<compile_context>
chip_gen: v5e
topology: v5e:2x2
jax: 0.10.0
libtpu: 0.0.40
codegen_flags: <defaults>
</compile_context>

<pallas_src>
import jax
import jax.numpy as jnp
from jax.experimental import pallas as pl
from jax.experimental.pallas import tpu as pltpu

EPS = 1e-5      # nn.BatchNorm1d default eps
ALPHA = 0.2     # LeakyReLU negative slope

D_IN, D1, D2, D3, D_OUT = 100, 256, 512, 1024, 784
D_IN_PAD = 128      # contraction dim padded to a full lane tile
D_OUT_PAD = 896     # 7 * 128 — lane-dense, tile-aligned output / w4 columns


def _leaky_relu(x):
    # max(x, 0.2*x) == LeakyReLU(0.2) for 0 < alpha < 1.
    return jnp.maximum(x, ALPHA * x)


def _batchnorm_train(x, gamma, beta):
    """Training-mode BatchNorm1d, single-pass batch statistics.

    mean = E[x], var = max(E[x^2] - mean^2, 0) (biased), gamma folded into the
    scale:  y = x * (gamma * rsqrt(var + eps)) + (beta - mean * scale)
    """
    inv_b = 1.0 / x.shape[0]
    s1 = jnp.sum(x, axis=0, keepdims=True)
    s2 = jnp.sum(x * x, axis=0, keepdims=True)
    mean = s1 * inv_b
    var = jnp.maximum(s2 * inv_b - mean * mean, 0.0)   # clamp: fp rounding guard
    scale = gamma * jax.lax.rsqrt(var + EPS)           # EUP rsqrt, (1, F)
    shift = beta - mean * scale                        # (1, F)
    return x * scale + shift


def generator_kernel(x_ref,
                     w1_ref, p1_ref,
                     w2_ref, p2_ref,
                     w3_hbm, p3_ref,
                     w4_hbm, p4_ref,
                     out_ref,
                     w3_vmem, w4_vmem, sem):
    # Kick off the big int8 weight fetches immediately; they overlap with
    # block-1/2 compute and are waited on right before their dot.
    cp3 = pltpu.make_async_copy(w3_hbm, w3_vmem, sem.at[0])
    cp4 = pltpu.make_async_copy(w4_hbm, w4_vmem, sem.at[1])
    cp3.start()
    cp4.start()

    # Latent input (B, 128) bf16 — lanes 100..127 are zero padding (exact dot).
    x = x_ref[...]

    # Block 1: Linear(100,256) -> LeakyReLU -> BatchNorm
    h = jnp.dot(x, w1_ref[...].astype(jnp.bfloat16),
                preferred_element_type=jnp.float32)
    h = h * p1_ref[0:1, :] + p1_ref[1:2, :]            # dequant scale + bias
    h = _leaky_relu(h)
    h = _batchnorm_train(h, p1_ref[2:3, :], p1_ref[3:4, :])

    # Block 2: Linear(256,512) -> LeakyReLU -> BatchNorm
    h = jnp.dot(h.astype(jnp.bfloat16), w2_ref[...].astype(jnp.bfloat16),
                preferred_element_type=jnp.float32)
    h = h * p2_ref[0:1, :] + p2_ref[1:2, :]
    h = _leaky_relu(h)
    h = _batchnorm_train(h, p2_ref[2:3, :], p2_ref[3:4, :])

    # Block 3: Linear(512,1024) -> LeakyReLU -> BatchNorm
    cp3.wait()
    h = jnp.dot(h.astype(jnp.bfloat16), w3_vmem[...].astype(jnp.bfloat16),
                preferred_element_type=jnp.float32)
    h = h * p3_ref[0:1, :] + p3_ref[1:2, :]
    h = _leaky_relu(h)
    h = _batchnorm_train(h, p3_ref[2:3, :], p3_ref[3:4, :])

    # Output head: Linear(1024,784) -> Tanh  (lanes 784:896 are zero columns)
    cp4.wait()
    o = jnp.dot(h.astype(jnp.bfloat16), w4_vmem[...].astype(jnp.bfloat16),
                preferred_element_type=jnp.float32)
    o = o * p4_ref[0:1, :] + p4_ref[1:2, :]
    out_ref[...] = jnp.tanh(o)


def init_params(key):
    """Deterministic PyTorch-style init: U(-1/sqrt(fan_in), 1/sqrt(fan_in))
    for Linear weight & bias; ones/zeros for BatchNorm gamma/beta."""
    dims = [(D_IN, D1), (D1, D2), (D2, D3), (D3, D_OUT)]
    params = []
    keys = jax.random.split(key, 2 * len(dims))
    for li, (fi, fo) in enumerate(dims):
        bound = 1.0 / (fi ** 0.5)
        w = jax.random.uniform(keys[2 * li], (fi, fo), jnp.float32, -bound, bound)
        b = jax.random.uniform(keys[2 * li + 1], (1, fo), jnp.float32, -bound, bound)
        params.append((w, b))
    bn = [(jnp.ones((1, d), jnp.float32), jnp.zeros((1, d), jnp.float32))
          for d in (D1, D2, D3)]
    return params, bn


def _quantize_int8(w):
    """Symmetric per-output-channel int8 quantization.  Returns (q, scale)."""
    maxabs = jnp.max(jnp.abs(w), axis=0, keepdims=True)          # (1, F_out)
    scale = jnp.where(maxabs > 0, maxabs / 127.0, 1.0)           # 0-col guard
    q = jnp.clip(jnp.round(w / scale), -127.0, 127.0).astype(jnp.int8)
    return q, scale.astype(jnp.float32)


def prepare_device_params(params, bn):
    """One-time layout/dtype prep: int8 weights + packed (4,N) per-layer params."""
    (w1, b1), (w2, b2), (w3, b3), (w4, b4) = params
    (g1, be1), (g2, be2), (g3, be3) = bn

    w1p = jnp.pad(w1, ((0, D_IN_PAD - D_IN), (0, 0)))            # (128, 256)
    w4p = jnp.pad(w4, ((0, 0), (0, D_OUT_PAD - D_OUT)))          # (1024, 896)
    b4p = jnp.pad(b4, ((0, 0), (0, D_OUT_PAD - D_OUT)))          # (1, 896)

    w1q, s1 = _quantize_int8(w1p)
    w2q, s2 = _quantize_int8(w2)
    w3q, s3 = _quantize_int8(w3)
    w4q, s4 = _quantize_int8(w4p)

    # Packed small params: rows = [quant_scale, bias, gamma, beta].
    p1 = jnp.concatenate([s1, b1, g1, be1], axis=0)              # (4, 256)
    p2 = jnp.concatenate([s2, b2, g2, be2], axis=0)              # (4, 512)
    p3 = jnp.concatenate([s3, b3, g3, be3], axis=0)              # (4, 1024)
    p4 = jnp.concatenate([s4, b4p], axis=0)                      # (2, 896)

    return (w1q, p1, w2q, p2, w3q, p3, w4q, p4)


@jax.jit
def generator_forward(x, dev_params):
    # x may be any shape (B, ...) with 100 elements per sample (mirrors x.view).
    B = x.shape[0]
    x2d = x.reshape(B, D_IN).astype(jnp.float32)
    # Pad 100 -> 128 and cast to bf16 here (halves input DMA, drops in-kernel cast).
    x_pad = jnp.pad(x2d, ((0, 0), (0, D_IN_PAD - D_IN))).astype(jnp.bfloat16)

    w1q, p1, w2q, p2, w3q, p3, w4q, p4 = dev_params
    args = (x_pad, w1q, p1, w2q, p2, w3q, p3, w4q, p4)

    vmem_spec = pl.BlockSpec(memory_space=pltpu.MemorySpace.VMEM)
    hbm_spec = pl.BlockSpec(memory_space=pl.ANY)   # raw HBM ref, manual DMA

    out_pad = pl.pallas_call(
        generator_kernel,
        out_shape=jax.ShapeDtypeStruct((B, D_OUT_PAD), jnp.float32),
        in_specs=[
            vmem_spec,   # x
            vmem_spec,   # w1 (int8, small)
            vmem_spec,   # p1
            vmem_spec,   # w2 (int8)
            vmem_spec,   # p2
            hbm_spec,    # w3 (int8, manual overlapped DMA)
            vmem_spec,   # p3
            hbm_spec,    # w4 (int8, manual overlapped DMA)
            vmem_spec,   # p4
        ],
        out_specs=vmem_spec,
        scratch_shapes=[
            pltpu.VMEM((D2, D3), jnp.int8),          # w3 landing buffer
            pltpu.VMEM((D3, D_OUT_PAD), jnp.int8),   # w4 landing buffer
            pltpu.SemaphoreType.DMA((2,)),
        ],
        compiler_params=pltpu.CompilerParams(vmem_limit_bytes=24 << 20),
    )(*args)

    # Slice back to the logical 784 output features (fused inside this jit).
    return out_pad[:, :D_OUT]

    # TODO(synk): for bulk sampling / large batches add a batch-chunk grid axis
    # marked "parallel" (uses both v7x TCs, weights resident via constant
    # index_maps) with cross-chunk BN partial sums for exact full-batch stats.


if __name__ == "__main__":
    key = jax.random.PRNGKey(0)
    pkey, xkey = jax.random.split(key)
    params, bn = init_params(pkey)
    dev_params = prepare_device_params(params, bn)

    B = 8
    x = jax.random.normal(xkey, (B, D_IN), dtype=jnp.float32)  # latent z

    out = generator_forward(x, dev_params)
    out = jax.block_until_ready(out)
    assert out.shape == (B, D_OUT), out.shape
    assert bool(jnp.all(jnp.isfinite(out)))
    assert bool(jnp.all(jnp.abs(out) <= 1.0))  # tanh range
    print("KERNEL_OK")
</pallas_src>

<mosaic_0001>
module attributes {stable_mosaic.version = 11 : i64} {
  func.func @generator_kernel(%arg0: memref<8x128xbf16, #tpu.memory_space<vmem>>, %arg1: memref<128x256xi8, #tpu.memory_space<vmem>>, %arg2: memref<4x256xf32, #tpu.memory_space<vmem>>, %arg3: memref<256x512xi8, #tpu.memory_space<vmem>>, %arg4: memref<4x512xf32, #tpu.memory_space<vmem>>, %arg5: memref<512x1024xi8, #tpu.memory_space<any>>, %arg6: memref<4x1024xf32, #tpu.memory_space<vmem>>, %arg7: memref<1024x896xi8, #tpu.memory_space<any>>, %arg8: memref<2x896xf32, #tpu.memory_space<vmem>>, %arg9: memref<8x896xf32, #tpu.memory_space<vmem>>, %arg10: memref<512x1024xi8, #tpu.memory_space<vmem>>, %arg11: memref<1024x896xi8, #tpu.memory_space<vmem>>, %arg12: memref<2x!tpu.dma_semaphore, #tpu.memory_space<semaphore_mem>>) attributes {dimension_semantics = [], scalar_prefetch = 0 : i64, scratch_operands = 3 : i64, tpu.core_type = #tpu.core_type<tc>} {
    %c0_i32 = arith.constant 0 : i32
    %0 = tpu.memref_slice %arg12[%c0_i32] : memref<2x!tpu.dma_semaphore, #tpu.memory_space<semaphore_mem>> -> memref<1x!tpu.dma_semaphore, #tpu.memory_space<semaphore_mem>>
    %1 = tpu.memref_squeeze %0 : memref<1x!tpu.dma_semaphore, #tpu.memory_space<semaphore_mem>> -> memref<!tpu.dma_semaphore, #tpu.memory_space<semaphore_mem>>
    tpu.enqueue_dma source(%arg5 : memref<512x1024xi8, #tpu.memory_space<any>>) target(%arg10 : memref<512x1024xi8, #tpu.memory_space<vmem>>) target_semaphore(%1 : memref<!tpu.dma_semaphore, #tpu.memory_space<semaphore_mem>>)
    %c1_i32 = arith.constant 1 : i32
    %2 = tpu.memref_slice %arg12[%c1_i32] : memref<2x!tpu.dma_semaphore, #tpu.memory_space<semaphore_mem>> -> memref<1x!tpu.dma_semaphore, #tpu.memory_space<semaphore_mem>>
    %3 = tpu.memref_squeeze %2 : memref<1x!tpu.dma_semaphore, #tpu.memory_space<semaphore_mem>> -> memref<!tpu.dma_semaphore, #tpu.memory_space<semaphore_mem>>
    tpu.enqueue_dma source(%arg7 : memref<1024x896xi8, #tpu.memory_space<any>>) target(%arg11 : memref<1024x896xi8, #tpu.memory_space<vmem>>) target_semaphore(%3 : memref<!tpu.dma_semaphore, #tpu.memory_space<semaphore_mem>>)
    %c0 = arith.constant 0 : index
    %c0_0 = arith.constant 0 : index
    %4 = vector.load %arg0[%c0, %c0_0] : memref<8x128xbf16, #tpu.memory_space<vmem>>, vector<8x128xbf16>
    %c0_1 = arith.constant 0 : index
    %c0_2 = arith.constant 0 : index
    %5 = vector.load %arg1[%c0_1, %c0_2] : memref<128x256xi8, #tpu.memory_space<vmem>>, vector<128x256xi8>
    %6 = arith.sitofp %5 : vector<128x256xi8> to vector<128x256xbf16>
    %cst = arith.constant dense<0.000000e+00> : vector<8x256xf32>
    %7 = tpu.matmul %4, %6, %cst {dimension_numbers = #tpu.dot_dimension_numbers<[1], [0], [0], [1], [0, 0, 1, 1], [], []>} : vector<8x128xbf16>, vector<128x256xbf16>, vector<8x256xf32> -> vector<8x256xf32>
    %c0_3 = arith.constant 0 : index
    %c0_4 = arith.constant 0 : index
    %8 = vector.load %arg2[%c0_3, %c0_4] : memref<4x256xf32, #tpu.memory_space<vmem>>, vector<1x256xf32>
    %9 = vector.broadcast %8 : vector<1x256xf32> to vector<8x256xf32>
    %10 = arith.mulf %7, %9 : vector<8x256xf32>
    %c1 = arith.constant 1 : index
    %c0_5 = arith.constant 0 : index
    %11 = vector.load %arg2[%c1, %c0_5] : memref<4x256xf32, #tpu.memory_space<vmem>>, vector<1x256xf32>
    %12 = vector.broadcast %11 : vector<1x256xf32> to vector<8x256xf32>
    %13 = arith.addf %10, %12 : vector<8x256xf32>
    %cst_6 = arith.constant 2.000000e-01 : f32
    %14 = vector.broadcast %cst_6 : f32 to vector<8x256xf32>
    %15 = arith.mulf %14, %13 : vector<8x256xf32>
    %16 = arith.maximumf %13, %15 : vector<8x256xf32>
    %c2 = arith.constant 2 : index
    %c0_7 = arith.constant 0 : index
    %17 = vector.load %arg2[%c2, %c0_7] : memref<4x256xf32, #tpu.memory_space<vmem>>, vector<1x256xf32>
    %c3 = arith.constant 3 : index
    %c0_8 = arith.constant 0 : index
    %18 = vector.load %arg2[%c3, %c0_8] : memref<4x256xf32, #tpu.memory_space<vmem>>, vector<1x256xf32>
    %cst_9 = arith.constant dense<0.000000e+00> : vector<256xf32>
    %19 = vector.multi_reduction <add>, %16, %cst_9 [0] : vector<8x256xf32> to vector<256xf32>
    %20 = vector.shape_cast %19 : vector<256xf32> to vector<1x256xf32>
    %21 = arith.mulf %16, %16 : vector<8x256xf32>
    %cst_10 = arith.constant dense<0.000000e+00> : vector<256xf32>
    %22 = vector.multi_reduction <add>, %21, %cst_10 [0] : vector<8x256xf32> to vector<256xf32>
    %23 = vector.shape_cast %22 : vector<256xf32> to vector<1x256xf32>
    %cst_11 = arith.constant 1.250000e-01 : f32
    %24 = vector.broadcast %cst_11 : f32 to vector<1x256xf32>
    %25 = arith.mulf %20, %24 : vector<1x256xf32>
    %cst_12 = arith.constant 1.250000e-01 : f32
    %26 = vector.broadcast %cst_12 : f32 to vector<1x256xf32>
    %27 = arith.mulf %23, %26 : vector<1x256xf32>
    %28 = arith.mulf %25, %25 : vector<1x256xf32>
    %29 = arith.subf %27, %28 : vector<1x256xf32>
    %cst_13 = arith.constant 0.000000e+00 : f32
    %30 = vector.broadcast %cst_13 : f32 to vector<1x256xf32>
    %31 = arith.maximumf %29, %30 : vector<1x256xf32>
    %cst_14 = arith.constant 9.99999974E-6 : f32
    %32 = vector.broadcast %cst_14 : f32 to vector<1x256xf32>
    %33 = arith.addf %31, %32 : vector<1x256xf32>
    %34 = math.rsqrt %33 : vector<1x256xf32>
    %35 = arith.mulf %17, %34 : vector<1x256xf32>
    %36 = arith.mulf %25, %35 : vector<1x256xf32>
    %37 = arith.subf %18, %36 : vector<1x256xf32>
    %38 = vector.broadcast %35 : vector<1x256xf32> to vector<8x256xf32>
    %39 = arith.mulf %16, %38 : vector<8x256xf32>
    %40 = vector.broadcast %37 : vector<1x256xf32> to vector<8x256xf32>
    %41 = arith.addf %39, %40 : vector<8x256xf32>
    %42 = arith.truncf %41 : vector<8x256xf32> to vector<8x256xbf16>
    %c0_15 = arith.constant 0 : index
    %c0_16 = arith.constant 0 : index
    %43 = vector.load %arg3[%c0_15, %c0_16] : memref<256x512xi8, #tpu.memory_space<vmem>>, vector<256x512xi8>
    %44 = arith.sitofp %43 : vector<256x512xi8> to vector<256x512xbf16>
    %cst_17 = arith.constant dense<0.000000e+00> : vector<8x512xf32>
    %45 = tpu.matmul %42, %44, %cst_17 {dimension_numbers = #tpu.dot_dimension_numbers<[1], [0], [0], [1], [0, 0, 1, 1], [], []>} : vector<8x256xbf16>, vector<256x512xbf16>, vector<8x512xf32> -> vector<8x512xf32>
    %c0_18 = arith.constant 0 : index
    %c0_19 = arith.constant 0 : index
    %46 = vector.load %arg4[%c0_18, %c0_19] : memref<4x512xf32, #tpu.memory_space<vmem>>, vector<1x512xf32>
    %47 = vector.broadcast %46 : vector<1x512xf32> to vector<8x512xf32>
    %48 = arith.mulf %45, %47 : vector<8x512xf32>
    %c1_20 = arith.constant 1 : index
    %c0_21 = arith.constant 0 : index
    %49 = vector.load %arg4[%c1_20, %c0_21] : memref<4x512xf32, #tpu.memory_space<vmem>>, vector<1x512xf32>
    %50 = vector.broadcast %49 : vector<1x512xf32> to vector<8x512xf32>
    %51 = arith.addf %48, %50 : vector<8x512xf32>
    %cst_22 = arith.constant 2.000000e-01 : f32
    %52 = vector.broadcast %cst_22 : f32 to vector<8x512xf32>
    %53 = arith.mulf %52, %51 : vector<8x512xf32>
    %54 = arith.maximumf %51, %53 : vector<8x512xf32>
    %c2_23 = arith.constant 2 : index
    %c0_24 = arith.constant 0 : index
    %55 = vector.load %arg4[%c2_23, %c0_24] : memref<4x512xf32, #tpu.memory_space<vmem>>, vector<1x512xf32>
    %c3_25 = arith.constant 3 : index
    %c0_26 = arith.constant 0 : index
    %56 = vector.load %arg4[%c3_25, %c0_26] : memref<4x512xf32, #tpu.memory_space<vmem>>, vector<1x512xf32>
    %cst_27 = arith.constant dense<0.000000e+00> : vector<512xf32>
    %57 = vector.multi_reduction <add>, %54, %cst_27 [0] : vector<8x512xf32> to vector<512xf32>
    %58 = vector.shape_cast %57 : vector<512xf32> to vector<1x512xf32>
    %59 = arith.mulf %54, %54 : vector<8x512xf32>
    %cst_28 = arith.constant dense<0.000000e+00> : vector<512xf32>
    %60 = vector.multi_reduction <add>, %59, %cst_28 [0] : vector<8x512xf32> to vector<512xf32>
    %61 = vector.shape_cast %60 : vector<512xf32> to vector<1x512xf32>
    %cst_29 = arith.constant 1.250000e-01 : f32
    %62 = vector.broadcast %cst_29 : f32 to vector<1x512xf32>
    %63 = arith.mulf %58, %62 : vector<1x512xf32>
    %cst_30 = arith.constant 1.250000e-01 : f32
    %64 = vector.broadcast %cst_30 : f32 to vector<1x512xf32>
    %65 = arith.mulf %61, %64 : vector<1x512xf32>
    %66 = arith.mulf %63, %63 : vector<1x512xf32>
    %67 = arith.subf %65, %66 : vector<1x512xf32>
    %cst_31 = arith.constant 0.000000e+00 : f32
    %68 = vector.broadcast %cst_31 : f32 to vector<1x512xf32>
    %69 = arith.maximumf %67, %68 : vector<1x512xf32>
    %cst_32 = arith.constant 9.99999974E-6 : f32
    %70 = vector.broadcast %cst_32 : f32 to vector<1x512xf32>
    %71 = arith.addf %69, %70 : vector<1x512xf32>
    %72 = math.rsqrt %71 : vector<1x512xf32>
    %73 = arith.mulf %55, %72 : vector<1x512xf32>
    %74 = arith.mulf %63, %73 : vector<1x512xf32>
    %75 = arith.subf %56, %74 : vector<1x512xf32>
    %76 = vector.broadcast %73 : vector<1x512xf32> to vector<8x512xf32>
    %77 = arith.mulf %54, %76 : vector<8x512xf32>
    %78 = vector.broadcast %75 : vector<1x512xf32> to vector<8x512xf32>
    %79 = arith.addf %77, %78 : vector<8x512xf32>
    %c0_i32_33 = arith.constant 0 : i32
    %80 = tpu.memref_slice %arg12[%c0_i32_33] : memref<2x!tpu.dma_semaphore, #tpu.memory_space<semaphore_mem>> -> memref<1x!tpu.dma_semaphore, #tpu.memory_space<semaphore_mem>>
    %81 = tpu.memref_squeeze %80 : memref<1x!tpu.dma_semaphore, #tpu.memory_space<semaphore_mem>> -> memref<!tpu.dma_semaphore, #tpu.memory_space<semaphore_mem>>
    tpu.wait_dma2 semaphore(%81 : memref<!tpu.dma_semaphore, #tpu.memory_space<semaphore_mem>>) src(%arg5 : memref<512x1024xi8, #tpu.memory_space<any>>) dst(%arg10 : memref<512x1024xi8, #tpu.memory_space<vmem>>)
    %82 = arith.truncf %79 : vector<8x512xf32> to vector<8x512xbf16>
    %c0_34 = arith.constant 0 : index
    %c0_35 = arith.constant 0 : index
    %83 = vector.load %arg10[%c0_34, %c0_35] : memref<512x1024xi8, #tpu.memory_space<vmem>>, vector<512x1024xi8>
    %84 = arith.sitofp %83 : vector<512x1024xi8> to vector<512x1024xbf16>
    %cst_36 = arith.constant dense<0.000000e+00> : vector<8x1024xf32>
    %85 = tpu.matmul %82, %84, %cst_36 {dimension_numbers = #tpu.dot_dimension_numbers<[1], [0], [0], [1], [0, 0, 1, 1], [], []>} : vector<8x512xbf16>, vector<512x1024xbf16>, vector<8x1024xf32> -> vector<8x1024xf32>
    %c0_37 = arith.constant 0 : index
    %c0_38 = arith.constant 0 : index
    %86 = vector.load %arg6[%c0_37, %c0_38] : memref<4x1024xf32, #tpu.memory_space<vmem>>, vector<1x1024xf32>
    %87 = vector.broadcast %86 : vector<1x1024xf32> to vector<8x1024xf32>
    %88 = arith.mulf %85, %87 : vector<8x1024xf32>
    %c1_39 = arith.constant 1 : index
    %c0_40 = arith.constant 0 : index
    %89 = vector.load %arg6[%c1_39, %c0_40] : memref<4x1024xf32, #tpu.memory_space<vmem>>, vector<1x1024xf32>
    %90 = vector.broadcast %89 : vector<1x1024xf32> to vector<8x1024xf32>
    %91 = arith.addf %88, %90 : vector<8x1024xf32>
    %cst_41 = arith.constant 2.000000e-01 : f32
    %92 = vector.broadcast %cst_41 : f32 to vector<8x1024xf32>
    %93 = arith.mulf %92, %91 : vector<8x1024xf32>
    %94 = arith.maximumf %91, %93 : vector<8x1024xf32>
    %c2_42 = arith.constant 2 : index
    %c0_43 = arith.constant 0 : index
    %95 = vector.load %arg6[%c2_42, %c0_43] : memref<4x1024xf32, #tpu.memory_space<vmem>>, vector<1x1024xf32>
    %c3_44 = arith.constant 3 : index
    %c0_45 = arith.constant 0 : index
    %96 = vector.load %arg6[%c3_44, %c0_45] : memref<4x1024xf32, #tpu.memory_space<vmem>>, vector<1x1024xf32>
    %cst_46 = arith.constant dense<0.000000e+00> : vector<1024xf32>
    %97 = vector.multi_reduction <add>, %94, %cst_46 [0] : vector<8x1024xf32> to vector<1024xf32>
    %98 = vector.shape_cast %97 : vector<1024xf32> to vector<1x1024xf32>
    %99 = arith.mulf %94, %94 : vector<8x1024xf32>
    %cst_47 = arith.constant dense<0.000000e+00> : vector<1024xf32>
    %100 = vector.multi_reduction <add>, %99, %cst_47 [0] : vector<8x1024xf32> to vector<1024xf32>
    %101 = vector.shape_cast %100 : vector<1024xf32> to vector<1x1024xf32>
    %cst_48 = arith.constant 1.250000e-01 : f32
    %102 = vector.broadcast %cst_48 : f32 to vector<1x1024xf32>
    %103 = arith.mulf %98, %102 : vector<1x1024xf32>
    %cst_49 = arith.constant 1.250000e-01 : f32
    %104 = vector.broadcast %cst_49 : f32 to vector<1x1024xf32>
    %105 = arith.mulf %101, %104 : vector<1x1024xf32>
    %106 = arith.mulf %103, %103 : vector<1x1024xf32>
    %107 = arith.subf %105, %106 : vector<1x1024xf32>
    %cst_50 = arith.constant 0.000000e+00 : f32
    %108 = vector.broadcast %cst_50 : f32 to vector<1x1024xf32>
    %109 = arith.maximumf %107, %108 : vector<1x1024xf32>
    %cst_51 = arith.constant 9.99999974E-6 : f32
    %110 = vector.broadcast %cst_51 : f32 to vector<1x1024xf32>
    %111 = arith.addf %109, %110 : vector<1x1024xf32>
    %112 = math.rsqrt %111 : vector<1x1024xf32>
    %113 = arith.mulf %95, %112 : vector<1x1024xf32>
    %114 = arith.mulf %103, %113 : vector<1x1024xf32>
    %115 = arith.subf %96, %114 : vector<1x1024xf32>
    %116 = vector.broadcast %113 : vector<1x1024xf32> to vector<8x1024xf32>
    %117 = arith.mulf %94, %116 : vector<8x1024xf32>
    %118 = vector.broadcast %115 : vector<1x1024xf32> to vector<8x1024xf32>
    %119 = arith.addf %117, %118 : vector<8x1024xf32>
    %c1_i32_52 = arith.constant 1 : i32
    %120 = tpu.memref_slice %arg12[%c1_i32_52] : memref<2x!tpu.dma_semaphore, #tpu.memory_space<semaphore_mem>> -> memref<1x!tpu.dma_semaphore, #tpu.memory_space<semaphore_mem>>
    %121 = tpu.memref_squeeze %120 : memref<1x!tpu.dma_semaphore, #tpu.memory_space<semaphore_mem>> -> memref<!tpu.dma_semaphore, #tpu.memory_space<semaphore_mem>>
    tpu.wait_dma2 semaphore(%121 : memref<!tpu.dma_semaphore, #tpu.memory_space<semaphore_mem>>) src(%arg7 : memref<1024x896xi8, #tpu.memory_space<any>>) dst(%arg11 : memref<1024x896xi8, #tpu.memory_space<vmem>>)
    %122 = arith.truncf %119 : vector<8x1024xf32> to vector<8x1024xbf16>
    %c0_53 = arith.constant 0 : index
    %c0_54 = arith.constant 0 : index
    %123 = vector.load %arg11[%c0_53, %c0_54] : memref<1024x896xi8, #tpu.memory_space<vmem>>, vector<1024x896xi8>
    %124 = arith.sitofp %123 : vector<1024x896xi8> to vector<1024x896xbf16>
    %cst_55 = arith.constant dense<0.000000e+00> : vector<8x896xf32>
    %125 = tpu.matmul %122, %124, %cst_55 {dimension_numbers = #tpu.dot_dimension_numbers<[1], [0], [0], [1], [0, 0, 1, 1], [], []>} : vector<8x1024xbf16>, vector<1024x896xbf16>, vector<8x896xf32> -> vector<8x896xf32>
    %c0_56 = arith.constant 0 : index
    %c0_57 = arith.constant 0 : index
    %126 = vector.load %arg8[%c0_56, %c0_57] : memref<2x896xf32, #tpu.memory_space<vmem>>, vector<1x896xf32>
    %127 = vector.broadcast %126 : vector<1x896xf32> to vector<8x896xf32>
    %128 = arith.mulf %125, %127 : vector<8x896xf32>
    %c1_58 = arith.constant 1 : index
    %c0_59 = arith.constant 0 : index
    %129 = vector.load %arg8[%c1_58, %c0_59] : memref<2x896xf32, #tpu.memory_space<vmem>>, vector<1x896xf32>
    %130 = vector.broadcast %129 : vector<1x896xf32> to vector<8x896xf32>
    %131 = arith.addf %128, %130 : vector<8x896xf32>
    %132 = math.tanh %131 : vector<8x896xf32>
    %c0_60 = arith.constant 0 : index
    %c0_61 = arith.constant 0 : index
    %133 = vector.load %arg9[%c0_60, %c0_61] : memref<8x896xf32, #tpu.memory_space<vmem>>, vector<8x896xf32>
    tpu.vector_store %arg9[%c0_60, %c0_61], %132 {strides = array<i32>} : memref<8x896xf32, #tpu.memory_space<vmem>>, vector<8x896xf32>,
    return
  }
}

</mosaic_0001>

<llo_original>
// kernel: generator_forward.1
$region0: #{generator_forward.1}
  #allocation0 [shape = 'u32[]', space=smem, size = 0x4, offset = 0x4, fixed_abs, tag = 'smem constant byte address 0x4 - core index']
  #allocation1 [shape = 'u32[72,128]{1,0:T(1,128)}', space=vmem, size = 0x9000, scoped, tag = 'internal scratch']
  #allocation2 [shape = 's8[512,1024]{1,0:T(32,128)(4,1)}', space=vmem, size = 0x80000, scoped, tag = 'scratch operand']
  #allocation3 [shape = 's8[1024,896]{1,0:T(32,128)(4,1)}', space=vmem, size = 0xe0000, scoped, tag = 'scratch operand']
  #allocation4 [shape = 's32[2]{0}', space=sflag, size = 0x8, scoped, tag = 'scratch operand']
  #allocation14 [shape = 's32[]', space=sflag, size = 0x4, offset = 0, fixed_abs, tag = 'sflag constant byte address 0x0 - dummy sync flag']
  #allocation15 [shape = 's32[]', space=sflag, size = 0x4, offset = 0, fixed_abs, tag = 'sflag constant byte address 0x0 - dummy sync flag']
  #allocation16 [shape = 'u32[]', space=smem, size = 0x4, offset = 0x44, fixed_abs, tag = 'smem constant byte address 0x44 - assertion arg 0']
  #allocation17 [shape = 'u32[]', space=smem, size = 0x4, offset = 0x48, fixed_abs, tag = 'smem constant byte address 0x48 - assertion arg 1']
  #allocation18 [shape = 's32[]', space=sflag, size = 0x4, offset = 0, fixed_abs, tag = 'sflag constant byte address 0x0 - dummy sync flag']
  #allocation19 [shape = 's32[]', space=sflag, size = 0x4, offset = 0, fixed_abs, tag = 'sflag constant byte address 0x0 - dummy sync flag']
  %s0 = inlined_call_operand.vmem [shape: bf16[8,128], index: 0, kind: input, shape index: {}]
  %s1 = inlined_call_operand.hbm [shape: s8[128,256], index: 1, kind: input, shape index: {}]
  %s2 = inlined_call_operand.vmem [shape: f32[4,256], index: 2, kind: input, shape index: {}]
  %s3 = inlined_call_operand.hbm [shape: s8[256,512], index: 3, kind: input, shape index: {}]
  %s4 = inlined_call_operand.vmem [shape: f32[4,512], index: 4, kind: input, shape index: {}]
  %s5 = inlined_call_operand.hbm [shape: s8[512,1024], index: 5, kind: input, shape index: {}]
  %s6 = inlined_call_operand.hbm [shape: f32[4,1024], index: 6, kind: input, shape index: {}]
  %s7 = inlined_call_operand.hbm [shape: s8[1024,896], index: 7, kind: input, shape index: {}]
  %s8 = inlined_call_operand.hbm [shape: f32[2,896], index: 8, kind: input, shape index: {}]
  %s9 = inlined_call_operand.hbm [shape: f32[8,896], index: 9, kind: output, shape index: {}]
  %s10 = sld [smem:[#allocation0]]
  $region62: #{generator_forward.1} parent=0
    _
  %s12 = ssub.s32 1, %s10
  %s13 = scalar_select 0, %s12, %s10
  $region1: #{generator_forward.1} parent=0
    #allocation5 [shape = 'u8[32768]{0}', space=vmem, size = 0x8000, scoped, tag = 'input window, operand 1, single buffered']
    #allocation6 [shape = 's32[1]{0}', space=sflag, size = 0x4, scoped, tag = 'scoped memory for generator_forward.1']
    #allocation7 [shape = 's32[1]{0}', space=sflag, size = 0x4, scoped, tag = 'scoped memory for generator_forward.1']
    #allocation8 [shape = 'u8[131072]{0}', space=vmem, size = 0x20000, scoped, tag = 'input window, operand 3, single buffered']
    #allocation9 [shape = 's32[1]{0}', space=sflag, size = 0x4, scoped, tag = 'scoped memory for generator_forward.1']
    #allocation10 [shape = 'u8[16384]{0}', space=vmem, size = 0x4000, scoped, tag = 'input window, operand 6, single buffered']
    #allocation11 [shape = 'u8[7168]{0}', space=vmem, size = 0x1c00, scoped, tag = 'input window, operand 8, single buffered']
    #allocation12 [shape = 's32[1]{0}', space=sflag, size = 0x4, scoped, tag = 'scoped memory for generator_forward.1']
    #allocation13 [shape = 'u8[28672]{0}', space=vmem, size = 0x7000, scoped, tag = 'output window, operand 0, single buffered']
    %14 = vsyncpa [#allocation6], 0
    %15 = vsyncpa [#allocation9], 0
    %16 = vsyncpa [#allocation12], 0
    %17 = vsyncpa [#allocation7], 0
    // Predicated region
    $region2: #{generator_forward.1} parent=1 // pred_check
      _
    $region3: #{generator_forward.1} parent=1 // pred_check_branch
      %19 = sbr.rel (0) target = $region5
    $region4: #{generator_forward.1} parent=1 // pred_region
      _
    $region5: #{generator_forward.1} parent=1 // pred_fallthru
      _
    // Predicated region
    $region6: #{generator_forward.1} parent=1 // pred_check
      _
    $region7: #{generator_forward.1} parent=1 // pred_check_branch
      %21 = sbr.rel (0) target = $region9
    $region8: #{generator_forward.1} parent=1 // pred_region
      %23 = vsyncadd [#allocation6], 0
      %s24 = sshll.u32 %s1, 4
      %s25 = int_to_ptr.hbm [resolvable:$true] %s24
      %s26 = sshll.u32 [#allocation5], 4
      %s27 = int_to_ptr.vmem [resolvable:$true] %s26
      %32 = dma.hbm_to_vmem [thread:$0]  %s25, 1024, %s27, [#allocation6], 256, 256, 16
    $region9: #{generator_forward.1} parent=1 // pred_fallthru
      _
    // Predicated region
    $region10: #{generator_forward.1} parent=1 // pred_check
      _
    $region11: #{generator_forward.1} parent=1 // pred_check_branch
      %34 = sbr.rel (0) target = $region13
    $region12: #{generator_forward.1} parent=1 // pred_region
      _
    $region13: #{generator_forward.1} parent=1 // pred_fallthru
      _
    // Predicated region
    $region14: #{generator_forward.1} parent=1 // pred_check
      _
    $region15: #{generator_forward.1} parent=1 // pred_check_branch
      %36 = sbr.rel (0) target = $region17
    $region16: #{generator_forward.1} parent=1 // pred_region
      %38 = vsyncadd [#allocation9], 0
      %s39 = sshll.u32 %s3, 4
      %s40 = int_to_ptr.hbm [resolvable:$true] %s39
      %s41 = sshll.u32 [#allocation8], 4
      %s42 = int_to_ptr.vmem [resolvable:$true] %s41
      %47 = dma.hbm_to_vmem [thread:$0]  %s40, 4096, %s42, [#allocation9], 512, 512, 32
    $region17: #{generator_forward.1} parent=1 // pred_fallthru
      _
    // Predicated region
    $region18: #{generator_forward.1} parent=1 // pred_check
      _
    $region19: #{generator_forward.1} parent=1 // pred_check_branch
      %49 = sbr.rel (0) target = $region21
    $region20: #{generator_forward.1} parent=1 // pred_region
      _
    $region21: #{generator_forward.1} parent=1 // pred_fallthru
      _
    // Predicated region
    $region22: #{generator_forward.1} parent=1 // pred_check
      _
    $region23: #{generator_forward.1} parent=1 // pred_check_branch
      %51 = sbr.rel (0) target = $region25
    $region24: #{generator_forward.1} parent=1 // pred_region
      %53 = vsyncadd [#allocation9], 0
      %s55 = sshll.u32 %s6, 4
      %s56 = int_to_ptr.hbm [resolvable:$true] %s55
      %s57 = sshll.u32 [#allocation10], 4
      %s58 = int_to_ptr.vmem [resolvable:$true] %s57
      %60 = dma.hbm_to_vmem [thread:$0]  %s56, 512, %s58, [#allocation9]
    $region25: #{generator_forward.1} parent=1 // pred_fallthru
      _
    // Predicated region
    $region26: #{generator_forward.1} parent=1 // pred_check
      _
    $region27: #{generator_forward.1} parent=1 // pred_check_branch
      %62 = sbr.rel (0) target = $region29
    $region28: #{generator_forward.1} parent=1 // pred_region
      %64 = vsyncadd [#allocation12], 0
      %s66 = sshll.u32 %s8, 4
      %s67 = int_to_ptr.hbm [resolvable:$true] %s66
      %s68 = sshll.u32 [#allocation11], 4
      %s69 = int_to_ptr.vmem [resolvable:$true] %s68
      %71 = dma.hbm_to_vmem [thread:$0]  %s67, 224, %s69, [#allocation12]
    $region29: #{generator_forward.1} parent=1 // pred_fallthru
      _
    // Predicated region
    $region30: #{generator_forward.1} parent=1 // pred_check
      _
    $region31: #{generator_forward.1} parent=1 // pred_check_branch
      %73 = sbr.rel (0) target = $region33
    $region32: #{generator_forward.1} parent=1 // pred_region
      %75 = dma.done [#allocation6], 1024
    $region33: #{generator_forward.1} parent=1 // pred_fallthru
      _
    // Predicated region
    $region34: #{generator_forward.1} parent=1 // pred_check
      _
    $region35: #{generator_forward.1} parent=1 // pred_check_branch
      %77 = sbr.rel (0) target = $region37
    $region36: #{generator_forward.1} parent=1 // pred_region
      %79 = dma.done [#allocation9], 4096
    $region37: #{generator_forward.1} parent=1 // pred_fallthru
      _
    // Predicated region
    $region38: #{generator_forward.1} parent=1 // pred_check
      _
    $region39: #{generator_forward.1} parent=1 // pred_check_branch
      %81 = sbr.rel (0) target = $region41
    $region40: #{generator_forward.1} parent=1 // pred_region
      %83 = dma.done [#allocation9], 512
    $region41: #{generator_forward.1} parent=1 // pred_fallthru
      _
    // Predicated region
    $region42: #{generator_forward.1} parent=1 // pred_check
      _
    $region43: #{generator_forward.1} parent=1 // pred_check_branch
      %85 = sbr.rel (0) target = $region45
    $region44: #{generator_forward.1} parent=1 // pred_region
      %87 = dma.done [#allocation12], 224
    $region45: #{generator_forward.1} parent=1 // pred_fallthru
      _
    // Predicated region
    $region46: #{generator_forward.1} parent=1 // pred_check
      _
    $region47: #{generator_forward.1} parent=1 // pred_check_branch
      %89 = sbr.rel target = $region49
    $region48: #{generator_forward.1} parent=1 // pred_region
      %90 = sst [smem:[#allocation16]] [#allocation15]
      %91 = sst [smem:[#allocation17]] [#allocation14]
    $region49: #{generator_forward.1} parent=1 // pred_fallthru
      _
    %93 = shalt.err (0)
    %s95 = sshll.u32 %s5, 4
    %s96 = int_to_ptr.hbm [resolvable:$true] %s95
    %s97 = sshll.u32 [#allocation2], 4
    %s98 = int_to_ptr.vmem [resolvable:$true] %s97
    %100 = dma.hbm_to_vmem [thread:$0]  %s96, 16384, %s98, [#allocation4]
    %s101 = scalar_lea.sflag [#allocation4], 1
    // Predicated region
    $region50: #{generator_forward.1} parent=1 // pred_check
      _
    $region51: #{generator_forward.1} parent=1 // pred_check_branch
      %103 = sbr.rel target = $region53
    $region52: #{generator_forward.1} parent=1 // pred_region
      %104 = sst [smem:[#allocation16]] [#allocation19]
      %105 = sst [smem:[#allocation17]] [#allocation18]
    $region53: #{generator_forward.1} parent=1 // pred_fallthru
      _
    %107 = shalt.err (0)
    %s109 = sshll.u32 %s7, 4
    %s110 = int_to_ptr.hbm [resolvable:$true] %s109
    %s111 = sshll.u32 [#allocation3], 4
    %s112 = int_to_ptr.vmem [resolvable:$true] %s111
    %114 = dma.hbm_to_vmem [thread:$0]  %s110, 28672, %s112, %s101
    %v115 = vld [vmem:[%s0] sm:$0xf]
    %v116 = vld [vmem:[#allocation5] sm:$0xff]
    %v117 = vld [vmem:[#allocation5 + $0x8] sm:$0xff]
    %v118 = vld [vmem:[#allocation5 + $0x10] sm:$0xff]
    %v119 = vld [vmem:[#allocation5 + $0x18] sm:$0xff]
    %v120 = vld [vmem:[#allocation5 + $0x20] sm:$0xff]
    %v121 = vld [vmem:[#allocation5 + $0x28] sm:$0xff]
    %v122 = vld [vmem:[#allocation5 + $0x30] sm:$0xff]
    %v123 = vld [vmem:[#allocation5 + $0x38] sm:$0xff]
    %v124 = vunpack.c.0.s8 %v116
    %v125 = vunpack.c.0.s8 %v117
    %v126 = vunpack.c.1.s8 %v116
    %v127 = vunpack.c.1.s8 %v117
    %v128 = vunpack.c.2.s8 %v116
    %v129 = vunpack.c.2.s8 %v117
    %v130 = vunpack.c.3.s8 %v116
    %v131 = vunpack.c.3.s8 %v117
    %v132 = vunpack.c.0.s8 %v118
    %v133 = vunpack.c.0.s8 %v119
    %v134 = vunpack.c.1.s8 %v118
    %v135 = vunpack.c.1.s8 %v119
    %v136 = vunpack.c.2.s8 %v118
    %v137 = vunpack.c.2.s8 %v119
    %v138 = vunpack.c.3.s8 %v118
    %v139 = vunpack.c.3.s8 %v119
    %v140 = vunpack.c.0.s8 %v120
    %v141 = vunpack.c.0.s8 %v121
    %v142 = vunpack.c.1.s8 %v120
    %v143 = vunpack.c.1.s8 %v121
    %v144 = vunpack.c.2.s8 %v120
    %v145 = vunpack.c.2.s8 %v121
    %v146 = vunpack.c.3.s8 %v120
    %v147 = vunpack.c.3.s8 %v121
    %v148 = vunpack.c.0.s8 %v122
    %v149 = vunpack.c.0.s8 %v123
    %v150 = vunpack.c.1.s8 %v122
    %v151 = vunpack.c.1.s8 %v123
    %v152 = vunpack.c.2.s8 %v122
    %v153 = vunpack.c.2.s8 %v123
    %v154 = vunpack.c.3.s8 %v122
    %v155 = vunpack.c.3.s8 %v123
    %v156 = vcvt.s32.f32 %v124
    %v157 = vcvt.s32.f32 %v125
    %v158 = vcvt.s32.f32 %v126
    %v159 = vcvt.s32.f32 %v127
    %v160 = vcvt.s32.f32 %v128
    %v161 = vcvt.s32.f32 %v129
    %v162 = vcvt.s32.f32 %v130
    %v163 = vcvt.s32.f32 %v131
    %v164 = vcvt.s32.f32 %v132
    %v165 = vcvt.s32.f32 %v133
    %v166 = vcvt.s32.f32 %v134
    %v167 = vcvt.s32.f32 %v135
    %v168 = vcvt.s32.f32 %v136
    %v169 = vcvt.s32.f32 %v137
    %v170 = vcvt.s32.f32 %v138
    %v171 = vcvt.s32.f32 %v139
    %v172 = vcvt.s32.f32 %v140
    %v173 = vcvt.s32.f32 %v141
    %v174 = vcvt.s32.f32 %v142
    %v175 = vcvt.s32.f32 %v143
    %v176 = vcvt.s32.f32 %v144
    %v177 = vcvt.s32.f32 %v145
    %v178 = vcvt.s32.f32 %v146
    %v179 = vcvt.s32.f32 %v147
    %v180 = vcvt.s32.f32 %v148
    %v181 = vcvt.s32.f32 %v149
    %v182 = vcvt.s32.f32 %v150
    %v183 = vcvt.s32.f32 %v151
    %v184 = vcvt.s32.f32 %v152
    %v185 = vcvt.s32.f32 %v153
    %v186 = vcvt.s32.f32 %v154
    %v187 = vcvt.s32.f32 %v155
    %v188 = vpack.c.bf16 %v158, %v156
    %v189 = vpack.c.bf16 %v159, %v157
    %v190 = vpack.c.bf16 %v162, %v160
    %v191 = vpack.c.bf16 %v163, %v161
    %v192 = vpack.c.bf16 %v166, %v164
    %v193 = vpack.c.bf16 %v167, %v165
    %v194 = vpack.c.bf16 %v170, %v168
    %v195 = vpack.c.bf16 %v171, %v169
    %v196 = vpack.c.bf16 %v174, %v172
    %v197 = vpack.c.bf16 %v175, %v173
    %v198 = vpack.c.bf16 %v178, %v176
    %v199 = vpack.c.bf16 %v179, %v177
    %v200 = vpack.c.bf16 %v182, %v180
    %v201 = vpack.c.bf16 %v183, %v181
    %v202 = vpack.c.bf16 %v186, %v184
    %v203 = vpack.c.bf16 %v187, %v185
    %204 = vmatpush.bf16.msra.mxu0 %v202
    %205 = vmatpush.bf16.msra.mxu0 %v200
    %206 = vmatpush.bf16.msra.mxu0 %v198
    %207 = vmatpush.bf16.msra.mxu0 %v196
    %208 = vmatpush.bf16.msra.mxu0 %v194
    %209 = vmatpush.bf16.msra.mxu0 %v192
    %210 = vmatpush.bf16.msra.mxu0 %v190
    %211 = vmatpush.bf16.msra.mxu0 %v188
    %212 = vmatmul.bf16.gmra.mxu0 %v115
    %v213 = vpop.f32.mrf.mxu0
    %v214 = vadd.f32 0.0, %v213
    %v215 = vpop.f32.mrf.mxu0
    %216 = vdwg.mxu0
    %217 = vmatpush.bf16.msra.mxu0 %v203
    %218 = vmatpush.bf16.msra.mxu0 %v201
    %219 = vmatpush.bf16.msra.mxu0 %v199
    %220 = vmatpush.bf16.msra.mxu0 %v197
    %221 = vmatpush.bf16.msra.mxu0 %v195
    %222 = vmatpush.bf16.msra.mxu0 %v193
    %223 = vmatpush.bf16.msra.mxu0 %v191
    %224 = vmatpush.bf16.msra.mxu0 %v189
    %225 = vmatmul.bf16.gmra.mxu0 %v115
    %v226 = vpop.f32.mrf.mxu0
    %v227 = vadd.f32 0.0, %v226
    %v228 = vpop.f32.mrf.mxu0
    %229 = vdwg.mxu0
    %v230 = vld [vmem:[%s2] ss:$4 sm:$0x3]
    %v232 = vperm.slane %v230, 0
    %v233 = vperm.slane %v230, 1
    %v236 = vmul.f32 %v214, %v232
    %v237 = vmul.f32 %v227, %v233
    %s238 = scalar_lea.vmem %s2, 1
    %v239 = vld [vmem:[%s238] ss:$4 sm:$0x3]
    %v241 = vperm.slane %v239, 0
    %v242 = vperm.slane %v239, 1
    %v245 = vadd.f32 %v236, %v241
    %v246 = vadd.f32 %v237, %v242
    %v247 = vmul.f32 %v245, 0.2
    %v248 = vmul.f32 %v246, 0.2
    %v249 = vmax.f32 %v245, %v247
    %v250 = vmax.f32 %v246, %v248
    %s251 = scalar_lea.vmem %s2, 2
    %v252 = vld [vmem:[%s251] ss:$4 sm:$0x3]
    %s253 = scalar_lea.vmem %s2, 3
    %v254 = vld [vmem:[%s253] ss:$4 sm:$0x3]
    %v255 = vrot.slane %v249, 4
    %v256 = vadd.f32 %v249, %v255
    %v257 = vrot.slane %v256, 2
    %v258 = vadd.f32 %v256, %v257
    %v259 = vrot.slane %v258, 1
    %v260 = vadd.f32 %v258, %v259
    %v261 = vrot.slane %v250, 4
    %v262 = vadd.f32 %v250, %v261
    %v263 = vrot.slane %v262, 2
    %v264 = vadd.f32 %v262, %v263
    %v265 = vrot.slane %v264, 1
    %v266 = vadd.f32 %v264, %v265
    %v267 = vmul.f32 %v249, %v249
    %v268 = vmul.f32 %v250, %v250
    %v269 = vrot.slane %v267, 4
    %v270 = vadd.f32 %v267, %v269
    %v271 = vrot.slane %v270, 2
    %v272 = vadd.f32 %v270, %v271
    %v273 = vrot.slane %v272, 1
    %v274 = vadd.f32 %v272, %v273
    %v275 = vrot.slane %v268, 4
    %v276 = vadd.f32 %v268, %v275
    %v277 = vrot.slane %v276, 2
    %v278 = vadd.f32 %v276, %v277
    %v279 = vrot.slane %v278, 1
    %v280 = vadd.f32 %v278, %v279
    %v281 = vmul.f32 %v260, 0.125
    %v282 = vmul.f32 %v266, 0.125
    %v283 = vmul.f32 %v274, 0.125
    %v284 = vmul.f32 %v280, 0.125
    %v285 = vmul.f32 %v281, %v281
    %v286 = vmul.f32 %v282, %v282
    %v287 = vsub.f32 %v283, %v285
    %v288 = vsub.f32 %v284, %v286
    %v289 = vmax.f32 %v287, 0.0
    %v290 = vmax.f32 %v288, 0.0
    %v291 = vadd.f32 %v289, 1e-05
    %v292 = vadd.f32 %v290, 1e-05
    %v293 = vrsqrt.pop %v291
    %v294 = vmul.f32 %v293, %v291
    %v295 = vmul.f32 %v294, %v293
    %v296 = vmul.f32 0.5, %v295
    %v297 = vsub.f32 1.5, %v296
    %v298 = vmul.f32 %v293, %v297
    %vm299 = vweird.f32 %v291
    %vm300 = vweird.f32 %v293
    %vm301 = vmor %vm299, %vm300
    %v302 = vsel %vm301, %v293, %v298
    %v303 = vrsqrt.pop %v292
    %v304 = vmul.f32 %v303, %v292
    %v305 = vmul.f32 %v304, %v303
    %v306 = vmul.f32 0.5, %v305
    %v307 = vsub.f32 1.5, %v306
    %v308 = vmul.f32 %v303, %v307
    %vm309 = vweird.f32 %v292
    %vm310 = vweird.f32 %v303
    %vm311 = vmor %vm309, %vm310
    %v312 = vsel %vm311, %v303, %v308
    %v315 = vrot.slane %v312, 7
    %vm316 = vcmask 1040384
    %v317 = vsel %vm316, %v302, %v315
    %v319 = vmul.f32 %v252, %v317
    %v321 = vperm.slane %v319, 0
    %v322 = vperm.slane %v319, 1
    %v325 = vmul.f32 %v281, %v321
    %v326 = vmul.f32 %v282, %v322
    %v329 = vrot.slane %v326, 7
    %v330 = vsel %vm316, %v325, %v329
    %v332 = vsub.f32 %v254, %v330
    %v333 = vmul.f32 %v249, %v321
    %v334 = vmul.f32 %v250, %v322
    %v336 = vperm.slane %v332, 0
    %v337 = vperm.slane %v332, 1
    %v340 = vadd.f32 %v333, %v336
    %v341 = vadd.f32 %v334, %v337
    %v342 = vpack.c.bf16 %v340, %v340
    %v343 = vpack.c.bf16 %v341, %v341
    %v344 = vld [vmem:[#allocation8] sm:$0xff]
    %v345 = vld [vmem:[#allocation8 + $0x8] sm:$0xff]
    %v346 = vld [vmem:[#allocation8 + $0x10] sm:$0xff]
    %v347 = vld [vmem:[#allocation8 + $0x18] sm:$0xff]
    %v348 = vld [vmem:[#allocation8 + $0x20] sm:$0xff]
    %v349 = vld [vmem:[#allocation8 + $0x28] sm:$0xff]
    %v350 = vld [vmem:[#allocation8 + $0x30] sm:$0xff]
    %v351 = vld [vmem:[#allocation8 + $0x38] sm:$0xff]
    %v352 = vld [vmem:[#allocation8 + $0x40] sm:$0xff]
    %v353 = vld [vmem:[#allocation8 + $0x48] sm:$0xff]
    %v354 = vld [vmem:[#allocation8 + $0x50] sm:$0xff]
    %v355 = vld [vmem:[#allocation8 + $0x58] sm:$0xff]
    %v356 = vld [vmem:[#allocation8 + $0x60] sm:$0xff]
    %v357 = vld [vmem:[#allocation8 + $0x68] sm:$0xff]
    %v358 = vld [vmem:[#allocation8 + $0x70] sm:$0xff]
    %v359 = vld [vmem:[#allocation8 + $0x78] sm:$0xff]
    %v360 = vld [vmem:[#allocation8 + $0x80] sm:$0xff]
    %v361 = vld [vmem:[#allocation8 + $0x88] sm:$0xff]
    %v362 = vld [vmem:[#allocation8 + $0x90] sm:$0xff]
    %v363 = vld [vmem:[#allocation8 + $0x98] sm:$0xff]
    %v364 = vld [vmem:[#allocation8 + $0xa0] sm:$0xff]
    %v365 = vld [vmem:[#allocation8 + $0xa8] sm:$0xff]
    %v366 = vld [vmem:[#allocation8 + $0xb0] sm:$0xff]
    %v367 = vld [vmem:[#allocation8 + $0xb8] sm:$0xff]
    %v368 = vld [vmem:[#allocation8 + $0xc0] sm:$0xff]
    %v369 = vld [vmem:[#allocation8 + $0xc8] sm:$0xff]
    %v370 = vld [vmem:[#allocation8 + $0xd0] sm:$0xff]
    %v371 = vld [vmem:[#allocation8 + $0xd8] sm:$0xff]
    %v372 = vld [vmem:[#allocation8 + $0xe0] sm:$0xff]
    %v373 = vld [vmem:[#allocation8 + $0xe8] sm:$0xff]
    %v374 = vld [vmem:[#allocation8 + $0xf0] sm:$0xff]
    %v375 = vld [vmem:[#allocation8 + $0xf8] sm:$0xff]
    %v376 = vunpack.c.0.s8 %v344
    %v377 = vunpack.c.0.s8 %v345
    %v378 = vunpack.c.0.s8 %v346
    %v379 = vunpack.c.0.s8 %v347
    %v380 = vunpack.c.1.s8 %v344
    %v381 = vunpack.c.1.s8 %v345
    %v382 = vunpack.c.1.s8 %v346
    %v383 = vunpack.c.1.s8 %v347
    %v384 = vunpack.c.2.s8 %v344
    %v385 = vunpack.c.2.s8 %v345
    %v386 = vunpack.c.2.s8 %v346
    %v387 = vunpack.c.2.s8 %v347
    %v388 = vunpack.c.3.s8 %v344
    %v389 = vunpack.c.3.s8 %v345
    %v390 = vunpack.c.3.s8 %v346
    %v391 = vunpack.c.3.s8 %v347
    %v392 = vunpack.c.0.s8 %v348
    %v393 = vunpack.c.0.s8 %v349
    %v394 = vunpack.c.0.s8 %v350
    %v395 = vunpack.c.0.s8 %v351
    %v396 = vunpack.c.1.s8 %v348
    %v397 = vunpack.c.1.s8 %v349
    %v398 = vunpack.c.1.s8 %v350
    %v399 = vunpack.c.1.s8 %v351
    %v400 = vunpack.c.2.s8 %v348
    %v401 = vunpack.c.2.s8 %v349
    %v402 = vunpack.c.2.s8 %v350
    %v403 = vunpack.c.2.s8 %v351
    %v404 = vunpack.c.3.s8 %v348
    %v405 = vunpack.c.3.s8 %v349
    %v406 = vunpack.c.3.s8 %v350
    %v407 = vunpack.c.3.s8 %v351
    %v408 = vunpack.c.0.s8 %v352
    %v409 = vunpack.c.0.s8 %v353
    %v410 = vunpack.c.0.s8 %v354
    %v411 = vunpack.c.0.s8 %v355
    %v412 = vunpack.c.1.s8 %v352
    %v413 = vunpack.c.1.s8 %v353
    %v414 = vunpack.c.1.s8 %v354
    %v415 = vunpack.c.1.s8 %v355
    %v416 = vunpack.c.2.s8 %v352
    %v417 = vunpack.c.2.s8 %v353
    %v418 = vunpack.c.2.s8 %v354
    %v419 = vunpack.c.2.s8 %v355
    %v420 = vunpack.c.3.s8 %v352
    %v421 = vunpack.c.3.s8 %v353
    %v422 = vunpack.c.3.s8 %v354
    %v423 = vunpack.c.3.s8 %v355
    %v424 = vunpack.c.0.s8 %v356
    %v425 = vunpack.c.0.s8 %v357
    %v426 = vunpack.c.0.s8 %v358
    %v427 = vunpack.c.0.s8 %v359
    %v428 = vunpack.c.1.s8 %v356
    %v429 = vunpack.c.1.s8 %v357
    %v430 = vunpack.c.1.s8 %v358
    %v431 = vunpack.c.1.s8 %v359
    %v432 = vunpack.c.2.s8 %v356
    %v433 = vunpack.c.2.s8 %v357
    %v434 = vunpack.c.2.s8 %v358
    %v435 = vunpack.c.2.s8 %v359
    %v436 = vunpack.c.3.s8 %v356
    %v437 = vunpack.c.3.s8 %v357
    %v438 = vunpack.c.3.s8 %v358
    %v439 = vunpack.c.3.s8 %v359
    %v440 = vunpack.c.0.s8 %v360
    %v441 = vunpack.c.0.s8 %v361
    %v442 = vunpack.c.0.s8 %v362
    %v443 = vunpack.c.0.s8 %v363
    %v444 = vunpack.c.1.s8 %v360
    %v445 = vunpack.c.1.s8 %v361
    %v446 = vunpack.c.1.s8 %v362
    %v447 = vunpack.c.1.s8 %v363
    %v448 = vunpack.c.2.s8 %v360
    %v449 = vunpack.c.2.s8 %v361
    %v450 = vunpack.c.2.s8 %v362
    %v451 = vunpack.c.2.s8 %v363
    %v452 = vunpack.c.3.s8 %v360
    %v453 = vunpack.c.3.s8 %v361
    %v454 = vunpack.c.3.s8 %v362
    %v455 = vunpack.c.3.s8 %v363
    %v456 = vunpack.c.0.s8 %v364
    %v457 = vunpack.c.0.s8 %v365
    %v458 = vunpack.c.0.s8 %v366
    %v459 = vunpack.c.0.s8 %v367
    %v460 = vunpack.c.1.s8 %v364
    %v461 = vunpack.c.1.s8 %v365
    %v462 = vunpack.c.1.s8 %v366
    %v463 = vunpack.c.1.s8 %v367
    %v464 = vunpack.c.2.s8 %v364
    %v465 = vunpack.c.2.s8 %v365
    %v466 = vunpack.c.2.s8 %v366
    %v467 = vunpack.c.2.s8 %v367
    %v468 = vunpack.c.3.s8 %v364
    %v469 = vunpack.c.3.s8 %v365
    %v470 = vunpack.c.3.s8 %v366
    %v471 = vunpack.c.3.s8 %v367
    %v472 = vunpack.c.0.s8 %v368
    %v473 = vunpack.c.0.s8 %v369
    %v474 = vunpack.c.0.s8 %v370
    %v475 = vunpack.c.0.s8 %v371
    %v476 = vunpack.c.1.s8 %v368
    %v477 = vunpack.c.1.s8 %v369
    %v478 = vunpack.c.1.s8 %v370
    %v479 = vunpack.c.1.s8 %v371
    %v480 = vunpack.c.2.s8 %v368
    %v481 = vunpack.c.2.s8 %v369
    %v482 = vunpack.c.2.s8 %v370
    %v483 = vunpack.c.2.s8 %v371
    %v484 = vunpack.c.3.s8 %v368
    %v485 = vunpack.c.3.s8 %v369
    %v486 = vunpack.c.3.s8 %v370
    %v487 = vunpack.c.3.s8 %v371
    %v488 = vunpack.c.0.s8 %v372
    %v489 = vunpack.c.0.s8 %v373
    %v490 = vunpack.c.0.s8 %v374
    %v491 = vunpack.c.0.s8 %v375
    %v492 = vunpack.c.1.s8 %v372
    %v493 = vunpack.c.1.s8 %v373
    %v494 = vunpack.c.1.s8 %v374
    %v495 = vunpack.c.1.s8 %v375
    %v496 = vunpack.c.2.s8 %v372
    %v497 = vunpack.c.2.s8 %v373
    %v498 = vunpack.c.2.s8 %v374
    %v499 = vunpack.c.2.s8 %v375
    %v500 = vunpack.c.3.s8 %v372
    %v501 = vunpack.c.3.s8 %v373
    %v502 = vunpack.c.3.s8 %v374
    %v503 = vunpack.c.3.s8 %v375
    %v504 = vcvt.s32.f32 %v376
    %v505 = vcvt.s32.f32 %v377
    %v506 = vcvt.s32.f32 %v378
    %v507 = vcvt.s32.f32 %v379
    %v508 = vcvt.s32.f32 %v380
    %v509 = vcvt.s32.f32 %v381
    %v510 = vcvt.s32.f32 %v382
    %v511 = vcvt.s32.f32 %v383
    %v512 = vcvt.s32.f32 %v384
    %v513 = vcvt.s32.f32 %v385
    %v514 = vcvt.s32.f32 %v386
    %v515 = vcvt.s32.f32 %v387
    %v516 = vcvt.s32.f32 %v388
    %v517 = vcvt.s32.f32 %v389
    %v518 = vcvt.s32.f32 %v390
    %v519 = vcvt.s32.f32 %v391
    %v520 = vcvt.s32.f32 %v392
    %v521 = vcvt.s32.f32 %v393
    %v522 = vcvt.s32.f32 %v394
    %v523 = vcvt.s32.f32 %v395
    %v524 = vcvt.s32.f32 %v396
    %v525 = vcvt.s32.f32 %v397
    %v526 = vcvt.s32.f32 %v398
    %v527 = vcvt.s32.f32 %v399
    %v528 = vcvt.s32.f32 %v400
    %v529 = vcvt.s32.f32 %v401
    %v530 = vcvt.s32.f32 %v402
    %v531 = vcvt.s32.f32 %v403
    %v532 = vcvt.s32.f32 %v404
    %v533 = vcvt.s32.f32 %v405
    %v534 = vcvt.s32.f32 %v406
    %v535 = vcvt.s32.f32 %v407
    %v536 = vcvt.s32.f32 %v408
    %v537 = vcvt.s32.f32 %v409
    %v538 = vcvt.s32.f32 %v410
    %v539 = vcvt.s32.f32 %v411
    %v540 = vcvt.s32.f32 %v412
    %v541 = vcvt.s32.f32 %v413
    %v542 = vcvt.s32.f32 %v414
    %v543 = vcvt.s32.f32 %v415
    %v544 = vcvt.s32.f32 %v416
    %v545 = vcvt.s32.f32 %v417
    %v546 = vcvt.s32.f32 %v418
    %v547 = vcvt.s32.f32 %v419
    %v548 = vcvt.s32.f32 %v420
    %v549 = vcvt.s32.f32 %v421
    %v550 = vcvt.s32.f32 %v422
    %v551 = vcvt.s32.f32 %v423
    %v552 = vcvt.s32.f32 %v424
    %v553 = vcvt.s32.f32 %v425
    %v554 = vcvt.s32.f32 %v426
    %v555 = vcvt.s32.f32 %v427
    %v556 = vcvt.s32.f32 %v428
    %v557 = vcvt.s32.f32 %v429
    %v558 = vcvt.s32.f32 %v430
    %v559 = vcvt.s32.f32 %v431
    %v560 = vcvt.s32.f32 %v432
    %v561 = vcvt.s32.f32 %v433
    %v562 = vcvt.s32.f32 %v434
    %v563 = vcvt.s32.f32 %v435
    %v564 = vcvt.s32.f32 %v436
    %v565 = vcvt.s32.f32 %v437
    %v566 = vcvt.s32.f32 %v438
    %v567 = vcvt.s32.f32 %v439
    %v568 = vcvt.s32.f32 %v440
    %v569 = vcvt.s32.f32 %v441
    %v570 = vcvt.s32.f32 %v442
    %v571 = vcvt.s32.f32 %v443
    %v572 = vcvt.s32.f32 %v444
    %v573 = vcvt.s32.f32 %v445
    %v574 = vcvt.s32.f32 %v446
    %v575 = vcvt.s32.f32 %v447
    %v576 = vcvt.s32.f32 %v448
    %v577 = vcvt.s32.f32 %v449
    %v578 = vcvt.s32.f32 %v450
    %v579 = vcvt.s32.f32 %v451
    %v580 = vcvt.s32.f32 %v452
    %v581 = vcvt.s32.f32 %v453
    %v582 = vcvt.s32.f32 %v454
    %v583 = vcvt.s32.f32 %v455
    %v584 = vcvt.s32.f32 %v456
    %v585 = vcvt.s32.f32 %v457
    %v586 = vcvt.s32.f32 %v458
    %v587 = vcvt.s32.f32 %v459
    %v588 = vcvt.s32.f32 %v460
    %v589 = vcvt.s32.f32 %v461
    %v590 = vcvt.s32.f32 %v462
    %v591 = vcvt.s32.f32 %v463
    %v592 = vcvt.s32.f32 %v464
    %v593 = vcvt.s32.f32 %v465
    %v594 = vcvt.s32.f32 %v466
    %v595 = vcvt.s32.f32 %v467
    %v596 = vcvt.s32.f32 %v468
    %v597 = vcvt.s32.f32 %v469
    %v598 = vcvt.s32.f32 %v470
    %v599 = vcvt.s32.f32 %v471
    %v600 = vcvt.s32.f32 %v472
    %v601 = vcvt.s32.f32 %v473
    %v602 = vcvt.s32.f32 %v474
    %v603 = vcvt.s32.f32 %v475
    %v604 = vcvt.s32.f32 %v476
    %v605 = vcvt.s32.f32 %v477
    %v606 = vcvt.s32.f32 %v478
    %v607 = vcvt.s32.f32 %v479
    %v608 = vcvt.s32.f32 %v480
    %v609 = vcvt.s32.f32 %v481
    %v610 = vcvt.s32.f32 %v482
    %v611 = vcvt.s32.f32 %v483
    %v612 = vcvt.s32.f32 %v484
    %v613 = vcvt.s32.f32 %v485
    %v614 = vcvt.s32.f32 %v486
    %v615 = vcvt.s32.f32 %v487
    %v616 = vcvt.s32.f32 %v488
    %v617 = vcvt.s32.f32 %v489
    %v618 = vcvt.s32.f32 %v490
    %v619 = vcvt.s32.f32 %v491
    %v620 = vcvt.s32.f32 %v492
    %v621 = vcvt.s32.f32 %v493
    %v622 = vcvt.s32.f32 %v494
    %v623 = vcvt.s32.f32 %v495
    %v624 = vcvt.s32.f32 %v496
    %v625 = vcvt.s32.f32 %v497
    %v626 = vcvt.s32.f32 %v498
    %v627 = vcvt.s32.f32 %v499
    %v628 = vcvt.s32.f32 %v500
    %v629 = vcvt.s32.f32 %v501
    %v630 = vcvt.s32.f32 %v502
    %v631 = vcvt.s32.f32 %v503
    %v632 = vpack.c.bf16 %v508, %v504
    %v633 = vpack.c.bf16 %v509, %v505
    %v634 = vpack.c.bf16 %v510, %v506
    %v635 = vpack.c.bf16 %v511, %v507
    %v636 = vpack.c.bf16 %v516, %v512
    %v637 = vpack.c.bf16 %v517, %v513
    %v638 = vpack.c.bf16 %v518, %v514
    %v639 = vpack.c.bf16 %v519, %v515
    %v640 = vpack.c.bf16 %v524, %v520
    %v641 = vpack.c.bf16 %v525, %v521
    %v642 = vpack.c.bf16 %v526, %v522
    %v643 = vpack.c.bf16 %v527, %v523
    %v644 = vpack.c.bf16 %v532, %v528
    %v645 = vpack.c.bf16 %v533, %v529
    %v646 = vpack.c.bf16 %v534, %v530
    %v647 = vpack.c.bf16 %v535, %v531
    %v648 = vpack.c.bf16 %v540, %v536
    %v649 = vpack.c.bf16 %v541, %v537
    %v650 = vpack.c.bf16 %v542, %v538
    %v651 = vpack.c.bf16 %v543, %v539
    %v652 = vpack.c.bf16 %v548, %v544
    %v653 = vpack.c.bf16 %v549, %v545
    %v654 = vpack.c.bf16 %v550, %v546
    %v655 = vpack.c.bf16 %v551, %v547
    %v656 = vpack.c.bf16 %v556, %v552
    %v657 = vpack.c.bf16 %v557, %v553
    %v658 = vpack.c.bf16 %v558, %v554
    %v659 = vpack.c.bf16 %v559, %v555
    %v660 = vpack.c.bf16 %v564, %v560
    %v661 = vpack.c.bf16 %v565, %v561
    %v662 = vpack.c.bf16 %v566, %v562
    %v663 = vpack.c.bf16 %v567, %v563
    %v664 = vpack.c.bf16 %v572, %v568
    %v665 = vpack.c.bf16 %v573, %v569
    %v666 = vpack.c.bf16 %v574, %v570
    %v667 = vpack.c.bf16 %v575, %v571
    %v668 = vpack.c.bf16 %v580, %v576
    %v669 = vpack.c.bf16 %v581, %v577
    %v670 = vpack.c.bf16 %v582, %v578
    %v671 = vpack.c.bf16 %v583, %v579
    %v672 = vpack.c.bf16 %v588, %v584
    %v673 = vpack.c.bf16 %v589, %v585
    %v674 = vpack.c.bf16 %v590, %v586
    %v675 = vpack.c.bf16 %v591, %v587
    %v676 = vpack.c.bf16 %v596, %v592
    %v677 = vpack.c.bf16 %v597, %v593
    %v678 = vpack.c.bf16 %v598, %v594
    %v679 = vpack.c.bf16 %v599, %v595
    %v680 = vpack.c.bf16 %v604, %v600
    %v681 = vpack.c.bf16 %v605, %v601
    %v682 = vpack.c.bf16 %v606, %v602
    %v683 = vpack.c.bf16 %v607, %v603
    %v684 = vpack.c.bf16 %v612, %v608
    %v685 = vpack.c.bf16 %v613, %v609
    %v686 = vpack.c.bf16 %v614, %v610
    %v687 = vpack.c.bf16 %v615, %v611
    %v688 = vpack.c.bf16 %v620, %v616
    %v689 = vpack.c.bf16 %v621, %v617
    %v690 = vpack.c.bf16 %v622, %v618
    %v691 = vpack.c.bf16 %v623, %v619
    %v692 = vpack.c.bf16 %v628, %v624
    %v693 = vpack.c.bf16 %v629, %v625
    %v694 = vpack.c.bf16 %v630, %v626
    %v695 = vpack.c.bf16 %v631, %v627
    %696 = vmatpush.bf16.msra.mxu0 %v660
    %697 = vmatpush.bf16.msra.mxu0 %v656
    %698 = vmatpush.bf16.msra.mxu0 %v652
    %699 = vmatpush.bf16.msra.mxu0 %v648
    %700 = vmatpush.bf16.msra.mxu0 %v644
    %701 = vmatpush.bf16.msra.mxu0 %v640
    %702 = vmatpush.bf16.msra.mxu0 %v636
    %703 = vmatpush.bf16.msra.mxu0 %v632
    %704 = vmatmul.bf16.gmra.mxu0 %v342
    %v705 = vpop.f32.mrf.mxu0
    %v706 = vadd.f32 0.0, %v705
    %v707 = vpop.f32.mrf.mxu0
    %708 = vdwg.mxu0
    %709 = vmatpush.bf16.msra.mxu0 %v692
    %710 = vmatpush.bf16.msra.mxu0 %v688
    %711 = vmatpush.bf16.msra.mxu0 %v684
    %712 = vmatpush.bf16.msra.mxu0 %v680
    %713 = vmatpush.bf16.msra.mxu0 %v676
    %714 = vmatpush.bf16.msra.mxu0 %v672
    %715 = vmatpush.bf16.msra.mxu0 %v668
    %716 = vmatpush.bf16.msra.mxu0 %v664
    %717 = vmatmul.bf16.gmra.mxu0 %v343
    %v718 = vpop.f32.mrf.mxu0
    %v719 = vadd.f32 %v706, %v718
    %v720 = vpop.f32.mrf.mxu0
    %721 = vdwg.mxu0
    %722 = vmatpush.bf16.msra.mxu0 %v661
    %723 = vmatpush.bf16.msra.mxu0 %v657
    %724 = vmatpush.bf16.msra.mxu0 %v653
    %725 = vmatpush.bf16.msra.mxu0 %v649
    %726 = vmatpush.bf16.msra.mxu0 %v645
    %727 = vmatpush.bf16.msra.mxu0 %v641
    %728 = vmatpush.bf16.msra.mxu0 %v637
    %729 = vmatpush.bf16.msra.mxu0 %v633
    %730 = vmatmul.bf16.gmra.mxu0 %v342
    %v731 = vpop.f32.mrf.mxu0
    %v732 = vadd.f32 0.0, %v731
    %v733 = vpop.f32.mrf.mxu0
    %734 = vdwg.mxu0
    %735 = vmatpush.bf16.msra.mxu0 %v693
    %736 = vmatpush.bf16.msra.mxu0 %v689
    %737 = vmatpush.bf16.msra.mxu0 %v685
    %738 = vmatpush.bf16.msra.mxu0 %v681
    %739 = vmatpush.bf16.msra.mxu0 %v677
    %740 = vmatpush.bf16.msra.mxu0 %v673
    %741 = vmatpush.bf16.msra.mxu0 %v669
    %742 = vmatpush.bf16.msra.mxu0 %v665
    %743 = vmatmul.bf16.gmra.mxu0 %v343
    %v744 = vpop.f32.mrf.mxu0
    %v745 = vadd.f32 %v732, %v744
    %v746 = vpop.f32.mrf.mxu0
    %747 = vdwg.mxu0
    %748 = vmatpush.bf16.msra.mxu0 %v662
    %749 = vmatpush.bf16.msra.mxu0 %v658
    %750 = vmatpush.bf16.msra.mxu0 %v654
    %751 = vmatpush.bf16.msra.mxu0 %v650
    %752 = vmatpush.bf16.msra.mxu0 %v646
    %753 = vmatpush.bf16.msra.mxu0 %v642
    %754 = vmatpush.bf16.msra.mxu0 %v638
    %755 = vmatpush.bf16.msra.mxu0 %v634
    %756 = vmatmul.bf16.gmra.mxu0 %v342
    %v757 = vpop.f32.mrf.mxu0
    %v758 = vadd.f32 0.0, %v757
    %v759 = vpop.f32.mrf.mxu0
    %760 = vdwg.mxu0
    %761 = vmatpush.bf16.msra.mxu0 %v694
    %762 = vmatpush.bf16.msra.mxu0 %v690
    %763 = vmatpush.bf16.msra.mxu0 %v686
    %764 = vmatpush.bf16.msra.mxu0 %v682
    %765 = vmatpush.bf16.msra.mxu0 %v678
    %766 = vmatpush.bf16.msra.mxu0 %v674
    %767 = vmatpush.bf16.msra.mxu0 %v670
    %768 = vmatpush.bf16.msra.mxu0 %v666
    %769 = vmatmul.bf16.gmra.mxu0 %v343
    %v770 = vpop.f32.mrf.mxu0
    %v771 = vadd.f32 %v758, %v770
    %v772 = vpop.f32.mrf.mxu0
    %773 = vdwg.mxu0
    %774 = vmatpush.bf16.msra.mxu0 %v663
    %775 = vmatpush.bf16.msra.mxu0 %v659
    %776 = vmatpush.bf16.msra.mxu0 %v655
    %777 = vmatpush.bf16.msra.mxu0 %v651
    %778 = vmatpush.bf16.msra.mxu0 %v647
    %779 = vmatpush.bf16.msra.mxu0 %v643
    %780 = vmatpush.bf16.msra.mxu0 %v639
    %781 = vmatpush.bf16.msra.mxu0 %v635
    %782 = vmatmul.bf16.gmra.mxu0 %v342
    %v783 = vpop.f32.mrf.mxu0
    %v784 = vadd.f32 0.0, %v783
    %v785 = vpop.f32.mrf.mxu0
    %786 = vdwg.mxu0
    %787 = vmatpush.bf16.msra.mxu0 %v695
    %788 = vmatpush.bf16.msra.mxu0 %v691
    %789 = vmatpush.bf16.msra.mxu0 %v687
    %790 = vmatpush.bf16.msra.mxu0 %v683
    %791 = vmatpush.bf16.msra.mxu0 %v679
    %792 = vmatpush.bf16.msra.mxu0 %v675
    %793 = vmatpush.bf16.msra.mxu0 %v671
    %794 = vmatpush.bf16.msra.mxu0 %v667
    %795 = vmatmul.bf16.gmra.mxu0 %v343
    %v796 = vpop.f32.mrf.mxu0
    %v797 = vadd.f32 %v784, %v796
    %v798 = vpop.f32.mrf.mxu0
    %799 = vdwg.mxu0
    %v800 = vld [vmem:[%s4] ss:$4 sm:$0xf]
    %v802 = vperm.slane %v800, 0
    %v803 = vperm.slane %v800, 1
    %v804 = vperm.slane %v800, 2
    %v805 = vperm.slane %v800, 3
    %v810 = vmul.f32 %v719, %v802
    %v811 = vmul.f32 %v745, %v803
    %v812 = vmul.f32 %v771, %v804
    %v813 = vmul.f32 %v797, %v805
    %s814 = scalar_lea.vmem %s4, 1
    %v815 = vld [vmem:[%s814] ss:$4 sm:$0xf]
    %v817 = vperm.slane %v815, 0
    %v818 = vperm.slane %v815, 1
    %v819 = vperm.slane %v815, 2
    %v820 = vperm.slane %v815, 3
    %v825 = vadd.f32 %v810, %v817
    %v826 = vadd.f32 %v811, %v818
    %v827 = vadd.f32 %v812, %v819
    %v828 = vadd.f32 %v813, %v820
    %v829 = vmul.f32 %v825, 0.2
    %v830 = vmul.f32 %v826, 0.2
    %v831 = vmul.f32 %v827, 0.2
    %v832 = vmul.f32 %v828, 0.2
    %v833 = vmax.f32 %v825, %v829
    %v834 = vmax.f32 %v826, %v830
    %v835 = vmax.f32 %v827, %v831
    %v836 = vmax.f32 %v828, %v832
    %s837 = scalar_lea.vmem %s4, 2
    %v838 = vld [vmem:[%s837] ss:$4 sm:$0xf]
    %s839 = scalar_lea.vmem %s4, 3
    %v840 = vld [vmem:[%s839] ss:$4 sm:$0xf]
    %v841 = vrot.slane %v833, 4
    %v842 = vadd.f32 %v833, %v841
    %v843 = vrot.slane %v842, 2
    %v844 = vadd.f32 %v842, %v843
    %v845 = vrot.slane %v844, 1
    %v846 = vadd.f32 %v844, %v845
    %v847 = vrot.slane %v834, 4
    %v848 = vadd.f32 %v834, %v847
    %v849 = vrot.slane %v848, 2
    %v850 = vadd.f32 %v848, %v849
    %v851 = vrot.slane %v850, 1
    %v852 = vadd.f32 %v850, %v851
    %v853 = vrot.slane %v835, 4
    %v854 = vadd.f32 %v835, %v853
    %v855 = vrot.slane %v854, 2
    %v856 = vadd.f32 %v854, %v855
    %v857 = vrot.slane %v856, 1
    %v858 = vadd.f32 %v856, %v857
    %v859 = vrot.slane %v836, 4
    %v860 = vadd.f32 %v836, %v859
    %v861 = vrot.slane %v860, 2
    %v862 = vadd.f32 %v860, %v861
    %v863 = vrot.slane %v862, 1
    %v864 = vadd.f32 %v862, %v863
    %v865 = vmul.f32 %v833, %v833
    %v866 = vmul.f32 %v834, %v834
    %v867 = vmul.f32 %v835, %v835
    %v868 = vmul.f32 %v836, %v836
    %v869 = vrot.slane %v865, 4
    %v870 = vadd.f32 %v865, %v869
    %v871 = vrot.slane %v870, 2
    %v872 = vadd.f32 %v870, %v871
    %v873 = vrot.slane %v872, 1
    %v874 = vadd.f32 %v872, %v873
    %v875 = vrot.slane %v866, 4
    %v876 = vadd.f32 %v866, %v875
    %v877 = vrot.slane %v876, 2
    %v878 = vadd.f32 %v876, %v877
    %v879 = vrot.slane %v878, 1
    %v880 = vadd.f32 %v878, %v879
    %v881 = vrot.slane %v867, 4
    %v882 = vadd.f32 %v867, %v881
    %v883 = vrot.slane %v882, 2
    %v884 = vadd.f32 %v882, %v883
    %v885 = vrot.slane %v884, 1
    %v886 = vadd.f32 %v884, %v885
    %v887 = vrot.slane %v868, 4
    %v888 = vadd.f32 %v868, %v887
    %v889 = vrot.slane %v888, 2
    %v890 = vadd.f32 %v888, %v889
    %v891 = vrot.slane %v890, 1
    %v892 = vadd.f32 %v890, %v891
    %v893 = vmul.f32 %v846, 0.125
    %v894 = vmul.f32 %v852, 0.125
    %v895 = vmul.f32 %v858, 0.125
    %v896 = vmul.f32 %v864, 0.125
    %v897 = vmul.f32 %v874, 0.125
    %v898 = vmul.f32 %v880, 0.125
    %v899 = vmul.f32 %v886, 0.125
    %v900 = vmul.f32 %v892, 0.125
    %v901 = vmul.f32 %v893, %v893
    %v902 = vmul.f32 %v894, %v894
    %v903 = vmul.f32 %v895, %v895
    %v904 = vmul.f32 %v896, %v896
    %v905 = vsub.f32 %v897, %v901
    %v906 = vsub.f32 %v898, %v902
    %v907 = vsub.f32 %v899, %v903
    %v908 = vsub.f32 %v900, %v904
    %v909 = vmax.f32 %v905, 0.0
    %v910 = vmax.f32 %v906, 0.0
    %v911 = vmax.f32 %v907, 0.0
    %v912 = vmax.f32 %v908, 0.0
    %v913 = vadd.f32 %v909, 1e-05
    %v914 = vadd.f32 %v910, 1e-05
    %v915 = vadd.f32 %v911, 1e-05
    %v916 = vadd.f32 %v912, 1e-05
    %v917 = vrsqrt.pop %v913
    %v918 = vmul.f32 %v917, %v913
    %v919 = vmul.f32 %v918, %v917
    %v920 = vmul.f32 0.5, %v919
    %v921 = vsub.f32 1.5, %v920
    %v922 = vmul.f32 %v917, %v921
    %vm923 = vweird.f32 %v913
    %vm924 = vweird.f32 %v917
    %vm925 = vmor %vm923, %vm924
    %v926 = vsel %vm925, %v917, %v922
    %v927 = vrsqrt.pop %v914
    %v928 = vmul.f32 %v927, %v914
    %v929 = vmul.f32 %v928, %v927
    %v930 = vmul.f32 0.5, %v929
    %v931 = vsub.f32 1.5, %v930
    %v932 = vmul.f32 %v927, %v931
    %vm933 = vweird.f32 %v914
    %vm934 = vweird.f32 %v927
    %vm935 = vmor %vm933, %vm934
    %v936 = vsel %vm935, %v927, %v932
    %v937 = vrsqrt.pop %v915
    %v938 = vmul.f32 %v937, %v915
    %v939 = vmul.f32 %v938, %v937
    %v940 = vmul.f32 0.5, %v939
    %v941 = vsub.f32 1.5, %v940
    %v942 = vmul.f32 %v937, %v941
    %vm943 = vweird.f32 %v915
    %vm944 = vweird.f32 %v937
    %vm945 = vmor %vm943, %vm944
    %v946 = vsel %vm945, %v937, %v942
    %v947 = vrsqrt.pop %v916
    %v948 = vmul.f32 %v947, %v916
    %v949 = vmul.f32 %v948, %v947
    %v950 = vmul.f32 0.5, %v949
    %v951 = vsub.f32 1.5, %v950
    %v952 = vmul.f32 %v947, %v951
    %vm953 = vweird.f32 %v916
    %vm954 = vweird.f32 %v947
    %vm955 = vmor %vm953, %vm954
    %v956 = vsel %vm955, %v947, %v952
    %v961 = vrot.slane %v936, 7
    %v962 = vrot.slane %v946, 6
    %v963 = vrot.slane %v956, 5
    %v964 = vsel %vm316, %v926, %v961
    %vm965 = vcmask 1042434
    %v966 = vsel %vm965, %v962, %v963
    %vm967 = vcmask 1041408
    %v968 = vsel %vm967, %v964, %v966
    %v970 = vmul.f32 %v838, %v968
    %v972 = vperm.slane %v970, 0
    %v973 = vperm.slane %v970, 1
    %v974 = vperm.slane %v970, 2
    %v975 = vperm.slane %v970, 3
    %v980 = vmul.f32 %v893, %v972
    %v981 = vmul.f32 %v894, %v973
    %v982 = vmul.f32 %v895, %v974
    %v983 = vmul.f32 %v896, %v975
    %v988 = vrot.slane %v981, 7
    %v989 = vrot.slane %v982, 6
    %v990 = vrot.slane %v983, 5
    %v991 = vsel %vm316, %v980, %v988
    %v992 = vsel %vm965, %v989, %v990
    %v993 = vsel %vm967, %v991, %v992
    %v995 = vsub.f32 %v840, %v993
    %v996 = vmul.f32 %v833, %v972
    %v997 = vmul.f32 %v834, %v973
    %v998 = vmul.f32 %v835, %v974
    %v999 = vmul.f32 %v836, %v975
    %v1001 = vperm.slane %v995, 0
    %v1002 = vperm.slane %v995, 1
    %v1003 = vperm.slane %v995, 2
    %v1004 = vperm.slane %v995, 3
    %v1009 = vadd.f32 %v996, %v1001
    %v1010 = vadd.f32 %v997, %v1002
    %v1011 = vadd.f32 %v998, %v1003
    %v1012 = vadd.f32 %v999, %v1004
    %s1013 = smul.u32 2, 64
    %s1014 = smul.u32 %s1013, 8
    %s1015 = sshll.u32 %s1014, 4
    %1016 = dma.done [#allocation4], %s1015
    %v1017 = vpack.c.bf16 %v1009, %v1009
    %v1018 = vpack.c.bf16 %v1010, %v1010
    %v1019 = vpack.c.bf16 %v1011, %v1011
    %v1020 = vpack.c.bf16 %v1012, %v1012
    %v1021 = vld [vmem:[#allocation2] sm:$0xff]
    %v1022 = vld [vmem:[#allocation2 + $0x8] sm:$0xff]
    %v1023 = vld [vmem:[#allocation2 + $0x10] sm:$0xff]
    %v1024 = vld [vmem:[#allocation2 + $0x18] sm:$0xff]
    %v1025 = vld [vmem:[#allocation2 + $0x20] sm:$0xff]
    %v1026 = vld [vmem:[#allocation2 + $0x28] sm:$0xff]
    %v1027 = vld [vmem:[#allocation2 + $0x30] sm:$0xff]
    %v1028 = vld [vmem:[#allocation2 + $0x38] sm:$0xff]
    %v1029 = vld [vmem:[#allocation2 + $0x40] sm:$0xff]
    %v1030 = vld [vmem:[#allocation2 + $0x48] sm:$0xff]
    %v1031 = vld [vmem:[#allocation2 + $0x50] sm:$0xff]
    %v1032 = vld [vmem:[#allocation2 + $0x58] sm:$0xff]
    %v1033 = vld [vmem:[#allocation2 + $0x60] sm:$0xff]
    %v1034 = vld [vmem:[#allocation2 + $0x68] sm:$0xff]
    %v1035 = vld [vmem:[#allocation2 + $0x70] sm:$0xff]
    %v1036 = vld [vmem:[#allocation2 + $0x78] sm:$0xff]
    %v1037 = vld [vmem:[#allocation2 + $0x80] sm:$0xff]
    %v1038 = vld [vmem:[#allocation2 + $0x88] sm:$0xff]
    %v1039 = vld [vmem:[#allocation2 + $0x90] sm:$0xff]
    %v1040 = vld [vmem:[#allocation2 + $0x98] sm:$0xff]
    %v1041 = vld [vmem:[#allocation2 + $0xa0] sm:$0xff]
    %v1042 = vld [vmem:[#allocation2 + $0xa8] sm:$0xff]
    %v1043 = vld [vmem:[#allocation2 + $0xb0] sm:$0xff]
    %v1044 = vld [vmem:[#allocation2 + $0xb8] sm:$0xff]
    %v1045 = vld [vmem:[#allocation2 + $0xc0] sm:$0xff]
    %v1046 = vld [vmem:[#allocation2 + $0xc8] sm:$0xff]
    %v1047 = vld [vmem:[#allocation2 + $0xd0] sm:$0xff]
    %v1048 = vld [vmem:[#allocation2 + $0xd8] sm:$0xff]
    %v1049 = vld [vmem:[#allocation2 + $0xe0] sm:$0xff]
    %v1050 = vld [vmem:[#allocation2 + $0xe8] sm:$0xff]
    %v1051 = vld [vmem:[#allocation2 + $0xf0] sm:$0xff]
    %v1052 = vld [vmem:[#allocation2 + $0xf8] sm:$0xff]
    %v1053 = vld [vmem:[#allocation2 + $0x100] sm:$0xff]
    %v1054 = vld [vmem:[#allocation2 + $0x108] sm:$0xff]
    %v1055 = vld [vmem:[#allocation2 + $0x110] sm:$0xff]
    %v1056 = vld [vmem:[#allocation2 + $0x118] sm:$0xff]
    %v1057 = vld [vmem:[#allocation2 + $0x120] sm:$0xff]
    %v1058 = vld [vmem:[#allocation2 + $0x128] sm:$0xff]
    %v1059 = vld [vmem:[#allocation2 + $0x130] sm:$0xff]
    %v1060 = vld [vmem:[#allocation2 + $0x138] sm:$0xff]
    %v1061 = vld [vmem:[#allocation2 + $0x140] sm:$0xff]
    %v1062 = vld [vmem:[#allocation2 + $0x148] sm:$0xff]
    %v1063 = vld [vmem:[#allocation2 + $0x150] sm:$0xff]
    %v1064 = vld [vmem:[#allocation2 + $0x158] sm:$0xff]
    %v1065 = vld [vmem:[#allocation2 + $0x160] sm:$0xff]
    %v1066 = vld [vmem:[#allocation2 + $0x168] sm:$0xff]
    %v1067 = vld [vmem:[#allocation2 + $0x170] sm:$0xff]
    %v1068 = vld [vmem:[#allocation2 + $0x178] sm:$0xff]
    %v1069 = vld [vmem:[#allocation2 + $0x180] sm:$0xff]
    %v1070 = vld [vmem:[#allocation2 + $0x188] sm:$0xff]
    %v1071 = vld [vmem:[#allocation2 + $0x190] sm:$0xff]
    %v1072 = vld [vmem:[#allocation2 + $0x198] sm:$0xff]
    %v1073 = vld [vmem:[#allocation2 + $0x1a0] sm:$0xff]
    %v1074 = vld [vmem:[#allocation2 + $0x1a8] sm:$0xff]
    %v1075 = vld [vmem:[#allocation2 + $0x1b0] sm:$0xff]
    %v1076 = vld [vmem:[#allocation2 + $0x1b8] sm:$0xff]
    %v1077 = vld [vmem:[#allocation2 + $0x1c0] sm:$0xff]
    %v1078 = vld [vmem:[#allocation2 + $0x1c8] sm:$0xff]
    %v1079 = vld [vmem:[#allocation2 + $0x1d0] sm:$0xff]
    %v1080 = vld [vmem:[#allocation2 + $0x1d8] sm:$0xff]
    %v1081 = vld [vmem:[#allocation2 + $0x1e0] sm:$0xff]
    %v1082 = vld [vmem:[#allocation2 + $0x1e8] sm:$0xff]
    %v1083 = vld [vmem:[#allocation2 + $0x1f0] sm:$0xff]
    %v1084 = vld [vmem:[#allocation2 + $0x1f8] sm:$0xff]
    %v1085 = vld [vmem:[#allocation2 + $0x200] sm:$0xff]
    %v1086 = vld [vmem:[#allocation2 + $0x208] sm:$0xff]
    %v1087 = vld [vmem:[#allocation2 + $0x210] sm:$0xff]
    %v1088 = vld [vmem:[#allocation2 + $0x218] sm:$0xff]
    %v1089 = vld [vmem:[#allocation2 + $0x220] sm:$0xff]
    %v1090 = vld [vmem:[#allocation2 + $0x228] sm:$0xff]
    %v1091 = vld [vmem:[#allocation2 + $0x230] sm:$0xff]
    %v1092 = vld [vmem:[#allocation2 + $0x238] sm:$0xff]
    %v1093 = vld [vmem:[#allocation2 + $0x240] sm:$0xff]
    %v1094 = vld [vmem:[#allocation2 + $0x248] sm:$0xff]
    %v1095 = vld [vmem:[#allocation2 + $0x250] sm:$0xff]
    %v1096 = vld [vmem:[#allocation2 + $0x258] sm:$0xff]
    %v1097 = vld [vmem:[#allocation2 + $0x260] sm:$0xff]
    %v1098 = vld [vmem:[#allocation2 + $0x268] sm:$0xff]
    %v1099 = vld [vmem:[#allocation2 + $0x270] sm:$0xff]
    %v1100 = vld [vmem:[#allocation2 + $0x278] sm:$0xff]
    %v1101 = vld [vmem:[#allocation2 + $0x280] sm:$0xff]
    %v1102 = vld [vmem:[#allocation2 + $0x288] sm:$0xff]
    %v1103 = vld [vmem:[#allocation2 + $0x290] sm:$0xff]
    %v1104 = vld [vmem:[#allocation2 + $0x298] sm:$0xff]
    %v1105 = vld [vmem:[#allocation2 + $0x2a0] sm:$0xff]
    %v1106 = vld [vmem:[#allocation2 + $0x2a8] sm:$0xff]
    %v1107 = vld [vmem:[#allocation2 + $0x2b0] sm:$0xff]
    %v1108 = vld [vmem:[#allocation2 + $0x2b8] sm:$0xff]
    %v1109 = vld [vmem:[#allocation2 + $0x2c0] sm:$0xff]
    %v1110 = vld [vmem:[#allocation2 + $0x2c8] sm:$0xff]
    %v1111 = vld [vmem:[#allocation2 + $0x2d0] sm:$0xff]
    %v1112 = vld [vmem:[#allocation2 + $0x2d8] sm:$0xff]
    %v1113 = vld [vmem:[#allocation2 + $0x2e0] sm:$0xff]
    %v1114 = vld [vmem:[#allocation2 + $0x2e8] sm:$0xff]
    %v1115 = vld [vmem:[#allocation2 + $0x2f0] sm:$0xff]
    %v1116 = vld [vmem:[#allocation2 + $0x2f8] sm:$0xff]
    %v1117 = vld [vmem:[#allocation2 + $0x300] sm:$0xff]
    %v1118 = vld [vmem:[#allocation2 + $0x308] sm:$0xff]
    %v1119 = vld [vmem:[#allocation2 + $0x310] sm:$0xff]
    %v1120 = vld [vmem:[#allocation2 + $0x318] sm:$0xff]
    %v1121 = vld [vmem:[#allocation2 + $0x320] sm:$0xff]
    %v1122 = vld [vmem:[#allocation2 + $0x328] sm:$0xff]
    %v1123 = vld [vmem:[#allocation2 + $0x330] sm:$0xff]
    %v1124 = vld [vmem:[#allocation2 + $0x338] sm:$0xff]
    %v1125 = vld [vmem:[#allocation2 + $0x340] sm:$0xff]
    %v1126 = vld [vmem:[#allocation2 + $0x348] sm:$0xff]
    %v1127 = vld [vmem:[#allocation2 + $0x350] sm:$0xff]
    %v1128 = vld [vmem:[#allocation2 + $0x358] sm:$0xff]
    %v1129 = vld [vmem:[#allocation2 + $0x360] sm:$0xff]
    %v1130 = vld [vmem:[#allocation2 + $0x368] sm:$0xff]
    %v1131 = vld [vmem:[#allocation2 + $0x370] sm:$0xff]
    %v1132 = vld [vmem:[#allocation2 + $0x378] sm:$0xff]
    %v1133 = vld [vmem:[#allocation2 + $0x380] sm:$0xff]
    %v1134 = vld [vmem:[#allocation2 + $0x388] sm:$0xff]
    %v1135 = vld [vmem:[#allocation2 + $0x390] sm:$0xff]
    %v1136 = vld [vmem:[#allocation2 + $0x398] sm:$0xff]
    %v1137 = vld [vmem:[#allocation2 + $0x3a0] sm:$0xff]
    %v1138 = vld [vmem:[#allocation2 + $0x3a8] sm:$0xff]
    %v1139 = vld [vmem:[#allocation2 + $0x3b0] sm:$0xff]
    %v1140 = vld [vmem:[#allocation2 + $0x3b8] sm:$0xff]
    %v1141 = vld [vmem:[#allocation2 + $0x3c0] sm:$0xff]
    %v1142 = vld [vmem:[#allocation2 + $0x3c8] sm:$0xff]
    %v1143 = vld [vmem:[#allocation2 + $0x3d0] sm:$0xff]
    %v1144 = vld [vmem:[#allocation2 + $0x3d8] sm:$0xff]
    %v1145 = vld [vmem:[#allocation2 + $0x3e0] sm:$0xff]
    %v1146 = vld [vmem:[#allocation2 + $0x3e8] sm:$0xff]
    %v1147 = vld [vmem:[#allocation2 + $0x3f0] sm:$0xff]
    %v1148 = vld [vmem:[#allocation2 + $0x3f8] sm:$0xff]
    %v1149 = vunpack.c.0.s8 %v1021
    %v1150 = vunpack.c.0.s8 %v1022
    %v1151 = vunpack.c.0.s8 %v1023
    %v1152 = vunpack.c.0.s8 %v1024
    %v1153 = vunpack.c.0.s8 %v1025
    %v1154 = vunpack.c.0.s8 %v1026
    %v1155 = vunpack.c.0.s8 %v1027
    %v1156 = vunpack.c.0.s8 %v1028
    %v1157 = vunpack.c.1.s8 %v1021
    %v1158 = vunpack.c.1.s8 %v1022
    %v1159 = vunpack.c.1.s8 %v1023
    %v1160 = vunpack.c.1.s8 %v1024
    %v1161 = vunpack.c.1.s8 %v1025
    %v1162 = vunpack.c.1.s8 %v1026
    %v1163 = vunpack.c.1.s8 %v1027
    %v1164 = vunpack.c.1.s8 %v1028
    %v1165 = vunpack.c.2.s8 %v1021
    %v1166 = vunpack.c.2.s8 %v1022
    %v1167 = vunpack.c.2.s8 %v1023
    %v1168 = vunpack.c.2.s8 %v1024
    %v1169 = vunpack.c.2.s8 %v1025
    %v1170 = vunpack.c.2.s8 %v1026
    %v1171 = vunpack.c.2.s8 %v1027
    %v1172 = vunpack.c.2.s8 %v1028
    %v1173 = vunpack.c.3.s8 %v1021
    %v1174 = vunpack.c.3.s8 %v1022
    %v1175 = vunpack.c.3.s8 %v1023
    %v1176 = vunpack.c.3.s8 %v1024
    %v1177 = vunpack.c.3.s8 %v1025
    %v1178 = vunpack.c.3.s8 %v1026
    %v1179 = vunpack.c.3.s8 %v1027
    %v1180 = vunpack.c.3.s8 %v1028
    %v1181 = vunpack.c.0.s8 %v1029
    %v1182 = vunpack.c.0.s8 %v1030
    %v1183 = vunpack.c.0.s8 %v1031
    %v1184 = vunpack.c.0.s8 %v1032
    %v1185 = vunpack.c.0.s8 %v1033
    %v1186 = vunpack.c.0.s8 %v1034
    %v1187 = vunpack.c.0.s8 %v1035
    %v1188 = vunpack.c.0.s8 %v1036
    %v1189 = vunpack.c.1.s8 %v1029
    %v1190 = vunpack.c.1.s8 %v1030
    %v1191 = vunpack.c.1.s8 %v1031
    %v1192 = vunpack.c.1.s8 %v1032
    %v1193 = vunpack.c.1.s8 %v1033
    %v1194 = vunpack.c.1.s8 %v1034
    %v1195 = vunpack.c.1.s8 %v1035
    %v1196 = vunpack.c.1.s8 %v1036
    %v1197 = vunpack.c.2.s8 %v1029
    %v1198 = vunpack.c.2.s8 %v1030
    %v1199 = vunpack.c.2.s8 %v1031
    %v1200 = vunpack.c.2.s8 %v1032
    %v1201 = vunpack.c.2.s8 %v1033
    %v1202 = vunpack.c.2.s8 %v1034
    %v1203 = vunpack.c.2.s8 %v1035
    %v1204 = vunpack.c.2.s8 %v1036
    %v1205 = vunpack.c.3.s8 %v1029
    %v1206 = vunpack.c.3.s8 %v1030
    %v1207 = vunpack.c.3.s8 %v1031
    %v1208 = vunpack.c.3.s8 %v1032
    %v1209 = vunpack.c.3.s8 %v1033
    %v1210 = vunpack.c.3.s8 %v1034
    %v1211 = vunpack.c.3.s8 %v1035
    %v1212 = vunpack.c.3.s8 %v1036
    %v1213 = vunpack.c.0.s8 %v1037
    %v1214 = vunpack.c.0.s8 %v1038
    %v1215 = vunpack.c.0.s8 %v1039
    %v1216 = vunpack.c.0.s8 %v1040
    %v1217 = vunpack.c.0.s8 %v1041
    %v1218 = vunpack.c.0.s8 %v1042
    %v1219 = vunpack.c.0.s8 %v1043
    %v1220 = vunpack.c.0.s8 %v1044
    %v1221 = vunpack.c.1.s8 %v1037
    %v1222 = vunpack.c.1.s8 %v1038
    %v1223 = vunpack.c.1.s8 %v1039
    %v1224 = vunpack.c.1.s8 %v1040
    %v1225 = vunpack.c.1.s8 %v1041
    %v1226 = vunpack.c.1.s8 %v1042
    %v1227 = vunpack.c.1.s8 %v1043
    %v1228 = vunpack.c.1.s8 %v1044
    %v1229 = vunpack.c.2.s8 %v1037
    %v1230 = vunpack.c.2.s8 %v1038
    %v1231 = vunpack.c.2.s8 %v1039
    %v1232 = vunpack.c.2.s8 %v1040
    %v1233 = vunpack.c.2.s8 %v1041
    %v1234 = vunpack.c.2.s8 %v1042
    %v1235 = vunpack.c.2.s8 %v1043
    %v1236 = vunpack.c.2.s8 %v1044
    %v1237 = vunpack.c.3.s8 %v1037
    %v1238 = vunpack.c.3.s8 %v1038
    %v1239 = vunpack.c.3.s8 %v1039
    %v1240 = vunpack.c.3.s8 %v1040
    %v1241 = vunpack.c.3.s8 %v1041
    %v1242 = vunpack.c.3.s8 %v1042
    %v1243 = vunpack.c.3.s8 %v1043
    %v1244 = vunpack.c.3.s8 %v1044
    %v1245 = vunpack.c.0.s8 %v1045
    %v1246 = vunpack.c.0.s8 %v1046
    %v1247 = vunpack.c.0.s8 %v1047
    %v1248 = vunpack.c.0.s8 %v1048
    %v1249 = vunpack.c.0.s8 %v1049
    %v1250 = vunpack.c.0.s8 %v1050
    %v1251 = vunpack.c.0.s8 %v1051
    %v1252 = vunpack.c.0.s8 %v1052
    %v1253 = vunpack.c.1.s8 %v1045
    %v1254 = vunpack.c.1.s8 %v1046
    %v1255 = vunpack.c.1.s8 %v1047
    %v1256 = vunpack.c.1.s8 %v1048
    %v1257 = vunpack.c.1.s8 %v1049
    %v1258 = vunpack.c.1.s8 %v1050
    %v1259 = vunpack.c.1.s8 %v1051
    %v1260 = vunpack.c.1.s8 %v1052
    %v1261 = vunpack.c.2.s8 %v1045
    %v1262 = vunpack.c.2.s8 %v1046
    %v1263 = vunpack.c.2.s8 %v1047
    %v1264 = vunpack.c.2.s8 %v1048
    %v1265 = vunpack.c.2.s8 %v1049
    %v1266 = vunpack.c.2.s8 %v1050
    %v1267 = vunpack.c.2.s8 %v1051
    %v1268 = vunpack.c.2.s8 %v1052
    %v1269 = vunpack.c.3.s8 %v1045
    %v1270 = vunpack.c.3.s8 %v1046
    %v1271 = vunpack.c.3.s8 %v1047
    %v1272 = vunpack.c.3.s8 %v1048
    %v1273 = vunpack.c.3.s8 %v1049
    %v1274 = vunpack.c.3.s8 %v1050
    %v1275 = vunpack.c.3.s8 %v1051
    %v1276 = vunpack.c.3.s8 %v1052
    %v1277 = vunpack.c.0.s8 %v1053
    %v1278 = vunpack.c.0.s8 %v1054
    %v1279 = vunpack.c.0.s8 %v1055
    %v1280 = vunpack.c.0.s8 %v1056
    %v1281 = vunpack.c.0.s8 %v1057
    %v1282 = vunpack.c.0.s8 %v1058
    %v1283 = vunpack.c.0.s8 %v1059
    %v1284 = vunpack.c.0.s8 %v1060
    %v1285 = vunpack.c.1.s8 %v1053
    %v1286 = vunpack.c.1.s8 %v1054
    %v1287 = vunpack.c.1.s8 %v1055
    %v1288 = vunpack.c.1.s8 %v1056
    %v1289 = vunpack.c.1.s8 %v1057
    %v1290 = vunpack.c.1.s8 %v1058
    %v1291 = vunpack.c.1.s8 %v1059
    %v1292 = vunpack.c.1.s8 %v1060
    %v1293 = vunpack.c.2.s8 %v1053
    %v1294 = vunpack.c.2.s8 %v1054
    %v1295 = vunpack.c.2.s8 %v1055
    %v1296 = vunpack.c.2.s8 %v1056
    %v1297 = vunpack.c.2.s8 %v1057
    %v1298 = vunpack.c.2.s8 %v1058
    %v1299 = vunpack.c.2.s8 %v1059
    %v1300 = vunpack.c.2.s8 %v1060
    %v1301 = vunpack.c.3.s8 %v1053
    %v1302 = vunpack.c.3.s8 %v1054
    %v1303 = vunpack.c.3.s8 %v1055
    %v1304 = vunpack.c.3.s8 %v1056
    %v1305 = vunpack.c.3.s8 %v1057
    %v1306 = vunpack.c.3.s8 %v1058
    %v1307 = vunpack.c.3.s8 %v1059
    %v1308 = vunpack.c.3.s8 %v1060
    %v1309 = vunpack.c.0.s8 %v1061
    %v1310 = vunpack.c.0.s8 %v1062
    %v1311 = vunpack.c.0.s8 %v1063
    %v1312 = vunpack.c.0.s8 %v1064
    %v1313 = vunpack.c.0.s8 %v1065
    %v1314 = vunpack.c.0.s8 %v1066
    %v1315 = vunpack.c.0.s8 %v1067
    %v1316 = vunpack.c.0.s8 %v1068
    %v1317 = vunpack.c.1.s8 %v1061
    %v1318 = vunpack.c.1.s8 %v1062
    %v1319 = vunpack.c.1.s8 %v1063
    %v1320 = vunpack.c.1.s8 %v1064
    %v1321 = vunpack.c.1.s8 %v1065
    %v1322 = vunpack.c.1.s8 %v1066
    %v1323 = vunpack.c.1.s8 %v1067
    %v1324 = vunpack.c.1.s8 %v1068
    %v1325 = vunpack.c.2.s8 %v1061
    %v1326 = vunpack.c.2.s8 %v1062
    %v1327 = vunpack.c.2.s8 %v1063
    %v1328 = vunpack.c.2.s8 %v1064
    %v1329 = vunpack.c.2.s8 %v1065
    %v1330 = vunpack.c.2.s8 %v1066
    %v1331 = vunpack.c.2.s8 %v1067
    %v1332 = vunpack.c.2.s8 %v1068
    %v1333 = vunpack.c.3.s8 %v1061
    %v1334 = vunpack.c.3.s8 %v1062
    %v1335 = vunpack.c.3.s8 %v1063
    %v1336 = vunpack.c.3.s8 %v1064
    %v1337 = vunpack.c.3.s8 %v1065
    %v1338 = vunpack.c.3.s8 %v1066
    %v1339 = vunpack.c.3.s8 %v1067
    %v1340 = vunpack.c.3.s8 %v1068
    %v1341 = vunpack.c.0.s8 %v1069
    %v1342 = vunpack.c.0.s8 %v1070
    %v1343 = vunpack.c.0.s8 %v1071
    %v1344 = vunpack.c.0.s8 %v1072
    %v1345 = vunpack.c.0.s8 %v1073
    %v1346 = vunpack.c.0.s8 %v1074
    %v1347 = vunpack.c.0.s8 %v1075
    %v1348 = vunpack.c.0.s8 %v1076
    %v1349 = vunpack.c.1.s8 %v1069
    %v1350 = vunpack.c.1.s8 %v1070
    %v1351 = vunpack.c.1.s8 %v1071
    %v1352 = vunpack.c.1.s8 %v1072
    %v1353 = vunpack.c.1.s8 %v1073
    %v1354 = vunpack.c.1.s8 %v1074
    %v1355 = vunpack.c.1.s8 %v1075
    %v1356 = vunpack.c.1.s8 %v1076
    %v1357 = vunpack.c.2.s8 %v1069
    %v1358 = vunpack.c.2.s8 %v1070
    %v1359 = vunpack.c.2.s8 %v1071
    %v1360 = vunpack.c.2.s8 %v1072
    %v1361 = vunpack.c.2.s8 %v1073
    %v1362 = vunpack.c.2.s8 %v1074
    %v1363 = vunpack.c.2.s8 %v1075
    %v1364 = vunpack.c.2.s8 %v1076
    %v1365 = vunpack.c.3.s8 %v1069
    %v1366 = vunpack.c.3.s8 %v1070
    %v1367 = vunpack.c.3.s8 %v1071
    %v1368 = vunpack.c.3.s8 %v1072
    %v1369 = vunpack.c.3.s8 %v1073
    %v1370 = vunpack.c.3.s8 %v1074
    %v1371 = vunpack.c.3.s8 %v1075
    %v1372 = vunpack.c.3.s8 %v1076
    %v1373 = vunpack.c.0.s8 %v1077
    %v1374 = vunpack.c.0.s8 %v1078
    %v1375 = vunpack.c.0.s8 %v1079
    %v1376 = vunpack.c.0.s8 %v1080
    %v1377 = vunpack.c.0.s8 %v1081
    %v1378 = vunpack.c.0.s8 %v1082
    %v1379 = vunpack.c.0.s8 %v1083
    %v1380 = vunpack.c.0.s8 %v1084
    %v1381 = vunpack.c.1.s8 %v1077
    %v1382 = vunpack.c.1.s8 %v1078
    %v1383 = vunpack.c.1.s8 %v1079
    %v1384 = vunpack.c.1.s8 %v1080
    %v1385 = vunpack.c.1.s8 %v1081
    %v1386 = vunpack.c.1.s8 %v1082
    %v1387 = vunpack.c.1.s8 %v1083
    %v1388 = vunpack.c.1.s8 %v1084
    %v1389 = vunpack.c.2.s8 %v1077
    %v1390 = vunpack.c.2.s8 %v1078
    %v1391 = vunpack.c.2.s8 %v1079
    %v1392 = vunpack.c.2.s8 %v1080
    %v1393 = vunpack.c.2.s8 %v1081
    %v1394 = vunpack.c.2.s8 %v1082
    %v1395 = vunpack.c.2.s8 %v1083
    %v1396 = vunpack.c.2.s8 %v1084
    %v1397 = vunpack.c.3.s8 %v1077
    %v1398 = vunpack.c.3.s8 %v1078
    %v1399 = vunpack.c.3.s8 %v1079
    %v1400 = vunpack.c.3.s8 %v1080
    %v1401 = vunpack.c.3.s8 %v1081
    %v1402 = vunpack.c.3.s8 %v1082
    %v1403 = vunpack.c.3.s8 %v1083
    %v1404 = vunpack.c.3.s8 %v1084
    %v1405 = vunpack.c.0.s8 %v1085
    %v1406 = vunpack.c.0.s8 %v1086
    %v1407 = vunpack.c.0.s8 %v1087
    %v1408 = vunpack.c.0.s8 %v1088
    %v1409 = vunpack.c.0.s8 %v1089
    %v1410 = vunpack.c.0.s8 %v1090
    %v1411 = vunpack.c.0.s8 %v1091
    %v1412 = vunpack.c.0.s8 %v1092
    %v1413 = vunpack.c.1.s8 %v1085
    %v1414 = vunpack.c.1.s8 %v1086
    %v1415 = vunpack.c.1.s8 %v1087
    %v1416 = vunpack.c.1.s8 %v1088
    %v1417 = vunpack.c.1.s8 %v1089
    %v1418 = vunpack.c.1.s8 %v1090
    %v1419 = vunpack.c.1.s8 %v1091
    %v1420 = vunpack.c.1.s8 %v1092
    %v1421 = vunpack.c.2.s8 %v1085
    %v1422 = vunpack.c.2.s8 %v1086
    %v1423 = vunpack.c.2.s8 %v1087
    %v1424 = vunpack.c.2.s8 %v1088
    %v1425 = vunpack.c.2.s8 %v1089
    %v1426 = vunpack.c.2.s8 %v1090
    %v1427 = vunpack.c.2.s8 %v1091
    %v1428 = vunpack.c.2.s8 %v1092
    %v1429 = vunpack.c.3.s8 %v1085
    %v1430 = vunpack.c.3.s8 %v1086
    %v1431 = vunpack.c.3.s8 %v1087
    %v1432 = vunpack.c.3.s8 %v1088
    %v1433 = vunpack.c.3.s8 %v1089
    %v1434 = vunpack.c.3.s8 %v1090
    %v1435 = vunpack.c.3.s8 %v1091
    %v1436 = vunpack.c.3.s8 %v1092
    %v1437 = vunpack.c.0.s8 %v1093
    %v1438 = vunpack.c.0.s8 %v1094
    %v1439 = vunpack.c.0.s8 %v1095
    %v1440 = vunpack.c.0.s8 %v1096
    %v1441 = vunpack.c.0.s8 %v1097
    %v1442 = vunpack.c.0.s8 %v1098
    %v1443 = vunpack.c.0.s8 %v1099
    %v1444 = vunpack.c.0.s8 %v1100
    %v1445 = vunpack.c.1.s8 %v1093
    %v1446 = vunpack.c.1.s8 %v1094
    %v1447 = vunpack.c.1.s8 %v1095
    %v1448 = vunpack.c.1.s8 %v1096
    %v1449 = vunpack.c.1.s8 %v1097
    %v1450 = vunpack.c.1.s8 %v1098
    %v1451 = vunpack.c.1.s8 %v1099
    %v1452 = vunpack.c.1.s8 %v1100
    %v1453 = vunpack.c.2.s8 %v1093
    %v1454 = vunpack.c.2.s8 %v1094
    %v1455 = vunpack.c.2.s8 %v1095
    %v1456 = vunpack.c.2.s8 %v1096
    %v1457 = vunpack.c.2.s8 %v1097
    %v1458 = vunpack.c.2.s8 %v1098
    %v1459 = vunpack.c.2.s8 %v1099
    %v1460 = vunpack.c.2.s8 %v1100
    %v1461 = vunpack.c.3.s8 %v1093
    %v1462 = vunpack.c.3.s8 %v1094
    %v1463 = vunpack.c.3.s8 %v1095
    %v1464 = vunpack.c.3.s8 %v1096
    %v1465 = vunpack.c.3.s8 %v1097
    %v1466 = vunpack.c.3.s8 %v1098
    %v1467 = vunpack.c.3.s8 %v1099
    %v1468 = vunpack.c.3.s8 %v1100
    %v1469 = vunpack.c.0.s8 %v1101
    %v1470 = vunpack.c.0.s8 %v1102
    %v1471 = vunpack.c.0.s8 %v1103
    %v1472 = vunpack.c.0.s8 %v1104
    %v1473 = vunpack.c.0.s8 %v1105
    %v1474 = vunpack.c.0.s8 %v1106
    %v1475 = vunpack.c.0.s8 %v1107
    %v1476 = vunpack.c.0.s8 %v1108
    %v1477 = vunpack.c.1.s8 %v1101
    %v1478 = vunpack.c.1.s8 %v1102
    %v1479 = vunpack.c.1.s8 %v1103
    %v1480 = vunpack.c.1.s8 %v1104
    %v1481 = vunpack.c.1.s8 %v1105
    %v1482 = vunpack.c.1.s8 %v1106
    %v1483 = vunpack.c.1.s8 %v1107
    %v1484 = vunpack.c.1.s8 %v1108
    %v1485 = vunpack.c.2.s8 %v1101
    %v1486 = vunpack.c.2.s8 %v1102
    %v1487 = vunpack.c.2.s8 %v1103
    %v1488 = vunpack.c.2.s8 %v1104
    %v1489 = vunpack.c.2.s8 %v1105
    %v1490 = vunpack.c.2.s8 %v1106
    %v1491 = vunpack.c.2.s8 %v1107
    %v1492 = vunpack.c.2.s8 %v1108
    %v1493 = vunpack.c.3.s8 %v1101
    %v1494 = vunpack.c.3.s8 %v1102
    %v1495 = vunpack.c.3.s8 %v1103
    %v1496 = vunpack.c.3.s8 %v1104
    %v1497 = vunpack.c.3.s8 %v1105
    %v1498 = vunpack.c.3.s8 %v1106
    %v1499 = vunpack.c.3.s8 %v1107
    %v1500 = vunpack.c.3.s8 %v1108
    %v1501 = vunpack.c.0.s8 %v1109
    %v1502 = vunpack.c.0.s8 %v1110
    %v1503 = vunpack.c.0.s8 %v1111
    %v1504 = vunpack.c.0.s8 %v1112
    %v1505 = vunpack.c.0.s8 %v1113
    %v1506 = vunpack.c.0.s8 %v1114
    %v1507 = vunpack.c.0.s8 %v1115
    %v1508 = vunpack.c.0.s8 %v1116
    %v1509 = vunpack.c.1.s8 %v1109
    %v1510 = vunpack.c.1.s8 %v1110
    %v1511 = vunpack.c.1.s8 %v1111
    %v1512 = vunpack.c.1.s8 %v1112
    %v1513 = vunpack.c.1.s8 %v1113
    %v1514 = vunpack.c.1.s8 %v1114
    %v1515 = vunpack.c.1.s8 %v1115
    %v1516 = vunpack.c.1.s8 %v1116
    %v1517 = vunpack.c.2.s8 %v1109
    %v1518 = vunpack.c.2.s8 %v1110
    %v1519 = vunpack.c.2.s8 %v1111
    %v1520 = vunpack.c.2.s8 %v1112
    %v1521 = vunpack.c.2.s8 %v1113
    %v1522 = vunpack.c.2.s8 %v1114
    %v1523 = vunpack.c.2.s8 %v1115
    %v1524 = vunpack.c.2.s8 %v1116
    %v1525 = vunpack.c.3.s8 %v1109
    %v1526 = vunpack.c.3.s8 %v1110
    %v1527 = vunpack.c.3.s8 %v1111
    %v1528 = vunpack.c.3.s8 %v1112
    %v1529 = vunpack.c.3.s8 %v1113
    %v1530 = vunpack.c.3.s8 %v1114
    %v1531 = vunpack.c.3.s8 %v1115
    %v1532 = vunpack.c.3.s8 %v1116
    %v1533 = vunpack.c.0.s8 %v1117
    %v1534 = vunpack.c.0.s8 %v1118
    %v1535 = vunpack.c.0.s8 %v1119
    %v1536 = vunpack.c.0.s8 %v1120
    %v1537 = vunpack.c.0.s8 %v1121
    %v1538 = vunpack.c.0.s8 %v1122
    %v1539 = vunpack.c.0.s8 %v1123
    %v1540 = vunpack.c.0.s8 %v1124
    %v1541 = vunpack.c.1.s8 %v1117
    %v1542 = vunpack.c.1.s8 %v1118
    %v1543 = vunpack.c.1.s8 %v1119
    %v1544 = vunpack.c.1.s8 %v1120
    %v1545 = vunpack.c.1.s8 %v1121
    %v1546 = vunpack.c.1.s8 %v1122
    %v1547 = vunpack.c.1.s8 %v1123
    %v1548 = vunpack.c.1.s8 %v1124
    %v1549 = vunpack.c.2.s8 %v1117
    %v1550 = vunpack.c.2.s8 %v1118
    %v1551 = vunpack.c.2.s8 %v1119
    %v1552 = vunpack.c.2.s8 %v1120
    %v1553 = vunpack.c.2.s8 %v1121
    %v1554 = vunpack.c.2.s8 %v1122
    %v1555 = vunpack.c.2.s8 %v1123
    %v1556 = vunpack.c.2.s8 %v1124
    %v1557 = vunpack.c.3.s8 %v1117
    %v1558 = vunpack.c.3.s8 %v1118
    %v1559 = vunpack.c.3.s8 %v1119
    %v1560 = vunpack.c.3.s8 %v1120
    %v1561 = vunpack.c.3.s8 %v1121
    %v1562 = vunpack.c.3.s8 %v1122
    %v1563 = vunpack.c.3.s8 %v1123
    %v1564 = vunpack.c.3.s8 %v1124
    %v1565 = vunpack.c.0.s8 %v1125
    %v1566 = vunpack.c.0.s8 %v1126
    %v1567 = vunpack.c.0.s8 %v1127
    %v1568 = vunpack.c.0.s8 %v1128
    %v1569 = vunpack.c.0.s8 %v1129
    %v1570 = vunpack.c.0.s8 %v1130
    %v1571 = vunpack.c.0.s8 %v1131
    %v1572 = vunpack.c.0.s8 %v1132
    %v1573 = vunpack.c.1.s8 %v1125
    %v1574 = vunpack.c.1.s8 %v1126
    %v1575 = vunpack.c.1.s8 %v1127
    %v1576 = vunpack.c.1.s8 %v1128
    %v1577 = vunpack.c.1.s8 %v1129
    %v1578 = vunpack.c.1.s8 %v1130
    %v1579 = vunpack.c.1.s8 %v1131
    %v1580 = vunpack.c.1.s8 %v1132
    %v1581 = vunpack.c.2.s8 %v1125
    %v1582 = vunpack.c.2.s8 %v1126
    %v1583 = vunpack.c.2.s8 %v1127
    %v1584 = vunpack.c.2.s8 %v1128
    %v1585 = vunpack.c.2.s8 %v1129
    %v1586 = vunpack.c.2.s8 %v1130
    %v1587 = vunpack.c.2.s8 %v1131
    %v1588 = vunpack.c.2.s8 %v1132
    %v1589 = vunpack.c.3.s8 %v1125
    %v1590 = vunpack.c.3.s8 %v1126
    %v1591 = vunpack.c.3.s8 %v1127
    %v1592 = vunpack.c.3.s8 %v1128
    %v1593 = vunpack.c.3.s8 %v1129
    %v1594 = vunpack.c.3.s8 %v1130
    %v1595 = vunpack.c.3.s8 %v1131
    %v1596 = vunpack.c.3.s8 %v1132
    %v1597 = vunpack.c.0.s8 %v1133
    %v1598 = vunpack.c.0.s8 %v1134
    %v1599 = vunpack.c.0.s8 %v1135
    %v1600 = vunpack.c.0.s8 %v1136
    %v1601 = vunpack.c.0.s8 %v1137
    %v1602 = vunpack.c.0.s8 %v1138
    %v1603 = vunpack.c.0.s8 %v1139
    %v1604 = vunpack.c.0.s8 %v1140
    %v1605 = vunpack.c.1.s8 %v1133
    %v1606 = vunpack.c.1.s8 %v1134
    %v1607 = vunpack.c.1.s8 %v1135
    %v1608 = vunpack.c.1.s8 %v1136
    %v1609 = vunpack.c.1.s8 %v1137
    %v1610 = vunpack.c.1.s8 %v1138
    %v1611 = vunpack.c.1.s8 %v1139
    %v1612 = vunpack.c.1.s8 %v1140
    %v1613 = vunpack.c.2.s8 %v1133
    %v1614 = vunpack.c.2.s8 %v1134
    %v1615 = vunpack.c.2.s8 %v1135
    %v1616 = vunpack.c.2.s8 %v1136
    %v1617 = vunpack.c.2.s8 %v1137
    %v1618 = vunpack.c.2.s8 %v1138
    %v1619 = vunpack.c.2.s8 %v1139
    %v1620 = vunpack.c.2.s8 %v1140
    %v1621 = vunpack.c.3.s8 %v1133
    %v1622 = vunpack.c.3.s8 %v1134
    %v1623 = vunpack.c.3.s8 %v1135
    %v1624 = vunpack.c.3.s8 %v1136
    %v1625 = vunpack.c.3.s8 %v1137
    %v1626 = vunpack.c.3.s8 %v1138
    %v1627 = vunpack.c.3.s8 %v1139
    %v1628 = vunpack.c.3.s8 %v1140
    %v1629 = vunpack.c.0.s8 %v1141
    %v1630 = vunpack.c.0.s8 %v1142
    %v1631 = vunpack.c.0.s8 %v1143
    %v1632 = vunpack.c.0.s8 %v1144
    %v1633 = vunpack.c.0.s8 %v1145
    %v1634 = vunpack.c.0.s8 %v1146
    %v1635 = vunpack.c.0.s8 %v1147
    %v1636 = vunpack.c.0.s8 %v1148
    %v1637 = vunpack.c.1.s8 %v1141
    %v1638 = vunpack.c.1.s8 %v1142
    %v1639 = vunpack.c.1.s8 %v1143
    %v1640 = vunpack.c.1.s8 %v1144
    %v1641 = vunpack.c.1.s8 %v1145
    %v1642 = vunpack.c.1.s8 %v1146
    %v1643 = vunpack.c.1.s8 %v1147
    %v1644 = vunpack.c.1.s8 %v1148
    %v1645 = vunpack.c.2.s8 %v1141
    %v1646 = vunpack.c.2.s8 %v1142
    %v1647 = vunpack.c.2.s8 %v1143
    %v1648 = vunpack.c.2.s8 %v1144
    %v1649 = vunpack.c.2.s8 %v1145
    %v1650 = vunpack.c.2.s8 %v1146
    %v1651 = vunpack.c.2.s8 %v1147
    %v1652 = vunpack.c.2.s8 %v1148
    %v1653 = vunpack.c.3.s8 %v1141
    %v1654 = vunpack.c.3.s8 %v1142
    %v1655 = vunpack.c.3.s8 %v1143
    %v1656 = vunpack.c.3.s8 %v1144
    %v1657 = vunpack.c.3.s8 %v1145
    %v1658 = vunpack.c.3.s8 %v1146
    %v1659 = vunpack.c.3.s8 %v1147
    %v1660 = vunpack.c.3.s8 %v1148
    %v1661 = vcvt.s32.f32 %v1149
    %v1662 = vcvt.s32.f32 %v1150
    %v1663 = vcvt.s32.f32 %v1151
    %v1664 = vcvt.s32.f32 %v1152
    %v1665 = vcvt.s32.f32 %v1153
    %v1666 = vcvt.s32.f32 %v1154
    %v1667 = vcvt.s32.f32 %v1155
    %v1668 = vcvt.s32.f32 %v1156
    %v1669 = vcvt.s32.f32 %v1157
    %v1670 = vcvt.s32.f32 %v1158
    %v1671 = vcvt.s32.f32 %v1159
    %v1672 = vcvt.s32.f32 %v1160
    %v1673 = vcvt.s32.f32 %v1161
    %v1674 = vcvt.s32.f32 %v1162
    %v1675 = vcvt.s32.f32 %v1163
    %v1676 = vcvt.s32.f32 %v1164
    %v1677 = vcvt.s32.f32 %v1165
    %v1678 = vcvt.s32.f32 %v1166
    %v1679 = vcvt.s32.f32 %v1167
    %v1680 = vcvt.s32.f32 %v1168
    %v1681 = vcvt.s32.f32 %v1169
    %v1682 = vcvt.s32.f32 %v1170
    %v1683 = vcvt.s32.f32 %v1171
    %v1684 = vcvt.s32.f32 %v1172
    %v1685 = vcvt.s32.f32 %v1173
    %v1686 = vcvt.s32.f32 %v1174
    %v1687 = vcvt.s32.f32 %v1175
    %v1688 = vcvt.s32.f32 %v1176
    %v1689 = vcvt.s32.f32 %v1177
    %v1690 = vcvt.s32.f32 %v1178
    %v1691 = vcvt.s32.f32 %v1179
    %v1692 = vcvt.s32.f32 %v1180
    %v1693 = vcvt.s32.f32 %v1181
    %v1694 = vcvt.s32.f32 %v1182
    %v1695 = vcvt.s32.f32 %v1183
    %v1696 = vcvt.s32.f32 %v1184
    %v1697 = vcvt.s32.f32 %v1185
    %v1698 = vcvt.s32.f32 %v1186
    %v1699 = vcvt.s32.f32 %v1187
    %v1700 = vcvt.s32.f32 %v1188
    %v1701 = vcvt.s32.f32 %v1189
    %v1702 = vcvt.s32.f32 %v1190
    %v1703 = vcvt.s32.f32 %v1191
    %v1704 = vcvt.s32.f32 %v1192
    %v1705 = vcvt.s32.f32 %v1193
    %v1706 = vcvt.s32.f32 %v1194
    %v1707 = vcvt.s32.f32 %v1195
    %v1708 = vcvt.s32.f32 %v1196
    %v1709 = vcvt.s32.f32 %v1197
    %v1710 = vcvt.s32.f32 %v1198
    %v1711 = vcvt.s32.f32 %v1199
    %v1712 = vcvt.s32.f32 %v1200
    %v1713 = vcvt.s32.f32 %v1201
    %v1714 = vcvt.s32.f32 %v1202
    %v1715 = vcvt.s32.f32 %v1203
    %v1716 = vcvt.s32.f32 %v1204
    %v1717 = vcvt.s32.f32 %v1205
    %v1718 = vcvt.s32.f32 %v1206
    %v1719 = vcvt.s32.f32 %v1207
    %v1720 = vcvt.s32.f32 %v1208
    %v1721 = vcvt.s32.f32 %v1209
    %v1722 = vcvt.s32.f32 %v1210
    %v1723 = vcvt.s32.f32 %v1211
    %v1724 = vcvt.s32.f32 %v1212
    %v1725 = vcvt.s32.f32 %v1213
    %v1726 = vcvt.s32.f32 %v1214
    %v1727 = vcvt.s32.f32 %v1215
    %v1728 = vcvt.s32.f32 %v1216
    %v1729 = vcvt.s32.f32 %v1217
    %v1730 = vcvt.s32.f32 %v1218
    %v1731 = vcvt.s32.f32 %v1219
    %v1732 = vcvt.s32.f32 %v1220
    %v1733 = vcvt.s32.f32 %v1221
    %v1734 = vcvt.s32.f32 %v1222
    %v1735 = vcvt.s32.f32 %v1223
    %v1736 = vcvt.s32.f32 %v1224
    %v1737 = vcvt.s32.f32 %v1225
    %v1738 = vcvt.s32.f32 %v1226
    %v1739 = vcvt.s32.f32 %v1227
    %v1740 = vcvt.s32.f32 %v1228
    %v1741 = vcvt.s32.f32 %v1229
    %v1742 = vcvt.s32.f32 %v1230
    %v1743 = vcvt.s32.f32 %v1231
    %v1744 = vcvt.s32.f32 %v1232
    %v1745 = vcvt.s32.f32 %v1233
    %v1746 = vcvt.s32.f32 %v1234
    %v1747 = vcvt.s32.f32 %v1235
    %v1748 = vcvt.s32.f32 %v1236
    %v1749 = vcvt.s32.f32 %v1237
    %v1750 = vcvt.s32.f32 %v1238
    %v1751 = vcvt.s32.f32 %v1239
    %v1752 = vcvt.s32.f32 %v1240
    %v1753 = vcvt.s32.f32 %v1241
    %v1754 = vcvt.s32.f32 %v1242
    %v1755 = vcvt.s32.f32 %v1243
    %v1756 = vcvt.s32.f32 %v1244
    %v1757 = vcvt.s32.f32 %v1245
    %v1758 = vcvt.s32.f32 %v1246
    %v1759 = vcvt.s32.f32 %v1247
    %v1760 = vcvt.s32.f32 %v1248
    %v1761 = vcvt.s32.f32 %v1249
    %v1762 = vcvt.s32.f32 %v1250
    %v1763 = vcvt.s32.f32 %v1251
    %v1764 = vcvt.s32.f32 %v1252
    %v1765 = vcvt.s32.f32 %v1253
    %v1766 = vcvt.s32.f32 %v1254
    %v1767 = vcvt.s32.f32 %v1255
    %v1768 = vcvt.s32.f32 %v1256
    %v1769 = vcvt.s32.f32 %v1257
    %v1770 = vcvt.s32.f32 %v1258
    %v1771 = vcvt.s32.f32 %v1259
    %v1772 = vcvt.s32.f32 %v1260
    %v1773 = vcvt.s32.f32 %v1261
    %v1774 = vcvt.s32.f32 %v1262
    %v1775 = vcvt.s32.f32 %v1263
    %v1776 = vcvt.s32.f32 %v1264
    %v1777 = vcvt.s32.f32 %v1265
    %v1778 = vcvt.s32.f32 %v1266
    %v1779 = vcvt.s32.f32 %v1267
    %v1780 = vcvt.s32.f32 %v1268
    %v1781 = vcvt.s32.f32 %v1269
    %v1782 = vcvt.s32.f32 %v1270
    %v1783 = vcvt.s32.f32 %v1271
    %v1784 = vcvt.s32.f32 %v1272
    %v1785 = vcvt.s32.f32 %v1273
    %v1786 = vcvt.s32.f32 %v1274
    %v1787 = vcvt.s32.f32 %v1275
    %v1788 = vcvt.s32.f32 %v1276
    %v1789 = vcvt.s32.f32 %v1277
    %v1790 = vcvt.s32.f32 %v1278
    %v1791 = vcvt.s32.f32 %v1279
    %v1792 = vcvt.s32.f32 %v1280
    %v1793 = vcvt.s32.f32 %v1281
    %v1794 = vcvt.s32.f32 %v1282
    %v1795 = vcvt.s32.f32 %v1283
    %v1796 = vcvt.s32.f32 %v1284
    %v1797 = vcvt.s32.f32 %v1285
    %v1798 = vcvt.s32.f32 %v1286
    %v1799 = vcvt.s32.f32 %v1287
    %v1800 = vcvt.s32.f32 %v1288
    %v1801 = vcvt.s32.f32 %v1289
    %v1802 = vcvt.s32.f32 %v1290
    %v1803 = vcvt.s32.f32 %v1291
    %v1804 = vcvt.s32.f32 %v1292
    %v1805 = vcvt.s32.f32 %v1293
    %v1806 = vcvt.s32.f32 %v1294
    %v1807 = vcvt.s32.f32 %v1295
    %v1808 = vcvt.s32.f32 %v1296
    %v1809 = vcvt.s32.f32 %v1297
    %v1810 = vcvt.s32.f32 %v1298
    %v1811 = vcvt.s32.f32 %v1299
    %v1812 = vcvt.s32.f32 %v1300
    %v1813 = vcvt.s32.f32 %v1301
    %v1814 = vcvt.s32.f32 %v1302
    %v1815 = vcvt.s32.f32 %v1303
    %v1816 = vcvt.s32.f32 %v1304
    %v1817 = vcvt.s32.f32 %v1305
    %v1818 = vcvt.s32.f32 %v1306
    %v1819 = vcvt.s32.f32 %v1307
    %v1820 = vcvt.s32.f32 %v1308
    %v1821 = vcvt.s32.f32 %v1309
    %v1822 = vcvt.s32.f32 %v1310
    %v1823 = vcvt.s32.f32 %v1311
    %v1824 = vcvt.s32.f32 %v1312
    %v1825 = vcvt.s32.f32 %v1313
    %v1826 = vcvt.s32.f32 %v1314
    %v1827 = vcvt.s32.f32 %v1315
    %v1828 = vcvt.s32.f32 %v1316
    %v1829 = vcvt.s32.f32 %v1317
    %v1830 = vcvt.s32.f32 %v1318
    %v1831 = vcvt.s32.f32 %v1319
    %v1832 = vcvt.s32.f32 %v1320
    %v1833 = vcvt.s32.f32 %v1321
    %v1834 = vcvt.s32.f32 %v1322
    %v1835 = vcvt.s32.f32 %v1323
    %v1836 = vcvt.s32.f32 %v1324
    %v1837 = vcvt.s32.f32 %v1325
    %v1838 = vcvt.s32.f32 %v1326
    %v1839 = vcvt.s32.f32 %v1327
    %v1840 = vcvt.s32.f32 %v1328
    %v1841 = vcvt.s32.f32 %v1329
    %v1842 = vcvt.s32.f32 %v1330
    %v1843 = vcvt.s32.f32 %v1331
    %v1844 = vcvt.s32.f32 %v1332
    %v1845 = vcvt.s32.f32 %v1333
    %v1846 = vcvt.s32.f32 %v1334
    %v1847 = vcvt.s32.f32 %v1335
    %v1848 = vcvt.s32.f32 %v1336
    %v1849 = vcvt.s32.f32 %v1337
    %v1850 = vcvt.s32.f32 %v1338
    %v1851 = vcvt.s32.f32 %v1339
    %v1852 = vcvt.s32.f32 %v1340
    %v1853 = vcvt.s32.f32 %v1341
    %v1854 = vcvt.s32.f32 %v1342
    %v1855 = vcvt.s32.f32 %v1343
    %v1856 = vcvt.s32.f32 %v1344
    %v1857 = vcvt.s32.f32 %v1345
    %v1858 = vcvt.s32.f32 %v1346
    %v1859 = vcvt.s32.f32 %v1347
    %v1860 = vcvt.s32.f32 %v1348
    %v1861 = vcvt.s32.f32 %v1349
    %v1862 = vcvt.s32.f32 %v1350
    %v1863 = vcvt.s32.f32 %v1351
    %v1864 = vcvt.s32.f32 %v1352
    %v1865 = vcvt.s32.f32 %v1353
    %v1866 = vcvt.s32.f32 %v1354
    %v1867 = vcvt.s32.f32 %v1355
    %v1868 = vcvt.s32.f32 %v1356
    %v1869 = vcvt.s32.f32 %v1357
    %v1870 = vcvt.s32.f32 %v1358
    %v1871 = vcvt.s32.f32 %v1359
    %v1872 = vcvt.s32.f32 %v1360
    %v1873 = vcvt.s32.f32 %v1361
    %v1874 = vcvt.s32.f32 %v1362
    %v1875 = vcvt.s32.f32 %v1363
    %v1876 = vcvt.s32.f32 %v1364
    %v1877 = vcvt.s32.f32 %v1365
    %v1878 = vcvt.s32.f32 %v1366
    %v1879 = vcvt.s32.f32 %v1367
    %v1880 = vcvt.s32.f32 %v1368
    %v1881 = vcvt.s32.f32 %v1369
    %v1882 = vcvt.s32.f32 %v1370
    %v1883 = vcvt.s32.f32 %v1371
    %v1884 = vcvt.s32.f32 %v1372
    %v1885 = vcvt.s32.f32 %v1373
    %v1886 = vcvt.s32.f32 %v1374
    %v1887 = vcvt.s32.f32 %v1375
    %v1888 = vcvt.s32.f32 %v1376
    %v1889 = vcvt.s32.f32 %v1377
    %v1890 = vcvt.s32.f32 %v1378
    %v1891 = vcvt.s32.f32 %v1379
    %v1892 = vcvt.s32.f32 %v1380
    %v1893 = vcvt.s32.f32 %v1381
    %v1894 = vcvt.s32.f32 %v1382
    %v1895 = vcvt.s32.f32 %v1383
    %v1896 = vcvt.s32.f32 %v1384
    %v1897 = vcvt.s32.f32 %v1385
    %v1898 = vcvt.s32.f32 %v1386
    %v1899 = vcvt.s32.f32 %v1387
    %v1900 = vcvt.s32.f32 %v1388
    %v1901 = vcvt.s32.f32 %v1389
    %v1902 = vcvt.s32.f32 %v1390
    %v1903 = vcvt.s32.f32 %v1391
    %v1904 = vcvt.s32.f32 %v1392
    %v1905 = vcvt.s32.f32 %v1393
    %v1906 = vcvt.s32.f32 %v1394
    %v1907 = vcvt.s32.f32 %v1395
    %v1908 = vcvt.s32.f32 %v1396
    %v1909 = vcvt.s32.f32 %v1397
    %v1910 = vcvt.s32.f32 %v1398
    %v1911 = vcvt.s32.f32 %v1399
    %v1912 = vcvt.s32.f32 %v1400
    %v1913 = vcvt.s32.f32 %v1401
    %v1914 = vcvt.s32.f32 %v1402
    %v1915 = vcvt.s32.f32 %v1403
    %v1916 = vcvt.s32.f32 %v1404
    %v1917 = vcvt.s32.f32 %v1405
    %v1918 = vcvt.s32.f32 %v1406
    %v1919 = vcvt.s32.f32 %v1407
    %v1920 = vcvt.s32.f32 %v1408
    %v1921 = vcvt.s32.f32 %v1409
    %v1922 = vcvt.s32.f32 %v1410
    %v1923 = vcvt.s32.f32 %v1411
    %v1924 = vcvt.s32.f32 %v1412
    %v1925 = vcvt.s32.f32 %v1413
    %v1926 = vcvt.s32.f32 %v1414
    %v1927 = vcvt.s32.f32 %v1415
    %v1928 = vcvt.s32.f32 %v1416
    %v1929 = vcvt.s32.f32 %v1417
    %v1930 = vcvt.s32.f32 %v1418
    %v1931 = vcvt.s32.f32 %v1419
    %v1932 = vcvt.s32.f32 %v1420
    %v1933 = vcvt.s32.f32 %v1421
    %v1934 = vcvt.s32.f32 %v1422
    %v1935 = vcvt.s32.f32 %v1423
    %v1936 = vcvt.s32.f32 %v1424
    %v1937 = vcvt.s32.f32 %v1425
    %v1938 = vcvt.s32.f32 %v1426
    %v1939 = vcvt.s32.f32 %v1427
    %v1940 = vcvt.s32.f32 %v1428
    %v1941 = vcvt.s32.f32 %v1429
    %v1942 = vcvt.s32.f32 %v1430
    %v1943 = vcvt.s32.f32 %v1431
    %v1944 = vcvt.s32.f32 %v1432
    %v1945 = vcvt.s32.f32 %v1433
    %v1946 = vcvt.s32.f32 %v1434
    %v1947 = vcvt.s32.f32 %v1435
    %v1948 = vcvt.s32.f32 %v1436
    %v1949 = vcvt.s32.f32 %v1437
    %v1950 = vcvt.s32.f32 %v1438
    %v1951 = vcvt.s32.f32 %v1439
    %v1952 = vcvt.s32.f32 %v1440
    %v1953 = vcvt.s32.f32 %v1441
    %v1954 = vcvt.s32.f32 %v1442
    %v1955 = vcvt.s32.f32 %v1443
    %v1956 = vcvt.s32.f32 %v1444
    %v1957 = vcvt.s32.f32 %v1445
    %v1958 = vcvt.s32.f32 %v1446
    %v1959 = vcvt.s32.f32 %v1447
    %v1960 = vcvt.s32.f32 %v1448
    %v1961 = vcvt.s32.f32 %v1449
    %v1962 = vcvt.s32.f32 %v1450
    %v1963 = vcvt.s32.f32 %v1451
    %v1964 = vcvt.s32.f32 %v1452
    %v1965 = vcvt.s32.f32 %v1453
    %v1966 = vcvt.s32.f32 %v1454
    %v1967 = vcvt.s32.f32 %v1455
    %v1968 = vcvt.s32.f32 %v1456
    %v1969 = vcvt.s32.f32 %v1457
    %v1970 = vcvt.s32.f32 %v1458
    %v1971 = vcvt.s32.f32 %v1459
    %v1972 = vcvt.s32.f32 %v1460
    %v1973 = vcvt.s32.f32 %v1461
    %v1974 = vcvt.s32.f32 %v1462
    %v1975 = vcvt.s32.f32 %v1463
    %v1976 = vcvt.s32.f32 %v1464
    %v1977 = vcvt.s32.f32 %v1465
    %v1978 = vcvt.s32.f32 %v1466
    %v1979 = vcvt.s32.f32 %v1467
    %v1980 = vcvt.s32.f32 %v1468
    %v1981 = vcvt.s32.f32 %v1469
    %v1982 = vcvt.s32.f32 %v1470
    %v1983 = vcvt.s32.f32 %v1471
    %v1984 = vcvt.s32.f32 %v1472
    %v1985 = vcvt.s32.f32 %v1473
    %v1986 = vcvt.s32.f32 %v1474
    %v1987 = vcvt.s32.f32 %v1475
    %v1988 = vcvt.s32.f32 %v1476
    %v1989 = vcvt.s32.f32 %v1477
    %v1990 = vcvt.s32.f32 %v1478
    %v1991 = vcvt.s32.f32 %v1479
    %v1992 = vcvt.s32.f32 %v1480
    %v1993 = vcvt.s32.f32 %v1481
    %v1994 = vcvt.s32.f32 %v1482
    %v1995 = vcvt.s32.f32 %v1483
    %v1996 = vcvt.s32.f32 %v1484
    %v1997 = vcvt.s32.f32 %v1485
    %v1998 = vcvt.s32.f32 %v1486
    %v1999 = vcvt.s32.f32 %v1487
    %v2000 = vcvt.s32.f32 %v1488
    %v2001 = vcvt.s32.f32 %v1489
    %v2002 = vcvt.s32.f32 %v1490
    %v2003 = vcvt.s32.f32 %v1491
    %v2004 = vcvt.s32.f32 %v1492
    %v2005 = vcvt.s32.f32 %v1493
    %v2006 = vcvt.s32.f32 %v1494
    %v2007 = vcvt.s32.f32 %v1495
    %v2008 = vcvt.s32.f32 %v1496
    %v2009 = vcvt.s32.f32 %v1497
    %v2010 = vcvt.s32.f32 %v1498
    %v2011 = vcvt.s32.f32 %v1499
    %v2012 = vcvt.s32.f32 %v1500
    %v2013 = vcvt.s32.f32 %v1501
    %v2014 = vcvt.s32.f32 %v1502
    %v2015 = vcvt.s32.f32 %v1503
    %v2016 = vcvt.s32.f32 %v1504
    %v2017 = vcvt.s32.f32 %v1505
    %v2018 = vcvt.s32.f32 %v1506
    %v2019 = vcvt.s32.f32 %v1507
    %v2020 = vcvt.s32.f32 %v1508
    %v2021 = vcvt.s32.f32 %v1509
    %v2022 = vcvt.s32.f32 %v1510
    %v2023 = vcvt.s32.f32 %v1511
    %v2024 = vcvt.s32.f32 %v1512
    %v2025 = vcvt.s32.f32 %v1513
    %v2026 = vcvt.s32.f32 %v1514
    %v2027 = vcvt.s32.f32 %v1515
    %v2028 = vcvt.s32.f32 %v1516
    %v2029 = vcvt.s32.f32 %v1517
    %v2030 = vcvt.s32.f32 %v1518
    %v2031 = vcvt.s32.f32 %v1519
    %v2032 = vcvt.s32.f32 %v1520
    %v2033 = vcvt.s32.f32 %v1521
    %v2034 = vcvt.s32.f32 %v1522
    %v2035 = vcvt.s32.f32 %v1523
    %v2036 = vcvt.s32.f32 %v1524
    %v2037 = vcvt.s32.f32 %v1525
    %v2038 = vcvt.s32.f32 %v1526
    %v2039 = vcvt.s32.f32 %v1527
    %v2040 = vcvt.s32.f32 %v1528
    %v2041 = vcvt.s32.f32 %v1529
    %v2042 = vcvt.s32.f32 %v1530
    %v2043 = vcvt.s32.f32 %v1531
    %v2044 = vcvt.s32.f32 %v1532
    %v2045 = vcvt.s32.f32 %v1533
    %v2046 = vcvt.s32.f32 %v1534
    %v2047 = vcvt.s32.f32 %v1535
    %v2048 = vcvt.s32.f32 %v1536
    %v2049 = vcvt.s32.f32 %v1537
    %v2050 = vcvt.s32.f32 %v1538
    %v2051 = vcvt.s32.f32 %v1539
    %v2052 = vcvt.s32.f32 %v1540
    %v2053 = vcvt.s32.f32 %v1541
    %v2054 = vcvt.s32.f32 %v1542
    %v2055 = vcvt.s32.f32 %v1543
    %v2056 = vcvt.s32.f32 %v1544
    %v2057 = vcvt.s32.f32 %v1545
    %v2058 = vcvt.s32.f32 %v1546
    %v2059 = vcvt.s32.f32 %v1547
    %v2060 = vcvt.s32.f32 %v1548
    %v2061 = vcvt.s32.f32 %v1549
    %v2062 = vcvt.s32.f32 %v1550
    %v2063 = vcvt.s32.f32 %v1551
    %v2064 = vcvt.s32.f32 %v1552
    %v2065 = vcvt.s32.f32 %v1553
    %v2066 = vcvt.s32.f32 %v1554
    %v2067 = vcvt.s32.f32 %v1555
    %v2068 = vcvt.s32.f32 %v1556
    %v2069 = vcvt.s32.f32 %v1557
    %v2070 = vcvt.s32.f32 %v1558
    %v2071 = vcvt.s32.f32 %v1559
    %v2072 = vcvt.s32.f32 %v1560
    %v2073 = vcvt.s32.f32 %v1561
    %v2074 = vcvt.s32.f32 %v1562
    %v2075 = vcvt.s32.f32 %v1563
    %v2076 = vcvt.s32.f32 %v1564
    %v2077 = vcvt.s32.f32 %v1565
    %v2078 = vcvt.s32.f32 %v1566
    %v2079 = vcvt.s32.f32 %v1567
    %v2080 = vcvt.s32.f32 %v1568
    %v2081 = vcvt.s32.f32 %v1569
    %v2082 = vcvt.s32.f32 %v1570
    %v2083 = vcvt.s32.f32 %v1571
    %v2084 = vcvt.s32.f32 %v1572
    %v2085 = vcvt.s32.f32 %v1573
    %v2086 = vcvt.s32.f32 %v1574
    %v2087 = vcvt.s32.f32 %v1575
    %v2088 = vcvt.s32.f32 %v1576
    %v2089 = vcvt.s32.f32 %v1577
    %v2090 = vcvt.s32.f32 %v1578
    %v2091 = vcvt.s32.f32 %v1579
    %v2092 = vcvt.s32.f32 %v1580
    %v2093 = vcvt.s32.f32 %v1581
    %v2094 = vcvt.s32.f32 %v1582
    %v2095 = vcvt.s32.f32 %v1583
    %v2096 = vcvt.s32.f32 %v1584
    %v2097 = vcvt.s32.f32 %v1585
    %v2098 = vcvt.s32.f32 %v1586
    %v2099 = vcvt.s32.f32 %v1587
    %v2100 = vcvt.s32.f32 %v1588
    %v2101 = vcvt.s32.f32 %v1589
    %v2102 = vcvt.s32.f32 %v1590
    %v2103 = vcvt.s32.f32 %v1591
    %v2104 = vcvt.s32.f32 %v1592
    %v2105 = vcvt.s32.f32 %v1593
    %v2106 = vcvt.s32.f32 %v1594
    %v2107 = vcvt.s32.f32 %v1595
    %v2108 = vcvt.s32.f32 %v1596
    %v2109 = vcvt.s32.f32 %v1597
    %v2110 = vcvt.s32.f32 %v1598
    %v2111 = vcvt.s32.f32 %v1599
    %v2112 = vcvt.s32.f32 %v1600
    %v2113 = vcvt.s32.f32 %v1601
    %v2114 = vcvt.s32.f32 %v1602
    %v2115 = vcvt.s32.f32 %v1603
    %v2116 = vcvt.s32.f32 %v1604
    %v2117 = vcvt.s32.f32 %v1605
    %v2118 = vcvt.s32.f32 %v1606
    %v2119 = vcvt.s32.f32 %v1607
    %v2120 = vcvt.s32.f32 %v1608
    %v2121 = vcvt.s32.f32 %v1609
    %v2122 = vcvt.s32.f32 %v1610
    %v2123 = vcvt.s32.f32 %v1611
    %v2124 = vcvt.s32.f32 %v1612
    %v2125 = vcvt.s32.f32 %v1613
    %v2126 = vcvt.s32.f32 %v1614
    %v2127 = vcvt.s32.f32 %v1615
    %v2128 = vcvt.s32.f32 %v1616
    %v2129 = vcvt.s32.f32 %v1617
    %v2130 = vcvt.s32.f32 %v1618
    %v2131 = vcvt.s32.f32 %v1619
    %v2132 = vcvt.s32.f32 %v1620
    %v2133 = vcvt.s32.f32 %v1621
    %v2134 = vcvt.s32.f32 %v1622
    %v2135 = vcvt.s32.f32 %v1623
    %v2136 = vcvt.s32.f32 %v1624
    %v2137 = vcvt.s32.f32 %v1625
    %v2138 = vcvt.s32.f32 %v1626
    %v2139 = vcvt.s32.f32 %v1627
    %v2140 = vcvt.s32.f32 %v1628
    %v2141 = vcvt.s32.f32 %v1629
    %v2142 = vcvt.s32.f32 %v1630
    %v2143 = vcvt.s32.f32 %v1631
    %v2144 = vcvt.s32.f32 %v1632
    %v2145 = vcvt.s32.f32 %v1633
    %v2146 = vcvt.s32.f32 %v1634
    %v2147 = vcvt.s32.f32 %v1635
    %v2148 = vcvt.s32.f32 %v1636
    %v2149 = vcvt.s32.f32 %v1637
    %v2150 = vcvt.s32.f32 %v1638
    %v2151 = vcvt.s32.f32 %v1639
    %v2152 = vcvt.s32.f32 %v1640
    %v2153 = vcvt.s32.f32 %v1641
    %v2154 = vcvt.s32.f32 %v1642
    %v2155 = vcvt.s32.f32 %v1643
    %v2156 = vcvt.s32.f32 %v1644
    %v2157 = vcvt.s32.f32 %v1645
    %v2158 = vcvt.s32.f32 %v1646
    %v2159 = vcvt.s32.f32 %v1647
    %v2160 = vcvt.s32.f32 %v1648
    %v2161 = vcvt.s32.f32 %v1649
    %v2162 = vcvt.s32.f32 %v1650
    %v2163 = vcvt.s32.f32 %v1651
    %v2164 = vcvt.s32.f32 %v1652
    %v2165 = vcvt.s32.f32 %v1653
    %v2166 = vcvt.s32.f32 %v1654
    %v2167 = vcvt.s32.f32 %v1655
    %v2168 = vcvt.s32.f32 %v1656
    %v2169 = vcvt.s32.f32 %v1657
    %v2170 = vcvt.s32.f32 %v1658
    %v2171 = vcvt.s32.f32 %v1659
    %v2172 = vcvt.s32.f32 %v1660
    %v2173 = vpack.c.bf16 %v1669, %v1661
    %v2174 = vpack.c.bf16 %v1670, %v1662
    %v2175 = vpack.c.bf16 %v1671, %v1663
    %v2176 = vpack.c.bf16 %v1672, %v1664
    %v2177 = vpack.c.bf16 %v1673, %v1665
    %v2178 = vpack.c.bf16 %v1674, %v1666
    %v2179 = vpack.c.bf16 %v1675, %v1667
    %v2180 = vpack.c.bf16 %v1676, %v1668
    %v2181 = vpack.c.bf16 %v1685, %v1677
    %v2182 = vpack.c.bf16 %v1686, %v1678
    %v2183 = vpack.c.bf16 %v1687, %v1679
    %v2184 = vpack.c.bf16 %v1688, %v1680
    %v2185 = vpack.c.bf16 %v1689, %v1681
    %v2186 = vpack.c.bf16 %v1690, %v1682
    %v2187 = vpack.c.bf16 %v1691, %v1683
    %v2188 = vpack.c.bf16 %v1692, %v1684
    %v2189 = vpack.c.bf16 %v1701, %v1693
    %v2190 = vpack.c.bf16 %v1702, %v1694
    %v2191 = vpack.c.bf16 %v1703, %v1695
    %v2192 = vpack.c.bf16 %v1704, %v1696
    %v2193 = vpack.c.bf16 %v1705, %v1697
    %v2194 = vpack.c.bf16 %v1706, %v1698
    %v2195 = vpack.c.bf16 %v1707, %v1699
    %v2196 = vpack.c.bf16 %v1708, %v1700
    %v2197 = vpack.c.bf16 %v1717, %v1709
    %v2198 = vpack.c.bf16 %v1718, %v1710
    %v2199 = vpack.c.bf16 %v1719, %v1711
    %v2200 = vpack.c.bf16 %v1720, %v1712
    %v2201 = vpack.c.bf16 %v1721, %v1713
    %v2202 = vpack.c.bf16 %v1722, %v1714
    %v2203 = vpack.c.bf16 %v1723, %v1715
    %v2204 = vpack.c.bf16 %v1724, %v1716
    %v2205 = vpack.c.bf16 %v1733, %v1725
    %v2206 = vpack.c.bf16 %v1734, %v1726
    %v2207 = vpack.c.bf16 %v1735, %v1727
    %v2208 = vpack.c.bf16 %v1736, %v1728
    %v2209 = vpack.c.bf16 %v1737, %v1729
    %v2210 = vpack.c.bf16 %v1738, %v1730
    %v2211 = vpack.c.bf16 %v1739, %v1731
    %v2212 = vpack.c.bf16 %v1740, %v1732
    %v2213 = vpack.c.bf16 %v1749, %v1741
    %v2214 = vpack.c.bf16 %v1750, %v1742
    %v2215 = vpack.c.bf16 %v1751, %v1743
    %v2216 = vpack.c.bf16 %v1752, %v1744
    %v2217 = vpack.c.bf16 %v1753, %v1745
    %v2218 = vpack.c.bf16 %v1754, %v1746
    %v2219 = vpack.c.bf16 %v1755, %v1747
    %v2220 = vpack.c.bf16 %v1756, %v1748
    %v2221 = vpack.c.bf16 %v1765, %v1757
    %v2222 = vpack.c.bf16 %v1766, %v1758
    %v2223 = vpack.c.bf16 %v1767, %v1759
    %v2224 = vpack.c.bf16 %v1768, %v1760
    %v2225 = vpack.c.bf16 %v1769, %v1761
    %v2226 = vpack.c.bf16 %v1770, %v1762
    %v2227 = vpack.c.bf16 %v1771, %v1763
    %v2228 = vpack.c.bf16 %v1772, %v1764
    %v2229 = vpack.c.bf16 %v1781, %v1773
    %v2230 = vpack.c.bf16 %v1782, %v1774
    %v2231 = vpack.c.bf16 %v1783, %v1775
    %v2232 = vpack.c.bf16 %v1784, %v1776
    %v2233 = vpack.c.bf16 %v1785, %v1777
    %v2234 = vpack.c.bf16 %v1786, %v1778
    %v2235 = vpack.c.bf16 %v1787, %v1779
    %v2236 = vpack.c.bf16 %v1788, %v1780
    %v2237 = vpack.c.bf16 %v1797, %v1789
    %v2238 = vpack.c.bf16 %v1798, %v1790
    %v2239 = vpack.c.bf16 %v1799, %v1791
    %v2240 = vpack.c.bf16 %v1800, %v1792
    %v2241 = vpack.c.bf16 %v1801, %v1793
    %v2242 = vpack.c.bf16 %v1802, %v1794
    %v2243 = vpack.c.bf16 %v1803, %v1795
    %v2244 = vpack.c.bf16 %v1804, %v1796
    %v2245 = vpack.c.bf16 %v1813, %v1805
    %v2246 = vpack.c.bf16 %v1814, %v1806
    %v2247 = vpack.c.bf16 %v1815, %v1807
    %v2248 = vpack.c.bf16 %v1816, %v1808
    %v2249 = vpack.c.bf16 %v1817, %v1809
    %v2250 = vpack.c.bf16 %v1818, %v1810
    %v2251 = vpack.c.bf16 %v1819, %v1811
    %v2252 = vpack.c.bf16 %v1820, %v1812
    %v2253 = vpack.c.bf16 %v1829, %v1821
    %v2254 = vpack.c.bf16 %v1830, %v1822
    %v2255 = vpack.c.bf16 %v1831, %v1823
    %v2256 = vpack.c.bf16 %v1832, %v1824
    %v2257 = vpack.c.bf16 %v1833, %v1825
    %v2258 = vpack.c.bf16 %v1834, %v1826
    %v2259 = vpack.c.bf16 %v1835, %v1827
    %v2260 = vpack.c.bf16 %v1836, %v1828
    %v2261 = vpack.c.bf16 %v1845, %v1837
    %v2262 = vpack.c.bf16 %v1846, %v1838
    %v2263 = vpack.c.bf16 %v1847, %v1839
    %v2264 = vpack.c.bf16 %v1848, %v1840
    %v2265 = vpack.c.bf16 %v1849, %v1841
    %v2266 = vpack.c.bf16 %v1850, %v1842
    %v2267 = vpack.c.bf16 %v1851, %v1843
    %v2268 = vpack.c.bf16 %v1852, %v1844
    %v2269 = vpack.c.bf16 %v1861, %v1853
    %v2270 = vpack.c.bf16 %v1862, %v1854
    %v2271 = vpack.c.bf16 %v1863, %v1855
    %v2272 = vpack.c.bf16 %v1864, %v1856
    %v2273 = vpack.c.bf16 %v1865, %v1857
    %v2274 = vpack.c.bf16 %v1866, %v1858
    %v2275 = vpack.c.bf16 %v1867, %v1859
    %v2276 = vpack.c.bf16 %v1868, %v1860
    %v2277 = vpack.c.bf16 %v1877, %v1869
    %v2278 = vpack.c.bf16 %v1878, %v1870
    %v2279 = vpack.c.bf16 %v1879, %v1871
    %v2280 = vpack.c.bf16 %v1880, %v1872
    %v2281 = vpack.c.bf16 %v1881, %v1873
    %v2282 = vpack.c.bf16 %v1882, %v1874
    %v2283 = vpack.c.bf16 %v1883, %v1875
    %v2284 = vpack.c.bf16 %v1884, %v1876
    %v2285 = vpack.c.bf16 %v1893, %v1885
    %v2286 = vpack.c.bf16 %v1894, %v1886
    %v2287 = vpack.c.bf16 %v1895, %v1887
    %v2288 = vpack.c.bf16 %v1896, %v1888
    %v2289 = vpack.c.bf16 %v1897, %v1889
    %v2290 = vpack.c.bf16 %v1898, %v1890
    %v2291 = vpack.c.bf16 %v1899, %v1891
    %v2292 = vpack.c.bf16 %v1900, %v1892
    %v2293 = vpack.c.bf16 %v1909, %v1901
    %v2294 = vpack.c.bf16 %v1910, %v1902
    %v2295 = vpack.c.bf16 %v1911, %v1903
    %v2296 = vpack.c.bf16 %v1912, %v1904
    %v2297 = vpack.c.bf16 %v1913, %v1905
    %v2298 = vpack.c.bf16 %v1914, %v1906
    %v2299 = vpack.c.bf16 %v1915, %v1907
    %v2300 = vpack.c.bf16 %v1916, %v1908
    %v2301 = vpack.c.bf16 %v1925, %v1917
    %v2302 = vpack.c.bf16 %v1926, %v1918
    %v2303 = vpack.c.bf16 %v1927, %v1919
    %v2304 = vpack.c.bf16 %v1928, %v1920
    %v2305 = vpack.c.bf16 %v1929, %v1921
    %v2306 = vpack.c.bf16 %v1930, %v1922
    %v2307 = vpack.c.bf16 %v1931, %v1923
    %v2308 = vpack.c.bf16 %v1932, %v1924
    %v2309 = vpack.c.bf16 %v1941, %v1933
    %v2310 = vpack.c.bf16 %v1942, %v1934
    %v2311 = vpack.c.bf16 %v1943, %v1935
    %v2312 = vpack.c.bf16 %v1944, %v1936
    %v2313 = vpack.c.bf16 %v1945, %v1937
    %v2314 = vpack.c.bf16 %v1946, %v1938
    %v2315 = vpack.c.bf16 %v1947, %v1939
    %v2316 = vpack.c.bf16 %v1948, %v1940
    %v2317 = vpack.c.bf16 %v1957, %v1949
    %v2318 = vpack.c.bf16 %v1958, %v1950
    %v2319 = vpack.c.bf16 %v1959, %v1951
    %v2320 = vpack.c.bf16 %v1960, %v1952
    %v2321 = vpack.c.bf16 %v1961, %v1953
    %v2322 = vpack.c.bf16 %v1962, %v1954
    %v2323 = vpack.c.bf16 %v1963, %v1955
    %v2324 = vpack.c.bf16 %v1964, %v1956
    %v2325 = vpack.c.bf16 %v1973, %v1965
    %v2326 = vpack.c.bf16 %v1974, %v1966
    %v2327 = vpack.c.bf16 %v1975, %v1967
    %v2328 = vpack.c.bf16 %v1976, %v1968
    %v2329 = vpack.c.bf16 %v1977, %v1969
    %v2330 = vpack.c.bf16 %v1978, %v1970
    %v2331 = vpack.c.bf16 %v1979, %v1971
    %v2332 = vpack.c.bf16 %v1980, %v1972
    %v2333 = vpack.c.bf16 %v1989, %v1981
    %v2334 = vpack.c.bf16 %v1990, %v1982
    %v2335 = vpack.c.bf16 %v1991, %v1983
    %v2336 = vpack.c.bf16 %v1992, %v1984
    %v2337 = vpack.c.bf16 %v1993, %v1985
    %v2338 = vpack.c.bf16 %v1994, %v1986
    %v2339 = vpack.c.bf16 %v1995, %v1987
    %v2340 = vpack.c.bf16 %v1996, %v1988
    %v2341 = vpack.c.bf16 %v2005, %v1997
    %v2342 = vpack.c.bf16 %v2006, %v1998
    %v2343 = vpack.c.bf16 %v2007, %v1999
    %v2344 = vpack.c.bf16 %v2008, %v2000
    %v2345 = vpack.c.bf16 %v2009, %v2001
    %v2346 = vpack.c.bf16 %v2010, %v2002
    %v2347 = vpack.c.bf16 %v2011, %v2003
    %v2348 = vpack.c.bf16 %v2012, %v2004
    %v2349 = vpack.c.bf16 %v2021, %v2013
    %v2350 = vpack.c.bf16 %v2022, %v2014
    %v2351 = vpack.c.bf16 %v2023, %v2015
    %v2352 = vpack.c.bf16 %v2024, %v2016
    %v2353 = vpack.c.bf16 %v2025, %v2017
    %v2354 = vpack.c.bf16 %v2026, %v2018
    %v2355 = vpack.c.bf16 %v2027, %v2019
    %v2356 = vpack.c.bf16 %v2028, %v2020
    %v2357 = vpack.c.bf16 %v2037, %v2029
    %v2358 = vpack.c.bf16 %v2038, %v2030
    %v2359 = vpack.c.bf16 %v2039, %v2031
    %v2360 = vpack.c.bf16 %v2040, %v2032
    %v2361 = vpack.c.bf16 %v2041, %v2033
    %v2362 = vpack.c.bf16 %v2042, %v2034
    %v2363 = vpack.c.bf16 %v2043, %v2035
    %v2364 = vpack.c.bf16 %v2044, %v2036
    %v2365 = vpack.c.bf16 %v2053, %v2045
    %v2366 = vpack.c.bf16 %v2054, %v2046
    %v2367 = vpack.c.bf16 %v2055, %v2047
    %v2368 = vpack.c.bf16 %v2056, %v2048
    %v2369 = vpack.c.bf16 %v2057, %v2049
    %v2370 = vpack.c.bf16 %v2058, %v2050
    %v2371 = vpack.c.bf16 %v2059, %v2051
    %v2372 = vpack.c.bf16 %v2060, %v2052
    %v2373 = vpack.c.bf16 %v2069, %v2061
    %v2374 = vpack.c.bf16 %v2070, %v2062
    %v2375 = vpack.c.bf16 %v2071, %v2063
    %v2376 = vpack.c.bf16 %v2072, %v2064
    %v2377 = vpack.c.bf16 %v2073, %v2065
    %v2378 = vpack.c.bf16 %v2074, %v2066
    %v2379 = vpack.c.bf16 %v2075, %v2067
    %v2380 = vpack.c.bf16 %v2076, %v2068
    %v2381 = vpack.c.bf16 %v2085, %v2077
    %v2382 = vpack.c.bf16 %v2086, %v2078
    %v2383 = vpack.c.bf16 %v2087, %v2079
    %v2384 = vpack.c.bf16 %v2088, %v2080
    %v2385 = vpack.c.bf16 %v2089, %v2081
    %v2386 = vpack.c.bf16 %v2090, %v2082
    %v2387 = vpack.c.bf16 %v2091, %v2083
    %v2388 = vpack.c.bf16 %v2092, %v2084
    %v2389 = vpack.c.bf16 %v2101, %v2093
    %v2390 = vpack.c.bf16 %v2102, %v2094
    %v2391 = vpack.c.bf16 %v2103, %v2095
    %v2392 = vpack.c.bf16 %v2104, %v2096
    %v2393 = vpack.c.bf16 %v2105, %v2097
    %v2394 = vpack.c.bf16 %v2106, %v2098
    %v2395 = vpack.c.bf16 %v2107, %v2099
    %v2396 = vpack.c.bf16 %v2108, %v2100
    %v2397 = vpack.c.bf16 %v2117, %v2109
    %v2398 = vpack.c.bf16 %v2118, %v2110
    %v2399 = vpack.c.bf16 %v2119, %v2111
    %v2400 = vpack.c.bf16 %v2120, %v2112
    %v2401 = vpack.c.bf16 %v2121, %v2113
    %v2402 = vpack.c.bf16 %v2122, %v2114
    %v2403 = vpack.c.bf16 %v2123, %v2115
    %v2404 = vpack.c.bf16 %v2124, %v2116
    %v2405 = vpack.c.bf16 %v2133, %v2125
    %v2406 = vpack.c.bf16 %v2134, %v2126
    %v2407 = vpack.c.bf16 %v2135, %v2127
    %v2408 = vpack.c.bf16 %v2136, %v2128
    %v2409 = vpack.c.bf16 %v2137, %v2129
    %v2410 = vpack.c.bf16 %v2138, %v2130
    %v2411 = vpack.c.bf16 %v2139, %v2131
    %v2412 = vpack.c.bf16 %v2140, %v2132
    %v2413 = vpack.c.bf16 %v2149, %v2141
    %v2414 = vpack.c.bf16 %v2150, %v2142
    %v2415 = vpack.c.bf16 %v2151, %v2143
    %v2416 = vpack.c.bf16 %v2152, %v2144
    %v2417 = vpack.c.bf16 %v2153, %v2145
    %v2418 = vpack.c.bf16 %v2154, %v2146
    %v2419 = vpack.c.bf16 %v2155, %v2147
    %v2420 = vpack.c.bf16 %v2156, %v2148
    %v2421 = vpack.c.bf16 %v2165, %v2157
    %v2422 = vpack.c.bf16 %v2166, %v2158
    %v2423 = vpack.c.bf16 %v2167, %v2159
    %v2424 = vpack.c.bf16 %v2168, %v2160
    %v2425 = vpack.c.bf16 %v2169, %v2161
    %v2426 = vpack.c.bf16 %v2170, %v2162
    %v2427 = vpack.c.bf16 %v2171, %v2163
    %v2428 = vpack.c.bf16 %v2172, %v2164
    %2429 = vmatpush.bf16.msra.mxu0 %v2229
    %2430 = vmatpush.bf16.msra.mxu0 %v2221
    %2431 = vmatpush.bf16.msra.mxu0 %v2213
    %2432 = vmatpush.bf16.msra.mxu0 %v2205
    %2433 = vmatpush.bf16.msra.mxu0 %v2197
    %2434 = vmatpush.bf16.msra.mxu0 %v2189
    %2435 = vmatpush.bf16.msra.mxu0 %v2181
    %2436 = vmatpush.bf16.msra.mxu0 %v2173
    %2437 = vmatmul.bf16.gmra.mxu0 %v1017
    %v2438 = vpop.f32.mrf.mxu0
    %v2439 = vadd.f32 0.0, %v2438
    %v2440 = vpop.f32.mrf.mxu0
    %2441 = vdwg.mxu0
    %2442 = vmatpush.bf16.msra.mxu0 %v2293
    %2443 = vmatpush.bf16.msra.mxu0 %v2285
    %2444 = vmatpush.bf16.msra.mxu0 %v2277
    %2445 = vmatpush.bf16.msra.mxu0 %v2269
    %2446 = vmatpush.bf16.msra.mxu0 %v2261
    %2447 = vmatpush.bf16.msra.mxu0 %v2253
    %2448 = vmatpush.bf16.msra.mxu0 %v2245
    %2449 = vmatpush.bf16.msra.mxu0 %v2237
    %2450 = vmatmul.bf16.gmra.mxu0 %v1018
    %v2451 = vpop.f32.mrf.mxu0
    %v2452 = vadd.f32 %v2439, %v2451
    %v2453 = vpop.f32.mrf.mxu0
    %2454 = vdwg.mxu0
    %2455 = vmatpush.bf16.msra.mxu0 %v2357
    %2456 = vmatpush.bf16.msra.mxu0 %v2349
    %2457 = vmatpush.bf16.msra.mxu0 %v2341
    %2458 = vmatpush.bf16.msra.mxu0 %v2333
    %2459 = vmatpush.bf16.msra.mxu0 %v2325
    %2460 = vmatpush.bf16.msra.mxu0 %v2317
    %2461 = vmatpush.bf16.msra.mxu0 %v2309
    %2462 = vmatpush.bf16.msra.mxu0 %v2301
    %2463 = vmatmul.bf16.gmra.mxu0 %v1019
    %v2464 = vpop.f32.mrf.mxu0
    %v2465 = vadd.f32 %v2452, %v2464
    %v2466 = vpop.f32.mrf.mxu0
    %2467 = vdwg.mxu0
    %2468 = vmatpush.bf16.msra.mxu0 %v2421
    %2469 = vmatpush.bf16.msra.mxu0 %v2413
    %2470 = vmatpush.bf16.msra.mxu0 %v2405
    %2471 = vmatpush.bf16.msra.mxu0 %v2397
    %2472 = vmatpush.bf16.msra.mxu0 %v2389
    %2473 = vmatpush.bf16.msra.mxu0 %v2381
    %2474 = vmatpush.bf16.msra.mxu0 %v2373
    %2475 = vmatpush.bf16.msra.mxu0 %v2365
    %2476 = vmatmul.bf16.gmra.mxu0 %v1020
    %v2477 = vpop.f32.mrf.mxu0
    %v2478 = vadd.f32 %v2465, %v2477
    %v2479 = vpop.f32.mrf.mxu0
    %2480 = vdwg.mxu0
    %2481 = vmatpush.bf16.msra.mxu0 %v2230
    %2482 = vmatpush.bf16.msra.mxu0 %v2222
    %2483 = vmatpush.bf16.msra.mxu0 %v2214
    %2484 = vmatpush.bf16.msra.mxu0 %v2206
    %2485 = vmatpush.bf16.msra.mxu0 %v2198
    %2486 = vmatpush.bf16.msra.mxu0 %v2190
    %2487 = vmatpush.bf16.msra.mxu0 %v2182
    %2488 = vmatpush.bf16.msra.mxu0 %v2174
    %2489 = vmatmul.bf16.gmra.mxu0 %v1017
    %v2490 = vpop.f32.mrf.mxu0
    %v2491 = vadd.f32 0.0, %v2490
    %v2492 = vpop.f32.mrf.mxu0
    %2493 = vdwg.mxu0
    %2494 = vmatpush.bf16.msra.mxu0 %v2294
    %2495 = vmatpush.bf16.msra.mxu0 %v2286
    %2496 = vmatpush.bf16.msra.mxu0 %v2278
    %2497 = vmatpush.bf16.msra.mxu0 %v2270
    %2498 = vmatpush.bf16.msra.mxu0 %v2262
    %2499 = vmatpush.bf16.msra.mxu0 %v2254
    %2500 = vmatpush.bf16.msra.mxu0 %v2246
    %2501 = vmatpush.bf16.msra.mxu0 %v2238
    %2502 = vmatmul.bf16.gmra.mxu0 %v1018
    %v2503 = vpop.f32.mrf.mxu0
    %v2504 = vadd.f32 %v2491, %v2503
    %v2505 = vpop.f32.mrf.mxu0
    %2506 = vdwg.mxu0
    %2507 = vmatpush.bf16.msra.mxu0 %v2358
    %2508 = vmatpush.bf16.msra.mxu0 %v2350
    %2509 = vmatpush.bf16.msra.mxu0 %v2342
    %2510 = vmatpush.bf16.msra.mxu0 %v2334
    %2511 = vmatpush.bf16.msra.mxu0 %v2326
    %2512 = vmatpush.bf16.msra.mxu0 %v2318
    %2513 = vmatpush.bf16.msra.mxu0 %v2310
    %2514 = vmatpush.bf16.msra.mxu0 %v2302
    %2515 = vmatmul.bf16.gmra.mxu0 %v1019
    %v2516 = vpop.f32.mrf.mxu0
    %v2517 = vadd.f32 %v2504, %v2516
    %v2518 = vpop.f32.mrf.mxu0
    %2519 = vdwg.mxu0
    %2520 = vmatpush.bf16.msra.mxu0 %v2422
    %2521 = vmatpush.bf16.msra.mxu0 %v2414
    %2522 = vmatpush.bf16.msra.mxu0 %v2406
    %2523 = vmatpush.bf16.msra.mxu0 %v2398
    %2524 = vmatpush.bf16.msra.mxu0 %v2390
    %2525 = vmatpush.bf16.msra.mxu0 %v2382
    %2526 = vmatpush.bf16.msra.mxu0 %v2374
    %2527 = vmatpush.bf16.msra.mxu0 %v2366
    %2528 = vmatmul.bf16.gmra.mxu0 %v1020
    %v2529 = vpop.f32.mrf.mxu0
    %v2530 = vadd.f32 %v2517, %v2529
    %v2531 = vpop.f32.mrf.mxu0
    %2532 = vdwg.mxu0
    %2533 = vmatpush.bf16.msra.mxu0 %v2231
    %2534 = vmatpush.bf16.msra.mxu0 %v2223
    %2535 = vmatpush.bf16.msra.mxu0 %v2215
    %2536 = vmatpush.bf16.msra.mxu0 %v2207
    %2537 = vmatpush.bf16.msra.mxu0 %v2199
    %2538 = vmatpush.bf16.msra.mxu0 %v2191
    %2539 = vmatpush.bf16.msra.mxu0 %v2183
    %2540 = vmatpush.bf16.msra.mxu0 %v2175
    %2541 = vmatmul.bf16.gmra.mxu0 %v1017
    %v2542 = vpop.f32.mrf.mxu0
    %v2543 = vadd.f32 0.0, %v2542
    %v2544 = vpop.f32.mrf.mxu0
    %2545 = vdwg.mxu0
    %2546 = vmatpush.bf16.msra.mxu0 %v2295
    %2547 = vmatpush.bf16.msra.mxu0 %v2287
    %2548 = vmatpush.bf16.msra.mxu0 %v2279
    %2549 = vmatpush.bf16.msra.mxu0 %v2271
    %2550 = vmatpush.bf16.msra.mxu0 %v2263
    %2551 = vmatpush.bf16.msra.mxu0 %v2255
    %2552 = vmatpush.bf16.msra.mxu0 %v2247
    %2553 = vmatpush.bf16.msra.mxu0 %v2239
    %2554 = vmatmul.bf16.gmra.mxu0 %v1018
    %v2555 = vpop.f32.mrf.mxu0
    %v2556 = vadd.f32 %v2543, %v2555
    %v2557 = vpop.f32.mrf.mxu0
    %2558 = vdwg.mxu0
    %2559 = vmatpush.bf16.msra.mxu0 %v2359
    %2560 = vmatpush.bf16.msra.mxu0 %v2351
    %2561 = vmatpush.bf16.msra.mxu0 %v2343
    %2562 = vmatpush.bf16.msra.mxu0 %v2335
    %2563 = vmatpush.bf16.msra.mxu0 %v2327
    %2564 = vmatpush.bf16.msra.mxu0 %v2319
    %2565 = vmatpush.bf16.msra.mxu0 %v2311
    %2566 = vmatpush.bf16.msra.mxu0 %v2303
    %2567 = vmatmul.bf16.gmra.mxu0 %v1019
    %v2568 = vpop.f32.mrf.mxu0
    %v2569 = vadd.f32 %v2556, %v2568
    %v2570 = vpop.f32.mrf.mxu0
    %2571 = vdwg.mxu0
    %2572 = vmatpush.bf16.msra.mxu0 %v2423
    %2573 = vmatpush.bf16.msra.mxu0 %v2415
    %2574 = vmatpush.bf16.msra.mxu0 %v2407
    %2575 = vmatpush.bf16.msra.mxu0 %v2399
    %2576 = vmatpush.bf16.msra.mxu0 %v2391
    %2577 = vmatpush.bf16.msra.mxu0 %v2383
    %2578 = vmatpush.bf16.msra.mxu0 %v2375
    %2579 = vmatpush.bf16.msra.mxu0 %v2367
    %2580 = vmatmul.bf16.gmra.mxu0 %v1020
    %v2581 = vpop.f32.mrf.mxu0
    %v2582 = vadd.f32 %v2569, %v2581
    %v2583 = vpop.f32.mrf.mxu0
    %2584 = vdwg.mxu0
    %2585 = vmatpush.bf16.msra.mxu0 %v2232
    %2586 = vmatpush.bf16.msra.mxu0 %v2224
    %2587 = vmatpush.bf16.msra.mxu0 %v2216
    %2588 = vmatpush.bf16.msra.mxu0 %v2208
    %2589 = vmatpush.bf16.msra.mxu0 %v2200
    %2590 = vmatpush.bf16.msra.mxu0 %v2192
    %2591 = vmatpush.bf16.msra.mxu0 %v2184
    %2592 = vmatpush.bf16.msra.mxu0 %v2176
    %2593 = vmatmul.bf16.gmra.mxu0 %v1017
    %v2594 = vpop.f32.mrf.mxu0
    %v2595 = vadd.f32 0.0, %v2594
    %v2596 = vpop.f32.mrf.mxu0
    %2597 = vdwg.mxu0
    %2598 = vmatpush.bf16.msra.mxu0 %v2296
    %2599 = vmatpush.bf16.msra.mxu0 %v2288
    %2600 = vmatpush.bf16.msra.mxu0 %v2280
    %2601 = vmatpush.bf16.msra.mxu0 %v2272
    %2602 = vmatpush.bf16.msra.mxu0 %v2264
    %2603 = vmatpush.bf16.msra.mxu0 %v2256
    %2604 = vmatpush.bf16.msra.mxu0 %v2248
    %2605 = vmatpush.bf16.msra.mxu0 %v2240
    %2606 = vmatmul.bf16.gmra.mxu0 %v1018
    %v2607 = vpop.f32.mrf.mxu0
    %v2608 = vadd.f32 %v2595, %v2607
    %v2609 = vpop.f32.mrf.mxu0
    %2610 = vdwg.mxu0
    %2611 = vmatpush.bf16.msra.mxu0 %v2360
    %2612 = vmatpush.bf16.msra.mxu0 %v2352
    %2613 = vmatpush.bf16.msra.mxu0 %v2344
    %2614 = vmatpush.bf16.msra.mxu0 %v2336
    %2615 = vmatpush.bf16.msra.mxu0 %v2328
    %2616 = vmatpush.bf16.msra.mxu0 %v2320
    %2617 = vmatpush.bf16.msra.mxu0 %v2312
    %2618 = vmatpush.bf16.msra.mxu0 %v2304
    %2619 = vmatmul.bf16.gmra.mxu0 %v1019
    %v2620 = vpop.f32.mrf.mxu0
    %v2621 = vadd.f32 %v2608, %v2620
    %v2622 = vpop.f32.mrf.mxu0
    %2623 = vdwg.mxu0
    %2624 = vmatpush.bf16.msra.mxu0 %v2424
    %2625 = vmatpush.bf16.msra.mxu0 %v2416
    %2626 = vmatpush.bf16.msra.mxu0 %v2408
    %2627 = vmatpush.bf16.msra.mxu0 %v2400
    %2628 = vmatpush.bf16.msra.mxu0 %v2392
    %2629 = vmatpush.bf16.msra.mxu0 %v2384
    %2630 = vmatpush.bf16.msra.mxu0 %v2376
    %2631 = vmatpush.bf16.msra.mxu0 %v2368
    %2632 = vmatmul.bf16.gmra.mxu0 %v1020
    %v2633 = vpop.f32.mrf.mxu0
    %v2634 = vadd.f32 %v2621, %v2633
    %v2635 = vpop.f32.mrf.mxu0
    %2636 = vdwg.mxu0
    %2637 = vmatpush.bf16.msra.mxu0 %v2233
    %2638 = vmatpush.bf16.msra.mxu0 %v2225
    %2639 = vmatpush.bf16.msra.mxu0 %v2217
    %2640 = vmatpush.bf16.msra.mxu0 %v2209
    %2641 = vmatpush.bf16.msra.mxu0 %v2201
    %2642 = vmatpush.bf16.msra.mxu0 %v2193
    %2643 = vmatpush.bf16.msra.mxu0 %v2185
    %2644 = vmatpush.bf16.msra.mxu0 %v2177
    %2645 = vmatmul.bf16.gmra.mxu0 %v1017
    %v2646 = vpop.f32.mrf.mxu0
    %v2647 = vadd.f32 0.0, %v2646
    %v2648 = vpop.f32.mrf.mxu0
    %2649 = vdwg.mxu0
    %2650 = vmatpush.bf16.msra.mxu0 %v2297
    %2651 = vmatpush.bf16.msra.mxu0 %v2289
    %2652 = vmatpush.bf16.msra.mxu0 %v2281
    %2653 = vmatpush.bf16.msra.mxu0 %v2273
    %2654 = vmatpush.bf16.msra.mxu0 %v2265
    %2655 = vmatpush.bf16.msra.mxu0 %v2257
    %2656 = vmatpush.bf16.msra.mxu0 %v2249
    %2657 = vmatpush.bf16.msra.mxu0 %v2241
    %2658 = vmatmul.bf16.gmra.mxu0 %v1018
    %v2659 = vpop.f32.mrf.mxu0
    %v2660 = vadd.f32 %v2647, %v2659
    %v2661 = vpop.f32.mrf.mxu0
    %2662 = vdwg.mxu0
    %2663 = vmatpush.bf16.msra.mxu0 %v2361
    %2664 = vmatpush.bf16.msra.mxu0 %v2353
    %2665 = vmatpush.bf16.msra.mxu0 %v2345
    %2666 = vmatpush.bf16.msra.mxu0 %v2337
    %2667 = vmatpush.bf16.msra.mxu0 %v2329
    %2668 = vmatpush.bf16.msra.mxu0 %v2321
    %2669 = vmatpush.bf16.msra.mxu0 %v2313
    %2670 = vmatpush.bf16.msra.mxu0 %v2305
    %2671 = vmatmul.bf16.gmra.mxu0 %v1019
    %v2672 = vpop.f32.mrf.mxu0
    %v2673 = vadd.f32 %v2660, %v2672
    %v2674 = vpop.f32.mrf.mxu0
    %2675 = vdwg.mxu0
    %2676 = vmatpush.bf16.msra.mxu0 %v2425
    %2677 = vmatpush.bf16.msra.mxu0 %v2417
    %2678 = vmatpush.bf16.msra.mxu0 %v2409
    %2679 = vmatpush.bf16.msra.mxu0 %v2401
    %2680 = vmatpush.bf16.msra.mxu0 %v2393
    %2681 = vmatpush.bf16.msra.mxu0 %v2385
    %2682 = vmatpush.bf16.msra.mxu0 %v2377
    %2683 = vmatpush.bf16.msra.mxu0 %v2369
    %2684 = vmatmul.bf16.gmra.mxu0 %v1020
    %v2685 = vpop.f32.mrf.mxu0
    %v2686 = vadd.f32 %v2673, %v2685
    %v2687 = vpop.f32.mrf.mxu0
    %2688 = vdwg.mxu0
    %2689 = vmatpush.bf16.msra.mxu0 %v2234
    %2690 = vmatpush.bf16.msra.mxu0 %v2226
    %2691 = vmatpush.bf16.msra.mxu0 %v2218
    %2692 = vmatpush.bf16.msra.mxu0 %v2210
    %2693 = vmatpush.bf16.msra.mxu0 %v2202
    %2694 = vmatpush.bf16.msra.mxu0 %v2194
    %2695 = vmatpush.bf16.msra.mxu0 %v2186
    %2696 = vmatpush.bf16.msra.mxu0 %v2178
    %2697 = vmatmul.bf16.gmra.mxu0 %v1017
    %v2698 = vpop.f32.mrf.mxu0
    %v2699 = vadd.f32 0.0, %v2698
    %v2700 = vpop.f32.mrf.mxu0
    %2701 = vdwg.mxu0
    %2702 = vmatpush.bf16.msra.mxu0 %v2298
    %2703 = vmatpush.bf16.msra.mxu0 %v2290
    %2704 = vmatpush.bf16.msra.mxu0 %v2282
    %2705 = vmatpush.bf16.msra.mxu0 %v2274
    %2706 = vmatpush.bf16.msra.mxu0 %v2266
    %2707 = vmatpush.bf16.msra.mxu0 %v2258
    %2708 = vmatpush.bf16.msra.mxu0 %v2250
    %2709 = vmatpush.bf16.msra.mxu0 %v2242
    %2710 = vmatmul.bf16.gmra.mxu0 %v1018
    %v2711 = vpop.f32.mrf.mxu0
    %v2712 = vadd.f32 %v2699, %v2711
    %v2713 = vpop.f32.mrf.mxu0
    %2714 = vdwg.mxu0
    %2715 = vmatpush.bf16.msra.mxu0 %v2362
    %2716 = vmatpush.bf16.msra.mxu0 %v2354
    %2717 = vmatpush.bf16.msra.mxu0 %v2346
    %2718 = vmatpush.bf16.msra.mxu0 %v2338
    %2719 = vmatpush.bf16.msra.mxu0 %v2330
    %2720 = vmatpush.bf16.msra.mxu0 %v2322
    %2721 = vmatpush.bf16.msra.mxu0 %v2314
    %2722 = vmatpush.bf16.msra.mxu0 %v2306
    %2723 = vmatmul.bf16.gmra.mxu0 %v1019
    %v2724 = vpop.f32.mrf.mxu0
    %v2725 = vadd.f32 %v2712, %v2724
    %v2726 = vpop.f32.mrf.mxu0
    %2727 = vdwg.mxu0
    %2728 = vmatpush.bf16.msra.mxu0 %v2426
    %2729 = vmatpush.bf16.msra.mxu0 %v2418
    %2730 = vmatpush.bf16.msra.mxu0 %v2410
    %2731 = vmatpush.bf16.msra.mxu0 %v2402
    %2732 = vmatpush.bf16.msra.mxu0 %v2394
    %2733 = vmatpush.bf16.msra.mxu0 %v2386
    %2734 = vmatpush.bf16.msra.mxu0 %v2378
    %2735 = vmatpush.bf16.msra.mxu0 %v2370
    %2736 = vmatmul.bf16.gmra.mxu0 %v1020
    %v2737 = vpop.f32.mrf.mxu0
    %v2738 = vadd.f32 %v2725, %v2737
    %v2739 = vpop.f32.mrf.mxu0
    %2740 = vdwg.mxu0
    %2741 = vmatpush.bf16.msra.mxu0 %v2235
    %2742 = vmatpush.bf16.msra.mxu0 %v2227
    %2743 = vmatpush.bf16.msra.mxu0 %v2219
    %2744 = vmatpush.bf16.msra.mxu0 %v2211
    %2745 = vmatpush.bf16.msra.mxu0 %v2203
    %2746 = vmatpush.bf16.msra.mxu0 %v2195
    %2747 = vmatpush.bf16.msra.mxu0 %v2187
    %2748 = vmatpush.bf16.msra.mxu0 %v2179
    %2749 = vmatmul.bf16.gmra.mxu0 %v1017
    %v2750 = vpop.f32.mrf.mxu0
    %v2751 = vadd.f32 0.0, %v2750
    %v2752 = vpop.f32.mrf.mxu0
    %2753 = vdwg.mxu0
    %2754 = vmatpush.bf16.msra.mxu0 %v2299
    %2755 = vmatpush.bf16.msra.mxu0 %v2291
    %2756 = vmatpush.bf16.msra.mxu0 %v2283
    %2757 = vmatpush.bf16.msra.mxu0 %v2275
    %2758 = vmatpush.bf16.msra.mxu0 %v2267
    %2759 = vmatpush.bf16.msra.mxu0 %v2259
    %2760 = vmatpush.bf16.msra.mxu0 %v2251
    %2761 = vmatpush.bf16.msra.mxu0 %v2243
    %2762 = vmatmul.bf16.gmra.mxu0 %v1018
    %v2763 = vpop.f32.mrf.mxu0
    %v2764 = vadd.f32 %v2751, %v2763
    %v2765 = vpop.f32.mrf.mxu0
    %2766 = vdwg.mxu0
    %2767 = vmatpush.bf16.msra.mxu0 %v2363
    %2768 = vmatpush.bf16.msra.mxu0 %v2355
    %2769 = vmatpush.bf16.msra.mxu0 %v2347
    %2770 = vmatpush.bf16.msra.mxu0 %v2339
    %2771 = vmatpush.bf16.msra.mxu0 %v2331
    %2772 = vmatpush.bf16.msra.mxu0 %v2323
    %2773 = vmatpush.bf16.msra.mxu0 %v2315
    %2774 = vmatpush.bf16.msra.mxu0 %v2307
    %2775 = vmatmul.bf16.gmra.mxu0 %v1019
    %v2776 = vpop.f32.mrf.mxu0
    %v2777 = vadd.f32 %v2764, %v2776
    %v2778 = vpop.f32.mrf.mxu0
    %2779 = vdwg.mxu0
    %2780 = vmatpush.bf16.msra.mxu0 %v2427
    %2781 = vmatpush.bf16.msra.mxu0 %v2419
    %2782 = vmatpush.bf16.msra.mxu0 %v2411
    %2783 = vmatpush.bf16.msra.mxu0 %v2403
    %2784 = vmatpush.bf16.msra.mxu0 %v2395
    %2785 = vmatpush.bf16.msra.mxu0 %v2387
    %2786 = vmatpush.bf16.msra.mxu0 %v2379
    %2787 = vmatpush.bf16.msra.mxu0 %v2371
    %2788 = vmatmul.bf16.gmra.mxu0 %v1020
    %v2789 = vpop.f32.mrf.mxu0
    %v2790 = vadd.f32 %v2777, %v2789
    %v2791 = vpop.f32.mrf.mxu0
    %2792 = vdwg.mxu0
    %2793 = vmatpush.bf16.msra.mxu0 %v2236
    %2794 = vmatpush.bf16.msra.mxu0 %v2228
    %2795 = vmatpush.bf16.msra.mxu0 %v2220
    %2796 = vmatpush.bf16.msra.mxu0 %v2212
    %2797 = vmatpush.bf16.msra.mxu0 %v2204
    %2798 = vmatpush.bf16.msra.mxu0 %v2196
    %2799 = vmatpush.bf16.msra.mxu0 %v2188
    %2800 = vmatpush.bf16.msra.mxu0 %v2180
    %2801 = vmatmul.bf16.gmra.mxu0 %v1017
    %v2802 = vpop.f32.mrf.mxu0
    %v2803 = vadd.f32 0.0, %v2802
    %v2804 = vpop.f32.mrf.mxu0
    %2805 = vdwg.mxu0
    %2806 = vmatpush.bf16.msra.mxu0 %v2300
    %2807 = vmatpush.bf16.msra.mxu0 %v2292
    %2808 = vmatpush.bf16.msra.mxu0 %v2284
    %2809 = vmatpush.bf16.msra.mxu0 %v2276
    %2810 = vmatpush.bf16.msra.mxu0 %v2268
    %2811 = vmatpush.bf16.msra.mxu0 %v2260
    %2812 = vmatpush.bf16.msra.mxu0 %v2252
    %2813 = vmatpush.bf16.msra.mxu0 %v2244
    %2814 = vmatmul.bf16.gmra.mxu0 %v1018
    %v2815 = vpop.f32.mrf.mxu0
    %v2816 = vadd.f32 %v2803, %v2815
    %v2817 = vpop.f32.mrf.mxu0
    %2818 = vdwg.mxu0
    %2819 = vmatpush.bf16.msra.mxu0 %v2364
    %2820 = vmatpush.bf16.msra.mxu0 %v2356
    %2821 = vmatpush.bf16.msra.mxu0 %v2348
    %2822 = vmatpush.bf16.msra.mxu0 %v2340
    %2823 = vmatpush.bf16.msra.mxu0 %v2332
    %2824 = vmatpush.bf16.msra.mxu0 %v2324
    %2825 = vmatpush.bf16.msra.mxu0 %v2316
    %2826 = vmatpush.bf16.msra.mxu0 %v2308
    %2827 = vmatmul.bf16.gmra.mxu0 %v1019
    %v2828 = vpop.f32.mrf.mxu0
    %v2829 = vadd.f32 %v2816, %v2828
    %v2830 = vpop.f32.mrf.mxu0
    %2831 = vdwg.mxu0
    %2832 = vmatpush.bf16.msra.mxu0 %v2428
    %2833 = vmatpush.bf16.msra.mxu0 %v2420
    %2834 = vmatpush.bf16.msra.mxu0 %v2412
    %2835 = vmatpush.bf16.msra.mxu0 %v2404
    %2836 = vmatpush.bf16.msra.mxu0 %v2396
    %2837 = vmatpush.bf16.msra.mxu0 %v2388
    %2838 = vmatpush.bf16.msra.mxu0 %v2380
    %2839 = vmatpush.bf16.msra.mxu0 %v2372
    %2840 = vmatmul.bf16.gmra.mxu0 %v1020
    %v2841 = vpop.f32.mrf.mxu0
    %v2842 = vadd.f32 %v2829, %v2841
    %v2843 = vpop.f32.mrf.mxu0
    %2844 = vdwg.mxu0
    %v2845 = vld [vmem:[#allocation10] ss:$4 sm:$0xff]
    %v2847 = vperm.slane %v2845, 0
    %v2848 = vperm.slane %v2845, 1
    %v2849 = vperm.slane %v2845, 2
    %v2850 = vperm.slane %v2845, 3
    %v2851 = vperm.slane %v2845, 4
    %v2852 = vperm.slane %v2845, 5
    %v2853 = vperm.slane %v2845, 6
    %v2854 = vperm.slane %v2845, 7
    %v2863 = vmul.f32 %v2478, %v2847
    %v2864 = vmul.f32 %v2530, %v2848
    %v2865 = vmul.f32 %v2582, %v2849
    %v2866 = vmul.f32 %v2634, %v2850
    %v2867 = vmul.f32 %v2686, %v2851
    %v2868 = vmul.f32 %v2738, %v2852
    %v2869 = vmul.f32 %v2790, %v2853
    %v2870 = vmul.f32 %v2842, %v2854
    %s2871 = scalar_lea.vmem [#allocation10], 1
    %v2872 = vld [vmem:[%s2871] ss:$4 sm:$0xff]
    %v2874 = vperm.slane %v2872, 0
    %v2875 = vperm.slane %v2872, 1
    %v2876 = vperm.slane %v2872, 2
    %v2877 = vperm.slane %v2872, 3
    %v2878 = vperm.slane %v2872, 4
    %v2879 = vperm.slane %v2872, 5
    %v2880 = vperm.slane %v2872, 6
    %v2881 = vperm.slane %v2872, 7
    %v2890 = vadd.f32 %v2863, %v2874
    %v2891 = vadd.f32 %v2864, %v2875
    %v2892 = vadd.f32 %v2865, %v2876
    %v2893 = vadd.f32 %v2866, %v2877
    %v2894 = vadd.f32 %v2867, %v2878
    %v2895 = vadd.f32 %v2868, %v2879
    %v2896 = vadd.f32 %v2869, %v2880
    %v2897 = vadd.f32 %v2870, %v2881
    %v2898 = vmul.f32 %v2890, 0.2
    %v2899 = vmul.f32 %v2891, 0.2
    %v2900 = vmul.f32 %v2892, 0.2
    %v2901 = vmul.f32 %v2893, 0.2
    %v2902 = vmul.f32 %v2894, 0.2
    %v2903 = vmul.f32 %v2895, 0.2
    %v2904 = vmul.f32 %v2896, 0.2
    %v2905 = vmul.f32 %v2897, 0.2
    %v2906 = vmax.f32 %v2890, %v2898
    %v2907 = vmax.f32 %v2891, %v2899
    %v2908 = vmax.f32 %v2892, %v2900
    %v2909 = vmax.f32 %v2893, %v2901
    %v2910 = vmax.f32 %v2894, %v2902
    %v2911 = vmax.f32 %v2895, %v2903
    %v2912 = vmax.f32 %v2896, %v2904
    %v2913 = vmax.f32 %v2897, %v2905
    %s2914 = scalar_lea.vmem [#allocation10], 2
    %v2915 = vld [vmem:[%s2914] ss:$4 sm:$0xff]
    %s2916 = scalar_lea.vmem [#allocation10], 3
    %v2917 = vld [vmem:[%s2916] ss:$4 sm:$0xff]
    %v2918 = vrot.slane %v2906, 4
    %v2919 = vadd.f32 %v2906, %v2918
    %v2920 = vrot.slane %v2919, 2
    %v2921 = vadd.f32 %v2919, %v2920
    %v2922 = vrot.slane %v2921, 1
    %v2923 = vadd.f32 %v2921, %v2922
    %v2924 = vrot.slane %v2907, 4
    %v2925 = vadd.f32 %v2907, %v2924
    %v2926 = vrot.slane %v2925, 2
    %v2927 = vadd.f32 %v2925, %v2926
    %v2928 = vrot.slane %v2927, 1
    %v2929 = vadd.f32 %v2927, %v2928
    %v2930 = vrot.slane %v2908, 4
    %v2931 = vadd.f32 %v2908, %v2930
    %v2932 = vrot.slane %v2931, 2
    %v2933 = vadd.f32 %v2931, %v2932
    %v2934 = vrot.slane %v2933, 1
    %v2935 = vadd.f32 %v2933, %v2934
    %v2936 = vrot.slane %v2909, 4
    %v2937 = vadd.f32 %v2909, %v2936
    %v2938 = vrot.slane %v2937, 2
    %v2939 = vadd.f32 %v2937, %v2938
    %v2940 = vrot.slane %v2939, 1
    %v2941 = vadd.f32 %v2939, %v2940
    %v2942 = vrot.slane %v2910, 4
    %v2943 = vadd.f32 %v2910, %v2942
    %v2944 = vrot.slane %v2943, 2
    %v2945 = vadd.f32 %v2943, %v2944
    %v2946 = vrot.slane %v2945, 1
    %v2947 = vadd.f32 %v2945, %v2946
    %v2948 = vrot.slane %v2911, 4
    %v2949 = vadd.f32 %v2911, %v2948
    %v2950 = vrot.slane %v2949, 2
    %v2951 = vadd.f32 %v2949, %v2950
    %v2952 = vrot.slane %v2951, 1
    %v2953 = vadd.f32 %v2951, %v2952
    %v2954 = vrot.slane %v2912, 4
    %v2955 = vadd.f32 %v2912, %v2954
    %v2956 = vrot.slane %v2955, 2
    %v2957 = vadd.f32 %v2955, %v2956
    %v2958 = vrot.slane %v2957, 1
    %v2959 = vadd.f32 %v2957, %v2958
    %v2960 = vrot.slane %v2913, 4
    %v2961 = vadd.f32 %v2913, %v2960
    %v2962 = vrot.slane %v2961, 2
    %v2963 = vadd.f32 %v2961, %v2962
    %v2964 = vrot.slane %v2963, 1
    %v2965 = vadd.f32 %v2963, %v2964
    %v2966 = vmul.f32 %v2906, %v2906
    %v2967 = vmul.f32 %v2907, %v2907
    %v2968 = vmul.f32 %v2908, %v2908
    %v2969 = vmul.f32 %v2909, %v2909
    %v2970 = vmul.f32 %v2910, %v2910
    %v2971 = vmul.f32 %v2911, %v2911
    %v2972 = vmul.f32 %v2912, %v2912
    %v2973 = vmul.f32 %v2913, %v2913
    %v2974 = vrot.slane %v2966, 4
    %v2975 = vadd.f32 %v2966, %v2974
    %v2976 = vrot.slane %v2975, 2
    %v2977 = vadd.f32 %v2975, %v2976
    %v2978 = vrot.slane %v2977, 1
    %v2979 = vadd.f32 %v2977, %v2978
    %v2980 = vrot.slane %v2967, 4
    %v2981 = vadd.f32 %v2967, %v2980
    %v2982 = vrot.slane %v2981, 2
    %v2983 = vadd.f32 %v2981, %v2982
    %v2984 = vrot.slane %v2983, 1
    %v2985 = vadd.f32 %v2983, %v2984
    %v2986 = vrot.slane %v2968, 4
    %v2987 = vadd.f32 %v2968, %v2986
    %v2988 = vrot.slane %v2987, 2
    %v2989 = vadd.f32 %v2987, %v2988
    %v2990 = vrot.slane %v2989, 1
    %v2991 = vadd.f32 %v2989, %v2990
    %v2992 = vrot.slane %v2969, 4
    %v2993 = vadd.f32 %v2969, %v2992
    %v2994 = vrot.slane %v2993, 2
    %v2995 = vadd.f32 %v2993, %v2994
    %v2996 = vrot.slane %v2995, 1
    %v2997 = vadd.f32 %v2995, %v2996
    %v2998 = vrot.slane %v2970, 4
    %v2999 = vadd.f32 %v2970, %v2998
    %v3000 = vrot.slane %v2999, 2
    %v3001 = vadd.f32 %v2999, %v3000
    %v3002 = vrot.slane %v3001, 1
    %v3003 = vadd.f32 %v3001, %v3002
    %v3004 = vrot.slane %v2971, 4
    %v3005 = vadd.f32 %v2971, %v3004
    %v3006 = vrot.slane %v3005, 2
    %v3007 = vadd.f32 %v3005, %v3006
    %v3008 = vrot.slane %v3007, 1
    %v3009 = vadd.f32 %v3007, %v3008
    %v3010 = vrot.slane %v2972, 4
    %v3011 = vadd.f32 %v2972, %v3010
    %v3012 = vrot.slane %v3011, 2
    %v3013 = vadd.f32 %v3011, %v3012
    %v3014 = vrot.slane %v3013, 1
    %v3015 = vadd.f32 %v3013, %v3014
    %v3016 = vrot.slane %v2973, 4
    %v3017 = vadd.f32 %v2973, %v3016
    %v3018 = vrot.slane %v3017, 2
    %v3019 = vadd.f32 %v3017, %v3018
    %v3020 = vrot.slane %v3019, 1
    %v3021 = vadd.f32 %v3019, %v3020
    %v3022 = vmul.f32 %v2923, 0.125
    %v3023 = vmul.f32 %v2929, 0.125
    %v3024 = vmul.f32 %v2935, 0.125
    %v3025 = vmul.f32 %v2941, 0.125
    %v3026 = vmul.f32 %v2947, 0.125
    %v3027 = vmul.f32 %v2953, 0.125
    %v3028 = vmul.f32 %v2959, 0.125
    %v3029 = vmul.f32 %v2965, 0.125
    %v3030 = vmul.f32 %v2979, 0.125
    %v3031 = vmul.f32 %v2985, 0.125
    %v3032 = vmul.f32 %v2991, 0.125
    %v3033 = vmul.f32 %v2997, 0.125
    %v3034 = vmul.f32 %v3003, 0.125
    %v3035 = vmul.f32 %v3009, 0.125
    %v3036 = vmul.f32 %v3015, 0.125
    %v3037 = vmul.f32 %v3021, 0.125
    %v3038 = vmul.f32 %v3022, %v3022
    %v3039 = vmul.f32 %v3023, %v3023
    %v3040 = vmul.f32 %v3024, %v3024
    %v3041 = vmul.f32 %v3025, %v3025
    %v3042 = vmul.f32 %v3026, %v3026
    %v3043 = vmul.f32 %v3027, %v3027
    %v3044 = vmul.f32 %v3028, %v3028
    %v3045 = vmul.f32 %v3029, %v3029
    %v3046 = vsub.f32 %v3030, %v3038
    %v3047 = vsub.f32 %v3031, %v3039
    %v3048 = vsub.f32 %v3032, %v3040
    %v3049 = vsub.f32 %v3033, %v3041
    %v3050 = vsub.f32 %v3034, %v3042
    %v3051 = vsub.f32 %v3035, %v3043
    %v3052 = vsub.f32 %v3036, %v3044
    %v3053 = vsub.f32 %v3037, %v3045
    %v3054 = vmax.f32 %v3046, 0.0
    %v3055 = vmax.f32 %v3047, 0.0
    %v3056 = vmax.f32 %v3048, 0.0
    %v3057 = vmax.f32 %v3049, 0.0
    %v3058 = vmax.f32 %v3050, 0.0
    %v3059 = vmax.f32 %v3051, 0.0
    %v3060 = vmax.f32 %v3052, 0.0
    %v3061 = vmax.f32 %v3053, 0.0
    %v3062 = vadd.f32 %v3054, 1e-05
    %v3063 = vadd.f32 %v3055, 1e-05
    %v3064 = vadd.f32 %v3056, 1e-05
    %v3065 = vadd.f32 %v3057, 1e-05
    %v3066 = vadd.f32 %v3058, 1e-05
    %v3067 = vadd.f32 %v3059, 1e-05
    %v3068 = vadd.f32 %v3060, 1e-05
    %v3069 = vadd.f32 %v3061, 1e-05
    %v3070 = vrsqrt.pop %v3062
    %v3071 = vmul.f32 %v3070, %v3062
    %v3072 = vmul.f32 %v3071, %v3070
    %v3073 = vmul.f32 0.5, %v3072
    %v3074 = vsub.f32 1.5, %v3073
    %v3075 = vmul.f32 %v3070, %v3074
    %vm3076 = vweird.f32 %v3062
    %vm3077 = vweird.f32 %v3070
    %vm3078 = vmor %vm3076, %vm3077
    %v3079 = vsel %vm3078, %v3070, %v3075
    %v3080 = vrsqrt.pop %v3063
    %v3081 = vmul.f32 %v3080, %v3063
    %v3082 = vmul.f32 %v3081, %v3080
    %v3083 = vmul.f32 0.5, %v3082
    %v3084 = vsub.f32 1.5, %v3083
    %v3085 = vmul.f32 %v3080, %v3084
    %vm3086 = vweird.f32 %v3063
    %vm3087 = vweird.f32 %v3080
    %vm3088 = vmor %vm3086, %vm3087
    %v3089 = vsel %vm3088, %v3080, %v3085
    %v3090 = vrsqrt.pop %v3064
    %v3091 = vmul.f32 %v3090, %v3064
    %v3092 = vmul.f32 %v3091, %v3090
    %v3093 = vmul.f32 0.5, %v3092
    %v3094 = vsub.f32 1.5, %v3093
    %v3095 = vmul.f32 %v3090, %v3094
    %vm3096 = vweird.f32 %v3064
    %vm3097 = vweird.f32 %v3090
    %vm3098 = vmor %vm3096, %vm3097
    %v3099 = vsel %vm3098, %v3090, %v3095
    %v3100 = vrsqrt.pop %v3065
    %v3101 = vmul.f32 %v3100, %v3065
    %v3102 = vmul.f32 %v3101, %v3100
    %v3103 = vmul.f32 0.5, %v3102
    %v3104 = vsub.f32 1.5, %v3103
    %v3105 = vmul.f32 %v3100, %v3104
    %vm3106 = vweird.f32 %v3065
    %vm3107 = vweird.f32 %v3100
    %vm3108 = vmor %vm3106, %vm3107
    %v3109 = vsel %vm3108, %v3100, %v3105
    %v3110 = vrsqrt.pop %v3066
    %v3111 = vmul.f32 %v3110, %v3066
    %v3112 = vmul.f32 %v3111, %v3110
    %v3113 = vmul.f32 0.5, %v3112
    %v3114 = vsub.f32 1.5, %v3113
    %v3115 = vmul.f32 %v3110, %v3114
    %vm3116 = vweird.f32 %v3066
    %vm3117 = vweird.f32 %v3110
    %vm3118 = vmor %vm3116, %vm3117
    %v3119 = vsel %vm3118, %v3110, %v3115
    %v3120 = vrsqrt.pop %v3067
    %v3121 = vmul.f32 %v3120, %v3067
    %v3122 = vmul.f32 %v3121, %v3120
    %v3123 = vmul.f32 0.5, %v3122
    %v3124 = vsub.f32 1.5, %v3123
    %v3125 = vmul.f32 %v3120, %v3124
    %vm3126 = vweird.f32 %v3067
    %vm3127 = vweird.f32 %v3120
    %vm3128 = vmor %vm3126, %vm3127
    %v3129 = vsel %vm3128, %v3120, %v3125
    %v3130 = vrsqrt.pop %v3068
    %v3131 = vmul.f32 %v3130, %v3068
    %v3132 = vmul.f32 %v3131, %v3130
    %v3133 = vmul.f32 0.5, %v3132
    %v3134 = vsub.f32 1.5, %v3133
    %v3135 = vmul.f32 %v3130, %v3134
    %vm3136 = vweird.f32 %v3068
    %vm3137 = vweird.f32 %v3130
    %vm3138 = vmor %vm3136, %vm3137
    %v3139 = vsel %vm3138, %v3130, %v3135
    %v3140 = vrsqrt.pop %v3069
    %v3141 = vmul.f32 %v3140, %v3069
    %v3142 = vmul.f32 %v3141, %v3140
    %v3143 = vmul.f32 0.5, %v3142
    %v3144 = vsub.f32 1.5, %v3143
    %v3145 = vmul.f32 %v3140, %v3144
    %vm3146 = vweird.f32 %v3069
    %vm3147 = vweird.f32 %v3140
    %vm3148 = vmor %vm3146, %vm3147
    %v3149 = vsel %vm3148, %v3140, %v3145
    %v3158 = vrot.slane %v3089, 7
    %v3159 = vrot.slane %v3099, 6
    %v3160 = vrot.slane %v3109, 5
    %v3161 = vrot.slane %v3119, 4
    %v3162 = vrot.slane %v3129, 3
    %v3163 = vrot.slane %v3139, 2
    %v3164 = vrot.slane %v3149, 1
    %v3165 = vsel %vm316, %v3079, %v3158
    %v3166 = vsel %vm965, %v3159, %v3160
    %v3167 = vsel %vm967, %v3165, %v3166
    %vm3168 = vcmask 1044484
    %v3169 = vsel %vm3168, %v3161, %v3162
    %vm3170 = vcmask 1046534
    %v3171 = vsel %vm3170, %v3163, %v3164
    %vm3172 = vcmask 1045508
    %v3173 = vsel %vm3172, %v3169, %v3171
    %vm3174 = vcmask 1043456
    %v3175 = vsel %vm3174, %v3167, %v3173
    %v3177 = vmul.f32 %v2915, %v3175
    %v3179 = vperm.slane %v3177, 0
    %v3180 = vperm.slane %v3177, 1
    %v3181 = vperm.slane %v3177, 2
    %v3182 = vperm.slane %v3177, 3
    %v3183 = vperm.slane %v3177, 4
    %v3184 = vperm.slane %v3177, 5
    %v3185 = vperm.slane %v3177, 6
    %v3186 = vperm.slane %v3177, 7
    %v3195 = vmul.f32 %v3022, %v3179
    %v3196 = vmul.f32 %v3023, %v3180
    %v3197 = vmul.f32 %v3024, %v3181
    %v3198 = vmul.f32 %v3025, %v3182
    %v3199 = vmul.f32 %v3026, %v3183
    %v3200 = vmul.f32 %v3027, %v3184
    %v3201 = vmul.f32 %v3028, %v3185
    %v3202 = vmul.f32 %v3029, %v3186
    %v3211 = vrot.slane %v3196, 7
    %v3212 = vrot.slane %v3197, 6
    %v3213 = vrot.slane %v3198, 5
    %v3214 = vrot.slane %v3199, 4
    %v3215 = vrot.slane %v3200, 3
    %v3216 = vrot.slane %v3201, 2
    %v3217 = vrot.slane %v3202, 1
    %v3218 = vsel %vm316, %v3195, %v3211
    %v3219 = vsel %vm965, %v3212, %v3213
    %v3220 = vsel %vm967, %v3218, %v3219
    %v3221 = vsel %vm3168, %v3214, %v3215
    %v3222 = vsel %vm3170, %v3216, %v3217
    %v3223 = vsel %vm3172, %v3221, %v3222
    %v3224 = vsel %vm3174, %v3220, %v3223
    %v3226 = vsub.f32 %v2917, %v3224
    %v3227 = vmul.f32 %v2906, %v3179
    %v3228 = vmul.f32 %v2907, %v3180
    %v3229 = vmul.f32 %v2908, %v3181
    %v3230 = vmul.f32 %v2909, %v3182
    %v3231 = vmul.f32 %v2910, %v3183
    %v3232 = vmul.f32 %v2911, %v3184
    %v3233 = vmul.f32 %v2912, %v3185
    %v3234 = vmul.f32 %v2913, %v3186
    %v3236 = vperm.slane %v3226, 0
    %v3237 = vperm.slane %v3226, 1
    %v3238 = vperm.slane %v3226, 2
    %v3239 = vperm.slane %v3226, 3
    %v3240 = vperm.slane %v3226, 4
    %v3241 = vperm.slane %v3226, 5
    %v3242 = vperm.slane %v3226, 6
    %v3243 = vperm.slane %v3226, 7
    %v3252 = vadd.f32 %v3227, %v3236
    %v3253 = vadd.f32 %v3228, %v3237
    %v3254 = vadd.f32 %v3229, %v3238
    %v3255 = vadd.f32 %v3230, %v3239
    %v3256 = vadd.f32 %v3231, %v3240
    %v3257 = vadd.f32 %v3232, %v3241
    %v3258 = vadd.f32 %v3233, %v3242
    %v3259 = vadd.f32 %v3234, %v3243
    %s3260 = smul.u32 2, 128
    %s3261 = smul.u32 %s3260, 7
    %s3262 = sshll.u32 %s3261, 4
    %3263 = dma.done %s101, %s3262
    %v3264 = vpack.c.bf16 %v3252, %v3252
    %v3265 = vpack.c.bf16 %v3253, %v3253
    %v3266 = vpack.c.bf16 %v3254, %v3254
    %v3267 = vpack.c.bf16 %v3255, %v3255
    %v3268 = vpack.c.bf16 %v3256, %v3256
    %v3269 = vpack.c.bf16 %v3257, %v3257
    %v3270 = vpack.c.bf16 %v3258, %v3258
    %v3271 = vpack.c.bf16 %v3259, %v3259
    %v3272 = vld [vmem:[#allocation3] sm:$0xff]
    %v3273 = vld [vmem:[#allocation3 + $0x8] sm:$0xff]
    %v3274 = vld [vmem:[#allocation3 + $0x10] sm:$0xff]
    %v3275 = vld [vmem:[#allocation3 + $0x18] sm:$0xff]
    %v3276 = vld [vmem:[#allocation3 + $0x20] sm:$0xff]
    %v3277 = vld [vmem:[#allocation3 + $0x28] sm:$0xff]
    %v3278 = vld [vmem:[#allocation3 + $0x30] sm:$0xff]
    %v3279 = vld [vmem:[#allocation3 + $0x38] sm:$0xff]
    %v3280 = vld [vmem:[#allocation3 + $0x40] sm:$0xff]
    %v3281 = vld [vmem:[#allocation3 + $0x48] sm:$0xff]
    %v3282 = vld [vmem:[#allocation3 + $0x50] sm:$0xff]
    %v3283 = vld [vmem:[#allocation3 + $0x58] sm:$0xff]
    %v3284 = vld [vmem:[#allocation3 + $0x60] sm:$0xff]
    %v3285 = vld [vmem:[#allocation3 + $0x68] sm:$0xff]
    %v3286 = vld [vmem:[#allocation3 + $0x70] sm:$0xff]
    %v3287 = vld [vmem:[#allocation3 + $0x78] sm:$0xff]
    %v3288 = vld [vmem:[#allocation3 + $0x80] sm:$0xff]
    %v3289 = vld [vmem:[#allocation3 + $0x88] sm:$0xff]
    %v3290 = vld [vmem:[#allocation3 + $0x90] sm:$0xff]
    %v3291 = vld [vmem:[#allocation3 + $0x98] sm:$0xff]
    %v3292 = vld [vmem:[#allocation3 + $0xa0] sm:$0xff]
    %v3293 = vld [vmem:[#allocation3 + $0xa8] sm:$0xff]
    %v3294 = vld [vmem:[#allocation3 + $0xb0] sm:$0xff]
    %v3295 = vld [vmem:[#allocation3 + $0xb8] sm:$0xff]
    %v3296 = vld [vmem:[#allocation3 + $0xc0] sm:$0xff]
    %v3297 = vld [vmem:[#allocation3 + $0xc8] sm:$0xff]
    %v3298 = vld [vmem:[#allocation3 + $0xd0] sm:$0xff]
    %v3299 = vld [vmem:[#allocation3 + $0xd8] sm:$0xff]
    %v3300 = vld [vmem:[#allocation3 + $0xe0] sm:$0xff]
    %v3301 = vld [vmem:[#allocation3 + $0xe8] sm:$0xff]
    %v3302 = vld [vmem:[#allocation3 + $0xf0] sm:$0xff]
    %v3303 = vld [vmem:[#allocation3 + $0xf8] sm:$0xff]
    %v3304 = vld [vmem:[#allocation3 + $0x100] sm:$0xff]
    %v3305 = vld [vmem:[#allocation3 + $0x108] sm:$0xff]
    %v3306 = vld [vmem:[#allocation3 + $0x110] sm:$0xff]
    %v3307 = vld [vmem:[#allocation3 + $0x118] sm:$0xff]
    %v3308 = vld [vmem:[#allocation3 + $0x120] sm:$0xff]
    %v3309 = vld [vmem:[#allocation3 + $0x128] sm:$0xff]
    %v3310 = vld [vmem:[#allocation3 + $0x130] sm:$0xff]
    %v3311 = vld [vmem:[#allocation3 + $0x138] sm:$0xff]
    %v3312 = vld [vmem:[#allocation3 + $0x140] sm:$0xff]
    %v3313 = vld [vmem:[#allocation3 + $0x148] sm:$0xff]
    %v3314 = vld [vmem:[#allocation3 + $0x150] sm:$0xff]
    %v3315 = vld [vmem:[#allocation3 + $0x158] sm:$0xff]
    %v3316 = vld [vmem:[#allocation3 + $0x160] sm:$0xff]
    %v3317 = vld [vmem:[#allocation3 + $0x168] sm:$0xff]
    %v3318 = vld [vmem:[#allocation3 + $0x170] sm:$0xff]
    %v3319 = vld [vmem:[#allocation3 + $0x178] sm:$0xff]
    %v3320 = vld [vmem:[#allocation3 + $0x180] sm:$0xff]
    %v3321 = vld [vmem:[#allocation3 + $0x188] sm:$0xff]
    %v3322 = vld [vmem:[#allocation3 + $0x190] sm:$0xff]
    %v3323 = vld [vmem:[#allocation3 + $0x198] sm:$0xff]
    %v3324 = vld [vmem:[#allocation3 + $0x1a0] sm:$0xff]
    %v3325 = vld [vmem:[#allocation3 + $0x1a8] sm:$0xff]
    %v3326 = vld [vmem:[#allocation3 + $0x1b0] sm:$0xff]
    %v3327 = vld [vmem:[#allocation3 + $0x1b8] sm:$0xff]
    %v3328 = vld [vmem:[#allocation3 + $0x1c0] sm:$0xff]
    %v3329 = vld [vmem:[#allocation3 + $0x1c8] sm:$0xff]
    %v3330 = vld [vmem:[#allocation3 + $0x1d0] sm:$0xff]
    %v3331 = vld [vmem:[#allocation3 + $0x1d8] sm:$0xff]
    %v3332 = vld [vmem:[#allocation3 + $0x1e0] sm:$0xff]
    %v3333 = vld [vmem:[#allocation3 + $0x1e8] sm:$0xff]
    %v3334 = vld [vmem:[#allocation3 + $0x1f0] sm:$0xff]
    %v3335 = vld [vmem:[#allocation3 + $0x1f8] sm:$0xff]
    %v3336 = vld [vmem:[#allocation3 + $0x200] sm:$0xff]
    %v3337 = vld [vmem:[#allocation3 + $0x208] sm:$0xff]
    %v3338 = vld [vmem:[#allocation3 + $0x210] sm:$0xff]
    %v3339 = vld [vmem:[#allocation3 + $0x218] sm:$0xff]
    %v3340 = vld [vmem:[#allocation3 + $0x220] sm:$0xff]
    %v3341 = vld [vmem:[#allocation3 + $0x228] sm:$0xff]
    %v3342 = vld [vmem:[#allocation3 + $0x230] sm:$0xff]
    %v3343 = vld [vmem:[#allocation3 + $0x238] sm:$0xff]
    %v3344 = vld [vmem:[#allocation3 + $0x240] sm:$0xff]
    %v3345 = vld [vmem:[#allocation3 + $0x248] sm:$0xff]
    %v3346 = vld [vmem:[#allocation3 + $0x250] sm:$0xff]
    %v3347 = vld [vmem:[#allocation3 + $0x258] sm:$0xff]
    %v3348 = vld [vmem:[#allocation3 + $0x260] sm:$0xff]
    %v3349 = vld [vmem:[#allocation3 + $0x268] sm:$0xff]
    %v3350 = vld [vmem:[#allocation3 + $0x270] sm:$0xff]
    %v3351 = vld [vmem:[#allocation3 + $0x278] sm:$0xff]
    %v3352 = vld [vmem:[#allocation3 + $0x280] sm:$0xff]
    %v3353 = vld [vmem:[#allocation3 + $0x288] sm:$0xff]
    %v3354 = vld [vmem:[#allocation3 + $0x290] sm:$0xff]
    %v3355 = vld [vmem:[#allocation3 + $0x298] sm:$0xff]
    %v3356 = vld [vmem:[#allocation3 + $0x2a0] sm:$0xff]
    %v3357 = vld [vmem:[#allocation3 + $0x2a8] sm:$0xff]
    %v3358 = vld [vmem:[#allocation3 + $0x2b0] sm:$0xff]
    %v3359 = vld [vmem:[#allocation3 + $0x2b8] sm:$0xff]
    %v3360 = vld [vmem:[#allocation3 + $0x2c0] sm:$0xff]
    %v3361 = vld [vmem:[#allocation3 + $0x2c8] sm:$0xff]
    %v3362 = vld [vmem:[#allocation3 + $0x2d0] sm:$0xff]
    %v3363 = vld [vmem:[#allocation3 + $0x2d8] sm:$0xff]
    %v3364 = vld [vmem:[#allocation3 + $0x2e0] sm:$0xff]
    %v3365 = vld [vmem:[#allocation3 + $0x2e8] sm:$0xff]
    %v3366 = vld [vmem:[#allocation3 + $0x2f0] sm:$0xff]
    %v3367 = vld [vmem:[#allocation3 + $0x2f8] sm:$0xff]
    %v3368 = vld [vmem:[#allocation3 + $0x300] sm:$0xff]
    %v3369 = vld [vmem:[#allocation3 + $0x308] sm:$0xff]
    %v3370 = vld [vmem:[#allocation3 + $0x310] sm:$0xff]
    %v3371 = vld [vmem:[#allocation3 + $0x318] sm:$0xff]
    %v3372 = vld [vmem:[#allocation3 + $0x320] sm:$0xff]
    %v3373 = vld [vmem:[#allocation3 + $0x328] sm:$0xff]
    %v3374 = vld [vmem:[#allocation3 + $0x330] sm:$0xff]
    %v3375 = vld [vmem:[#allocation3 + $0x338] sm:$0xff]
    %v3376 = vld [vmem:[#allocation3 + $0x340] sm:$0xff]
    %v3377 = vld [vmem:[#allocation3 + $0x348] sm:$0xff]
    %v3378 = vld [vmem:[#allocation3 + $0x350] sm:$0xff]
    %v3379 = vld [vmem:[#allocation3 + $0x358] sm:$0xff]
    %v3380 = vld [vmem:[#allocation3 + $0x360] sm:$0xff]
    %v3381 = vld [vmem:[#allocation3 + $0x368] sm:$0xff]
    %v3382 = vld [vmem:[#allocation3 + $0x370] sm:$0xff]
    %v3383 = vld [vmem:[#allocation3 + $0x378] sm:$0xff]
    %v3384 = vld [vmem:[#allocation3 + $0x380] sm:$0xff]
    %v3385 = vld [vmem:[#allocation3 + $0x388] sm:$0xff]
    %v3386 = vld [vmem:[#allocation3 + $0x390] sm:$0xff]
    %v3387 = vld [vmem:[#allocation3 + $0x398] sm:$0xff]
    %v3388 = vld [vmem:[#allocation3 + $0x3a0] sm:$0xff]
    %v3389 = vld [vmem:[#allocation3 + $0x3a8] sm:$0xff]
    %v3390 = vld [vmem:[#allocation3 + $0x3b0] sm:$0xff]
    %v3391 = vld [vmem:[#allocation3 + $0x3b8] sm:$0xff]
    %v3392 = vld [vmem:[#allocation3 + $0x3c0] sm:$0xff]
    %v3393 = vld [vmem:[#allocation3 + $0x3c8] sm:$0xff]
    %v3394 = vld [vmem:[#allocation3 + $0x3d0] sm:$0xff]
    %v3395 = vld [vmem:[#allocation3 + $0x3d8] sm:$0xff]
    %v3396 = vld [vmem:[#allocation3 + $0x3e0] sm:$0xff]
    %v3397 = vld [vmem:[#allocation3 + $0x3e8] sm:$0xff]
    %v3398 = vld [vmem:[#allocation3 + $0x3f0] sm:$0xff]
    %v3399 = vld [vmem:[#allocation3 + $0x3f8] sm:$0xff]
    %v3400 = vld [vmem:[#allocation3 + $0x400] sm:$0xff]
    %v3401 = vld [vmem:[#allocation3 + $0x408] sm:$0xff]
    %v3402 = vld [vmem:[#allocation3 + $0x410] sm:$0xff]
    %v3403 = vld [vmem:[#allocation3 + $0x418] sm:$0xff]
    %v3404 = vld [vmem:[#allocation3 + $0x420] sm:$0xff]
    %v3405 = vld [vmem:[#allocation3 + $0x428] sm:$0xff]
    %v3406 = vld [vmem:[#allocation3 + $0x430] sm:$0xff]
    %v3407 = vld [vmem:[#allocation3 + $0x438] sm:$0xff]
    %v3408 = vld [vmem:[#allocation3 + $0x440] sm:$0xff]
    %v3409 = vld [vmem:[#allocation3 + $0x448] sm:$0xff]
    %v3410 = vld [vmem:[#allocation3 + $0x450] sm:$0xff]
    %v3411 = vld [vmem:[#allocation3 + $0x458] sm:$0xff]
    %v3412 = vld [vmem:[#allocation3 + $0x460] sm:$0xff]
    %v3413 = vld [vmem:[#allocation3 + $0x468] sm:$0xff]
    %v3414 = vld [vmem:[#allocation3 + $0x470] sm:$0xff]
    %v3415 = vld [vmem:[#allocation3 + $0x478] sm:$0xff]
    %v3416 = vld [vmem:[#allocation3 + $0x480] sm:$0xff]
    %v3417 = vld [vmem:[#allocation3 + $0x488] sm:$0xff]
    %v3418 = vld [vmem:[#allocation3 + $0x490] sm:$0xff]
    %v3419 = vld [vmem:[#allocation3 + $0x498] sm:$0xff]
    %v3420 = vld [vmem:[#allocation3 + $0x4a0] sm:$0xff]
    %v3421 = vld [vmem:[#allocation3 + $0x4a8] sm:$0xff]
    %v3422 = vld [vmem:[#allocation3 + $0x4b0] sm:$0xff]
    %v3423 = vld [vmem:[#allocation3 + $0x4b8] sm:$0xff]
    %v3424 = vld [vmem:[#allocation3 + $0x4c0] sm:$0xff]
    %v3425 = vld [vmem:[#allocation3 + $0x4c8] sm:$0xff]
    %v3426 = vld [vmem:[#allocation3 + $0x4d0] sm:$0xff]
    %v3427 = vld [vmem:[#allocation3 + $0x4d8] sm:$0xff]
    %v3428 = vld [vmem:[#allocation3 + $0x4e0] sm:$0xff]
    %v3429 = vld [vmem:[#allocation3 + $0x4e8] sm:$0xff]
    %v3430 = vld [vmem:[#allocation3 + $0x4f0] sm:$0xff]
    %v3431 = vld [vmem:[#allocation3 + $0x4f8] sm:$0xff]
    %v3432 = vld [vmem:[#allocation3 + $0x500] sm:$0xff]
    %v3433 = vld [vmem:[#allocation3 + $0x508] sm:$0xff]
    %v3434 = vld [vmem:[#allocation3 + $0x510] sm:$0xff]
    %v3435 = vld [vmem:[#allocation3 + $0x518] sm:$0xff]
    %v3436 = vld [vmem:[#allocation3 + $0x520] sm:$0xff]
    %v3437 = vld [vmem:[#allocation3 + $0x528] sm:$0xff]
    %v3438 = vld [vmem:[#allocation3 + $0x530] sm:$0xff]
    %v3439 = vld [vmem:[#allocation3 + $0x538] sm:$0xff]
    %v3440 = vld [vmem:[#allocation3 + $0x540] sm:$0xff]
    %v3441 = vld [vmem:[#allocation3 + $0x548] sm:$0xff]
    %v3442 = vld [vmem:[#allocation3 + $0x550] sm:$0xff]
    %v3443 = vld [vmem:[#allocation3 + $0x558] sm:$0xff]
    %v3444 = vld [vmem:[#allocation3 + $0x560] sm:$0xff]
    %v3445 = vld [vmem:[#allocation3 + $0x568] sm:$0xff]
    %v3446 = vld [vmem:[#allocation3 + $0x570] sm:$0xff]
    %v3447 = vld [vmem:[#allocation3 + $0x578] sm:$0xff]
    %v3448 = vld [vmem:[#allocation3 + $0x580] sm:$0xff]
    %v3449 = vld [vmem:[#allocation3 + $0x588] sm:$0xff]
    %v3450 = vld [vmem:[#allocation3 + $0x590] sm:$0xff]
    %v3451 = vld [vmem:[#allocation3 + $0x598] sm:$0xff]
    %v3452 = vld [vmem:[#allocation3 + $0x5a0] sm:$0xff]
    %v3453 = vld [vmem:[#allocation3 + $0x5a8] sm:$0xff]
    %v3454 = vld [vmem:[#allocation3 + $0x5b0] sm:$0xff]
    %v3455 = vld [vmem:[#allocation3 + $0x5b8] sm:$0xff]
    %v3456 = vld [vmem:[#allocation3 + $0x5c0] sm:$0xff]
    %v3457 = vld [vmem:[#allocation3 + $0x5c8] sm:$0xff]
    %v3458 = vld [vmem:[#allocation3 + $0x5d0] sm:$0xff]
    %v3459 = vld [vmem:[#allocation3 + $0x5d8] sm:$0xff]
    %v3460 = vld [vmem:[#allocation3 + $0x5e0] sm:$0xff]
    %v3461 = vld [vmem:[#allocation3 + $0x5e8] sm:$0xff]
    %v3462 = vld [vmem:[#allocation3 + $0x5f0] sm:$0xff]
    %v3463 = vld [vmem:[#allocation3 + $0x5f8] sm:$0xff]
    %v3464 = vld [vmem:[#allocation3 + $0x600] sm:$0xff]
    %v3465 = vld [vmem:[#allocation3 + $0x608] sm:$0xff]
    %v3466 = vld [vmem:[#allocation3 + $0x610] sm:$0xff]
    %v3467 = vld [vmem:[#allocation3 + $0x618] sm:$0xff]
    %v3468 = vld [vmem:[#allocation3 + $0x620] sm:$0xff]
    %v3469 = vld [vmem:[#allocation3 + $0x628] sm:$0xff]
    %v3470 = vld [vmem:[#allocation3 + $0x630] sm:$0xff]
    %v3471 = vld [vmem:[#allocation3 + $0x638] sm:$0xff]
    %v3472 = vld [vmem:[#allocation3 + $0x640] sm:$0xff]
    %v3473 = vld [vmem:[#allocation3 + $0x648] sm:$0xff]
    %v3474 = vld [vmem:[#allocation3 + $0x650] sm:$0xff]
    %v3475 = vld [vmem:[#allocation3 + $0x658] sm:$0xff]
    %v3476 = vld [vmem:[#allocation3 + $0x660] sm:$0xff]
    %v3477 = vld [vmem:[#allocation3 + $0x668] sm:$0xff]
    %v3478 = vld [vmem:[#allocation3 + $0x670] sm:$0xff]
    %v3479 = vld [vmem:[#allocation3 + $0x678] sm:$0xff]
    %v3480 = vld [vmem:[#allocation3 + $0x680] sm:$0xff]
    %v3481 = vld [vmem:[#allocation3 + $0x688] sm:$0xff]
    %v3482 = vld [vmem:[#allocation3 + $0x690] sm:$0xff]
    %v3483 = vld [vmem:[#allocation3 + $0x698] sm:$0xff]
    %v3484 = vld [vmem:[#allocation3 + $0x6a0] sm:$0xff]
    %v3485 = vld [vmem:[#allocation3 + $0x6a8] sm:$0xff]
    %v3486 = vld [vmem:[#allocation3 + $0x6b0] sm:$0xff]
    %v3487 = vld [vmem:[#allocation3 + $0x6b8] sm:$0xff]
    %v3488 = vld [vmem:[#allocation3 + $0x6c0] sm:$0xff]
    %v3489 = vld [vmem:[#allocation3 + $0x6c8] sm:$0xff]
    %v3490 = vld [vmem:[#allocation3 + $0x6d0] sm:$0xff]
    %v3491 = vld [vmem:[#allocation3 + $0x6d8] sm:$0xff]
    %v3492 = vld [vmem:[#allocation3 + $0x6e0] sm:$0xff]
    %v3493 = vld [vmem:[#allocation3 + $0x6e8] sm:$0xff]
    %v3494 = vld [vmem:[#allocation3 + $0x6f0] sm:$0xff]
    %v3495 = vld [vmem:[#allocation3 + $0x6f8] sm:$0xff]
    %v3496 = vunpack.c.0.s8 %v3272
    %v3497 = vunpack.c.0.s8 %v3273
    %v3498 = vunpack.c.0.s8 %v3274
    %v3499 = vunpack.c.0.s8 %v3275
    %v3500 = vunpack.c.0.s8 %v3276
    %v3501 = vunpack.c.0.s8 %v3277
    %v3502 = vunpack.c.0.s8 %v3278
    %v3503 = vunpack.c.1.s8 %v3272
    %v3504 = vunpack.c.1.s8 %v3273
    %v3505 = vunpack.c.1.s8 %v3274
    %v3506 = vunpack.c.1.s8 %v3275
    %v3507 = vunpack.c.1.s8 %v3276
    %v3508 = vunpack.c.1.s8 %v3277
    %v3509 = vunpack.c.1.s8 %v3278
    %v3510 = vunpack.c.2.s8 %v3272
    %v3511 = vunpack.c.2.s8 %v3273
    %v3512 = vunpack.c.2.s8 %v3274
    %v3513 = vunpack.c.2.s8 %v3275
    %v3514 = vunpack.c.2.s8 %v3276
    %v3515 = vunpack.c.2.s8 %v3277
    %v3516 = vunpack.c.2.s8 %v3278
    %v3517 = vunpack.c.3.s8 %v3272
    %v3518 = vunpack.c.3.s8 %v3273
    %v3519 = vunpack.c.3.s8 %v3274
    %v3520 = vunpack.c.3.s8 %v3275
    %v3521 = vunpack.c.3.s8 %v3276
    %v3522 = vunpack.c.3.s8 %v3277
    %v3523 = vunpack.c.3.s8 %v3278
    %v3524 = vunpack.c.0.s8 %v3279
    %v3525 = vunpack.c.0.s8 %v3280
    %v3526 = vunpack.c.0.s8 %v3281
    %v3527 = vunpack.c.0.s8 %v3282
    %v3528 = vunpack.c.0.s8 %v3283
    %v3529 = vunpack.c.0.s8 %v3284
    %v3530 = vunpack.c.0.s8 %v3285
    %v3531 = vunpack.c.1.s8 %v3279
    %v3532 = vunpack.c.1.s8 %v3280
    %v3533 = vunpack.c.1.s8 %v3281
    %v3534 = vunpack.c.1.s8 %v3282
    %v3535 = vunpack.c.1.s8 %v3283
    %v3536 = vunpack.c.1.s8 %v3284
    %v3537 = vunpack.c.1.s8 %v3285
    %v3538 = vunpack.c.2.s8 %v3279
    %v3539 = vunpack.c.2.s8 %v3280
    %v3540 = vunpack.c.2.s8 %v3281
    %v3541 = vunpack.c.2.s8 %v3282
    %v3542 = vunpack.c.2.s8 %v3283
    %v3543 = vunpack.c.2.s8 %v3284
    %v3544 = vunpack.c.2.s8 %v3285
    %v3545 = vunpack.c.3.s8 %v3279
    %v3546 = vunpack.c.3.s8 %v3280
    %v3547 = vunpack.c.3.s8 %v3281
    %v3548 = vunpack.c.3.s8 %v3282
    %v3549 = vunpack.c.3.s8 %v3283
    %v3550 = vunpack.c.3.s8 %v3284
    %v3551 = vunpack.c.3.s8 %v3285
    %v3552 = vunpack.c.0.s8 %v3286
    %v3553 = vunpack.c.0.s8 %v3287
    %v3554 = vunpack.c.0.s8 %v3288
    %v3555 = vunpack.c.0.s8 %v3289
    %v3556 = vunpack.c.0.s8 %v3290
    %v3557 = vunpack.c.0.s8 %v3291
    %v3558 = vunpack.c.0.s8 %v3292
    %v3559 = vunpack.c.1.s8 %v3286
    %v3560 = vunpack.c.1.s8 %v3287
    %v3561 = vunpack.c.1.s8 %v3288
    %v3562 = vunpack.c.1.s8 %v3289
    %v3563 = vunpack.c.1.s8 %v3290
    %v3564 = vunpack.c.1.s8 %v3291
    %v3565 = vunpack.c.1.s8 %v3292
    %v3566 = vunpack.c.2.s8 %v3286
    %v3567 = vunpack.c.2.s8 %v3287
    %v3568 = vunpack.c.2.s8 %v3288
    %v3569 = vunpack.c.2.s8 %v3289
    %v3570 = vunpack.c.2.s8 %v3290
    %v3571 = vunpack.c.2.s8 %v3291
    %v3572 = vunpack.c.2.s8 %v3292
    %v3573 = vunpack.c.3.s8 %v3286
    %v3574 = vunpack.c.3.s8 %v3287
    %v3575 = vunpack.c.3.s8 %v3288
    %v3576 = vunpack.c.3.s8 %v3289
    %v3577 = vunpack.c.3.s8 %v3290
    %v3578 = vunpack.c.3.s8 %v3291
    %v3579 = vunpack.c.3.s8 %v3292
    %v3580 = vunpack.c.0.s8 %v3293
    %v3581 = vunpack.c.0.s8 %v3294
    %v3582 = vunpack.c.0.s8 %v3295
    %v3583 = vunpack.c.0.s8 %v3296
    %v3584 = vunpack.c.0.s8 %v3297
    %v3585 = vunpack.c.0.s8 %v3298
    %v3586 = vunpack.c.0.s8 %v3299
    %v3587 = vunpack.c.1.s8 %v3293
    %v3588 = vunpack.c.1.s8 %v3294
    %v3589 = vunpack.c.1.s8 %v3295
    %v3590 = vunpack.c.1.s8 %v3296
    %v3591 = vunpack.c.1.s8 %v3297
    %v3592 = vunpack.c.1.s8 %v3298
    %v3593 = vunpack.c.1.s8 %v3299
    %v3594 = vunpack.c.2.s8 %v3293
    %v3595 = vunpack.c.2.s8 %v3294
    %v3596 = vunpack.c.2.s8 %v3295
    %v3597 = vunpack.c.2.s8 %v3296
    %v3598 = vunpack.c.2.s8 %v3297
    %v3599 = vunpack.c.2.s8 %v3298
    %v3600 = vunpack.c.2.s8 %v3299
    %v3601 = vunpack.c.3.s8 %v3293
    %v3602 = vunpack.c.3.s8 %v3294
    %v3603 = vunpack.c.3.s8 %v3295
    %v3604 = vunpack.c.3.s8 %v3296
    %v3605 = vunpack.c.3.s8 %v3297
    %v3606 = vunpack.c.3.s8 %v3298
    %v3607 = vunpack.c.3.s8 %v3299
    %v3608 = vunpack.c.0.s8 %v3300
    %v3609 = vunpack.c.0.s8 %v3301
    %v3610 = vunpack.c.0.s8 %v3302
    %v3611 = vunpack.c.0.s8 %v3303
    %v3612 = vunpack.c.0.s8 %v3304
    %v3613 = vunpack.c.0.s8 %v3305
    %v3614 = vunpack.c.0.s8 %v3306
    %v3615 = vunpack.c.1.s8 %v3300
    %v3616 = vunpack.c.1.s8 %v3301
    %v3617 = vunpack.c.1.s8 %v3302
    %v3618 = vunpack.c.1.s8 %v3303
    %v3619 = vunpack.c.1.s8 %v3304
    %v3620 = vunpack.c.1.s8 %v3305
    %v3621 = vunpack.c.1.s8 %v3306
    %v3622 = vunpack.c.2.s8 %v3300
    %v3623 = vunpack.c.2.s8 %v3301
    %v3624 = vunpack.c.2.s8 %v3302
    %v3625 = vunpack.c.2.s8 %v3303
    %v3626 = vunpack.c.2.s8 %v3304
    %v3627 = vunpack.c.2.s8 %v3305
    %v3628 = vunpack.c.2.s8 %v3306
    %v3629 = vunpack.c.3.s8 %v3300
    %v3630 = vunpack.c.3.s8 %v3301
    %v3631 = vunpack.c.3.s8 %v3302
    %v3632 = vunpack.c.3.s8 %v3303
    %v3633 = vunpack.c.3.s8 %v3304
    %v3634 = vunpack.c.3.s8 %v3305
    %v3635 = vunpack.c.3.s8 %v3306
    %v3636 = vunpack.c.0.s8 %v3307
    %v3637 = vunpack.c.0.s8 %v3308
    %v3638 = vunpack.c.0.s8 %v3309
    %v3639 = vunpack.c.0.s8 %v3310
    %v3640 = vunpack.c.0.s8 %v3311
    %v3641 = vunpack.c.0.s8 %v3312
    %v3642 = vunpack.c.0.s8 %v3313
    %v3643 = vunpack.c.1.s8 %v3307
    %v3644 = vunpack.c.1.s8 %v3308
    %v3645 = vunpack.c.1.s8 %v3309
    %v3646 = vunpack.c.1.s8 %v3310
    %v3647 = vunpack.c.1.s8 %v3311
    %v3648 = vunpack.c.1.s8 %v3312
    %v3649 = vunpack.c.1.s8 %v3313
    %v3650 = vunpack.c.2.s8 %v3307
    %v3651 = vunpack.c.2.s8 %v3308
    %v3652 = vunpack.c.2.s8 %v3309
    %v3653 = vunpack.c.2.s8 %v3310
    %v3654 = vunpack.c.2.s8 %v3311
    %v3655 = vunpack.c.2.s8 %v3312
    %v3656 = vunpack.c.2.s8 %v3313
    %v3657 = vunpack.c.3.s8 %v3307
    %v3658 = vunpack.c.3.s8 %v3308
    %v3659 = vunpack.c.3.s8 %v3309
    %v3660 = vunpack.c.3.s8 %v3310
    %v3661 = vunpack.c.3.s8 %v3311
    %v3662 = vunpack.c.3.s8 %v3312
    %v3663 = vunpack.c.3.s8 %v3313
    %v3664 = vunpack.c.0.s8 %v3314
    %v3665 = vunpack.c.0.s8 %v3315
    %v3666 = vunpack.c.0.s8 %v3316
    %v3667 = vunpack.c.0.s8 %v3317
    %v3668 = vunpack.c.0.s8 %v3318
    %v3669 = vunpack.c.0.s8 %v3319
    %v3670 = vunpack.c.0.s8 %v3320
    %v3671 = vunpack.c.1.s8 %v3314
    %v3672 = vunpack.c.1.s8 %v3315
    %v3673 = vunpack.c.1.s8 %v3316
    %v3674 = vunpack.c.1.s8 %v3317
    %v3675 = vunpack.c.1.s8 %v3318
    %v3676 = vunpack.c.1.s8 %v3319
    %v3677 = vunpack.c.1.s8 %v3320
    %v3678 = vunpack.c.2.s8 %v3314
    %v3679 = vunpack.c.2.s8 %v3315
    %v3680 = vunpack.c.2.s8 %v3316
    %v3681 = vunpack.c.2.s8 %v3317
    %v3682 = vunpack.c.2.s8 %v3318
    %v3683 = vunpack.c.2.s8 %v3319
    %v3684 = vunpack.c.2.s8 %v3320
    %v3685 = vunpack.c.3.s8 %v3314
    %v3686 = vunpack.c.3.s8 %v3315
    %v3687 = vunpack.c.3.s8 %v3316
    %v3688 = vunpack.c.3.s8 %v3317
    %v3689 = vunpack.c.3.s8 %v3318
    %v3690 = vunpack.c.3.s8 %v3319
    %v3691 = vunpack.c.3.s8 %v3320
    %v3692 = vunpack.c.0.s8 %v3321
    %v3693 = vunpack.c.0.s8 %v3322
    %v3694 = vunpack.c.0.s8 %v3323
    %v3695 = vunpack.c.0.s8 %v3324
    %v3696 = vunpack.c.0.s8 %v3325
    %v3697 = vunpack.c.0.s8 %v3326
    %v3698 = vunpack.c.0.s8 %v3327
    %v3699 = vunpack.c.1.s8 %v3321
    %v3700 = vunpack.c.1.s8 %v3322
    %v3701 = vunpack.c.1.s8 %v3323
    %v3702 = vunpack.c.1.s8 %v3324
    %v3703 = vunpack.c.1.s8 %v3325
    %v3704 = vunpack.c.1.s8 %v3326
    %v3705 = vunpack.c.1.s8 %v3327
    %v3706 = vunpack.c.2.s8 %v3321
    %v3707 = vunpack.c.2.s8 %v3322
    %v3708 = vunpack.c.2.s8 %v3323
    %v3709 = vunpack.c.2.s8 %v3324
    %v3710 = vunpack.c.2.s8 %v3325
    %v3711 = vunpack.c.2.s8 %v3326
    %v3712 = vunpack.c.2.s8 %v3327
    %v3713 = vunpack.c.3.s8 %v3321
    %v3714 = vunpack.c.3.s8 %v3322
    %v3715 = vunpack.c.3.s8 %v3323
    %v3716 = vunpack.c.3.s8 %v3324
    %v3717 = vunpack.c.3.s8 %v3325
    %v3718 = vunpack.c.3.s8 %v3326
    %v3719 = vunpack.c.3.s8 %v3327
    %v3720 = vunpack.c.0.s8 %v3328
    %v3721 = vunpack.c.0.s8 %v3329
    %v3722 = vunpack.c.0.s8 %v3330
    %v3723 = vunpack.c.0.s8 %v3331
    %v3724 = vunpack.c.0.s8 %v3332
    %v3725 = vunpack.c.0.s8 %v3333
    %v3726 = vunpack.c.0.s8 %v3334
    %v3727 = vunpack.c.1.s8 %v3328
    %v3728 = vunpack.c.1.s8 %v3329
    %v3729 = vunpack.c.1.s8 %v3330
    %v3730 = vunpack.c.1.s8 %v3331
    %v3731 = vunpack.c.1.s8 %v3332
    %v3732 = vunpack.c.1.s8 %v3333
    %v3733 = vunpack.c.1.s8 %v3334
    %v3734 = vunpack.c.2.s8 %v3328
    %v3735 = vunpack.c.2.s8 %v3329
    %v3736 = vunpack.c.2.s8 %v3330
    %v3737 = vunpack.c.2.s8 %v3331
    %v3738 = vunpack.c.2.s8 %v3332
    %v3739 = vunpack.c.2.s8 %v3333
    %v3740 = vunpack.c.2.s8 %v3334
    %v3741 = vunpack.c.3.s8 %v3328
    %v3742 = vunpack.c.3.s8 %v3329
    %v3743 = vunpack.c.3.s8 %v3330
    %v3744 = vunpack.c.3.s8 %v3331
    %v3745 = vunpack.c.3.s8 %v3332
    %v3746 = vunpack.c.3.s8 %v3333
    %v3747 = vunpack.c.3.s8 %v3334
    %v3748 = vunpack.c.0.s8 %v3335
    %v3749 = vunpack.c.0.s8 %v3336
    %v3750 = vunpack.c.0.s8 %v3337
    %v3751 = vunpack.c.0.s8 %v3338
    %v3752 = vunpack.c.0.s8 %v3339
    %v3753 = vunpack.c.0.s8 %v3340
    %v3754 = vunpack.c.0.s8 %v3341
    %v3755 = vunpack.c.1.s8 %v3335
    %v3756 = vunpack.c.1.s8 %v3336
    %v3757 = vunpack.c.1.s8 %v3337
    %v3758 = vunpack.c.1.s8 %v3338
    %v3759 = vunpack.c.1.s8 %v3339
    %v3760 = vunpack.c.1.s8 %v3340
    %v3761 = vunpack.c.1.s8 %v3341
    %v3762 = vunpack.c.2.s8 %v3335
    %v3763 = vunpack.c.2.s8 %v3336
    %v3764 = vunpack.c.2.s8 %v3337
    %v3765 = vunpack.c.2.s8 %v3338
    %v3766 = vunpack.c.2.s8 %v3339
    %v3767 = vunpack.c.2.s8 %v3340
    %v3768 = vunpack.c.2.s8 %v3341
    %v3769 = vunpack.c.3.s8 %v3335
    %v3770 = vunpack.c.3.s8 %v3336
    %v3771 = vunpack.c.3.s8 %v3337
    %v3772 = vunpack.c.3.s8 %v3338
    %v3773 = vunpack.c.3.s8 %v3339
    %v3774 = vunpack.c.3.s8 %v3340
    %v3775 = vunpack.c.3.s8 %v3341
    %v3776 = vunpack.c.0.s8 %v3342
    %v3777 = vunpack.c.0.s8 %v3343
    %v3778 = vunpack.c.0.s8 %v3344
    %v3779 = vunpack.c.0.s8 %v3345
    %v3780 = vunpack.c.0.s8 %v3346
    %v3781 = vunpack.c.0.s8 %v3347
    %v3782 = vunpack.c.0.s8 %v3348
    %v3783 = vunpack.c.1.s8 %v3342
    %v3784 = vunpack.c.1.s8 %v3343
    %v3785 = vunpack.c.1.s8 %v3344
    %v3786 = vunpack.c.1.s8 %v3345
    %v3787 = vunpack.c.1.s8 %v3346
    %v3788 = vunpack.c.1.s8 %v3347
    %v3789 = vunpack.c.1.s8 %v3348
    %v3790 = vunpack.c.2.s8 %v3342
    %v3791 = vunpack.c.2.s8 %v3343
    %v3792 = vunpack.c.2.s8 %v3344
    %v3793 = vunpack.c.2.s8 %v3345
    %v3794 = vunpack.c.2.s8 %v3346
    %v3795 = vunpack.c.2.s8 %v3347
    %v3796 = vunpack.c.2.s8 %v3348
    %v3797 = vunpack.c.3.s8 %v3342
    %v3798 = vunpack.c.3.s8 %v3343
    %v3799 = vunpack.c.3.s8 %v3344
    %v3800 = vunpack.c.3.s8 %v3345
    %v3801 = vunpack.c.3.s8 %v3346
    %v3802 = vunpack.c.3.s8 %v3347
    %v3803 = vunpack.c.3.s8 %v3348
    %v3804 = vunpack.c.0.s8 %v3349
    %v3805 = vunpack.c.0.s8 %v3350
    %v3806 = vunpack.c.0.s8 %v3351
    %v3807 = vunpack.c.0.s8 %v3352
    %v3808 = vunpack.c.0.s8 %v3353
    %v3809 = vunpack.c.0.s8 %v3354
    %v3810 = vunpack.c.0.s8 %v3355
    %v3811 = vunpack.c.1.s8 %v3349
    %v3812 = vunpack.c.1.s8 %v3350
    %v3813 = vunpack.c.1.s8 %v3351
    %v3814 = vunpack.c.1.s8 %v3352
    %v3815 = vunpack.c.1.s8 %v3353
    %v3816 = vunpack.c.1.s8 %v3354
    %v3817 = vunpack.c.1.s8 %v3355
    %v3818 = vunpack.c.2.s8 %v3349
    %v3819 = vunpack.c.2.s8 %v3350
    %v3820 = vunpack.c.2.s8 %v3351
    %v3821 = vunpack.c.2.s8 %v3352
    %v3822 = vunpack.c.2.s8 %v3353
    %v3823 = vunpack.c.2.s8 %v3354
    %v3824 = vunpack.c.2.s8 %v3355
    %v3825 = vunpack.c.3.s8 %v3349
    %v3826 = vunpack.c.3.s8 %v3350
    %v3827 = vunpack.c.3.s8 %v3351
    %v3828 = vunpack.c.3.s8 %v3352
    %v3829 = vunpack.c.3.s8 %v3353
    %v3830 = vunpack.c.3.s8 %v3354
    %v3831 = vunpack.c.3.s8 %v3355
    %v3832 = vunpack.c.0.s8 %v3356
    %v3833 = vunpack.c.0.s8 %v3357
    %v3834 = vunpack.c.0.s8 %v3358
    %v3835 = vunpack.c.0.s8 %v3359
    %v3836 = vunpack.c.0.s8 %v3360
    %v3837 = vunpack.c.0.s8 %v3361
    %v3838 = vunpack.c.0.s8 %v3362
    %v3839 = vunpack.c.1.s8 %v3356
    %v3840 = vunpack.c.1.s8 %v3357
    %v3841 = vunpack.c.1.s8 %v3358
    %v3842 = vunpack.c.1.s8 %v3359
    %v3843 = vunpack.c.1.s8 %v3360
    %v3844 = vunpack.c.1.s8 %v3361
    %v3845 = vunpack.c.1.s8 %v3362
    %v3846 = vunpack.c.2.s8 %v3356
    %v3847 = vunpack.c.2.s8 %v3357
    %v3848 = vunpack.c.2.s8 %v3358
    %v3849 = vunpack.c.2.s8 %v3359
    %v3850 = vunpack.c.2.s8 %v3360
    %v3851 = vunpack.c.2.s8 %v3361
    %v3852 = vunpack.c.2.s8 %v3362
    %v3853 = vunpack.c.3.s8 %v3356
    %v3854 = vunpack.c.3.s8 %v3357
    %v3855 = vunpack.c.3.s8 %v3358
    %v3856 = vunpack.c.3.s8 %v3359
    %v3857 = vunpack.c.3.s8 %v3360
    %v3858 = vunpack.c.3.s8 %v3361
    %v3859 = vunpack.c.3.s8 %v3362
    %v3860 = vunpack.c.0.s8 %v3363
    %v3861 = vunpack.c.0.s8 %v3364
    %v3862 = vunpack.c.0.s8 %v3365
    %v3863 = vunpack.c.0.s8 %v3366
    %v3864 = vunpack.c.0.s8 %v3367
    %v3865 = vunpack.c.0.s8 %v3368
    %v3866 = vunpack.c.0.s8 %v3369
    %v3867 = vunpack.c.1.s8 %v3363
    %v3868 = vunpack.c.1.s8 %v3364
    %v3869 = vunpack.c.1.s8 %v3365
    %v3870 = vunpack.c.1.s8 %v3366
    %v3871 = vunpack.c.1.s8 %v3367
    %v3872 = vunpack.c.1.s8 %v3368
    %v3873 = vunpack.c.1.s8 %v3369
    %v3874 = vunpack.c.2.s8 %v3363
    %v3875 = vunpack.c.2.s8 %v3364
    %v3876 = vunpack.c.2.s8 %v3365
    %v3877 = vunpack.c.2.s8 %v3366
    %v3878 = vunpack.c.2.s8 %v3367
    %v3879 = vunpack.c.2.s8 %v3368
    %v3880 = vunpack.c.2.s8 %v3369
    %v3881 = vunpack.c.3.s8 %v3363
    %v3882 = vunpack.c.3.s8 %v3364
    %v3883 = vunpack.c.3.s8 %v3365
    %v3884 = vunpack.c.3.s8 %v3366
    %v3885 = vunpack.c.3.s8 %v3367
    %v3886 = vunpack.c.3.s8 %v3368
    %v3887 = vunpack.c.3.s8 %v3369
    %v3888 = vunpack.c.0.s8 %v3370
    %v3889 = vunpack.c.0.s8 %v3371
    %v3890 = vunpack.c.0.s8 %v3372
    %v3891 = vunpack.c.0.s8 %v3373
    %v3892 = vunpack.c.0.s8 %v3374
    %v3893 = vunpack.c.0.s8 %v3375
    %v3894 = vunpack.c.0.s8 %v3376
    %v3895 = vunpack.c.1.s8 %v3370
    %v3896 = vunpack.c.1.s8 %v3371
    %v3897 = vunpack.c.1.s8 %v3372
    %v3898 = vunpack.c.1.s8 %v3373
    %v3899 = vunpack.c.1.s8 %v3374
    %v3900 = vunpack.c.1.s8 %v3375
    %v3901 = vunpack.c.1.s8 %v3376
    %v3902 = vunpack.c.2.s8 %v3370
    %v3903 = vunpack.c.2.s8 %v3371
    %v3904 = vunpack.c.2.s8 %v3372
    %v3905 = vunpack.c.2.s8 %v3373
    %v3906 = vunpack.c.2.s8 %v3374
    %v3907 = vunpack.c.2.s8 %v3375
    %v3908 = vunpack.c.2.s8 %v3376
    %v3909 = vunpack.c.3.s8 %v3370
    %v3910 = vunpack.c.3.s8 %v3371
    %v3911 = vunpack.c.3.s8 %v3372
    %v3912 = vunpack.c.3.s8 %v3373
    %v3913 = vunpack.c.3.s8 %v3374
    %v3914 = vunpack.c.3.s8 %v3375
    %v3915 = vunpack.c.3.s8 %v3376
    %v3916 = vunpack.c.0.s8 %v3377
    %v3917 = vunpack.c.0.s8 %v3378
    %v3918 = vunpack.c.0.s8 %v3379
    %v3919 = vunpack.c.0.s8 %v3380
    %v3920 = vunpack.c.0.s8 %v3381
    %v3921 = vunpack.c.0.s8 %v3382
    %v3922 = vunpack.c.0.s8 %v3383
    %v3923 = vunpack.c.1.s8 %v3377
    %v3924 = vunpack.c.1.s8 %v3378
    %v3925 = vunpack.c.1.s8 %v3379
    %v3926 = vunpack.c.1.s8 %v3380
    %v3927 = vunpack.c.1.s8 %v3381
    %v3928 = vunpack.c.1.s8 %v3382
    %v3929 = vunpack.c.1.s8 %v3383
    %v3930 = vunpack.c.2.s8 %v3377
    %v3931 = vunpack.c.2.s8 %v3378
    %v3932 = vunpack.c.2.s8 %v3379
    %v3933 = vunpack.c.2.s8 %v3380
    %v3934 = vunpack.c.2.s8 %v3381
    %v3935 = vunpack.c.2.s8 %v3382
    %v3936 = vunpack.c.2.s8 %v3383
    %v3937 = vunpack.c.3.s8 %v3377
    %v3938 = vunpack.c.3.s8 %v3378
    %v3939 = vunpack.c.3.s8 %v3379
    %v3940 = vunpack.c.3.s8 %v3380
    %v3941 = vunpack.c.3.s8 %v3381
    %v3942 = vunpack.c.3.s8 %v3382
    %v3943 = vunpack.c.3.s8 %v3383
    %v3944 = vunpack.c.0.s8 %v3384
    %v3945 = vunpack.c.0.s8 %v3385
    %v3946 = vunpack.c.0.s8 %v3386
    %v3947 = vunpack.c.0.s8 %v3387
    %v3948 = vunpack.c.0.s8 %v3388
    %v3949 = vunpack.c.0.s8 %v3389
    %v3950 = vunpack.c.0.s8 %v3390
    %v3951 = vunpack.c.1.s8 %v3384
    %v3952 = vunpack.c.1.s8 %v3385
    %v3953 = vunpack.c.1.s8 %v3386
    %v3954 = vunpack.c.1.s8 %v3387
    %v3955 = vunpack.c.1.s8 %v3388
    %v3956 = vunpack.c.1.s8 %v3389
    %v3957 = vunpack.c.1.s8 %v3390
    %v3958 = vunpack.c.2.s8 %v3384
    %v3959 = vunpack.c.2.s8 %v3385
    %v3960 = vunpack.c.2.s8 %v3386
    %v3961 = vunpack.c.2.s8 %v3387
    %v3962 = vunpack.c.2.s8 %v3388
    %v3963 = vunpack.c.2.s8 %v3389
    %v3964 = vunpack.c.2.s8 %v3390
    %v3965 = vunpack.c.3.s8 %v3384
    %v3966 = vunpack.c.3.s8 %v3385
    %v3967 = vunpack.c.3.s8 %v3386
    %v3968 = vunpack.c.3.s8 %v3387
    %v3969 = vunpack.c.3.s8 %v3388
    %v3970 = vunpack.c.3.s8 %v3389
    %v3971 = vunpack.c.3.s8 %v3390
    %v3972 = vunpack.c.0.s8 %v3391
    %v3973 = vunpack.c.0.s8 %v3392
    %v3974 = vunpack.c.0.s8 %v3393
    %v3975 = vunpack.c.0.s8 %v3394
    %v3976 = vunpack.c.0.s8 %v3395
    %v3977 = vunpack.c.0.s8 %v3396
    %v3978 = vunpack.c.0.s8 %v3397
    %v3979 = vunpack.c.1.s8 %v3391
    %v3980 = vunpack.c.1.s8 %v3392
    %v3981 = vunpack.c.1.s8 %v3393
    %v3982 = vunpack.c.1.s8 %v3394
    %v3983 = vunpack.c.1.s8 %v3395
    %v3984 = vunpack.c.1.s8 %v3396
    %v3985 = vunpack.c.1.s8 %v3397
    %v3986 = vunpack.c.2.s8 %v3391
    %v3987 = vunpack.c.2.s8 %v3392
    %v3988 = vunpack.c.2.s8 %v3393
    %v3989 = vunpack.c.2.s8 %v3394
    %v3990 = vunpack.c.2.s8 %v3395
    %v3991 = vunpack.c.2.s8 %v3396
    %v3992 = vunpack.c.2.s8 %v3397
    %v3993 = vunpack.c.3.s8 %v3391
    %v3994 = vunpack.c.3.s8 %v3392
    %v3995 = vunpack.c.3.s8 %v3393
    %v3996 = vunpack.c.3.s8 %v3394
    %v3997 = vunpack.c.3.s8 %v3395
    %v3998 = vunpack.c.3.s8 %v3396
    %v3999 = vunpack.c.3.s8 %v3397
    %v4000 = vunpack.c.0.s8 %v3398
    %v4001 = vunpack.c.0.s8 %v3399
    %v4002 = vunpack.c.0.s8 %v3400
    %v4003 = vunpack.c.0.s8 %v3401
    %v4004 = vunpack.c.0.s8 %v3402
    %v4005 = vunpack.c.0.s8 %v3403
    %v4006 = vunpack.c.0.s8 %v3404
    %v4007 = vunpack.c.1.s8 %v3398
    %v4008 = vunpack.c.1.s8 %v3399
    %v4009 = vunpack.c.1.s8 %v3400
    %v4010 = vunpack.c.1.s8 %v3401
    %v4011 = vunpack.c.1.s8 %v3402
    %v4012 = vunpack.c.1.s8 %v3403
    %v4013 = vunpack.c.1.s8 %v3404
    %v4014 = vunpack.c.2.s8 %v3398
    %v4015 = vunpack.c.2.s8 %v3399
    %v4016 = vunpack.c.2.s8 %v3400
    %v4017 = vunpack.c.2.s8 %v3401
    %v4018 = vunpack.c.2.s8 %v3402
    %v4019 = vunpack.c.2.s8 %v3403
    %v4020 = vunpack.c.2.s8 %v3404
    %v4021 = vunpack.c.3.s8 %v3398
    %v4022 = vunpack.c.3.s8 %v3399
    %v4023 = vunpack.c.3.s8 %v3400
    %v4024 = vunpack.c.3.s8 %v3401
    %v4025 = vunpack.c.3.s8 %v3402
    %v4026 = vunpack.c.3.s8 %v3403
    %v4027 = vunpack.c.3.s8 %v3404
    %v4028 = vunpack.c.0.s8 %v3405
    %v4029 = vunpack.c.0.s8 %v3406
    %v4030 = vunpack.c.0.s8 %v3407
    %v4031 = vunpack.c.0.s8 %v3408
    %v4032 = vunpack.c.0.s8 %v3409
    %v4033 = vunpack.c.0.s8 %v3410
    %v4034 = vunpack.c.0.s8 %v3411
    %v4035 = vunpack.c.1.s8 %v3405
    %v4036 = vunpack.c.1.s8 %v3406
    %v4037 = vunpack.c.1.s8 %v3407
    %v4038 = vunpack.c.1.s8 %v3408
    %v4039 = vunpack.c.1.s8 %v3409
    %v4040 = vunpack.c.1.s8 %v3410
    %v4041 = vunpack.c.1.s8 %v3411
    %v4042 = vunpack.c.2.s8 %v3405
    %v4043 = vunpack.c.2.s8 %v3406
    %v4044 = vunpack.c.2.s8 %v3407
    %v4045 = vunpack.c.2.s8 %v3408
    %v4046 = vunpack.c.2.s8 %v3409
    %v4047 = vunpack.c.2.s8 %v3410
    %v4048 = vunpack.c.2.s8 %v3411
    %v4049 = vunpack.c.3.s8 %v3405
    %v4050 = vunpack.c.3.s8 %v3406
    %v4051 = vunpack.c.3.s8 %v3407
    %v4052 = vunpack.c.3.s8 %v3408
    %v4053 = vunpack.c.3.s8 %v3409
    %v4054 = vunpack.c.3.s8 %v3410
    %v4055 = vunpack.c.3.s8 %v3411
    %v4056 = vunpack.c.0.s8 %v3412
    %v4057 = vunpack.c.0.s8 %v3413
    %v4058 = vunpack.c.0.s8 %v3414
    %v4059 = vunpack.c.0.s8 %v3415
    %v4060 = vunpack.c.0.s8 %v3416
    %v4061 = vunpack.c.0.s8 %v3417
    %v4062 = vunpack.c.0.s8 %v3418
    %v4063 = vunpack.c.1.s8 %v3412
    %v4064 = vunpack.c.1.s8 %v3413
    %v4065 = vunpack.c.1.s8 %v3414
    %v4066 = vunpack.c.1.s8 %v3415
    %v4067 = vunpack.c.1.s8 %v3416
    %v4068 = vunpack.c.1.s8 %v3417
    %v4069 = vunpack.c.1.s8 %v3418
    %v4070 = vunpack.c.2.s8 %v3412
    %v4071 = vunpack.c.2.s8 %v3413
    %v4072 = vunpack.c.2.s8 %v3414
    %v4073 = vunpack.c.2.s8 %v3415
    %v4074 = vunpack.c.2.s8 %v3416
    %v4075 = vunpack.c.2.s8 %v3417
    %v4076 = vunpack.c.2.s8 %v3418
    %v4077 = vunpack.c.3.s8 %v3412
    %v4078 = vunpack.c.3.s8 %v3413
    %v4079 = vunpack.c.3.s8 %v3414
    %v4080 = vunpack.c.3.s8 %v3415
    %v4081 = vunpack.c.3.s8 %v3416
    %v4082 = vunpack.c.3.s8 %v3417
    %v4083 = vunpack.c.3.s8 %v3418
    %v4084 = vunpack.c.0.s8 %v3419
    %v4085 = vunpack.c.0.s8 %v3420
    %v4086 = vunpack.c.0.s8 %v3421
    %v4087 = vunpack.c.0.s8 %v3422
    %v4088 = vunpack.c.0.s8 %v3423
    %v4089 = vunpack.c.0.s8 %v3424
    %v4090 = vunpack.c.0.s8 %v3425
    %v4091 = vunpack.c.1.s8 %v3419
    %v4092 = vunpack.c.1.s8 %v3420
    %v4093 = vunpack.c.1.s8 %v3421
    %v4094 = vunpack.c.1.s8 %v3422
    %v4095 = vunpack.c.1.s8 %v3423
    %v4096 = vunpack.c.1.s8 %v3424
    %v4097 = vunpack.c.1.s8 %v3425
    %v4098 = vunpack.c.2.s8 %v3419
    %v4099 = vunpack.c.2.s8 %v3420
    %v4100 = vunpack.c.2.s8 %v3421
    %v4101 = vunpack.c.2.s8 %v3422
    %v4102 = vunpack.c.2.s8 %v3423
    %v4103 = vunpack.c.2.s8 %v3424
    %v4104 = vunpack.c.2.s8 %v3425
    %v4105 = vunpack.c.3.s8 %v3419
    %v4106 = vunpack.c.3.s8 %v3420
    %v4107 = vunpack.c.3.s8 %v3421
    %v4108 = vunpack.c.3.s8 %v3422
    %v4109 = vunpack.c.3.s8 %v3423
    %v4110 = vunpack.c.3.s8 %v3424
    %v4111 = vunpack.c.3.s8 %v3425
    %v4112 = vunpack.c.0.s8 %v3426
    %v4113 = vunpack.c.0.s8 %v3427
    %v4114 = vunpack.c.0.s8 %v3428
    %v4115 = vunpack.c.0.s8 %v3429
    %v4116 = vunpack.c.0.s8 %v3430
    %v4117 = vunpack.c.0.s8 %v3431
    %v4118 = vunpack.c.0.s8 %v3432
    %v4119 = vunpack.c.1.s8 %v3426
    %v4120 = vunpack.c.1.s8 %v3427
    %v4121 = vunpack.c.1.s8 %v3428
    %v4122 = vunpack.c.1.s8 %v3429
    %v4123 = vunpack.c.1.s8 %v3430
    %v4124 = vunpack.c.1.s8 %v3431
    %v4125 = vunpack.c.1.s8 %v3432
    %v4126 = vunpack.c.2.s8 %v3426
    %v4127 = vunpack.c.2.s8 %v3427
    %v4128 = vunpack.c.2.s8 %v3428
    %v4129 = vunpack.c.2.s8 %v3429
    %v4130 = vunpack.c.2.s8 %v3430
    %v4131 = vunpack.c.2.s8 %v3431
    %v4132 = vunpack.c.2.s8 %v3432
    %v4133 = vunpack.c.3.s8 %v3426
    %v4134 = vunpack.c.3.s8 %v3427
    %v4135 = vunpack.c.3.s8 %v3428
    %v4136 = vunpack.c.3.s8 %v3429
    %v4137 = vunpack.c.3.s8 %v3430
    %v4138 = vunpack.c.3.s8 %v3431
    %v4139 = vunpack.c.3.s8 %v3432
    %v4140 = vunpack.c.0.s8 %v3433
    %v4141 = vunpack.c.0.s8 %v3434
    %v4142 = vunpack.c.0.s8 %v3435
    %v4143 = vunpack.c.0.s8 %v3436
    %v4144 = vunpack.c.0.s8 %v3437
    %v4145 = vunpack.c.0.s8 %v3438
    %v4146 = vunpack.c.0.s8 %v3439
    %v4147 = vunpack.c.1.s8 %v3433
    %v4148 = vunpack.c.1.s8 %v3434
    %v4149 = vunpack.c.1.s8 %v3435
    %v4150 = vunpack.c.1.s8 %v3436
    %v4151 = vunpack.c.1.s8 %v3437
    %v4152 = vunpack.c.1.s8 %v3438
    %v4153 = vunpack.c.1.s8 %v3439
    %v4154 = vunpack.c.2.s8 %v3433
    %v4155 = vunpack.c.2.s8 %v3434
    %v4156 = vunpack.c.2.s8 %v3435
    %v4157 = vunpack.c.2.s8 %v3436
    %v4158 = vunpack.c.2.s8 %v3437
    %v4159 = vunpack.c.2.s8 %v3438
    %v4160 = vunpack.c.2.s8 %v3439
    %v4161 = vunpack.c.3.s8 %v3433
    %v4162 = vunpack.c.3.s8 %v3434
    %v4163 = vunpack.c.3.s8 %v3435
    %v4164 = vunpack.c.3.s8 %v3436
    %v4165 = vunpack.c.3.s8 %v3437
    %v4166 = vunpack.c.3.s8 %v3438
    %v4167 = vunpack.c.3.s8 %v3439
    %v4168 = vunpack.c.0.s8 %v3440
    %v4169 = vunpack.c.0.s8 %v3441
    %v4170 = vunpack.c.0.s8 %v3442
    %v4171 = vunpack.c.0.s8 %v3443
    %v4172 = vunpack.c.0.s8 %v3444
    %v4173 = vunpack.c.0.s8 %v3445
    %v4174 = vunpack.c.0.s8 %v3446
    %v4175 = vunpack.c.1.s8 %v3440
    %v4176 = vunpack.c.1.s8 %v3441
    %v4177 = vunpack.c.1.s8 %v3442
    %v4178 = vunpack.c.1.s8 %v3443
    %v4179 = vunpack.c.1.s8 %v3444
    %v4180 = vunpack.c.1.s8 %v3445
    %v4181 = vunpack.c.1.s8 %v3446
    %v4182 = vunpack.c.2.s8 %v3440
    %v4183 = vunpack.c.2.s8 %v3441
    %v4184 = vunpack.c.2.s8 %v3442
    %v4185 = vunpack.c.2.s8 %v3443
    %v4186 = vunpack.c.2.s8 %v3444
    %v4187 = vunpack.c.2.s8 %v3445
    %v4188 = vunpack.c.2.s8 %v3446
    %v4189 = vunpack.c.3.s8 %v3440
    %v4190 = vunpack.c.3.s8 %v3441
    %v4191 = vunpack.c.3.s8 %v3442
    %v4192 = vunpack.c.3.s8 %v3443
    %v4193 = vunpack.c.3.s8 %v3444
    %v4194 = vunpack.c.3.s8 %v3445
    %v4195 = vunpack.c.3.s8 %v3446
    %v4196 = vunpack.c.0.s8 %v3447
    %v4197 = vunpack.c.0.s8 %v3448
    %v4198 = vunpack.c.0.s8 %v3449
    %v4199 = vunpack.c.0.s8 %v3450
    %v4200 = vunpack.c.0.s8 %v3451
    %v4201 = vunpack.c.0.s8 %v3452
    %v4202 = vunpack.c.0.s8 %v3453
    %v4203 = vunpack.c.1.s8 %v3447
    %v4204 = vunpack.c.1.s8 %v3448
    %v4205 = vunpack.c.1.s8 %v3449
    %v4206 = vunpack.c.1.s8 %v3450
    %v4207 = vunpack.c.1.s8 %v3451
    %v4208 = vunpack.c.1.s8 %v3452
    %v4209 = vunpack.c.1.s8 %v3453
    %v4210 = vunpack.c.2.s8 %v3447
    %v4211 = vunpack.c.2.s8 %v3448
    %v4212 = vunpack.c.2.s8 %v3449
    %v4213 = vunpack.c.2.s8 %v3450
    %v4214 = vunpack.c.2.s8 %v3451
    %v4215 = vunpack.c.2.s8 %v3452
    %v4216 = vunpack.c.2.s8 %v3453
    %v4217 = vunpack.c.3.s8 %v3447
    %v4218 = vunpack.c.3.s8 %v3448
    %v4219 = vunpack.c.3.s8 %v3449
    %v4220 = vunpack.c.3.s8 %v3450
    %v4221 = vunpack.c.3.s8 %v3451
    %v4222 = vunpack.c.3.s8 %v3452
    %v4223 = vunpack.c.3.s8 %v3453
    %v4224 = vunpack.c.0.s8 %v3454
    %v4225 = vunpack.c.0.s8 %v3455
    %v4226 = vunpack.c.0.s8 %v3456
    %v4227 = vunpack.c.0.s8 %v3457
    %v4228 = vunpack.c.0.s8 %v3458
    %v4229 = vunpack.c.0.s8 %v3459
    %v4230 = vunpack.c.0.s8 %v3460
    %v4231 = vunpack.c.1.s8 %v3454
    %v4232 = vunpack.c.1.s8 %v3455
    %v4233 = vunpack.c.1.s8 %v3456
    %v4234 = vunpack.c.1.s8 %v3457
    %v4235 = vunpack.c.1.s8 %v3458
    %v4236 = vunpack.c.1.s8 %v3459
    %v4237 = vunpack.c.1.s8 %v3460
    %v4238 = vunpack.c.2.s8 %v3454
    %v4239 = vunpack.c.2.s8 %v3455
    %v4240 = vunpack.c.2.s8 %v3456
    %v4241 = vunpack.c.2.s8 %v3457
    %v4242 = vunpack.c.2.s8 %v3458
    %v4243 = vunpack.c.2.s8 %v3459
    %v4244 = vunpack.c.2.s8 %v3460
    %v4245 = vunpack.c.3.s8 %v3454
    %v4246 = vunpack.c.3.s8 %v3455
    %v4247 = vunpack.c.3.s8 %v3456
    %v4248 = vunpack.c.3.s8 %v3457
    %v4249 = vunpack.c.3.s8 %v3458
    %v4250 = vunpack.c.3.s8 %v3459
    %v4251 = vunpack.c.3.s8 %v3460
    %v4252 = vunpack.c.0.s8 %v3461
    %v4253 = vunpack.c.0.s8 %v3462
    %v4254 = vunpack.c.0.s8 %v3463
    %v4255 = vunpack.c.0.s8 %v3464
    %v4256 = vunpack.c.0.s8 %v3465
    %v4257 = vunpack.c.0.s8 %v3466
    %v4258 = vunpack.c.0.s8 %v3467
    %v4259 = vunpack.c.1.s8 %v3461
    %v4260 = vunpack.c.1.s8 %v3462
    %v4261 = vunpack.c.1.s8 %v3463
    %v4262 = vunpack.c.1.s8 %v3464
    %v4263 = vunpack.c.1.s8 %v3465
    %v4264 = vunpack.c.1.s8 %v3466
    %v4265 = vunpack.c.1.s8 %v3467
    %v4266 = vunpack.c.2.s8 %v3461
    %v4267 = vunpack.c.2.s8 %v3462
    %v4268 = vunpack.c.2.s8 %v3463
    %v4269 = vunpack.c.2.s8 %v3464
    %v4270 = vunpack.c.2.s8 %v3465
    %v4271 = vunpack.c.2.s8 %v3466
    %v4272 = vunpack.c.2.s8 %v3467
    %v4273 = vunpack.c.3.s8 %v3461
    %v4274 = vunpack.c.3.s8 %v3462
    %v4275 = vunpack.c.3.s8 %v3463
    %v4276 = vunpack.c.3.s8 %v3464
    %v4277 = vunpack.c.3.s8 %v3465
    %v4278 = vunpack.c.3.s8 %v3466
    %v4279 = vunpack.c.3.s8 %v3467
    %v4280 = vunpack.c.0.s8 %v3468
    %v4281 = vunpack.c.0.s8 %v3469
    %v4282 = vunpack.c.0.s8 %v3470
    %v4283 = vunpack.c.0.s8 %v3471
    %v4284 = vunpack.c.0.s8 %v3472
    %v4285 = vunpack.c.0.s8 %v3473
    %v4286 = vunpack.c.0.s8 %v3474
    %v4287 = vunpack.c.1.s8 %v3468
    %v4288 = vunpack.c.1.s8 %v3469
    %v4289 = vunpack.c.1.s8 %v3470
    %v4290 = vunpack.c.1.s8 %v3471
    %v4291 = vunpack.c.1.s8 %v3472
    %v4292 = vunpack.c.1.s8 %v3473
    %v4293 = vunpack.c.1.s8 %v3474
    %v4294 = vunpack.c.2.s8 %v3468
    %v4295 = vunpack.c.2.s8 %v3469
    %v4296 = vunpack.c.2.s8 %v3470
    %v4297 = vunpack.c.2.s8 %v3471
    %v4298 = vunpack.c.2.s8 %v3472
    %v4299 = vunpack.c.2.s8 %v3473
    %v4300 = vunpack.c.2.s8 %v3474
    %v4301 = vunpack.c.3.s8 %v3468
    %v4302 = vunpack.c.3.s8 %v3469
    %v4303 = vunpack.c.3.s8 %v3470
    %v4304 = vunpack.c.3.s8 %v3471
    %v4305 = vunpack.c.3.s8 %v3472
    %v4306 = vunpack.c.3.s8 %v3473
    %v4307 = vunpack.c.3.s8 %v3474
    %v4308 = vunpack.c.0.s8 %v3475
    %v4309 = vunpack.c.0.s8 %v3476
    %v4310 = vunpack.c.0.s8 %v3477
    %v4311 = vunpack.c.0.s8 %v3478
    %v4312 = vunpack.c.0.s8 %v3479
    %v4313 = vunpack.c.0.s8 %v3480
    %v4314 = vunpack.c.0.s8 %v3481
    %v4315 = vunpack.c.1.s8 %v3475
    %v4316 = vunpack.c.1.s8 %v3476
    %v4317 = vunpack.c.1.s8 %v3477
    %v4318 = vunpack.c.1.s8 %v3478
    %v4319 = vunpack.c.1.s8 %v3479
    %v4320 = vunpack.c.1.s8 %v3480
    %v4321 = vunpack.c.1.s8 %v3481
    %v4322 = vunpack.c.2.s8 %v3475
    %v4323 = vunpack.c.2.s8 %v3476
    %v4324 = vunpack.c.2.s8 %v3477
    %v4325 = vunpack.c.2.s8 %v3478
    %v4326 = vunpack.c.2.s8 %v3479
    %v4327 = vunpack.c.2.s8 %v3480
    %v4328 = vunpack.c.2.s8 %v3481
    %v4329 = vunpack.c.3.s8 %v3475
    %v4330 = vunpack.c.3.s8 %v3476
    %v4331 = vunpack.c.3.s8 %v3477
    %v4332 = vunpack.c.3.s8 %v3478
    %v4333 = vunpack.c.3.s8 %v3479
    %v4334 = vunpack.c.3.s8 %v3480
    %v4335 = vunpack.c.3.s8 %v3481
    %v4336 = vunpack.c.0.s8 %v3482
    %v4337 = vunpack.c.0.s8 %v3483
    %v4338 = vunpack.c.0.s8 %v3484
    %v4339 = vunpack.c.0.s8 %v3485
    %v4340 = vunpack.c.0.s8 %v3486
    %v4341 = vunpack.c.0.s8 %v3487
    %v4342 = vunpack.c.0.s8 %v3488
    %v4343 = vunpack.c.1.s8 %v3482
    %v4344 = vunpack.c.1.s8 %v3483
    %v4345 = vunpack.c.1.s8 %v3484
    %v4346 = vunpack.c.1.s8 %v3485
    %v4347 = vunpack.c.1.s8 %v3486
    %v4348 = vunpack.c.1.s8 %v3487
    %v4349 = vunpack.c.1.s8 %v3488
    %v4350 = vunpack.c.2.s8 %v3482
    %v4351 = vunpack.c.2.s8 %v3483
    %v4352 = vunpack.c.2.s8 %v3484
    %v4353 = vunpack.c.2.s8 %v3485
    %v4354 = vunpack.c.2.s8 %v3486
    %v4355 = vunpack.c.2.s8 %v3487
    %v4356 = vunpack.c.2.s8 %v3488
    %v4357 = vunpack.c.3.s8 %v3482
    %v4358 = vunpack.c.3.s8 %v3483
    %v4359 = vunpack.c.3.s8 %v3484
    %v4360 = vunpack.c.3.s8 %v3485
    %v4361 = vunpack.c.3.s8 %v3486
    %v4362 = vunpack.c.3.s8 %v3487
    %v4363 = vunpack.c.3.s8 %v3488
    %v4364 = vunpack.c.0.s8 %v3489
    %v4365 = vunpack.c.0.s8 %v3490
    %v4366 = vunpack.c.0.s8 %v3491
    %v4367 = vunpack.c.0.s8 %v3492
    %v4368 = vunpack.c.0.s8 %v3493
    %v4369 = vunpack.c.0.s8 %v3494
    %v4370 = vunpack.c.0.s8 %v3495
    %v4371 = vunpack.c.1.s8 %v3489
    %v4372 = vunpack.c.1.s8 %v3490
    %v4373 = vunpack.c.1.s8 %v3491
    %v4374 = vunpack.c.1.s8 %v3492
    %v4375 = vunpack.c.1.s8 %v3493
    %v4376 = vunpack.c.1.s8 %v3494
    %v4377 = vunpack.c.1.s8 %v3495
    %v4378 = vunpack.c.2.s8 %v3489
    %v4379 = vunpack.c.2.s8 %v3490
    %v4380 = vunpack.c.2.s8 %v3491
    %v4381 = vunpack.c.2.s8 %v3492
    %v4382 = vunpack.c.2.s8 %v3493
    %v4383 = vunpack.c.2.s8 %v3494
    %v4384 = vunpack.c.2.s8 %v3495
    %v4385 = vunpack.c.3.s8 %v3489
    %v4386 = vunpack.c.3.s8 %v3490
    %v4387 = vunpack.c.3.s8 %v3491
    %v4388 = vunpack.c.3.s8 %v3492
    %v4389 = vunpack.c.3.s8 %v3493
    %v4390 = vunpack.c.3.s8 %v3494
    %v4391 = vunpack.c.3.s8 %v3495
    %v4392 = vcvt.s32.f32 %v3496
    %v4393 = vcvt.s32.f32 %v3497
    %v4394 = vcvt.s32.f32 %v3498
    %v4395 = vcvt.s32.f32 %v3499
    %v4396 = vcvt.s32.f32 %v3500
    %v4397 = vcvt.s32.f32 %v3501
    %v4398 = vcvt.s32.f32 %v3502
    %v4399 = vcvt.s32.f32 %v3503
    %v4400 = vcvt.s32.f32 %v3504
    %v4401 = vcvt.s32.f32 %v3505
    %v4402 = vcvt.s32.f32 %v3506
    %v4403 = vcvt.s32.f32 %v3507
    %v4404 = vcvt.s32.f32 %v3508
    %v4405 = vcvt.s32.f32 %v3509
    %v4406 = vcvt.s32.f32 %v3510
    %v4407 = vcvt.s32.f32 %v3511
    %v4408 = vcvt.s32.f32 %v3512
    %v4409 = vcvt.s32.f32 %v3513
    %v4410 = vcvt.s32.f32 %v3514
    %v4411 = vcvt.s32.f32 %v3515
    %v4412 = vcvt.s32.f32 %v3516
    %v4413 = vcvt.s32.f32 %v3517
    %v4414 = vcvt.s32.f32 %v3518
    %v4415 = vcvt.s32.f32 %v3519
    %v4416 = vcvt.s32.f32 %v3520
    %v4417 = vcvt.s32.f32 %v3521
    %v4418 = vcvt.s32.f32 %v3522
    %v4419 = vcvt.s32.f32 %v3523
    %v4420 = vcvt.s32.f32 %v3524
    %v4421 = vcvt.s32.f32 %v3525
    %v4422 = vcvt.s32.f32 %v3526
    %v4423 = vcvt.s32.f32 %v3527
    %v4424 = vcvt.s32.f32 %v3528
    %v4425 = vcvt.s32.f32 %v3529
    %v4426 = vcvt.s32.f32 %v3530
    %v4427 = vcvt.s32.f32 %v3531
    %v4428 = vcvt.s32.f32 %v3532
    %v4429 = vcvt.s32.f32 %v3533
    %v4430 = vcvt.s32.f32 %v3534
    %v4431 = vcvt.s32.f32 %v3535
    %v4432 = vcvt.s32.f32 %v3536
    %v4433 = vcvt.s32.f32 %v3537
    %v4434 = vcvt.s32.f32 %v3538
    %v4435 = vcvt.s32.f32 %v3539
    %v4436 = vcvt.s32.f32 %v3540
    %v4437 = vcvt.s32.f32 %v3541
    %v4438 = vcvt.s32.f32 %v3542
    %v4439 = vcvt.s32.f32 %v3543
    %v4440 = vcvt.s32.f32 %v3544
    %v4441 = vcvt.s32.f32 %v3545
    %v4442 = vcvt.s32.f32 %v3546
    %v4443 = vcvt.s32.f32 %v3547
    %v4444 = vcvt.s32.f32 %v3548
    %v4445 = vcvt.s32.f32 %v3549
    %v4446 = vcvt.s32.f32 %v3550
    %v4447 = vcvt.s32.f32 %v3551
    %v4448 = vcvt.s32.f32 %v3552
    %v4449 = vcvt.s32.f32 %v3553
    %v4450 = vcvt.s32.f32 %v3554
    %v4451 = vcvt.s32.f32 %v3555
    %v4452 = vcvt.s32.f32 %v3556
    %v4453 = vcvt.s32.f32 %v3557
    %v4454 = vcvt.s32.f32 %v3558
    %v4455 = vcvt.s32.f32 %v3559
    %v4456 = vcvt.s32.f32 %v3560
    %v4457 = vcvt.s32.f32 %v3561
    %v4458 = vcvt.s32.f32 %v3562
    %v4459 = vcvt.s32.f32 %v3563
    %v4460 = vcvt.s32.f32 %v3564
    %v4461 = vcvt.s32.f32 %v3565
    %v4462 = vcvt.s32.f32 %v3566
    %v4463 = vcvt.s32.f32 %v3567
    %v4464 = vcvt.s32.f32 %v3568
    %v4465 = vcvt.s32.f32 %v3569
    %v4466 = vcvt.s32.f32 %v3570
    %v4467 = vcvt.s32.f32 %v3571
    %v4468 = vcvt.s32.f32 %v3572
    %v4469 = vcvt.s32.f32 %v3573
    %v4470 = vcvt.s32.f32 %v3574
    %v4471 = vcvt.s32.f32 %v3575
    %v4472 = vcvt.s32.f32 %v3576
    %v4473 = vcvt.s32.f32 %v3577
    %v4474 = vcvt.s32.f32 %v3578
    %v4475 = vcvt.s32.f32 %v3579
    %v4476 = vcvt.s32.f32 %v3580
    %v4477 = vcvt.s32.f32 %v3581
    %v4478 = vcvt.s32.f32 %v3582
    %v4479 = vcvt.s32.f32 %v3583
    %v4480 = vcvt.s32.f32 %v3584
    %v4481 = vcvt.s32.f32 %v3585
    %v4482 = vcvt.s32.f32 %v3586
    %v4483 = vcvt.s32.f32 %v3587
    %v4484 = vcvt.s32.f32 %v3588
    %v4485 = vcvt.s32.f32 %v3589
    %v4486 = vcvt.s32.f32 %v3590
    %v4487 = vcvt.s32.f32 %v3591
    %v4488 = vcvt.s32.f32 %v3592
    %v4489 = vcvt.s32.f32 %v3593
    %v4490 = vcvt.s32.f32 %v3594
    %v4491 = vcvt.s32.f32 %v3595
    %v4492 = vcvt.s32.f32 %v3596
    %v4493 = vcvt.s32.f32 %v3597
    %v4494 = vcvt.s32.f32 %v3598
    %v4495 = vcvt.s32.f32 %v3599
    %v4496 = vcvt.s32.f32 %v3600
    %v4497 = vcvt.s32.f32 %v3601
    %v4498 = vcvt.s32.f32 %v3602
    %v4499 = vcvt.s32.f32 %v3603
    %v4500 = vcvt.s32.f32 %v3604
    %v4501 = vcvt.s32.f32 %v3605
    %v4502 = vcvt.s32.f32 %v3606
    %v4503 = vcvt.s32.f32 %v3607
    %v4504 = vcvt.s32.f32 %v3608
    %v4505 = vcvt.s32.f32 %v3609
    %v4506 = vcvt.s32.f32 %v3610
    %v4507 = vcvt.s32.f32 %v3611
    %v4508 = vcvt.s32.f32 %v3612
    %v4509 = vcvt.s32.f32 %v3613
    %v4510 = vcvt.s32.f32 %v3614
    %v4511 = vcvt.s32.f32 %v3615
    %v4512 = vcvt.s32.f32 %v3616
    %v4513 = vcvt.s32.f32 %v3617
    %v4514 = vcvt.s32.f32 %v3618
    %v4515 = vcvt.s32.f32 %v3619
    %v4516 = vcvt.s32.f32 %v3620
    %v4517 = vcvt.s32.f32 %v3621
    %v4518 = vcvt.s32.f32 %v3622
    %v4519 = vcvt.s32.f32 %v3623
    %v4520 = vcvt.s32.f32 %v3624
    %v4521 = vcvt.s32.f32 %v3625
    %v4522 = vcvt.s32.f32 %v3626
    %v4523 = vcvt.s32.f32 %v3627
    %v4524 = vcvt.s32.f32 %v3628
    %v4525 = vcvt.s32.f32 %v3629
    %v4526 = vcvt.s32.f32 %v3630
    %v4527 = vcvt.s32.f32 %v3631
    %v4528 = vcvt.s32.f32 %v3632
    %v4529 = vcvt.s32.f32 %v3633
    %v4530 = vcvt.s32.f32 %v3634
    %v4531 = vcvt.s32.f32 %v3635
    %v4532 = vcvt.s32.f32 %v3636
    %v4533 = vcvt.s32.f32 %v3637
    %v4534 = vcvt.s32.f32 %v3638
    %v4535 = vcvt.s32.f32 %v3639
    %v4536 = vcvt.s32.f32 %v3640
    %v4537 = vcvt.s32.f32 %v3641
    %v4538 = vcvt.s32.f32 %v3642
    %v4539 = vcvt.s32.f32 %v3643
    %v4540 = vcvt.s32.f32 %v3644
    %v4541 = vcvt.s32.f32 %v3645
    %v4542 = vcvt.s32.f32 %v3646
    %v4543 = vcvt.s32.f32 %v3647
    %v4544 = vcvt.s32.f32 %v3648
    %v4545 = vcvt.s32.f32 %v3649
    %v4546 = vcvt.s32.f32 %v3650
    %v4547 = vcvt.s32.f32 %v3651
    %v4548 = vcvt.s32.f32 %v3652
    %v4549 = vcvt.s32.f32 %v3653
    %v4550 = vcvt.s32.f32 %v3654
    %v4551 = vcvt.s32.f32 %v3655
    %v4552 = vcvt.s32.f32 %v3656
    %v4553 = vcvt.s32.f32 %v3657
    %v4554 = vcvt.s32.f32 %v3658
    %v4555 = vcvt.s32.f32 %v3659
    %v4556 = vcvt.s32.f32 %v3660
    %v4557 = vcvt.s32.f32 %v3661
    %v4558 = vcvt.s32.f32 %v3662
    %v4559 = vcvt.s32.f32 %v3663
    %v4560 = vcvt.s32.f32 %v3664
    %v4561 = vcvt.s32.f32 %v3665
    %v4562 = vcvt.s32.f32 %v3666
    %v4563 = vcvt.s32.f32 %v3667
    %v4564 = vcvt.s32.f32 %v3668
    %v4565 = vcvt.s32.f32 %v3669
    %v4566 = vcvt.s32.f32 %v3670
    %v4567 = vcvt.s32.f32 %v3671
    %v4568 = vcvt.s32.f32 %v3672
    %v4569 = vcvt.s32.f32 %v3673
    %v4570 = vcvt.s32.f32 %v3674
    %v4571 = vcvt.s32.f32 %v3675
    %v4572 = vcvt.s32.f32 %v3676
    %v4573 = vcvt.s32.f32 %v3677
    %v4574 = vcvt.s32.f32 %v3678
    %v4575 = vcvt.s32.f32 %v3679
    %v4576 = vcvt.s32.f32 %v3680
    %v4577 = vcvt.s32.f32 %v3681
    %v4578 = vcvt.s32.f32 %v3682
    %v4579 = vcvt.s32.f32 %v3683
    %v4580 = vcvt.s32.f32 %v3684
    %v4581 = vcvt.s32.f32 %v3685
    %v4582 = vcvt.s32.f32 %v3686
    %v4583 = vcvt.s32.f32 %v3687
    %v4584 = vcvt.s32.f32 %v3688
    %v4585 = vcvt.s32.f32 %v3689
    %v4586 = vcvt.s32.f32 %v3690
    %v4587 = vcvt.s32.f32 %v3691
    %v4588 = vcvt.s32.f32 %v3692
    %v4589 = vcvt.s32.f32 %v3693
    %v4590 = vcvt.s32.f32 %v3694
    %v4591 = vcvt.s32.f32 %v3695
    %v4592 = vcvt.s32.f32 %v3696
    %v4593 = vcvt.s32.f32 %v3697
    %v4594 = vcvt.s32.f32 %v3698
    %v4595 = vcvt.s32.f32 %v3699
    %v4596 = vcvt.s32.f32 %v3700
    %v4597 = vcvt.s32.f32 %v3701
    %v4598 = vcvt.s32.f32 %v3702
    %v4599 = vcvt.s32.f32 %v3703
    %v4600 = vcvt.s32.f32 %v3704
    %v4601 = vcvt.s32.f32 %v3705
    %v4602 = vcvt.s32.f32 %v3706
    %v4603 = vcvt.s32.f32 %v3707
    %v4604 = vcvt.s32.f32 %v3708
    %v4605 = vcvt.s32.f32 %v3709
    %v4606 = vcvt.s32.f32 %v3710
    %v4607 = vcvt.s32.f32 %v3711
    %v4608 = vcvt.s32.f32 %v3712
    %v4609 = vcvt.s32.f32 %v3713
    %v4610 = vcvt.s32.f32 %v3714
    %v4611 = vcvt.s32.f32 %v3715
    %v4612 = vcvt.s32.f32 %v3716
    %v4613 = vcvt.s32.f32 %v3717
    %v4614 = vcvt.s32.f32 %v3718
    %v4615 = vcvt.s32.f32 %v3719
    %v4616 = vcvt.s32.f32 %v3720
    %v4617 = vcvt.s32.f32 %v3721
    %v4618 = vcvt.s32.f32 %v3722
    %v4619 = vcvt.s32.f32 %v3723
    %v4620 = vcvt.s32.f32 %v3724
    %v4621 = vcvt.s32.f32 %v3725
    %v4622 = vcvt.s32.f32 %v3726
    %v4623 = vcvt.s32.f32 %v3727
    %v4624 = vcvt.s32.f32 %v3728
    %v4625 = vcvt.s32.f32 %v3729
    %v4626 = vcvt.s32.f32 %v3730
    %v4627 = vcvt.s32.f32 %v3731
    %v4628 = vcvt.s32.f32 %v3732
    %v4629 = vcvt.s32.f32 %v3733
    %v4630 = vcvt.s32.f32 %v3734
    %v4631 = vcvt.s32.f32 %v3735
    %v4632 = vcvt.s32.f32 %v3736
    %v4633 = vcvt.s32.f32 %v3737
    %v4634 = vcvt.s32.f32 %v3738
    %v4635 = vcvt.s32.f32 %v3739
    %v4636 = vcvt.s32.f32 %v3740
    %v4637 = vcvt.s32.f32 %v3741
    %v4638 = vcvt.s32.f32 %v3742
    %v4639 = vcvt.s32.f32 %v3743
    %v4640 = vcvt.s32.f32 %v3744
    %v4641 = vcvt.s32.f32 %v3745
    %v4642 = vcvt.s32.f32 %v3746
    %v4643 = vcvt.s32.f32 %v3747
    %v4644 = vcvt.s32.f32 %v3748
    %v4645 = vcvt.s32.f32 %v3749
    %v4646 = vcvt.s32.f32 %v3750
    %v4647 = vcvt.s32.f32 %v3751
    %v4648 = vcvt.s32.f32 %v3752
    %v4649 = vcvt.s32.f32 %v3753
    %v4650 = vcvt.s32.f32 %v3754
    %v4651 = vcvt.s32.f32 %v3755
    %v4652 = vcvt.s32.f32 %v3756
    %v4653 = vcvt.s32.f32 %v3757
    %v4654 = vcvt.s32.f32 %v3758
    %v4655 = vcvt.s32.f32 %v3759
    %v4656 = vcvt.s32.f32 %v3760
    %v4657 = vcvt.s32.f32 %v3761
    %v4658 = vcvt.s32.f32 %v3762
    %v4659 = vcvt.s32.f32 %v3763
    %v4660 = vcvt.s32.f32 %v3764
    %v4661 = vcvt.s32.f32 %v3765
    %v4662 = vcvt.s32.f32 %v3766
    %v4663 = vcvt.s32.f32 %v3767
    %v4664 = vcvt.s32.f32 %v3768
    %v4665 = vcvt.s32.f32 %v3769
    %v4666 = vcvt.s32.f32 %v3770
    %v4667 = vcvt.s32.f32 %v3771
    %v4668 = vcvt.s32.f32 %v3772
    %v4669 = vcvt.s32.f32 %v3773
    %v4670 = vcvt.s32.f32 %v3774
    %v4671 = vcvt.s32.f32 %v3775
    %v4672 = vcvt.s32.f32 %v3776
    %v4673 = vcvt.s32.f32 %v3777
    %v4674 = vcvt.s32.f32 %v3778
    %v4675 = vcvt.s32.f32 %v3779
    %v4676 = vcvt.s32.f32 %v3780
    %v4677 = vcvt.s32.f32 %v3781
    %v4678 = vcvt.s32.f32 %v3782
    %v4679 = vcvt.s32.f32 %v3783
    %v4680 = vcvt.s32.f32 %v3784
    %v4681 = vcvt.s32.f32 %v3785
    %v4682 = vcvt.s32.f32 %v3786
    %v4683 = vcvt.s32.f32 %v3787
    %v4684 = vcvt.s32.f32 %v3788
    %v4685 = vcvt.s32.f32 %v3789
    %v4686 = vcvt.s32.f32 %v3790
    %v4687 = vcvt.s32.f32 %v3791
    %v4688 = vcvt.s32.f32 %v3792
    %v4689 = vcvt.s32.f32 %v3793
    %v4690 = vcvt.s32.f32 %v3794
    %v4691 = vcvt.s32.f32 %v3795
    %v4692 = vcvt.s32.f32 %v3796
    %v4693 = vcvt.s32.f32 %v3797
    %v4694 = vcvt.s32.f32 %v3798
    %v4695 = vcvt.s32.f32 %v3799
    %v4696 = vcvt.s32.f32 %v3800
    %v4697 = vcvt.s32.f32 %v3801
    %v4698 = vcvt.s32.f32 %v3802
    %v4699 = vcvt.s32.f32 %v3803
    %v4700 = vcvt.s32.f32 %v3804
    %v4701 = vcvt.s32.f32 %v3805
    %v4702 = vcvt.s32.f32 %v3806
    %v4703 = vcvt.s32.f32 %v3807
    %v4704 = vcvt.s32.f32 %v3808
    %v4705 = vcvt.s32.f32 %v3809
    %v4706 = vcvt.s32.f32 %v3810
    %v4707 = vcvt.s32.f32 %v3811
    %v4708 = vcvt.s32.f32 %v3812
    %v4709 = vcvt.s32.f32 %v3813
    %v4710 = vcvt.s32.f32 %v3814
    %v4711 = vcvt.s32.f32 %v3815
    %v4712 = vcvt.s32.f32 %v3816
    %v4713 = vcvt.s32.f32 %v3817
    %v4714 = vcvt.s32.f32 %v3818
    %v4715 = vcvt.s32.f32 %v3819
    %v4716 = vcvt.s32.f32 %v3820
    %v4717 = vcvt.s32.f32 %v3821
    %v4718 = vcvt.s32.f32 %v3822
    %v4719 = vcvt.s32.f32 %v3823
    %v4720 = vcvt.s32.f32 %v3824
    %v4721 = vcvt.s32.f32 %v3825
    %v4722 = vcvt.s32.f32 %v3826
    %v4723 = vcvt.s32.f32 %v3827
    %v4724 = vcvt.s32.f32 %v3828
    %v4725 = vcvt.s32.f32 %v3829
    %v4726 = vcvt.s32.f32 %v3830
    %v4727 = vcvt.s32.f32 %v3831
    %v4728 = vcvt.s32.f32 %v3832
    %v4729 = vcvt.s32.f32 %v3833
    %v4730 = vcvt.s32.f32 %v3834
    %v4731 = vcvt.s32.f32 %v3835
    %v4732 = vcvt.s32.f32 %v3836
    %v4733 = vcvt.s32.f32 %v3837
    %v4734 = vcvt.s32.f32 %v3838
    %v4735 = vcvt.s32.f32 %v3839
    %v4736 = vcvt.s32.f32 %v3840
    %v4737 = vcvt.s32.f32 %v3841
    %v4738 = vcvt.s32.f32 %v3842
    %v4739 = vcvt.s32.f32 %v3843
    %v4740 = vcvt.s32.f32 %v3844
    %v4741 = vcvt.s32.f32 %v3845
    %v4742 = vcvt.s32.f32 %v3846
    %v4743 = vcvt.s32.f32 %v3847
    %v4744 = vcvt.s32.f32 %v3848
    %v4745 = vcvt.s32.f32 %v3849
    %v4746 = vcvt.s32.f32 %v3850
    %v4747 = vcvt.s32.f32 %v3851
    %v4748 = vcvt.s32.f32 %v3852
    %v4749 = vcvt.s32.f32 %v3853
    %v4750 = vcvt.s32.f32 %v3854
    %v4751 = vcvt.s32.f32 %v3855
    %v4752 = vcvt.s32.f32 %v3856
    %v4753 = vcvt.s32.f32 %v3857
    %v4754 = vcvt.s32.f32 %v3858
    %v4755 = vcvt.s32.f32 %v3859
    %v4756 = vcvt.s32.f32 %v3860
    %v4757 = vcvt.s32.f32 %v3861
    %v4758 = vcvt.s32.f32 %v3862
    %v4759 = vcvt.s32.f32 %v3863
    %v4760 = vcvt.s32.f32 %v3864
    %v4761 = vcvt.s32.f32 %v3865
    %v4762 = vcvt.s32.f32 %v3866
    %v4763 = vcvt.s32.f32 %v3867
    %v4764 = vcvt.s32.f32 %v3868
    %v4765 = vcvt.s32.f32 %v3869
    %v4766 = vcvt.s32.f32 %v3870
    %v4767 = vcvt.s32.f32 %v3871
    %v4768 = vcvt.s32.f32 %v3872
    %v4769 = vcvt.s32.f32 %v3873
    %v4770 = vcvt.s32.f32 %v3874
    %v4771 = vcvt.s32.f32 %v3875
    %v4772 = vcvt.s32.f32 %v3876
    %v4773 = vcvt.s32.f32 %v3877
    %v4774 = vcvt.s32.f32 %v3878
    %v4775 = vcvt.s32.f32 %v3879
    %v4776 = vcvt.s32.f32 %v3880
    %v4777 = vcvt.s32.f32 %v3881
    %v4778 = vcvt.s32.f32 %v3882
    %v4779 = vcvt.s32.f32 %v3883
    %v4780 = vcvt.s32.f32 %v3884
    %v4781 = vcvt.s32.f32 %v3885
    %v4782 = vcvt.s32.f32 %v3886
    %v4783 = vcvt.s32.f32 %v3887
    %v4784 = vcvt.s32.f32 %v3888
    %v4785 = vcvt.s32.f32 %v3889
    %v4786 = vcvt.s32.f32 %v3890
    %v4787 = vcvt.s32.f32 %v3891
    %v4788 = vcvt.s32.f32 %v3892
    %v4789 = vcvt.s32.f32 %v3893
    %v4790 = vcvt.s32.f32 %v3894
    %v4791 = vcvt.s32.f32 %v3895
    %v4792 = vcvt.s32.f32 %v3896
    %v4793 = vcvt.s32.f32 %v3897
    %v4794 = vcvt.s32.f32 %v3898
    %v4795 = vcvt.s32.f32 %v3899
    %v4796 = vcvt.s32.f32 %v3900
    %v4797 = vcvt.s32.f32 %v3901
    %v4798 = vcvt.s32.f32 %v3902
    %v4799 = vcvt.s32.f32 %v3903
    %v4800 = vcvt.s32.f32 %v3904
    %v4801 = vcvt.s32.f32 %v3905
    %v4802 = vcvt.s32.f32 %v3906
    %v4803 = vcvt.s32.f32 %v3907
    %v4804 = vcvt.s32.f32 %v3908
    %v4805 = vcvt.s32.f32 %v3909
    %v4806 = vcvt.s32.f32 %v3910
    %v4807 = vcvt.s32.f32 %v3911
    %v4808 = vcvt.s32.f32 %v3912
    %v4809 = vcvt.s32.f32 %v3913
    %v4810 = vcvt.s32.f32 %v3914
    %v4811 = vcvt.s32.f32 %v3915
    %v4812 = vcvt.s32.f32 %v3916
    %v4813 = vcvt.s32.f32 %v3917
    %v4814 = vcvt.s32.f32 %v3918
    %v4815 = vcvt.s32.f32 %v3919
    %v4816 = vcvt.s32.f32 %v3920
    %v4817 = vcvt.s32.f32 %v3921
    %v4818 = vcvt.s32.f32 %v3922
    %v4819 = vcvt.s32.f32 %v3923
    %v4820 = vcvt.s32.f32 %v3924
    %v4821 = vcvt.s32.f32 %v3925
    %v4822 = vcvt.s32.f32 %v3926
    %v4823 = vcvt.s32.f32 %v3927
    %v4824 = vcvt.s32.f32 %v3928
    %v4825 = vcvt.s32.f32 %v3929
    %v4826 = vcvt.s32.f32 %v3930
    %v4827 = vcvt.s32.f32 %v3931
    %v4828 = vcvt.s32.f32 %v3932
    %v4829 = vcvt.s32.f32 %v3933
    %v4830 = vcvt.s32.f32 %v3934
    %v4831 = vcvt.s32.f32 %v3935
    %v4832 = vcvt.s32.f32 %v3936
    %v4833 = vcvt.s32.f32 %v3937
    %v4834 = vcvt.s32.f32 %v3938
    %v4835 = vcvt.s32.f32 %v3939
    %v4836 = vcvt.s32.f32 %v3940
    %v4837 = vcvt.s32.f32 %v3941
    %v4838 = vcvt.s32.f32 %v3942
    %v4839 = vcvt.s32.f32 %v3943
    %v4840 = vcvt.s32.f32 %v3944
    %v4841 = vcvt.s32.f32 %v3945
    %v4842 = vcvt.s32.f32 %v3946
    %v4843 = vcvt.s32.f32 %v3947
    %v4844 = vcvt.s32.f32 %v3948
    %v4845 = vcvt.s32.f32 %v3949
    %v4846 = vcvt.s32.f32 %v3950
    %v4847 = vcvt.s32.f32 %v3951
    %v4848 = vcvt.s32.f32 %v3952
    %v4849 = vcvt.s32.f32 %v3953
    %v4850 = vcvt.s32.f32 %v3954
    %v4851 = vcvt.s32.f32 %v3955
    %v4852 = vcvt.s32.f32 %v3956
    %v4853 = vcvt.s32.f32 %v3957
    %v4854 = vcvt.s32.f32 %v3958
    %v4855 = vcvt.s32.f32 %v3959
    %v4856 = vcvt.s32.f32 %v3960
    %v4857 = vcvt.s32.f32 %v3961
    %v4858 = vcvt.s32.f32 %v3962
    %v4859 = vcvt.s32.f32 %v3963
    %v4860 = vcvt.s32.f32 %v3964
    %v4861 = vcvt.s32.f32 %v3965
    %v4862 = vcvt.s32.f32 %v3966
    %v4863 = vcvt.s32.f32 %v3967
    %v4864 = vcvt.s32.f32 %v3968
    %v4865 = vcvt.s32.f32 %v3969
    %v4866 = vcvt.s32.f32 %v3970
    %v4867 = vcvt.s32.f32 %v3971
    %v4868 = vcvt.s32.f32 %v3972
    %v4869 = vcvt.s32.f32 %v3973
    %v4870 = vcvt.s32.f32 %v3974
    %v4871 = vcvt.s32.f32 %v3975
    %v4872 = vcvt.s32.f32 %v3976
    %v4873 = vcvt.s32.f32 %v3977
    %v4874 = vcvt.s32.f32 %v3978
    %v4875 = vcvt.s32.f32 %v3979
    %v4876 = vcvt.s32.f32 %v3980
    %v4877 = vcvt.s32.f32 %v3981
    %v4878 = vcvt.s32.f32 %v3982
    %v4879 = vcvt.s32.f32 %v3983
    %v4880 = vcvt.s32.f32 %v3984
    %v4881 = vcvt.s32.f32 %v3985
    %v4882 = vcvt.s32.f32 %v3986
    %v4883 = vcvt.s32.f32 %v3987
    %v4884 = vcvt.s32.f32 %v3988
    %v4885 = vcvt.s32.f32 %v3989
    %v4886 = vcvt.s32.f32 %v3990
    %v4887 = vcvt.s32.f32 %v3991
    %v4888 = vcvt.s32.f32 %v3992
    %v4889 = vcvt.s32.f32 %v3993
    %v4890 = vcvt.s32.f32 %v3994
    %v4891 = vcvt.s32.f32 %v3995
    %v4892 = vcvt.s32.f32 %v3996
    %v4893 = vcvt.s32.f32 %v3997
    %v4894 = vcvt.s32.f32 %v3998
    %v4895 = vcvt.s32.f32 %v3999
    %v4896 = vcvt.s32.f32 %v4000
    %v4897 = vcvt.s32.f32 %v4001
    %v4898 = vcvt.s32.f32 %v4002
    %v4899 = vcvt.s32.f32 %v4003
    %v4900 = vcvt.s32.f32 %v4004
    %v4901 = vcvt.s32.f32 %v4005
    %v4902 = vcvt.s32.f32 %v4006
    %v4903 = vcvt.s32.f32 %v4007
    %v4904 = vcvt.s32.f32 %v4008
    %v4905 = vcvt.s32.f32 %v4009
    %v4906 = vcvt.s32.f32 %v4010
    %v4907 = vcvt.s32.f32 %v4011
    %v4908 = vcvt.s32.f32 %v4012
    %v4909 = vcvt.s32.f32 %v4013
    %v4910 = vcvt.s32.f32 %v4014
    %v4911 = vcvt.s32.f32 %v4015
    %v4912 = vcvt.s32.f32 %v4016
    %v4913 = vcvt.s32.f32 %v4017
    %v4914 = vcvt.s32.f32 %v4018
    %v4915 = vcvt.s32.f32 %v4019
    %v4916 = vcvt.s32.f32 %v4020
    %v4917 = vcvt.s32.f32 %v4021
    %v4918 = vcvt.s32.f32 %v4022
    %v4919 = vcvt.s32.f32 %v4023
    %v4920 = vcvt.s32.f32 %v4024
    %v4921 = vcvt.s32.f32 %v4025
    %v4922 = vcvt.s32.f32 %v4026
    %v4923 = vcvt.s32.f32 %v4027
    %v4924 = vcvt.s32.f32 %v4028
    %v4925 = vcvt.s32.f32 %v4029
    %v4926 = vcvt.s32.f32 %v4030
    %v4927 = vcvt.s32.f32 %v4031
    %v4928 = vcvt.s32.f32 %v4032
    %v4929 = vcvt.s32.f32 %v4033
    %v4930 = vcvt.s32.f32 %v4034
    %v4931 = vcvt.s32.f32 %v4035
    %v4932 = vcvt.s32.f32 %v4036
    %v4933 = vcvt.s32.f32 %v4037
    %v4934 = vcvt.s32.f32 %v4038
    %v4935 = vcvt.s32.f32 %v4039
    %v4936 = vcvt.s32.f32 %v4040
    %v4937 = vcvt.s32.f32 %v4041
    %v4938 = vcvt.s32.f32 %v4042
    %v4939 = vcvt.s32.f32 %v4043
    %v4940 = vcvt.s32.f32 %v4044
    %v4941 = vcvt.s32.f32 %v4045
    %v4942 = vcvt.s32.f32 %v4046
    %v4943 = vcvt.s32.f32 %v4047
    %v4944 = vcvt.s32.f32 %v4048
    %v4945 = vcvt.s32.f32 %v4049
    %v4946 = vcvt.s32.f32 %v4050
    %v4947 = vcvt.s32.f32 %v4051
    %v4948 = vcvt.s32.f32 %v4052
    %v4949 = vcvt.s32.f32 %v4053
    %v4950 = vcvt.s32.f32 %v4054
    %v4951 = vcvt.s32.f32 %v4055
    %v4952 = vcvt.s32.f32 %v4056
    %v4953 = vcvt.s32.f32 %v4057
    %v4954 = vcvt.s32.f32 %v4058
    %v4955 = vcvt.s32.f32 %v4059
    %v4956 = vcvt.s32.f32 %v4060
    %v4957 = vcvt.s32.f32 %v4061
    %v4958 = vcvt.s32.f32 %v4062
    %v4959 = vcvt.s32.f32 %v4063
    %v4960 = vcvt.s32.f32 %v4064
    %v4961 = vcvt.s32.f32 %v4065
    %v4962 = vcvt.s32.f32 %v4066
    %v4963 = vcvt.s32.f32 %v4067
    %v4964 = vcvt.s32.f32 %v4068
    %v4965 = vcvt.s32.f32 %v4069
    %v4966 = vcvt.s32.f32 %v4070
    %v4967 = vcvt.s32.f32 %v4071
    %v4968 = vcvt.s32.f32 %v4072
    %v4969 = vcvt.s32.f32 %v4073
    %v4970 = vcvt.s32.f32 %v4074
    %v4971 = vcvt.s32.f32 %v4075
    %v4972 = vcvt.s32.f32 %v4076
    %v4973 = vcvt.s32.f32 %v4077
    %v4974 = vcvt.s32.f32 %v4078
    %v4975 = vcvt.s32.f32 %v4079
    %v4976 = vcvt.s32.f32 %v4080
    %v4977 = vcvt.s32.f32 %v4081
    %v4978 = vcvt.s32.f32 %v4082
    %v4979 = vcvt.s32.f32 %v4083
    %v4980 = vcvt.s32.f32 %v4084
    %v4981 = vcvt.s32.f32 %v4085
    %v4982 = vcvt.s32.f32 %v4086
    %v4983 = vcvt.s32.f32 %v4087
    %v4984 = vcvt.s32.f32 %v4088
    %v4985 = vcvt.s32.f32 %v4089
    %v4986 = vcvt.s32.f32 %v4090
    %v4987 = vcvt.s32.f32 %v4091
    %v4988 = vcvt.s32.f32 %v4092
    %v4989 = vcvt.s32.f32 %v4093
    %v4990 = vcvt.s32.f32 %v4094
    %v4991 = vcvt.s32.f32 %v4095
    %v4992 = vcvt.s32.f32 %v4096
    %v4993 = vcvt.s32.f32 %v4097
    %v4994 = vcvt.s32.f32 %v4098
    %v4995 = vcvt.s32.f32 %v4099
    %v4996 = vcvt.s32.f32 %v4100
    %v4997 = vcvt.s32.f32 %v4101
    %v4998 = vcvt.s32.f32 %v4102
    %v4999 = vcvt.s32.f32 %v4103
    %v5000 = vcvt.s32.f32 %v4104
    %v5001 = vcvt.s32.f32 %v4105
    %v5002 = vcvt.s32.f32 %v4106
    %v5003 = vcvt.s32.f32 %v4107
    %v5004 = vcvt.s32.f32 %v4108
    %v5005 = vcvt.s32.f32 %v4109
    %v5006 = vcvt.s32.f32 %v4110
    %v5007 = vcvt.s32.f32 %v4111
    %v5008 = vcvt.s32.f32 %v4112
    %v5009 = vcvt.s32.f32 %v4113
    %v5010 = vcvt.s32.f32 %v4114
    %v5011 = vcvt.s32.f32 %v4115
    %v5012 = vcvt.s32.f32 %v4116
    %v5013 = vcvt.s32.f32 %v4117
    %v5014 = vcvt.s32.f32 %v4118
    %v5015 = vcvt.s32.f32 %v4119
    %v5016 = vcvt.s32.f32 %v4120
    %v5017 = vcvt.s32.f32 %v4121
    %v5018 = vcvt.s32.f32 %v4122
    %v5019 = vcvt.s32.f32 %v4123
    %v5020 = vcvt.s32.f32 %v4124
    %v5021 = vcvt.s32.f32 %v4125
    %v5022 = vcvt.s32.f32 %v4126
    %v5023 = vcvt.s32.f32 %v4127
    %v5024 = vcvt.s32.f32 %v4128
    %v5025 = vcvt.s32.f32 %v4129
    %v5026 = vcvt.s32.f32 %v4130
    %v5027 = vcvt.s32.f32 %v4131
    %v5028 = vcvt.s32.f32 %v4132
    %v5029 = vcvt.s32.f32 %v4133
    %v5030 = vcvt.s32.f32 %v4134
    %v5031 = vcvt.s32.f32 %v4135
    %v5032 = vcvt.s32.f32 %v4136
    %v5033 = vcvt.s32.f32 %v4137
    %v5034 = vcvt.s32.f32 %v4138
    %v5035 = vcvt.s32.f32 %v4139
    %v5036 = vcvt.s32.f32 %v4140
    %v5037 = vcvt.s32.f32 %v4141
    %v5038 = vcvt.s32.f32 %v4142
    %v5039 = vcvt.s32.f32 %v4143
    %v5040 = vcvt.s32.f32 %v4144
    %v5041 = vcvt.s32.f32 %v4145
    %v5042 = vcvt.s32.f32 %v4146
    %v5043 = vcvt.s32.f32 %v4147
    %v5044 = vcvt.s32.f32 %v4148
    %v5045 = vcvt.s32.f32 %v4149
    %v5046 = vcvt.s32.f32 %v4150
    %v5047 = vcvt.s32.f32 %v4151
    %v5048 = vcvt.s32.f32 %v4152
    %v5049 = vcvt.s32.f32 %v4153
    %v5050 = vcvt.s32.f32 %v4154
    %v5051 = vcvt.s32.f32 %v4155
    %v5052 = vcvt.s32.f32 %v4156
    %v5053 = vcvt.s32.f32 %v4157
    %v5054 = vcvt.s32.f32 %v4158
    %v5055 = vcvt.s32.f32 %v4159
    %v5056 = vcvt.s32.f32 %v4160
    %v5057 = vcvt.s32.f32 %v4161
    %v5058 = vcvt.s32.f32 %v4162
    %v5059 = vcvt.s32.f32 %v4163
    %v5060 = vcvt.s32.f32 %v4164
    %v5061 = vcvt.s32.f32 %v4165
    %v5062 = vcvt.s32.f32 %v4166
    %v5063 = vcvt.s32.f32 %v4167
    %v5064 = vcvt.s32.f32 %v4168
    %v5065 = vcvt.s32.f32 %v4169
    %v5066 = vcvt.s32.f32 %v4170
    %v5067 = vcvt.s32.f32 %v4171
    %v5068 = vcvt.s32.f32 %v4172
    %v5069 = vcvt.s32.f32 %v4173
    %v5070 = vcvt.s32.f32 %v4174
    %v5071 = vcvt.s32.f32 %v4175
    %v5072 = vcvt.s32.f32 %v4176
    %v5073 = vcvt.s32.f32 %v4177
    %v5074 = vcvt.s32.f32 %v4178
    %v5075 = vcvt.s32.f32 %v4179
    %v5076 = vcvt.s32.f32 %v4180
    %v5077 = vcvt.s32.f32 %v4181
    %v5078 = vcvt.s32.f32 %v4182
    %v5079 = vcvt.s32.f32 %v4183
    %v5080 = vcvt.s32.f32 %v4184
    %v5081 = vcvt.s32.f32 %v4185
    %v5082 = vcvt.s32.f32 %v4186
    %v5083 = vcvt.s32.f32 %v4187
    %v5084 = vcvt.s32.f32 %v4188
    %v5085 = vcvt.s32.f32 %v4189
    %v5086 = vcvt.s32.f32 %v4190
    %v5087 = vcvt.s32.f32 %v4191
    %v5088 = vcvt.s32.f32 %v4192
    %v5089 = vcvt.s32.f32 %v4193
    %v5090 = vcvt.s32.f32 %v4194
    %v5091 = vcvt.s32.f32 %v4195
    %v5092 = vcvt.s32.f32 %v4196
    %v5093 = vcvt.s32.f32 %v4197
    %v5094 = vcvt.s32.f32 %v4198
    %v5095 = vcvt.s32.f32 %v4199
    %v5096 = vcvt.s32.f32 %v4200
    %v5097 = vcvt.s32.f32 %v4201
    %v5098 = vcvt.s32.f32 %v4202
    %v5099 = vcvt.s32.f32 %v4203
    %v5100 = vcvt.s32.f32 %v4204
    %v5101 = vcvt.s32.f32 %v4205
    %v5102 = vcvt.s32.f32 %v4206
    %v5103 = vcvt.s32.f32 %v4207
    %v5104 = vcvt.s32.f32 %v4208
    %v5105 = vcvt.s32.f32 %v4209
    %v5106 = vcvt.s32.f32 %v4210
    %v5107 = vcvt.s32.f32 %v4211
    %v5108 = vcvt.s32.f32 %v4212
    %v5109 = vcvt.s32.f32 %v4213
    %v5110 = vcvt.s32.f32 %v4214
    %v5111 = vcvt.s32.f32 %v4215
    %v5112 = vcvt.s32.f32 %v4216
    %v5113 = vcvt.s32.f32 %v4217
    %v5114 = vcvt.s32.f32 %v4218
    %v5115 = vcvt.s32.f32 %v4219
    %v5116 = vcvt.s32.f32 %v4220
    %v5117 = vcvt.s32.f32 %v4221
    %v5118 = vcvt.s32.f32 %v4222
    %v5119 = vcvt.s32.f32 %v4223
    %v5120 = vcvt.s32.f32 %v4224
    %v5121 = vcvt.s32.f32 %v4225
    %v5122 = vcvt.s32.f32 %v4226
    %v5123 = vcvt.s32.f32 %v4227
    %v5124 = vcvt.s32.f32 %v4228
    %v5125 = vcvt.s32.f32 %v4229
    %v5126 = vcvt.s32.f32 %v4230
    %v5127 = vcvt.s32.f32 %v4231
    %v5128 = vcvt.s32.f32 %v4232
    %v5129 = vcvt.s32.f32 %v4233
    %v5130 = vcvt.s32.f32 %v4234
    %v5131 = vcvt.s32.f32 %v4235
    %v5132 = vcvt.s32.f32 %v4236
    %v5133 = vcvt.s32.f32 %v4237
    %v5134 = vcvt.s32.f32 %v4238
    %v5135 = vcvt.s32.f32 %v4239
    %v5136 = vcvt.s32.f32 %v4240
    %v5137 = vcvt.s32.f32 %v4241
    %v5138 = vcvt.s32.f32 %v4242
    %v5139 = vcvt.s32.f32 %v4243
    %v5140 = vcvt.s32.f32 %v4244
    %v5141 = vcvt.s32.f32 %v4245
    %v5142 = vcvt.s32.f32 %v4246
    %v5143 = vcvt.s32.f32 %v4247
    %v5144 = vcvt.s32.f32 %v4248
    %v5145 = vcvt.s32.f32 %v4249
    %v5146 = vcvt.s32.f32 %v4250
    %v5147 = vcvt.s32.f32 %v4251
    %v5148 = vcvt.s32.f32 %v4252
    %v5149 = vcvt.s32.f32 %v4253
    %v5150 = vcvt.s32.f32 %v4254
    %v5151 = vcvt.s32.f32 %v4255
    %v5152 = vcvt.s32.f32 %v4256
    %v5153 = vcvt.s32.f32 %v4257
    %v5154 = vcvt.s32.f32 %v4258
    %v5155 = vcvt.s32.f32 %v4259
    %v5156 = vcvt.s32.f32 %v4260
    %v5157 = vcvt.s32.f32 %v4261
    %v5158 = vcvt.s32.f32 %v4262
    %v5159 = vcvt.s32.f32 %v4263
    %v5160 = vcvt.s32.f32 %v4264
    %v5161 = vcvt.s32.f32 %v4265
    %v5162 = vcvt.s32.f32 %v4266
    %v5163 = vcvt.s32.f32 %v4267
    %v5164 = vcvt.s32.f32 %v4268
    %v5165 = vcvt.s32.f32 %v4269
    %v5166 = vcvt.s32.f32 %v4270
    %v5167 = vcvt.s32.f32 %v4271
    %v5168 = vcvt.s32.f32 %v4272
    %v5169 = vcvt.s32.f32 %v4273
    %v5170 = vcvt.s32.f32 %v4274
    %v5171 = vcvt.s32.f32 %v4275
    %v5172 = vcvt.s32.f32 %v4276
    %v5173 = vcvt.s32.f32 %v4277
    %v5174 = vcvt.s32.f32 %v4278
    %v5175 = vcvt.s32.f32 %v4279
    %v5176 = vcvt.s32.f32 %v4280
    %v5177 = vcvt.s32.f32 %v4281
    %v5178 = vcvt.s32.f32 %v4282
    %v5179 = vcvt.s32.f32 %v4283
    %v5180 = vcvt.s32.f32 %v4284
    %v5181 = vcvt.s32.f32 %v4285
    %v5182 = vcvt.s32.f32 %v4286
    %v5183 = vcvt.s32.f32 %v4287
    %v5184 = vcvt.s32.f32 %v4288
    %v5185 = vcvt.s32.f32 %v4289
    %v5186 = vcvt.s32.f32 %v4290
    %v5187 = vcvt.s32.f32 %v4291
    %v5188 = vcvt.s32.f32 %v4292
    %v5189 = vcvt.s32.f32 %v4293
    %v5190 = vcvt.s32.f32 %v4294
    %v5191 = vcvt.s32.f32 %v4295
    %v5192 = vcvt.s32.f32 %v4296
    %v5193 = vcvt.s32.f32 %v4297
    %v5194 = vcvt.s32.f32 %v4298
    %v5195 = vcvt.s32.f32 %v4299
    %v5196 = vcvt.s32.f32 %v4300
    %v5197 = vcvt.s32.f32 %v4301
    %v5198 = vcvt.s32.f32 %v4302
    %v5199 = vcvt.s32.f32 %v4303
    %v5200 = vcvt.s32.f32 %v4304
    %v5201 = vcvt.s32.f32 %v4305
    %v5202 = vcvt.s32.f32 %v4306
    %v5203 = vcvt.s32.f32 %v4307
    %v5204 = vcvt.s32.f32 %v4308
    %v5205 = vcvt.s32.f32 %v4309
    %v5206 = vcvt.s32.f32 %v4310
    %v5207 = vcvt.s32.f32 %v4311
    %v5208 = vcvt.s32.f32 %v4312
    %v5209 = vcvt.s32.f32 %v4313
    %v5210 = vcvt.s32.f32 %v4314
    %v5211 = vcvt.s32.f32 %v4315
    %v5212 = vcvt.s32.f32 %v4316
    %v5213 = vcvt.s32.f32 %v4317
    %v5214 = vcvt.s32.f32 %v4318
    %v5215 = vcvt.s32.f32 %v4319
    %v5216 = vcvt.s32.f32 %v4320
    %v5217 = vcvt.s32.f32 %v4321
    %v5218 = vcvt.s32.f32 %v4322
    %v5219 = vcvt.s32.f32 %v4323
    %v5220 = vcvt.s32.f32 %v4324
    %v5221 = vcvt.s32.f32 %v4325
    %v5222 = vcvt.s32.f32 %v4326
    %v5223 = vcvt.s32.f32 %v4327
    %v5224 = vcvt.s32.f32 %v4328
    %v5225 = vcvt.s32.f32 %v4329
    %v5226 = vcvt.s32.f32 %v4330
    %v5227 = vcvt.s32.f32 %v4331
    %v5228 = vcvt.s32.f32 %v4332
    %v5229 = vcvt.s32.f32 %v4333
    %v5230 = vcvt.s32.f32 %v4334
    %v5231 = vcvt.s32.f32 %v4335
    %v5232 = vcvt.s32.f32 %v4336
    %v5233 = vcvt.s32.f32 %v4337
    %v5234 = vcvt.s32.f32 %v4338
    %v5235 = vcvt.s32.f32 %v4339
    %v5236 = vcvt.s32.f32 %v4340
    %v5237 = vcvt.s32.f32 %v4341
    %v5238 = vcvt.s32.f32 %v4342
    %v5239 = vcvt.s32.f32 %v4343
    %v5240 = vcvt.s32.f32 %v4344
    %v5241 = vcvt.s32.f32 %v4345
    %v5242 = vcvt.s32.f32 %v4346
    %v5243 = vcvt.s32.f32 %v4347
    %v5244 = vcvt.s32.f32 %v4348
    %v5245 = vcvt.s32.f32 %v4349
    %v5246 = vcvt.s32.f32 %v4350
    %v5247 = vcvt.s32.f32 %v4351
    %v5248 = vcvt.s32.f32 %v4352
    %v5249 = vcvt.s32.f32 %v4353
    %v5250 = vcvt.s32.f32 %v4354
    %v5251 = vcvt.s32.f32 %v4355
    %v5252 = vcvt.s32.f32 %v4356
    %v5253 = vcvt.s32.f32 %v4357
    %v5254 = vcvt.s32.f32 %v4358
    %v5255 = vcvt.s32.f32 %v4359
    %v5256 = vcvt.s32.f32 %v4360
    %v5257 = vcvt.s32.f32 %v4361
    %v5258 = vcvt.s32.f32 %v4362
    %v5259 = vcvt.s32.f32 %v4363
    %v5260 = vcvt.s32.f32 %v4364
    %v5261 = vcvt.s32.f32 %v4365
    %v5262 = vcvt.s32.f32 %v4366
    %v5263 = vcvt.s32.f32 %v4367
    %v5264 = vcvt.s32.f32 %v4368
    %v5265 = vcvt.s32.f32 %v4369
    %v5266 = vcvt.s32.f32 %v4370
    %v5267 = vcvt.s32.f32 %v4371
    %v5268 = vcvt.s32.f32 %v4372
    %v5269 = vcvt.s32.f32 %v4373
    %v5270 = vcvt.s32.f32 %v4374
    %v5271 = vcvt.s32.f32 %v4375
    %v5272 = vcvt.s32.f32 %v4376
    %v5273 = vcvt.s32.f32 %v4377
    %v5274 = vcvt.s32.f32 %v4378
    %v5275 = vcvt.s32.f32 %v4379
    %v5276 = vcvt.s32.f32 %v4380
    %v5277 = vcvt.s32.f32 %v4381
    %v5278 = vcvt.s32.f32 %v4382
    %v5279 = vcvt.s32.f32 %v4383
    %v5280 = vcvt.s32.f32 %v4384
    %v5281 = vcvt.s32.f32 %v4385
    %v5282 = vcvt.s32.f32 %v4386
    %v5283 = vcvt.s32.f32 %v4387
    %v5284 = vcvt.s32.f32 %v4388
    %v5285 = vcvt.s32.f32 %v4389
    %v5286 = vcvt.s32.f32 %v4390
    %v5287 = vcvt.s32.f32 %v4391
    %v5288 = vpack.c.bf16 %v4399, %v4392
    %v5289 = vpack.c.bf16 %v4400, %v4393
    %v5290 = vpack.c.bf16 %v4401, %v4394
    %v5291 = vpack.c.bf16 %v4402, %v4395
    %v5292 = vpack.c.bf16 %v4403, %v4396
    %v5293 = vpack.c.bf16 %v4404, %v4397
    %v5294 = vpack.c.bf16 %v4405, %v4398
    %v5295 = vpack.c.bf16 %v4413, %v4406
    %v5296 = vpack.c.bf16 %v4414, %v4407
    %v5297 = vpack.c.bf16 %v4415, %v4408
    %v5298 = vpack.c.bf16 %v4416, %v4409
    %v5299 = vpack.c.bf16 %v4417, %v4410
    %v5300 = vpack.c.bf16 %v4418, %v4411
    %v5301 = vpack.c.bf16 %v4419, %v4412
    %v5302 = vpack.c.bf16 %v4427, %v4420
    %v5303 = vpack.c.bf16 %v4428, %v4421
    %v5304 = vpack.c.bf16 %v4429, %v4422
    %v5305 = vpack.c.bf16 %v4430, %v4423
    %v5306 = vpack.c.bf16 %v4431, %v4424
    %v5307 = vpack.c.bf16 %v4432, %v4425
    %v5308 = vpack.c.bf16 %v4433, %v4426
    %v5309 = vpack.c.bf16 %v4441, %v4434
    %v5310 = vpack.c.bf16 %v4442, %v4435
    %v5311 = vpack.c.bf16 %v4443, %v4436
    %v5312 = vpack.c.bf16 %v4444, %v4437
    %v5313 = vpack.c.bf16 %v4445, %v4438
    %v5314 = vpack.c.bf16 %v4446, %v4439
    %v5315 = vpack.c.bf16 %v4447, %v4440
    %v5316 = vpack.c.bf16 %v4455, %v4448
    %v5317 = vpack.c.bf16 %v4456, %v4449
    %v5318 = vpack.c.bf16 %v4457, %v4450
    %v5319 = vpack.c.bf16 %v4458, %v4451
    %v5320 = vpack.c.bf16 %v4459, %v4452
    %v5321 = vpack.c.bf16 %v4460, %v4453
    %v5322 = vpack.c.bf16 %v4461, %v4454
    %v5323 = vpack.c.bf16 %v4469, %v4462
    %v5324 = vpack.c.bf16 %v4470, %v4463
    %v5325 = vpack.c.bf16 %v4471, %v4464
    %v5326 = vpack.c.bf16 %v4472, %v4465
    %v5327 = vpack.c.bf16 %v4473, %v4466
    %v5328 = vpack.c.bf16 %v4474, %v4467
    %v5329 = vpack.c.bf16 %v4475, %v4468
    %v5330 = vpack.c.bf16 %v4483, %v4476
    %v5331 = vpack.c.bf16 %v4484, %v4477
    %v5332 = vpack.c.bf16 %v4485, %v4478
    %v5333 = vpack.c.bf16 %v4486, %v4479
    %v5334 = vpack.c.bf16 %v4487, %v4480
    %v5335 = vpack.c.bf16 %v4488, %v4481
    %v5336 = vpack.c.bf16 %v4489, %v4482
    %v5337 = vpack.c.bf16 %v4497, %v4490
    %v5338 = vpack.c.bf16 %v4498, %v4491
    %v5339 = vpack.c.bf16 %v4499, %v4492
    %v5340 = vpack.c.bf16 %v4500, %v4493
    %v5341 = vpack.c.bf16 %v4501, %v4494
    %v5342 = vpack.c.bf16 %v4502, %v4495
    %v5343 = vpack.c.bf16 %v4503, %v4496
    %v5344 = vpack.c.bf16 %v4511, %v4504
    %v5345 = vpack.c.bf16 %v4512, %v4505
    %v5346 = vpack.c.bf16 %v4513, %v4506
    %v5347 = vpack.c.bf16 %v4514, %v4507
    %v5348 = vpack.c.bf16 %v4515, %v4508
    %v5349 = vpack.c.bf16 %v4516, %v4509
    %v5350 = vpack.c.bf16 %v4517, %v4510
    %v5351 = vpack.c.bf16 %v4525, %v4518
    %v5352 = vpack.c.bf16 %v4526, %v4519
    %v5353 = vpack.c.bf16 %v4527, %v4520
    %v5354 = vpack.c.bf16 %v4528, %v4521
    %v5355 = vpack.c.bf16 %v4529, %v4522
    %v5356 = vpack.c.bf16 %v4530, %v4523
    %v5357 = vpack.c.bf16 %v4531, %v4524
    %v5358 = vpack.c.bf16 %v4539, %v4532
    %v5359 = vpack.c.bf16 %v4540, %v4533
    %v5360 = vpack.c.bf16 %v4541, %v4534
    %v5361 = vpack.c.bf16 %v4542, %v4535
    %v5362 = vpack.c.bf16 %v4543, %v4536
    %v5363 = vpack.c.bf16 %v4544, %v4537
    %v5364 = vpack.c.bf16 %v4545, %v4538
    %v5365 = vpack.c.bf16 %v4553, %v4546
    %v5366 = vpack.c.bf16 %v4554, %v4547
    %v5367 = vpack.c.bf16 %v4555, %v4548
    %v5368 = vpack.c.bf16 %v4556, %v4549
    %v5369 = vpack.c.bf16 %v4557, %v4550
    %v5370 = vpack.c.bf16 %v4558, %v4551
    %v5371 = vpack.c.bf16 %v4559, %v4552
    %v5372 = vpack.c.bf16 %v4567, %v4560
    %v5373 = vpack.c.bf16 %v4568, %v4561
    %v5374 = vpack.c.bf16 %v4569, %v4562
    %v5375 = vpack.c.bf16 %v4570, %v4563
    %v5376 = vpack.c.bf16 %v4571, %v4564
    %v5377 = vpack.c.bf16 %v4572, %v4565
    %v5378 = vpack.c.bf16 %v4573, %v4566
    %v5379 = vpack.c.bf16 %v4581, %v4574
    %v5380 = vpack.c.bf16 %v4582, %v4575
    %v5381 = vpack.c.bf16 %v4583, %v4576
    %v5382 = vpack.c.bf16 %v4584, %v4577
    %v5383 = vpack.c.bf16 %v4585, %v4578
    %v5384 = vpack.c.bf16 %v4586, %v4579
    %v5385 = vpack.c.bf16 %v4587, %v4580
    %v5386 = vpack.c.bf16 %v4595, %v4588
    %v5387 = vpack.c.bf16 %v4596, %v4589
    %v5388 = vpack.c.bf16 %v4597, %v4590
    %v5389 = vpack.c.bf16 %v4598, %v4591
    %v5390 = vpack.c.bf16 %v4599, %v4592
    %v5391 = vpack.c.bf16 %v4600, %v4593
    %v5392 = vpack.c.bf16 %v4601, %v4594
    %v5393 = vpack.c.bf16 %v4609, %v4602
    %v5394 = vpack.c.bf16 %v4610, %v4603
    %v5395 = vpack.c.bf16 %v4611, %v4604
    %v5396 = vpack.c.bf16 %v4612, %v4605
    %v5397 = vpack.c.bf16 %v4613, %v4606
    %v5398 = vpack.c.bf16 %v4614, %v4607
    %v5399 = vpack.c.bf16 %v4615, %v4608
    %v5400 = vpack.c.bf16 %v4623, %v4616
    %v5401 = vpack.c.bf16 %v4624, %v4617
    %v5402 = vpack.c.bf16 %v4625, %v4618
    %v5403 = vpack.c.bf16 %v4626, %v4619
    %v5404 = vpack.c.bf16 %v4627, %v4620
    %v5405 = vpack.c.bf16 %v4628, %v4621
    %v5406 = vpack.c.bf16 %v4629, %v4622
    %v5407 = vpack.c.bf16 %v4637, %v4630
    %v5408 = vpack.c.bf16 %v4638, %v4631
    %v5409 = vpack.c.bf16 %v4639, %v4632
    %v5410 = vpack.c.bf16 %v4640, %v4633
    %v5411 = vpack.c.bf16 %v4641, %v4634
    %v5412 = vpack.c.bf16 %v4642, %v4635
    %v5413 = vpack.c.bf16 %v4643, %v4636
    %v5414 = vpack.c.bf16 %v4651, %v4644
    %v5415 = vpack.c.bf16 %v4652, %v4645
    %v5416 = vpack.c.bf16 %v4653, %v4646
    %v5417 = vpack.c.bf16 %v4654, %v4647
    %v5418 = vpack.c.bf16 %v4655, %v4648
    %v5419 = vpack.c.bf16 %v4656, %v4649
    %v5420 = vpack.c.bf16 %v4657, %v4650
    %v5421 = vpack.c.bf16 %v4665, %v4658
    %v5422 = vpack.c.bf16 %v4666, %v4659
    %v5423 = vpack.c.bf16 %v4667, %v4660
    %v5424 = vpack.c.bf16 %v4668, %v4661
    %v5425 = vpack.c.bf16 %v4669, %v4662
    %v5426 = vpack.c.bf16 %v4670, %v4663
    %v5427 = vpack.c.bf16 %v4671, %v4664
    %v5428 = vpack.c.bf16 %v4679, %v4672
    %v5429 = vpack.c.bf16 %v4680, %v4673
    %v5430 = vpack.c.bf16 %v4681, %v4674
    %v5431 = vpack.c.bf16 %v4682, %v4675
    %v5432 = vpack.c.bf16 %v4683, %v4676
    %v5433 = vpack.c.bf16 %v4684, %v4677
    %v5434 = vpack.c.bf16 %v4685, %v4678
    %v5435 = vpack.c.bf16 %v4693, %v4686
    %v5436 = vpack.c.bf16 %v4694, %v4687
    %v5437 = vpack.c.bf16 %v4695, %v4688
    %v5438 = vpack.c.bf16 %v4696, %v4689
    %v5439 = vpack.c.bf16 %v4697, %v4690
    %v5440 = vpack.c.bf16 %v4698, %v4691
    %v5441 = vpack.c.bf16 %v4699, %v4692
    %v5442 = vpack.c.bf16 %v4707, %v4700
    %v5443 = vpack.c.bf16 %v4708, %v4701
    %v5444 = vpack.c.bf16 %v4709, %v4702
    %v5445 = vpack.c.bf16 %v4710, %v4703
    %v5446 = vpack.c.bf16 %v4711, %v4704
    %v5447 = vpack.c.bf16 %v4712, %v4705
    %v5448 = vpack.c.bf16 %v4713, %v4706
    %v5449 = vpack.c.bf16 %v4721, %v4714
    %v5450 = vpack.c.bf16 %v4722, %v4715
    %v5451 = vpack.c.bf16 %v4723, %v4716
    %v5452 = vpack.c.bf16 %v4724, %v4717
    %v5453 = vpack.c.bf16 %v4725, %v4718
    %v5454 = vpack.c.bf16 %v4726, %v4719
    %v5455 = vpack.c.bf16 %v4727, %v4720
    %v5456 = vpack.c.bf16 %v4735, %v4728
    %v5457 = vpack.c.bf16 %v4736, %v4729
    %v5458 = vpack.c.bf16 %v4737, %v4730
    %v5459 = vpack.c.bf16 %v4738, %v4731
    %v5460 = vpack.c.bf16 %v4739, %v4732
    %v5461 = vpack.c.bf16 %v4740, %v4733
    %v5462 = vpack.c.bf16 %v4741, %v4734
    %v5463 = vpack.c.bf16 %v4749, %v4742
    %v5464 = vpack.c.bf16 %v4750, %v4743
    %v5465 = vpack.c.bf16 %v4751, %v4744
    %v5466 = vpack.c.bf16 %v4752, %v4745
    %v5467 = vpack.c.bf16 %v4753, %v4746
    %v5468 = vpack.c.bf16 %v4754, %v4747
    %v5469 = vpack.c.bf16 %v4755, %v4748
    %v5470 = vpack.c.bf16 %v4763, %v4756
    %v5471 = vpack.c.bf16 %v4764, %v4757
    %v5472 = vpack.c.bf16 %v4765, %v4758
    %v5473 = vpack.c.bf16 %v4766, %v4759
    %v5474 = vpack.c.bf16 %v4767, %v4760
    %v5475 = vpack.c.bf16 %v4768, %v4761
    %v5476 = vpack.c.bf16 %v4769, %v4762
    %v5477 = vpack.c.bf16 %v4777, %v4770
    %v5478 = vpack.c.bf16 %v4778, %v4771
    %v5479 = vpack.c.bf16 %v4779, %v4772
    %v5480 = vpack.c.bf16 %v4780, %v4773
    %v5481 = vpack.c.bf16 %v4781, %v4774
    %v5482 = vpack.c.bf16 %v4782, %v4775
    %v5483 = vpack.c.bf16 %v4783, %v4776
    %v5484 = vpack.c.bf16 %v4791, %v4784
    %v5485 = vpack.c.bf16 %v4792, %v4785
    %v5486 = vpack.c.bf16 %v4793, %v4786
    %v5487 = vpack.c.bf16 %v4794, %v4787
    %v5488 = vpack.c.bf16 %v4795, %v4788
    %v5489 = vpack.c.bf16 %v4796, %v4789
    %v5490 = vpack.c.bf16 %v4797, %v4790
    %v5491 = vpack.c.bf16 %v4805, %v4798
    %v5492 = vpack.c.bf16 %v4806, %v4799
    %v5493 = vpack.c.bf16 %v4807, %v4800
    %v5494 = vpack.c.bf16 %v4808, %v4801
    %v5495 = vpack.c.bf16 %v4809, %v4802
    %v5496 = vpack.c.bf16 %v4810, %v4803
    %v5497 = vpack.c.bf16 %v4811, %v4804
    %v5498 = vpack.c.bf16 %v4819, %v4812
    %v5499 = vpack.c.bf16 %v4820, %v4813
    %v5500 = vpack.c.bf16 %v4821, %v4814
    %v5501 = vpack.c.bf16 %v4822, %v4815
    %v5502 = vpack.c.bf16 %v4823, %v4816
    %v5503 = vpack.c.bf16 %v4824, %v4817
    %v5504 = vpack.c.bf16 %v4825, %v4818
    %v5505 = vpack.c.bf16 %v4833, %v4826
    %v5506 = vpack.c.bf16 %v4834, %v4827
    %v5507 = vpack.c.bf16 %v4835, %v4828
    %v5508 = vpack.c.bf16 %v4836, %v4829
    %v5509 = vpack.c.bf16 %v4837, %v4830
    %v5510 = vpack.c.bf16 %v4838, %v4831
    %v5511 = vpack.c.bf16 %v4839, %v4832
    %v5512 = vpack.c.bf16 %v4847, %v4840
    %v5513 = vpack.c.bf16 %v4848, %v4841
    %v5514 = vpack.c.bf16 %v4849, %v4842
    %v5515 = vpack.c.bf16 %v4850, %v4843
    %v5516 = vpack.c.bf16 %v4851, %v4844
    %v5517 = vpack.c.bf16 %v4852, %v4845
    %v5518 = vpack.c.bf16 %v4853, %v4846
    %v5519 = vpack.c.bf16 %v4861, %v4854
    %v5520 = vpack.c.bf16 %v4862, %v4855
    %v5521 = vpack.c.bf16 %v4863, %v4856
    %v5522 = vpack.c.bf16 %v4864, %v4857
    %v5523 = vpack.c.bf16 %v4865, %v4858
    %v5524 = vpack.c.bf16 %v4866, %v4859
    %v5525 = vpack.c.bf16 %v4867, %v4860
    %v5526 = vpack.c.bf16 %v4875, %v4868
    %v5527 = vpack.c.bf16 %v4876, %v4869
    %v5528 = vpack.c.bf16 %v4877, %v4870
    %v5529 = vpack.c.bf16 %v4878, %v4871
    %v5530 = vpack.c.bf16 %v4879, %v4872
    %v5531 = vpack.c.bf16 %v4880, %v4873
    %v5532 = vpack.c.bf16 %v4881, %v4874
    %v5533 = vpack.c.bf16 %v4889, %v4882
    %v5534 = vpack.c.bf16 %v4890, %v4883
    %v5535 = vpack.c.bf16 %v4891, %v4884
    %v5536 = vpack.c.bf16 %v4892, %v4885
    %v5537 = vpack.c.bf16 %v4893, %v4886
    %v5538 = vpack.c.bf16 %v4894, %v4887
    %v5539 = vpack.c.bf16 %v4895, %v4888
    %v5540 = vpack.c.bf16 %v4903, %v4896
    %v5541 = vpack.c.bf16 %v4904, %v4897
    %v5542 = vpack.c.bf16 %v4905, %v4898
    %v5543 = vpack.c.bf16 %v4906, %v4899
    %v5544 = vpack.c.bf16 %v4907, %v4900
    %v5545 = vpack.c.bf16 %v4908, %v4901
    %v5546 = vpack.c.bf16 %v4909, %v4902
    %v5547 = vpack.c.bf16 %v4917, %v4910
    %v5548 = vpack.c.bf16 %v4918, %v4911
    %v5549 = vpack.c.bf16 %v4919, %v4912
    %v5550 = vpack.c.bf16 %v4920, %v4913
    %v5551 = vpack.c.bf16 %v4921, %v4914
    %v5552 = vpack.c.bf16 %v4922, %v4915
    %v5553 = vpack.c.bf16 %v4923, %v4916
    %v5554 = vpack.c.bf16 %v4931, %v4924
    %v5555 = vpack.c.bf16 %v4932, %v4925
    %v5556 = vpack.c.bf16 %v4933, %v4926
    %v5557 = vpack.c.bf16 %v4934, %v4927
    %v5558 = vpack.c.bf16 %v4935, %v4928
    %v5559 = vpack.c.bf16 %v4936, %v4929
    %v5560 = vpack.c.bf16 %v4937, %v4930
    %v5561 = vpack.c.bf16 %v4945, %v4938
    %v5562 = vpack.c.bf16 %v4946, %v4939
    %v5563 = vpack.c.bf16 %v4947, %v4940
    %v5564 = vpack.c.bf16 %v4948, %v4941
    %v5565 = vpack.c.bf16 %v4949, %v4942
    %v5566 = vpack.c.bf16 %v4950, %v4943
    %v5567 = vpack.c.bf16 %v4951, %v4944
    %v5568 = vpack.c.bf16 %v4959, %v4952
    %v5569 = vpack.c.bf16 %v4960, %v4953
    %v5570 = vpack.c.bf16 %v4961, %v4954
    %v5571 = vpack.c.bf16 %v4962, %v4955
    %v5572 = vpack.c.bf16 %v4963, %v4956
    %v5573 = vpack.c.bf16 %v4964, %v4957
    %v5574 = vpack.c.bf16 %v4965, %v4958
    %v5575 = vpack.c.bf16 %v4973, %v4966
    %v5576 = vpack.c.bf16 %v4974, %v4967
    %v5577 = vpack.c.bf16 %v4975, %v4968
    %v5578 = vpack.c.bf16 %v4976, %v4969
    %v5579 = vpack.c.bf16 %v4977, %v4970
    %v5580 = vpack.c.bf16 %v4978, %v4971
    %v5581 = vpack.c.bf16 %v4979, %v4972
    %v5582 = vpack.c.bf16 %v4987, %v4980
    %v5583 = vpack.c.bf16 %v4988, %v4981
    %v5584 = vpack.c.bf16 %v4989, %v4982
    %v5585 = vpack.c.bf16 %v4990, %v4983
    %v5586 = vpack.c.bf16 %v4991, %v4984
    %v5587 = vpack.c.bf16 %v4992, %v4985
    %v5588 = vpack.c.bf16 %v4993, %v4986
    %v5589 = vpack.c.bf16 %v5001, %v4994
    %v5590 = vpack.c.bf16 %v5002, %v4995
    %v5591 = vpack.c.bf16 %v5003, %v4996
    %v5592 = vpack.c.bf16 %v5004, %v4997
    %v5593 = vpack.c.bf16 %v5005, %v4998
    %v5594 = vpack.c.bf16 %v5006, %v4999
    %v5595 = vpack.c.bf16 %v5007, %v5000
    %v5596 = vpack.c.bf16 %v5015, %v5008
    %v5597 = vpack.c.bf16 %v5016, %v5009
    %v5598 = vpack.c.bf16 %v5017, %v5010
    %v5599 = vpack.c.bf16 %v5018, %v5011
    %v5600 = vpack.c.bf16 %v5019, %v5012
    %v5601 = vpack.c.bf16 %v5020, %v5013
    %v5602 = vpack.c.bf16 %v5021, %v5014
    %v5603 = vpack.c.bf16 %v5029, %v5022
    %v5604 = vpack.c.bf16 %v5030, %v5023
    %v5605 = vpack.c.bf16 %v5031, %v5024
    %v5606 = vpack.c.bf16 %v5032, %v5025
    %v5607 = vpack.c.bf16 %v5033, %v5026
    %v5608 = vpack.c.bf16 %v5034, %v5027
    %v5609 = vpack.c.bf16 %v5035, %v5028
    %v5610 = vpack.c.bf16 %v5043, %v5036
    %v5611 = vpack.c.bf16 %v5044, %v5037
    %v5612 = vpack.c.bf16 %v5045, %v5038
    %v5613 = vpack.c.bf16 %v5046, %v5039
    %v5614 = vpack.c.bf16 %v5047, %v5040
    %v5615 = vpack.c.bf16 %v5048, %v5041
    %v5616 = vpack.c.bf16 %v5049, %v5042
    %v5617 = vpack.c.bf16 %v5057, %v5050
    %v5618 = vpack.c.bf16 %v5058, %v5051
    %v5619 = vpack.c.bf16 %v5059, %v5052
    %v5620 = vpack.c.bf16 %v5060, %v5053
    %v5621 = vpack.c.bf16 %v5061, %v5054
    %v5622 = vpack.c.bf16 %v5062, %v5055
    %v5623 = vpack.c.bf16 %v5063, %v5056
    %v5624 = vpack.c.bf16 %v5071, %v5064
    %v5625 = vpack.c.bf16 %v5072, %v5065
    %v5626 = vpack.c.bf16 %v5073, %v5066
    %v5627 = vpack.c.bf16 %v5074, %v5067
    %v5628 = vpack.c.bf16 %v5075, %v5068
    %v5629 = vpack.c.bf16 %v5076, %v5069
    %v5630 = vpack.c.bf16 %v5077, %v5070
    %v5631 = vpack.c.bf16 %v5085, %v5078
    %v5632 = vpack.c.bf16 %v5086, %v5079
    %v5633 = vpack.c.bf16 %v5087, %v5080
    %v5634 = vpack.c.bf16 %v5088, %v5081
    %v5635 = vpack.c.bf16 %v5089, %v5082
    %v5636 = vpack.c.bf16 %v5090, %v5083
    %v5637 = vpack.c.bf16 %v5091, %v5084
    %v5638 = vpack.c.bf16 %v5099, %v5092
    %v5639 = vpack.c.bf16 %v5100, %v5093
    %v5640 = vpack.c.bf16 %v5101, %v5094
    %v5641 = vpack.c.bf16 %v5102, %v5095
    %v5642 = vpack.c.bf16 %v5103, %v5096
    %v5643 = vpack.c.bf16 %v5104, %v5097
    %v5644 = vpack.c.bf16 %v5105, %v5098
    %v5645 = vpack.c.bf16 %v5113, %v5106
    %v5646 = vpack.c.bf16 %v5114, %v5107
    %v5647 = vpack.c.bf16 %v5115, %v5108
    %v5648 = vpack.c.bf16 %v5116, %v5109
    %v5649 = vpack.c.bf16 %v5117, %v5110
    %v5650 = vpack.c.bf16 %v5118, %v5111
    %v5651 = vpack.c.bf16 %v5119, %v5112
    %v5652 = vpack.c.bf16 %v5127, %v5120
    %v5653 = vpack.c.bf16 %v5128, %v5121
    %v5654 = vpack.c.bf16 %v5129, %v5122
    %v5655 = vpack.c.bf16 %v5130, %v5123
    %v5656 = vpack.c.bf16 %v5131, %v5124
    %v5657 = vpack.c.bf16 %v5132, %v5125
    %v5658 = vpack.c.bf16 %v5133, %v5126
    %v5659 = vpack.c.bf16 %v5141, %v5134
    %v5660 = vpack.c.bf16 %v5142, %v5135
    %v5661 = vpack.c.bf16 %v5143, %v5136
    %v5662 = vpack.c.bf16 %v5144, %v5137
    %v5663 = vpack.c.bf16 %v5145, %v5138
    %v5664 = vpack.c.bf16 %v5146, %v5139
    %v5665 = vpack.c.bf16 %v5147, %v5140
    %v5666 = vpack.c.bf16 %v5155, %v5148
    %v5667 = vpack.c.bf16 %v5156, %v5149
    %v5668 = vpack.c.bf16 %v5157, %v5150
    %v5669 = vpack.c.bf16 %v5158, %v5151
    %v5670 = vpack.c.bf16 %v5159, %v5152
    %v5671 = vpack.c.bf16 %v5160, %v5153
    %v5672 = vpack.c.bf16 %v5161, %v5154
    %v5673 = vpack.c.bf16 %v5169, %v5162
    %v5674 = vpack.c.bf16 %v5170, %v5163
    %v5675 = vpack.c.bf16 %v5171, %v5164
    %v5676 = vpack.c.bf16 %v5172, %v5165
    %v5677 = vpack.c.bf16 %v5173, %v5166
    %v5678 = vpack.c.bf16 %v5174, %v5167
    %v5679 = vpack.c.bf16 %v5175, %v5168
    %v5680 = vpack.c.bf16 %v5183, %v5176
    %v5681 = vpack.c.bf16 %v5184, %v5177
    %v5682 = vpack.c.bf16 %v5185, %v5178
    %v5683 = vpack.c.bf16 %v5186, %v5179
    %v5684 = vpack.c.bf16 %v5187, %v5180
    %v5685 = vpack.c.bf16 %v5188, %v5181
    %v5686 = vpack.c.bf16 %v5189, %v5182
    %v5687 = vpack.c.bf16 %v5197, %v5190
    %v5688 = vpack.c.bf16 %v5198, %v5191
    %v5689 = vpack.c.bf16 %v5199, %v5192
    %v5690 = vpack.c.bf16 %v5200, %v5193
    %v5691 = vpack.c.bf16 %v5201, %v5194
    %v5692 = vpack.c.bf16 %v5202, %v5195
    %v5693 = vpack.c.bf16 %v5203, %v5196
    %v5694 = vpack.c.bf16 %v5211, %v5204
    %v5695 = vpack.c.bf16 %v5212, %v5205
    %v5696 = vpack.c.bf16 %v5213, %v5206
    %v5697 = vpack.c.bf16 %v5214, %v5207
    %v5698 = vpack.c.bf16 %v5215, %v5208
    %v5699 = vpack.c.bf16 %v5216, %v5209
    %v5700 = vpack.c.bf16 %v5217, %v5210
    %v5701 = vpack.c.bf16 %v5225, %v5218
    %v5702 = vpack.c.bf16 %v5226, %v5219
    %v5703 = vpack.c.bf16 %v5227, %v5220
    %v5704 = vpack.c.bf16 %v5228, %v5221
    %v5705 = vpack.c.bf16 %v5229, %v5222
    %v5706 = vpack.c.bf16 %v5230, %v5223
    %v5707 = vpack.c.bf16 %v5231, %v5224
    %v5708 = vpack.c.bf16 %v5239, %v5232
    %v5709 = vpack.c.bf16 %v5240, %v5233
    %v5710 = vpack.c.bf16 %v5241, %v5234
    %v5711 = vpack.c.bf16 %v5242, %v5235
    %v5712 = vpack.c.bf16 %v5243, %v5236
    %v5713 = vpack.c.bf16 %v5244, %v5237
    %v5714 = vpack.c.bf16 %v5245, %v5238
    %v5715 = vpack.c.bf16 %v5253, %v5246
    %v5716 = vpack.c.bf16 %v5254, %v5247
    %v5717 = vpack.c.bf16 %v5255, %v5248
    %v5718 = vpack.c.bf16 %v5256, %v5249
    %v5719 = vpack.c.bf16 %v5257, %v5250
    %v5720 = vpack.c.bf16 %v5258, %v5251
    %v5721 = vpack.c.bf16 %v5259, %v5252
    %v5722 = vpack.c.bf16 %v5267, %v5260
    %v5723 = vpack.c.bf16 %v5268, %v5261
    %v5724 = vpack.c.bf16 %v5269, %v5262
    %v5725 = vpack.c.bf16 %v5270, %v5263
    %v5726 = vpack.c.bf16 %v5271, %v5264
    %v5727 = vpack.c.bf16 %v5272, %v5265
    %v5728 = vpack.c.bf16 %v5273, %v5266
    %v5729 = vpack.c.bf16 %v5281, %v5274
    %v5730 = vpack.c.bf16 %v5282, %v5275
    %v5731 = vpack.c.bf16 %v5283, %v5276
    %v5732 = vpack.c.bf16 %v5284, %v5277
    %v5733 = vpack.c.bf16 %v5285, %v5278
    %v5734 = vpack.c.bf16 %v5286, %v5279
    %v5735 = vpack.c.bf16 %v5287, %v5280
    %5736 = vmatpush.bf16.msra.mxu0 %v5337
    %5737 = vmatpush.bf16.msra.mxu0 %v5330
    %5738 = vmatpush.bf16.msra.mxu0 %v5323
    %5739 = vmatpush.bf16.msra.mxu0 %v5316
    %5740 = vmatpush.bf16.msra.mxu0 %v5309
    %5741 = vmatpush.bf16.msra.mxu0 %v5302
    %5742 = vmatpush.bf16.msra.mxu0 %v5295
    %5743 = vmatpush.bf16.msra.mxu0 %v5288
    %5744 = vmatmul.bf16.gmra.mxu0 %v3264
    %v5745 = vpop.f32.mrf.mxu0
    %v5746 = vadd.f32 0.0, %v5745
    %v5747 = vpop.f32.mrf.mxu0
    %5748 = vdwg.mxu0
    %5749 = vmatpush.bf16.msra.mxu0 %v5393
    %5750 = vmatpush.bf16.msra.mxu0 %v5386
    %5751 = vmatpush.bf16.msra.mxu0 %v5379
    %5752 = vmatpush.bf16.msra.mxu0 %v5372
    %5753 = vmatpush.bf16.msra.mxu0 %v5365
    %5754 = vmatpush.bf16.msra.mxu0 %v5358
    %5755 = vmatpush.bf16.msra.mxu0 %v5351
    %5756 = vmatpush.bf16.msra.mxu0 %v5344
    %5757 = vmatmul.bf16.gmra.mxu0 %v3265
    %v5758 = vpop.f32.mrf.mxu0
    %v5759 = vadd.f32 %v5746, %v5758
    %v5760 = vpop.f32.mrf.mxu0
    %5761 = vdwg.mxu0
    %5762 = vmatpush.bf16.msra.mxu0 %v5449
    %5763 = vmatpush.bf16.msra.mxu0 %v5442
    %5764 = vmatpush.bf16.msra.mxu0 %v5435
    %5765 = vmatpush.bf16.msra.mxu0 %v5428
    %5766 = vmatpush.bf16.msra.mxu0 %v5421
    %5767 = vmatpush.bf16.msra.mxu0 %v5414
    %5768 = vmatpush.bf16.msra.mxu0 %v5407
    %5769 = vmatpush.bf16.msra.mxu0 %v5400
    %5770 = vmatmul.bf16.gmra.mxu0 %v3266
    %v5771 = vpop.f32.mrf.mxu0
    %v5772 = vadd.f32 %v5759, %v5771
    %v5773 = vpop.f32.mrf.mxu0
    %5774 = vdwg.mxu0
    %5775 = vmatpush.bf16.msra.mxu0 %v5505
    %5776 = vmatpush.bf16.msra.mxu0 %v5498
    %5777 = vmatpush.bf16.msra.mxu0 %v5491
    %5778 = vmatpush.bf16.msra.mxu0 %v5484
    %5779 = vmatpush.bf16.msra.mxu0 %v5477
    %5780 = vmatpush.bf16.msra.mxu0 %v5470
    %5781 = vmatpush.bf16.msra.mxu0 %v5463
    %5782 = vmatpush.bf16.msra.mxu0 %v5456
    %5783 = vmatmul.bf16.gmra.mxu0 %v3267
    %v5784 = vpop.f32.mrf.mxu0
    %v5785 = vadd.f32 %v5772, %v5784
    %v5786 = vpop.f32.mrf.mxu0
    %5787 = vdwg.mxu0
    %5788 = vmatpush.bf16.msra.mxu0 %v5561
    %5789 = vmatpush.bf16.msra.mxu0 %v5554
    %5790 = vmatpush.bf16.msra.mxu0 %v5547
    %5791 = vmatpush.bf16.msra.mxu0 %v5540
    %5792 = vmatpush.bf16.msra.mxu0 %v5533
    %5793 = vmatpush.bf16.msra.mxu0 %v5526
    %5794 = vmatpush.bf16.msra.mxu0 %v5519
    %5795 = vmatpush.bf16.msra.mxu0 %v5512
    %5796 = vmatmul.bf16.gmra.mxu0 %v3268
    %v5797 = vpop.f32.mrf.mxu0
    %v5798 = vadd.f32 %v5785, %v5797
    %v5799 = vpop.f32.mrf.mxu0
    %5800 = vdwg.mxu0
    %5801 = vmatpush.bf16.msra.mxu0 %v5617
    %5802 = vmatpush.bf16.msra.mxu0 %v5610
    %5803 = vmatpush.bf16.msra.mxu0 %v5603
    %5804 = vmatpush.bf16.msra.mxu0 %v5596
    %5805 = vmatpush.bf16.msra.mxu0 %v5589
    %5806 = vmatpush.bf16.msra.mxu0 %v5582
    %5807 = vmatpush.bf16.msra.mxu0 %v5575
    %5808 = vmatpush.bf16.msra.mxu0 %v5568
    %5809 = vmatmul.bf16.gmra.mxu0 %v3269
    %v5810 = vpop.f32.mrf.mxu0
    %v5811 = vadd.f32 %v5798, %v5810
    %v5812 = vpop.f32.mrf.mxu0
    %5813 = vdwg.mxu0
    %5814 = vmatpush.bf16.msra.mxu0 %v5673
    %5815 = vmatpush.bf16.msra.mxu0 %v5666
    %5816 = vmatpush.bf16.msra.mxu0 %v5659
    %5817 = vmatpush.bf16.msra.mxu0 %v5652
    %5818 = vmatpush.bf16.msra.mxu0 %v5645
    %5819 = vmatpush.bf16.msra.mxu0 %v5638
    %5820 = vmatpush.bf16.msra.mxu0 %v5631
    %5821 = vmatpush.bf16.msra.mxu0 %v5624
    %5822 = vmatmul.bf16.gmra.mxu0 %v3270
    %v5823 = vpop.f32.mrf.mxu0
    %v5824 = vadd.f32 %v5811, %v5823
    %v5825 = vpop.f32.mrf.mxu0
    %5826 = vdwg.mxu0
    %5827 = vmatpush.bf16.msra.mxu0 %v5729
    %5828 = vmatpush.bf16.msra.mxu0 %v5722
    %5829 = vmatpush.bf16.msra.mxu0 %v5715
    %5830 = vmatpush.bf16.msra.mxu0 %v5708
    %5831 = vmatpush.bf16.msra.mxu0 %v5701
    %5832 = vmatpush.bf16.msra.mxu0 %v5694
    %5833 = vmatpush.bf16.msra.mxu0 %v5687
    %5834 = vmatpush.bf16.msra.mxu0 %v5680
    %5835 = vmatmul.bf16.gmra.mxu0 %v3271
    %v5836 = vpop.f32.mrf.mxu0
    %v5837 = vadd.f32 %v5824, %v5836
    %v5838 = vpop.f32.mrf.mxu0
    %5839 = vdwg.mxu0
    %5840 = vmatpush.bf16.msra.mxu0 %v5338
    %5841 = vmatpush.bf16.msra.mxu0 %v5331
    %5842 = vmatpush.bf16.msra.mxu0 %v5324
    %5843 = vmatpush.bf16.msra.mxu0 %v5317
    %5844 = vmatpush.bf16.msra.mxu0 %v5310
    %5845 = vmatpush.bf16.msra.mxu0 %v5303
    %5846 = vmatpush.bf16.msra.mxu0 %v5296
    %5847 = vmatpush.bf16.msra.mxu0 %v5289
    %5848 = vmatmul.bf16.gmra.mxu0 %v3264
    %v5849 = vpop.f32.mrf.mxu0
    %v5850 = vadd.f32 0.0, %v5849
    %v5851 = vpop.f32.mrf.mxu0
    %5852 = vdwg.mxu0
    %5853 = vmatpush.bf16.msra.mxu0 %v5394
    %5854 = vmatpush.bf16.msra.mxu0 %v5387
    %5855 = vmatpush.bf16.msra.mxu0 %v5380
    %5856 = vmatpush.bf16.msra.mxu0 %v5373
    %5857 = vmatpush.bf16.msra.mxu0 %v5366
    %5858 = vmatpush.bf16.msra.mxu0 %v5359
    %5859 = vmatpush.bf16.msra.mxu0 %v5352
    %5860 = vmatpush.bf16.msra.mxu0 %v5345
    %5861 = vmatmul.bf16.gmra.mxu0 %v3265
    %v5862 = vpop.f32.mrf.mxu0
    %v5863 = vadd.f32 %v5850, %v5862
    %v5864 = vpop.f32.mrf.mxu0
    %5865 = vdwg.mxu0
    %5866 = vmatpush.bf16.msra.mxu0 %v5450
    %5867 = vmatpush.bf16.msra.mxu0 %v5443
    %5868 = vmatpush.bf16.msra.mxu0 %v5436
    %5869 = vmatpush.bf16.msra.mxu0 %v5429
    %5870 = vmatpush.bf16.msra.mxu0 %v5422
    %5871 = vmatpush.bf16.msra.mxu0 %v5415
    %5872 = vmatpush.bf16.msra.mxu0 %v5408
    %5873 = vmatpush.bf16.msra.mxu0 %v5401
    %5874 = vmatmul.bf16.gmra.mxu0 %v3266
    %v5875 = vpop.f32.mrf.mxu0
    %v5876 = vadd.f32 %v5863, %v5875
    %v5877 = vpop.f32.mrf.mxu0
    %5878 = vdwg.mxu0
    %5879 = vmatpush.bf16.msra.mxu0 %v5506
    %5880 = vmatpush.bf16.msra.mxu0 %v5499
    %5881 = vmatpush.bf16.msra.mxu0 %v5492
    %5882 = vmatpush.bf16.msra.mxu0 %v5485
    %5883 = vmatpush.bf16.msra.mxu0 %v5478
    %5884 = vmatpush.bf16.msra.mxu0 %v5471
    %5885 = vmatpush.bf16.msra.mxu0 %v5464
    %5886 = vmatpush.bf16.msra.mxu0 %v5457
    %5887 = vmatmul.bf16.gmra.mxu0 %v3267
    %v5888 = vpop.f32.mrf.mxu0
    %v5889 = vadd.f32 %v5876, %v5888
    %v5890 = vpop.f32.mrf.mxu0
    %5891 = vdwg.mxu0
    %5892 = vmatpush.bf16.msra.mxu0 %v5562
    %5893 = vmatpush.bf16.msra.mxu0 %v5555
    %5894 = vmatpush.bf16.msra.mxu0 %v5548
    %5895 = vmatpush.bf16.msra.mxu0 %v5541
    %5896 = vmatpush.bf16.msra.mxu0 %v5534
    %5897 = vmatpush.bf16.msra.mxu0 %v5527
    %5898 = vmatpush.bf16.msra.mxu0 %v5520
    %5899 = vmatpush.bf16.msra.mxu0 %v5513
    %5900 = vmatmul.bf16.gmra.mxu0 %v3268
    %v5901 = vpop.f32.mrf.mxu0
    %v5902 = vadd.f32 %v5889, %v5901
    %v5903 = vpop.f32.mrf.mxu0
    %5904 = vdwg.mxu0
    %5905 = vmatpush.bf16.msra.mxu0 %v5618
    %5906 = vmatpush.bf16.msra.mxu0 %v5611
    %5907 = vmatpush.bf16.msra.mxu0 %v5604
    %5908 = vmatpush.bf16.msra.mxu0 %v5597
    %5909 = vmatpush.bf16.msra.mxu0 %v5590
    %5910 = vmatpush.bf16.msra.mxu0 %v5583
    %5911 = vmatpush.bf16.msra.mxu0 %v5576
    %5912 = vmatpush.bf16.msra.mxu0 %v5569
    %5913 = vmatmul.bf16.gmra.mxu0 %v3269
    %v5914 = vpop.f32.mrf.mxu0
    %v5915 = vadd.f32 %v5902, %v5914
    %v5916 = vpop.f32.mrf.mxu0
    %5917 = vdwg.mxu0
    %5918 = vmatpush.bf16.msra.mxu0 %v5674
    %5919 = vmatpush.bf16.msra.mxu0 %v5667
    %5920 = vmatpush.bf16.msra.mxu0 %v5660
    %5921 = vmatpush.bf16.msra.mxu0 %v5653
    %5922 = vmatpush.bf16.msra.mxu0 %v5646
    %5923 = vmatpush.bf16.msra.mxu0 %v5639
    %5924 = vmatpush.bf16.msra.mxu0 %v5632
    %5925 = vmatpush.bf16.msra.mxu0 %v5625
    %5926 = vmatmul.bf16.gmra.mxu0 %v3270
    %v5927 = vpop.f32.mrf.mxu0
    %v5928 = vadd.f32 %v5915, %v5927
    %v5929 = vpop.f32.mrf.mxu0
    %5930 = vdwg.mxu0
    %5931 = vmatpush.bf16.msra.mxu0 %v5730
    %5932 = vmatpush.bf16.msra.mxu0 %v5723
    %5933 = vmatpush.bf16.msra.mxu0 %v5716
    %5934 = vmatpush.bf16.msra.mxu0 %v5709
    %5935 = vmatpush.bf16.msra.mxu0 %v5702
    %5936 = vmatpush.bf16.msra.mxu0 %v5695
    %5937 = vmatpush.bf16.msra.mxu0 %v5688
    %5938 = vmatpush.bf16.msra.mxu0 %v5681
    %5939 = vmatmul.bf16.gmra.mxu0 %v3271
    %v5940 = vpop.f32.mrf.mxu0
    %v5941 = vadd.f32 %v5928, %v5940
    %v5942 = vpop.f32.mrf.mxu0
    %5943 = vdwg.mxu0
    %5944 = vmatpush.bf16.msra.mxu0 %v5339
    %5945 = vmatpush.bf16.msra.mxu0 %v5332
    %5946 = vmatpush.bf16.msra.mxu0 %v5325
    %5947 = vmatpush.bf16.msra.mxu0 %v5318
    %5948 = vmatpush.bf16.msra.mxu0 %v5311
    %5949 = vmatpush.bf16.msra.mxu0 %v5304
    %5950 = vmatpush.bf16.msra.mxu0 %v5297
    %5951 = vmatpush.bf16.msra.mxu0 %v5290
    %5952 = vmatmul.bf16.gmra.mxu0 %v3264
    %v5953 = vpop.f32.mrf.mxu0
    %v5954 = vadd.f32 0.0, %v5953
    %v5955 = vpop.f32.mrf.mxu0
    %5956 = vdwg.mxu0
    %5957 = vmatpush.bf16.msra.mxu0 %v5395
    %5958 = vmatpush.bf16.msra.mxu0 %v5388
    %5959 = vmatpush.bf16.msra.mxu0 %v5381
    %5960 = vmatpush.bf16.msra.mxu0 %v5374
    %5961 = vmatpush.bf16.msra.mxu0 %v5367
    %5962 = vmatpush.bf16.msra.mxu0 %v5360
    %5963 = vmatpush.bf16.msra.mxu0 %v5353
    %5964 = vmatpush.bf16.msra.mxu0 %v5346
    %5965 = vmatmul.bf16.gmra.mxu0 %v3265
    %v5966 = vpop.f32.mrf.mxu0
    %v5967 = vadd.f32 %v5954, %v5966
    %v5968 = vpop.f32.mrf.mxu0
    %5969 = vdwg.mxu0
    %5970 = vmatpush.bf16.msra.mxu0 %v5451
    %5971 = vmatpush.bf16.msra.mxu0 %v5444
    %5972 = vmatpush.bf16.msra.mxu0 %v5437
    %5973 = vmatpush.bf16.msra.mxu0 %v5430
    %5974 = vmatpush.bf16.msra.mxu0 %v5423
    %5975 = vmatpush.bf16.msra.mxu0 %v5416
    %5976 = vmatpush.bf16.msra.mxu0 %v5409
    %5977 = vmatpush.bf16.msra.mxu0 %v5402
    %5978 = vmatmul.bf16.gmra.mxu0 %v3266
    %v5979 = vpop.f32.mrf.mxu0
    %v5980 = vadd.f32 %v5967, %v5979
    %v5981 = vpop.f32.mrf.mxu0
    %5982 = vdwg.mxu0
    %5983 = vmatpush.bf16.msra.mxu0 %v5507
    %5984 = vmatpush.bf16.msra.mxu0 %v5500
    %5985 = vmatpush.bf16.msra.mxu0 %v5493
    %5986 = vmatpush.bf16.msra.mxu0 %v5486
    %5987 = vmatpush.bf16.msra.mxu0 %v5479
    %5988 = vmatpush.bf16.msra.mxu0 %v5472
    %5989 = vmatpush.bf16.msra.mxu0 %v5465
    %5990 = vmatpush.bf16.msra.mxu0 %v5458
    %5991 = vmatmul.bf16.gmra.mxu0 %v3267
    %v5992 = vpop.f32.mrf.mxu0
    %v5993 = vadd.f32 %v5980, %v5992
    %v5994 = vpop.f32.mrf.mxu0
    %5995 = vdwg.mxu0
    %5996 = vmatpush.bf16.msra.mxu0 %v5563
    %5997 = vmatpush.bf16.msra.mxu0 %v5556
    %5998 = vmatpush.bf16.msra.mxu0 %v5549
    %5999 = vmatpush.bf16.msra.mxu0 %v5542
    %6000 = vmatpush.bf16.msra.mxu0 %v5535
    %6001 = vmatpush.bf16.msra.mxu0 %v5528
    %6002 = vmatpush.bf16.msra.mxu0 %v5521
    %6003 = vmatpush.bf16.msra.mxu0 %v5514
    %6004 = vmatmul.bf16.gmra.mxu0 %v3268
    %v6005 = vpop.f32.mrf.mxu0
    %v6006 = vadd.f32 %v5993, %v6005
    %v6007 = vpop.f32.mrf.mxu0
    %6008 = vdwg.mxu0
    %6009 = vmatpush.bf16.msra.mxu0 %v5619
    %6010 = vmatpush.bf16.msra.mxu0 %v5612
    %6011 = vmatpush.bf16.msra.mxu0 %v5605
    %6012 = vmatpush.bf16.msra.mxu0 %v5598
    %6013 = vmatpush.bf16.msra.mxu0 %v5591
    %6014 = vmatpush.bf16.msra.mxu0 %v5584
    %6015 = vmatpush.bf16.msra.mxu0 %v5577
    %6016 = vmatpush.bf16.msra.mxu0 %v5570
    %6017 = vmatmul.bf16.gmra.mxu0 %v3269
    %v6018 = vpop.f32.mrf.mxu0
    %v6019 = vadd.f32 %v6006, %v6018
    %v6020 = vpop.f32.mrf.mxu0
    %6021 = vdwg.mxu0
    %6022 = vmatpush.bf16.msra.mxu0 %v5675
    %6023 = vmatpush.bf16.msra.mxu0 %v5668
    %6024 = vmatpush.bf16.msra.mxu0 %v5661
    %6025 = vmatpush.bf16.msra.mxu0 %v5654
    %6026 = vmatpush.bf16.msra.mxu0 %v5647
    %6027 = vmatpush.bf16.msra.mxu0 %v5640
    %6028 = vmatpush.bf16.msra.mxu0 %v5633
    %6029 = vmatpush.bf16.msra.mxu0 %v5626
    %6030 = vmatmul.bf16.gmra.mxu0 %v3270
    %v6031 = vpop.f32.mrf.mxu0
    %v6032 = vadd.f32 %v6019, %v6031
    %v6033 = vpop.f32.mrf.mxu0
    %6034 = vdwg.mxu0
    %6035 = vmatpush.bf16.msra.mxu0 %v5731
    %6036 = vmatpush.bf16.msra.mxu0 %v5724
    %6037 = vmatpush.bf16.msra.mxu0 %v5717
    %6038 = vmatpush.bf16.msra.mxu0 %v5710
    %6039 = vmatpush.bf16.msra.mxu0 %v5703
    %6040 = vmatpush.bf16.msra.mxu0 %v5696
    %6041 = vmatpush.bf16.msra.mxu0 %v5689
    %6042 = vmatpush.bf16.msra.mxu0 %v5682
    %6043 = vmatmul.bf16.gmra.mxu0 %v3271
    %v6044 = vpop.f32.mrf.mxu0
    %v6045 = vadd.f32 %v6032, %v6044
    %v6046 = vpop.f32.mrf.mxu0
    %6047 = vdwg.mxu0
    %6048 = vmatpush.bf16.msra.mxu0 %v5340
    %6049 = vmatpush.bf16.msra.mxu0 %v5333
    %6050 = vmatpush.bf16.msra.mxu0 %v5326
    %6051 = vmatpush.bf16.msra.mxu0 %v5319
    %6052 = vmatpush.bf16.msra.mxu0 %v5312
    %6053 = vmatpush.bf16.msra.mxu0 %v5305
    %6054 = vmatpush.bf16.msra.mxu0 %v5298
    %6055 = vmatpush.bf16.msra.mxu0 %v5291
    %6056 = vmatmul.bf16.gmra.mxu0 %v3264
    %v6057 = vpop.f32.mrf.mxu0
    %v6058 = vadd.f32 0.0, %v6057
    %v6059 = vpop.f32.mrf.mxu0
    %6060 = vdwg.mxu0
    %6061 = vmatpush.bf16.msra.mxu0 %v5396
    %6062 = vmatpush.bf16.msra.mxu0 %v5389
    %6063 = vmatpush.bf16.msra.mxu0 %v5382
    %6064 = vmatpush.bf16.msra.mxu0 %v5375
    %6065 = vmatpush.bf16.msra.mxu0 %v5368
    %6066 = vmatpush.bf16.msra.mxu0 %v5361
    %6067 = vmatpush.bf16.msra.mxu0 %v5354
    %6068 = vmatpush.bf16.msra.mxu0 %v5347
    %6069 = vmatmul.bf16.gmra.mxu0 %v3265
    %v6070 = vpop.f32.mrf.mxu0
    %v6071 = vadd.f32 %v6058, %v6070
    %v6072 = vpop.f32.mrf.mxu0
    %6073 = vdwg.mxu0
    %6074 = vmatpush.bf16.msra.mxu0 %v5452
    %6075 = vmatpush.bf16.msra.mxu0 %v5445
    %6076 = vmatpush.bf16.msra.mxu0 %v5438
    %6077 = vmatpush.bf16.msra.mxu0 %v5431
    %6078 = vmatpush.bf16.msra.mxu0 %v5424
    %6079 = vmatpush.bf16.msra.mxu0 %v5417
    %6080 = vmatpush.bf16.msra.mxu0 %v5410
    %6081 = vmatpush.bf16.msra.mxu0 %v5403
    %6082 = vmatmul.bf16.gmra.mxu0 %v3266
    %v6083 = vpop.f32.mrf.mxu0
    %v6084 = vadd.f32 %v6071, %v6083
    %v6085 = vpop.f32.mrf.mxu0
    %6086 = vdwg.mxu0
    %6087 = vmatpush.bf16.msra.mxu0 %v5508
    %6088 = vmatpush.bf16.msra.mxu0 %v5501
    %6089 = vmatpush.bf16.msra.mxu0 %v5494
    %6090 = vmatpush.bf16.msra.mxu0 %v5487
    %6091 = vmatpush.bf16.msra.mxu0 %v5480
    %6092 = vmatpush.bf16.msra.mxu0 %v5473
    %6093 = vmatpush.bf16.msra.mxu0 %v5466
    %6094 = vmatpush.bf16.msra.mxu0 %v5459
    %6095 = vmatmul.bf16.gmra.mxu0 %v3267
    %v6096 = vpop.f32.mrf.mxu0
    %v6097 = vadd.f32 %v6084, %v6096
    %v6098 = vpop.f32.mrf.mxu0
    %6099 = vdwg.mxu0
    %6100 = vmatpush.bf16.msra.mxu0 %v5564
    %6101 = vmatpush.bf16.msra.mxu0 %v5557
    %6102 = vmatpush.bf16.msra.mxu0 %v5550
    %6103 = vmatpush.bf16.msra.mxu0 %v5543
    %6104 = vmatpush.bf16.msra.mxu0 %v5536
    %6105 = vmatpush.bf16.msra.mxu0 %v5529
    %6106 = vmatpush.bf16.msra.mxu0 %v5522
    %6107 = vmatpush.bf16.msra.mxu0 %v5515
    %6108 = vmatmul.bf16.gmra.mxu0 %v3268
    %v6109 = vpop.f32.mrf.mxu0
    %v6110 = vadd.f32 %v6097, %v6109
    %v6111 = vpop.f32.mrf.mxu0
    %6112 = vdwg.mxu0
    %6113 = vmatpush.bf16.msra.mxu0 %v5620
    %6114 = vmatpush.bf16.msra.mxu0 %v5613
    %6115 = vmatpush.bf16.msra.mxu0 %v5606
    %6116 = vmatpush.bf16.msra.mxu0 %v5599
    %6117 = vmatpush.bf16.msra.mxu0 %v5592
    %6118 = vmatpush.bf16.msra.mxu0 %v5585
    %6119 = vmatpush.bf16.msra.mxu0 %v5578
    %6120 = vmatpush.bf16.msra.mxu0 %v5571
    %6121 = vmatmul.bf16.gmra.mxu0 %v3269
    %v6122 = vpop.f32.mrf.mxu0
    %v6123 = vadd.f32 %v6110, %v6122
    %v6124 = vpop.f32.mrf.mxu0
    %6125 = vdwg.mxu0
    %6126 = vmatpush.bf16.msra.mxu0 %v5676
    %6127 = vmatpush.bf16.msra.mxu0 %v5669
    %6128 = vmatpush.bf16.msra.mxu0 %v5662
    %6129 = vmatpush.bf16.msra.mxu0 %v5655
    %6130 = vmatpush.bf16.msra.mxu0 %v5648
    %6131 = vmatpush.bf16.msra.mxu0 %v5641
    %6132 = vmatpush.bf16.msra.mxu0 %v5634
    %6133 = vmatpush.bf16.msra.mxu0 %v5627
    %6134 = vmatmul.bf16.gmra.mxu0 %v3270
    %v6135 = vpop.f32.mrf.mxu0
    %v6136 = vadd.f32 %v6123, %v6135
    %v6137 = vpop.f32.mrf.mxu0
    %6138 = vdwg.mxu0
    %6139 = vmatpush.bf16.msra.mxu0 %v5732
    %6140 = vmatpush.bf16.msra.mxu0 %v5725
    %6141 = vmatpush.bf16.msra.mxu0 %v5718
    %6142 = vmatpush.bf16.msra.mxu0 %v5711
    %6143 = vmatpush.bf16.msra.mxu0 %v5704
    %6144 = vmatpush.bf16.msra.mxu0 %v5697
    %6145 = vmatpush.bf16.msra.mxu0 %v5690
    %6146 = vmatpush.bf16.msra.mxu0 %v5683
    %6147 = vmatmul.bf16.gmra.mxu0 %v3271
    %v6148 = vpop.f32.mrf.mxu0
    %v6149 = vadd.f32 %v6136, %v6148
    %v6150 = vpop.f32.mrf.mxu0
    %6151 = vdwg.mxu0
    %6152 = vmatpush.bf16.msra.mxu0 %v5341
    %6153 = vmatpush.bf16.msra.mxu0 %v5334
    %6154 = vmatpush.bf16.msra.mxu0 %v5327
    %6155 = vmatpush.bf16.msra.mxu0 %v5320
    %6156 = vmatpush.bf16.msra.mxu0 %v5313
    %6157 = vmatpush.bf16.msra.mxu0 %v5306
    %6158 = vmatpush.bf16.msra.mxu0 %v5299
    %6159 = vmatpush.bf16.msra.mxu0 %v5292
    %6160 = vmatmul.bf16.gmra.mxu0 %v3264
    %v6161 = vpop.f32.mrf.mxu0
    %v6162 = vadd.f32 0.0, %v6161
    %v6163 = vpop.f32.mrf.mxu0
    %6164 = vdwg.mxu0
    %6165 = vmatpush.bf16.msra.mxu0 %v5397
    %6166 = vmatpush.bf16.msra.mxu0 %v5390
    %6167 = vmatpush.bf16.msra.mxu0 %v5383
    %6168 = vmatpush.bf16.msra.mxu0 %v5376
    %6169 = vmatpush.bf16.msra.mxu0 %v5369
    %6170 = vmatpush.bf16.msra.mxu0 %v5362
    %6171 = vmatpush.bf16.msra.mxu0 %v5355
    %6172 = vmatpush.bf16.msra.mxu0 %v5348
    %6173 = vmatmul.bf16.gmra.mxu0 %v3265
    %v6174 = vpop.f32.mrf.mxu0
    %v6175 = vadd.f32 %v6162, %v6174
    %v6176 = vpop.f32.mrf.mxu0
    %6177 = vdwg.mxu0
    %6178 = vmatpush.bf16.msra.mxu0 %v5453
    %6179 = vmatpush.bf16.msra.mxu0 %v5446
    %6180 = vmatpush.bf16.msra.mxu0 %v5439
    %6181 = vmatpush.bf16.msra.mxu0 %v5432
    %6182 = vmatpush.bf16.msra.mxu0 %v5425
    %6183 = vmatpush.bf16.msra.mxu0 %v5418
    %6184 = vmatpush.bf16.msra.mxu0 %v5411
    %6185 = vmatpush.bf16.msra.mxu0 %v5404
    %6186 = vmatmul.bf16.gmra.mxu0 %v3266
    %v6187 = vpop.f32.mrf.mxu0
    %v6188 = vadd.f32 %v6175, %v6187
    %v6189 = vpop.f32.mrf.mxu0
    %6190 = vdwg.mxu0
    %6191 = vmatpush.bf16.msra.mxu0 %v5509
    %6192 = vmatpush.bf16.msra.mxu0 %v5502
    %6193 = vmatpush.bf16.msra.mxu0 %v5495
    %6194 = vmatpush.bf16.msra.mxu0 %v5488
    %6195 = vmatpush.bf16.msra.mxu0 %v5481
    %6196 = vmatpush.bf16.msra.mxu0 %v5474
    %6197 = vmatpush.bf16.msra.mxu0 %v5467
    %6198 = vmatpush.bf16.msra.mxu0 %v5460
    %6199 = vmatmul.bf16.gmra.mxu0 %v3267
    %v6200 = vpop.f32.mrf.mxu0
    %v6201 = vadd.f32 %v6188, %v6200
    %v6202 = vpop.f32.mrf.mxu0
    %6203 = vdwg.mxu0
    %6204 = vmatpush.bf16.msra.mxu0 %v5565
    %6205 = vmatpush.bf16.msra.mxu0 %v5558
    %6206 = vmatpush.bf16.msra.mxu0 %v5551
    %6207 = vmatpush.bf16.msra.mxu0 %v5544
    %6208 = vmatpush.bf16.msra.mxu0 %v5537
    %6209 = vmatpush.bf16.msra.mxu0 %v5530
    %6210 = vmatpush.bf16.msra.mxu0 %v5523
    %6211 = vmatpush.bf16.msra.mxu0 %v5516
    %6212 = vmatmul.bf16.gmra.mxu0 %v3268
    %v6213 = vpop.f32.mrf.mxu0
    %v6214 = vadd.f32 %v6201, %v6213
    %v6215 = vpop.f32.mrf.mxu0
    %6216 = vdwg.mxu0
    %6217 = vmatpush.bf16.msra.mxu0 %v5621
    %6218 = vmatpush.bf16.msra.mxu0 %v5614
    %6219 = vmatpush.bf16.msra.mxu0 %v5607
    %6220 = vmatpush.bf16.msra.mxu0 %v5600
    %6221 = vmatpush.bf16.msra.mxu0 %v5593
    %6222 = vmatpush.bf16.msra.mxu0 %v5586
    %6223 = vmatpush.bf16.msra.mxu0 %v5579
    %6224 = vmatpush.bf16.msra.mxu0 %v5572
    %6225 = vmatmul.bf16.gmra.mxu0 %v3269
    %v6226 = vpop.f32.mrf.mxu0
    %v6227 = vadd.f32 %v6214, %v6226
    %v6228 = vpop.f32.mrf.mxu0
    %6229 = vdwg.mxu0
    %6230 = vmatpush.bf16.msra.mxu0 %v5677
    %6231 = vmatpush.bf16.msra.mxu0 %v5670
    %6232 = vmatpush.bf16.msra.mxu0 %v5663
    %6233 = vmatpush.bf16.msra.mxu0 %v5656
    %6234 = vmatpush.bf16.msra.mxu0 %v5649
    %6235 = vmatpush.bf16.msra.mxu0 %v5642
    %6236 = vmatpush.bf16.msra.mxu0 %v5635
    %6237 = vmatpush.bf16.msra.mxu0 %v5628
    %6238 = vmatmul.bf16.gmra.mxu0 %v3270
    %v6239 = vpop.f32.mrf.mxu0
    %v6240 = vadd.f32 %v6227, %v6239
    %v6241 = vpop.f32.mrf.mxu0
    %6242 = vdwg.mxu0
    %6243 = vmatpush.bf16.msra.mxu0 %v5733
    %6244 = vmatpush.bf16.msra.mxu0 %v5726
    %6245 = vmatpush.bf16.msra.mxu0 %v5719
    %6246 = vmatpush.bf16.msra.mxu0 %v5712
    %6247 = vmatpush.bf16.msra.mxu0 %v5705
    %6248 = vmatpush.bf16.msra.mxu0 %v5698
    %6249 = vmatpush.bf16.msra.mxu0 %v5691
    %6250 = vmatpush.bf16.msra.mxu0 %v5684
    %6251 = vmatmul.bf16.gmra.mxu0 %v3271
    %v6252 = vpop.f32.mrf.mxu0
    %v6253 = vadd.f32 %v6240, %v6252
    %v6254 = vpop.f32.mrf.mxu0
    %6255 = vdwg.mxu0
    %6256 = vmatpush.bf16.msra.mxu0 %v5342
    %6257 = vmatpush.bf16.msra.mxu0 %v5335
    %6258 = vmatpush.bf16.msra.mxu0 %v5328
    %6259 = vmatpush.bf16.msra.mxu0 %v5321
    %6260 = vmatpush.bf16.msra.mxu0 %v5314
    %6261 = vmatpush.bf16.msra.mxu0 %v5307
    %6262 = vmatpush.bf16.msra.mxu0 %v5300
    %6263 = vmatpush.bf16.msra.mxu0 %v5293
    %6264 = vmatmul.bf16.gmra.mxu0 %v3264
    %v6265 = vpop.f32.mrf.mxu0
    %v6266 = vadd.f32 0.0, %v6265
    %v6267 = vpop.f32.mrf.mxu0
    %6268 = vdwg.mxu0
    %6269 = vmatpush.bf16.msra.mxu0 %v5398
    %6270 = vmatpush.bf16.msra.mxu0 %v5391
    %6271 = vmatpush.bf16.msra.mxu0 %v5384
    %6272 = vmatpush.bf16.msra.mxu0 %v5377
    %6273 = vmatpush.bf16.msra.mxu0 %v5370
    %6274 = vmatpush.bf16.msra.mxu0 %v5363
    %6275 = vmatpush.bf16.msra.mxu0 %v5356
    %6276 = vmatpush.bf16.msra.mxu0 %v5349
    %6277 = vmatmul.bf16.gmra.mxu0 %v3265
    %v6278 = vpop.f32.mrf.mxu0
    %v6279 = vadd.f32 %v6266, %v6278
    %v6280 = vpop.f32.mrf.mxu0
    %6281 = vdwg.mxu0
    %6282 = vmatpush.bf16.msra.mxu0 %v5454
    %6283 = vmatpush.bf16.msra.mxu0 %v5447
    %6284 = vmatpush.bf16.msra.mxu0 %v5440
    %6285 = vmatpush.bf16.msra.mxu0 %v5433
    %6286 = vmatpush.bf16.msra.mxu0 %v5426
    %6287 = vmatpush.bf16.msra.mxu0 %v5419
    %6288 = vmatpush.bf16.msra.mxu0 %v5412
    %6289 = vmatpush.bf16.msra.mxu0 %v5405
    %6290 = vmatmul.bf16.gmra.mxu0 %v3266
    %v6291 = vpop.f32.mrf.mxu0
    %v6292 = vadd.f32 %v6279, %v6291
    %v6293 = vpop.f32.mrf.mxu0
    %6294 = vdwg.mxu0
    %6295 = vmatpush.bf16.msra.mxu0 %v5510
    %6296 = vmatpush.bf16.msra.mxu0 %v5503
    %6297 = vmatpush.bf16.msra.mxu0 %v5496
    %6298 = vmatpush.bf16.msra.mxu0 %v5489
    %6299 = vmatpush.bf16.msra.mxu0 %v5482
    %6300 = vmatpush.bf16.msra.mxu0 %v5475
    %6301 = vmatpush.bf16.msra.mxu0 %v5468
    %6302 = vmatpush.bf16.msra.mxu0 %v5461
    %6303 = vmatmul.bf16.gmra.mxu0 %v3267
    %v6304 = vpop.f32.mrf.mxu0
    %v6305 = vadd.f32 %v6292, %v6304
    %v6306 = vpop.f32.mrf.mxu0
    %6307 = vdwg.mxu0
    %6308 = vmatpush.bf16.msra.mxu0 %v5566
    %6309 = vmatpush.bf16.msra.mxu0 %v5559
    %6310 = vmatpush.bf16.msra.mxu0 %v5552
    %6311 = vmatpush.bf16.msra.mxu0 %v5545
    %6312 = vmatpush.bf16.msra.mxu0 %v5538
    %6313 = vmatpush.bf16.msra.mxu0 %v5531
    %6314 = vmatpush.bf16.msra.mxu0 %v5524
    %6315 = vmatpush.bf16.msra.mxu0 %v5517
    %6316 = vmatmul.bf16.gmra.mxu0 %v3268
    %v6317 = vpop.f32.mrf.mxu0
    %v6318 = vadd.f32 %v6305, %v6317
    %v6319 = vpop.f32.mrf.mxu0
    %6320 = vdwg.mxu0
    %6321 = vmatpush.bf16.msra.mxu0 %v5622
    %6322 = vmatpush.bf16.msra.mxu0 %v5615
    %6323 = vmatpush.bf16.msra.mxu0 %v5608
    %6324 = vmatpush.bf16.msra.mxu0 %v5601
    %6325 = vmatpush.bf16.msra.mxu0 %v5594
    %6326 = vmatpush.bf16.msra.mxu0 %v5587
    %6327 = vmatpush.bf16.msra.mxu0 %v5580
    %6328 = vmatpush.bf16.msra.mxu0 %v5573
    %6329 = vmatmul.bf16.gmra.mxu0 %v3269
    %v6330 = vpop.f32.mrf.mxu0
    %v6331 = vadd.f32 %v6318, %v6330
    %v6332 = vpop.f32.mrf.mxu0
    %6333 = vdwg.mxu0
    %6334 = vmatpush.bf16.msra.mxu0 %v5678
    %6335 = vmatpush.bf16.msra.mxu0 %v5671
    %6336 = vmatpush.bf16.msra.mxu0 %v5664
    %6337 = vmatpush.bf16.msra.mxu0 %v5657
    %6338 = vmatpush.bf16.msra.mxu0 %v5650
    %6339 = vmatpush.bf16.msra.mxu0 %v5643
    %6340 = vmatpush.bf16.msra.mxu0 %v5636
    %6341 = vmatpush.bf16.msra.mxu0 %v5629
    %6342 = vmatmul.bf16.gmra.mxu0 %v3270
    %v6343 = vpop.f32.mrf.mxu0
    %v6344 = vadd.f32 %v6331, %v6343
    %v6345 = vpop.f32.mrf.mxu0
    %6346 = vdwg.mxu0
    %6347 = vmatpush.bf16.msra.mxu0 %v5734
    %6348 = vmatpush.bf16.msra.mxu0 %v5727
    %6349 = vmatpush.bf16.msra.mxu0 %v5720
    %6350 = vmatpush.bf16.msra.mxu0 %v5713
    %6351 = vmatpush.bf16.msra.mxu0 %v5706
    %6352 = vmatpush.bf16.msra.mxu0 %v5699
    %6353 = vmatpush.bf16.msra.mxu0 %v5692
    %6354 = vmatpush.bf16.msra.mxu0 %v5685
    %6355 = vmatmul.bf16.gmra.mxu0 %v3271
    %v6356 = vpop.f32.mrf.mxu0
    %v6357 = vadd.f32 %v6344, %v6356
    %v6358 = vpop.f32.mrf.mxu0
    %6359 = vdwg.mxu0
    %6360 = vmatpush.bf16.msra.mxu0 %v5343
    %6361 = vmatpush.bf16.msra.mxu0 %v5336
    %6362 = vmatpush.bf16.msra.mxu0 %v5329
    %6363 = vmatpush.bf16.msra.mxu0 %v5322
    %6364 = vmatpush.bf16.msra.mxu0 %v5315
    %6365 = vmatpush.bf16.msra.mxu0 %v5308
    %6366 = vmatpush.bf16.msra.mxu0 %v5301
    %6367 = vmatpush.bf16.msra.mxu0 %v5294
    %6368 = vmatmul.bf16.gmra.mxu0 %v3264
    %v6369 = vpop.f32.mrf.mxu0
    %v6370 = vadd.f32 0.0, %v6369
    %v6371 = vpop.f32.mrf.mxu0
    %6372 = vdwg.mxu0
    %6373 = vmatpush.bf16.msra.mxu0 %v5399
    %6374 = vmatpush.bf16.msra.mxu0 %v5392
    %6375 = vmatpush.bf16.msra.mxu0 %v5385
    %6376 = vmatpush.bf16.msra.mxu0 %v5378
    %6377 = vmatpush.bf16.msra.mxu0 %v5371
    %6378 = vmatpush.bf16.msra.mxu0 %v5364
    %6379 = vmatpush.bf16.msra.mxu0 %v5357
    %6380 = vmatpush.bf16.msra.mxu0 %v5350
    %6381 = vmatmul.bf16.gmra.mxu0 %v3265
    %v6382 = vpop.f32.mrf.mxu0
    %v6383 = vadd.f32 %v6370, %v6382
    %v6384 = vpop.f32.mrf.mxu0
    %6385 = vdwg.mxu0
    %6386 = vmatpush.bf16.msra.mxu0 %v5455
    %6387 = vmatpush.bf16.msra.mxu0 %v5448
    %6388 = vmatpush.bf16.msra.mxu0 %v5441
    %6389 = vmatpush.bf16.msra.mxu0 %v5434
    %6390 = vmatpush.bf16.msra.mxu0 %v5427
    %6391 = vmatpush.bf16.msra.mxu0 %v5420
    %6392 = vmatpush.bf16.msra.mxu0 %v5413
    %6393 = vmatpush.bf16.msra.mxu0 %v5406
    %6394 = vmatmul.bf16.gmra.mxu0 %v3266
    %v6395 = vpop.f32.mrf.mxu0
    %v6396 = vadd.f32 %v6383, %v6395
    %v6397 = vpop.f32.mrf.mxu0
    %6398 = vdwg.mxu0
    %6399 = vmatpush.bf16.msra.mxu0 %v5511
    %6400 = vmatpush.bf16.msra.mxu0 %v5504
    %6401 = vmatpush.bf16.msra.mxu0 %v5497
    %6402 = vmatpush.bf16.msra.mxu0 %v5490
    %6403 = vmatpush.bf16.msra.mxu0 %v5483
    %6404 = vmatpush.bf16.msra.mxu0 %v5476
    %6405 = vmatpush.bf16.msra.mxu0 %v5469
    %6406 = vmatpush.bf16.msra.mxu0 %v5462
    %6407 = vmatmul.bf16.gmra.mxu0 %v3267
    %v6408 = vpop.f32.mrf.mxu0
    %v6409 = vadd.f32 %v6396, %v6408
    %v6410 = vpop.f32.mrf.mxu0
    %6411 = vdwg.mxu0
    %6412 = vmatpush.bf16.msra.mxu0 %v5567
    %6413 = vmatpush.bf16.msra.mxu0 %v5560
    %6414 = vmatpush.bf16.msra.mxu0 %v5553
    %6415 = vmatpush.bf16.msra.mxu0 %v5546
    %6416 = vmatpush.bf16.msra.mxu0 %v5539
    %6417 = vmatpush.bf16.msra.mxu0 %v5532
    %6418 = vmatpush.bf16.msra.mxu0 %v5525
    %6419 = vmatpush.bf16.msra.mxu0 %v5518
    %6420 = vmatmul.bf16.gmra.mxu0 %v3268
    %v6421 = vpop.f32.mrf.mxu0
    %v6422 = vadd.f32 %v6409, %v6421
    %v6423 = vpop.f32.mrf.mxu0
    %6424 = vdwg.mxu0
    %6425 = vmatpush.bf16.msra.mxu0 %v5623
    %6426 = vmatpush.bf16.msra.mxu0 %v5616
    %6427 = vmatpush.bf16.msra.mxu0 %v5609
    %6428 = vmatpush.bf16.msra.mxu0 %v5602
    %6429 = vmatpush.bf16.msra.mxu0 %v5595
    %6430 = vmatpush.bf16.msra.mxu0 %v5588
    %6431 = vmatpush.bf16.msra.mxu0 %v5581
    %6432 = vmatpush.bf16.msra.mxu0 %v5574
    %6433 = vmatmul.bf16.gmra.mxu0 %v3269
    %v6434 = vpop.f32.mrf.mxu0
    %v6435 = vadd.f32 %v6422, %v6434
    %v6436 = vpop.f32.mrf.mxu0
    %6437 = vdwg.mxu0
    %6438 = vmatpush.bf16.msra.mxu0 %v5679
    %6439 = vmatpush.bf16.msra.mxu0 %v5672
    %6440 = vmatpush.bf16.msra.mxu0 %v5665
    %6441 = vmatpush.bf16.msra.mxu0 %v5658
    %6442 = vmatpush.bf16.msra.mxu0 %v5651
    %6443 = vmatpush.bf16.msra.mxu0 %v5644
    %6444 = vmatpush.bf16.msra.mxu0 %v5637
    %6445 = vmatpush.bf16.msra.mxu0 %v5630
    %6446 = vmatmul.bf16.gmra.mxu0 %v3270
    %v6447 = vpop.f32.mrf.mxu0
    %v6448 = vadd.f32 %v6435, %v6447
    %v6449 = vpop.f32.mrf.mxu0
    %6450 = vdwg.mxu0
    %6451 = vmatpush.bf16.msra.mxu0 %v5735
    %6452 = vmatpush.bf16.msra.mxu0 %v5728
    %6453 = vmatpush.bf16.msra.mxu0 %v5721
    %6454 = vmatpush.bf16.msra.mxu0 %v5714
    %6455 = vmatpush.bf16.msra.mxu0 %v5707
    %6456 = vmatpush.bf16.msra.mxu0 %v5700
    %6457 = vmatpush.bf16.msra.mxu0 %v5693
    %6458 = vmatpush.bf16.msra.mxu0 %v5686
    %6459 = vmatmul.bf16.gmra.mxu0 %v3271
    %v6460 = vpop.f32.mrf.mxu0
    %v6461 = vadd.f32 %v6448, %v6460
    %v6462 = vpop.f32.mrf.mxu0
    %6463 = vdwg.mxu0
    %v6464 = vld [vmem:[#allocation11] ss:$2 sm:$0xff]
    %v6466 = vperm.slane %v6464, 0
    %v6467 = vperm.slane %v6464, 1
    %v6468 = vperm.slane %v6464, 2
    %v6469 = vperm.slane %v6464, 3
    %v6470 = vperm.slane %v6464, 4
    %v6471 = vperm.slane %v6464, 5
    %v6472 = vperm.slane %v6464, 6
    %v6480 = vmul.f32 %v5837, %v6466
    %v6481 = vmul.f32 %v5941, %v6467
    %v6482 = vmul.f32 %v6045, %v6468
    %v6483 = vmul.f32 %v6149, %v6469
    %v6484 = vmul.f32 %v6253, %v6470
    %v6485 = vmul.f32 %v6357, %v6471
    %v6486 = vmul.f32 %v6461, %v6472
    %s6487 = scalar_lea.vmem [#allocation11], 1
    %v6488 = vld [vmem:[%s6487] ss:$2 sm:$0xff]
    %v6490 = vperm.slane %v6488, 0
    %v6491 = vperm.slane %v6488, 1
    %v6492 = vperm.slane %v6488, 2
    %v6493 = vperm.slane %v6488, 3
    %v6494 = vperm.slane %v6488, 4
    %v6495 = vperm.slane %v6488, 5
    %v6496 = vperm.slane %v6488, 6
    %v6504 = vadd.f32 %v6480, %v6490
    %v6505 = vadd.f32 %v6481, %v6491
    %v6506 = vadd.f32 %v6482, %v6492
    %v6507 = vadd.f32 %v6483, %v6493
    %v6508 = vadd.f32 %v6484, %v6494
    %v6509 = vadd.f32 %v6485, %v6495
    %v6510 = vadd.f32 %v6486, %v6496
    %v6511 = vtanh.pop %v6504
    %v6512 = vtanh.pop %v6505
    %v6513 = vtanh.pop %v6506
    %v6514 = vtanh.pop %v6507
    %v6515 = vtanh.pop %v6508
    %v6516 = vtanh.pop %v6509
    %v6517 = vtanh.pop %v6510
    %6518 = vst [vmem:[#allocation13] sm:$0xff] %v6511
    %6519 = vst [vmem:[#allocation13 + $0x8] sm:$0xff] %v6512
    %6520 = vst [vmem:[#allocation13 + $0x10] sm:$0xff] %v6513
    %6521 = vst [vmem:[#allocation13 + $0x18] sm:$0xff] %v6514
    %6522 = vst [vmem:[#allocation13 + $0x20] sm:$0xff] %v6515
    %6523 = vst [vmem:[#allocation13 + $0x28] sm:$0xff] %v6516
    %6524 = vst [vmem:[#allocation13 + $0x30] sm:$0xff] %v6517
    // Predicated region
    $region54: #{generator_forward.1} parent=1 // pred_check
      _
    $region55: #{generator_forward.1} parent=1 // pred_check_branch
      %6526 = sbr.rel (0) target = $region57
    $region56: #{generator_forward.1} parent=1 // pred_region
      %6528 = vsyncadd [#allocation7], 0
      %s6530 = sshll.u32 [#allocation13], 4
      %s6531 = int_to_ptr.vmem [resolvable:$true] %s6530
      %s6532 = sshll.u32 %s9, 4
      %s6533 = int_to_ptr.hbm [resolvable:$true] %s6532
      %6535 = dma.vmem_to_hbm [thread:$0]  %s6531, 896, %s6533, [#allocation7]
    $region57: #{generator_forward.1} parent=1 // pred_fallthru
      _
    // Predicated region
    $region58: #{generator_forward.1} parent=1 // pred_check
      _
    $region59: #{generator_forward.1} parent=1 // pred_check_branch
      %6537 = sbr.rel (0) target = $region61
    $region60: #{generator_forward.1} parent=1 // pred_region
      %6539 = dma.done [#allocation7], 896
    $region61: #{generator_forward.1} parent=1 // pred_fallthru
      _
    %6540 = vsyncpa [#allocation6], 1
    %6541 = vsyncpa [#allocation9], 1
    %6542 = vsyncpa [#allocation12], 1
    %6543 = vsyncpa [#allocation7], 1
  %6544 = vsyncmov [#allocation4]
  %s6545 = vpop.sfrf %6544
  %p6546 = scmp.eq.s32.totalorder %s6545, 0
  %p6547 = pneg %p6546
  %6549 = shalt.err (%p6547)
  %s6550 = scalar_lea.sflag [#allocation4], 1
  %6551 = vsyncmov %s6550
  %s6552 = vpop.sfrf %6551
  %p6553 = scmp.eq.s32.totalorder %s6552, 0
  %p6554 = pneg %p6553
  %6556 = shalt.err (%p6554)

</llo_original>
